<compile_context>
chip_gen: v7x
topology: tpu7x:2x2x1
jax: 0.10.0
libtpu: 0.0.40
codegen_flags: <defaults>
</compile_context>

<pallas_src>
import numpy as np
import jax
import jax.numpy as jnp
from jax.experimental import pallas as pl
from jax.experimental.pallas import tpu as pltpu

HIDDEN = 40
N_HIDDEN_LAYERS = 3


def neural_ode_kernel(t_ref, y0_ref, w1_ref, b1_ref, wh_ref, bh_ref,
                      wo_ref, bo_ref, out_ref):
    T = out_ref.shape[0]

    # Hoist all weight/bias loads out of the integration loop (loaded once,
    # kept live in registers across all 4*(T-1) MLP evaluations).
    w1 = w1_ref[...]
    b1 = b1_ref[...]
    wh = [wh_ref[l] for l in range(N_HIDDEN_LAYERS)]
    bh = [bh_ref[l] for l in range(N_HIDDEN_LAYERS)]
    wo = wo_ref[...]
    bo = bo_ref[...]

    def f(z):
        """MLP f(t, y) = net(y); z is (1, D)."""
        h = jnp.tanh(jnp.dot(z, w1, preferred_element_type=jnp.float32) + b1)
        for l in range(N_HIDDEN_LAYERS):
            h = jnp.tanh(jnp.dot(h, wh[l], preferred_element_type=jnp.float32) + bh[l])
        return jnp.dot(h, wo, preferred_element_type=jnp.float32) + bo

    # Running state lives in vregs (no VMEM scratch round trips).
    y = y0_ref[...]                           # (1, D)
    out_ref[pl.ds(0, 1), :] = y               # record y(t[0])

    # Statically unrolled time loop (T is known at trace time).
    for i in range(T - 1):
        dt = t_ref[i + 1] - t_ref[i]          # SMEM scalar reads
        k1 = f(y)
        k2 = f(y + 0.5 * dt * k1)
        k3 = f(y + 0.5 * dt * k2)
        k4 = f(y + dt * k3)
        y = y + (dt / 6.0) * (k1 + 2.0 * k2 + 2.0 * k3 + k4)
        out_ref[pl.ds(i + 1, 1), :] = y       # VMEM-only store; single HBM writeback at end


def neural_ode(y0, t, params):
    """odeint(MLP, y0, t) -> (T, D) trajectory."""
    w1, b1, wh, bh, wo, bo = params
    D = y0.shape[-1]
    T = t.shape[0]
    H = w1.shape[1]
    y0_row = y0.reshape(1, D).astype(jnp.float32)

    # Advisory cost estimate for XLA's scheduler around this custom call.
    flops_per_f = 2 * (D * H + N_HIDDEN_LAYERS * H * H + H * D)
    cost = pl.CostEstimate(
        flops=int(4 * (T - 1) * flops_per_f),
        transcendentals=int(4 * (T - 1) * (N_HIDDEN_LAYERS + 1) * H),
        bytes_accessed=int(4 * (w1.size + b1.size + wh.size + bh.size
                                + wo.size + bo.size + T + D + T * D)),
    )

    def vmem_spec():
        return pl.BlockSpec(memory_space=pltpu.MemorySpace.VMEM)

    out = pl.pallas_call(
        neural_ode_kernel,
        out_shape=jax.ShapeDtypeStruct((T, D), jnp.float32),
        in_specs=[
            pl.BlockSpec(memory_space=pltpu.MemorySpace.SMEM),  # t   (T,) scalars
            vmem_spec(),                                        # y0  (1, D)
            vmem_spec(),                                        # W1  (D, H)
            vmem_spec(),                                        # b1  (1, H)
            vmem_spec(),                                        # Wh  (L, H, H)
            vmem_spec(),                                        # bh  (L, 1, H)
            vmem_spec(),                                        # Wo  (H, D)
            vmem_spec(),                                        # bo  (1, D)
        ],
        out_specs=vmem_spec(),                                  # trajectory (T, D)
        cost_estimate=cost,
    )(t.astype(jnp.float32), y0_row, w1, b1, wh, bh, wo, bo)
    return out


def init_params(key, layer_len):
    """Deterministic PyTorch-default (U[-1/sqrt(fan_in), 1/sqrt(fan_in)]) init."""
    keys = jax.random.split(key, 10)

    def lin(kw, kb, fan_in, fan_out):
        bound = 1.0 / np.sqrt(fan_in)
        w = jax.random.uniform(kw, (fan_in, fan_out), jnp.float32, -bound, bound)
        b = jax.random.uniform(kb, (1, fan_out), jnp.float32, -bound, bound)
        return w, b

    w1, b1 = lin(keys[0], keys[1], layer_len, HIDDEN)
    whs, bhs = [], []
    for l in range(N_HIDDEN_LAYERS):
        w, b = lin(keys[2 + 2 * l], keys[3 + 2 * l], HIDDEN, HIDDEN)
        whs.append(w)
        bhs.append(b)
    wh = jnp.stack(whs)
    bh = jnp.stack(bhs)
    wo, bo = lin(keys[8], keys[9], HIDDEN, layer_len)
    return w1, b1, wh, bh, wo, bo


def reference(y0, t, params):
    """Pure-JAX fixed-step RK4 reference for verification."""
    w1, b1, wh, bh, wo, bo = params

    def f(y):
        h = jnp.tanh(jnp.dot(y, w1, preferred_element_type=jnp.float32) + b1)
        for l in range(N_HIDDEN_LAYERS):
            h = jnp.tanh(jnp.dot(h, wh[l], preferred_element_type=jnp.float32) + bh[l])
        return jnp.dot(h, wo, preferred_element_type=jnp.float32) + bo

    y = y0.reshape(1, -1)
    ys = [y]
    for i in range(t.shape[0] - 1):
        dt = t[i + 1] - t[i]
        k1 = f(y)
        k2 = f(y + 0.5 * dt * k1)
        k3 = f(y + 0.5 * dt * k2)
        k4 = f(y + dt * k3)
        y = y + (dt / 6.0) * (k1 + 2.0 * k2 + 2.0 * k3 + k4)
        ys.append(y)
    return jnp.concatenate(ys, axis=0)


if __name__ == "__main__":
    layer_len = 8   # features per data row (layer_len in the PyTorch script)
    json_len = 8    # number of time points (json_len in the PyTorch script)

    key = jax.random.PRNGKey(0)
    kp, ky = jax.random.split(key)
    params = init_params(kp, layer_len)

    # synthetic normalized data: y0 = tensor_data[0, :] after max-min scaling
    y0 = jax.random.uniform(ky, (layer_len,), jnp.float32)
    t = jnp.asarray(np.linspace(0, json_len, json_len, endpoint=False), jnp.float32)

    traj = neural_ode(y0, t, params)
    traj = jax.block_until_ready(traj)

    ref = reference(y0, t, params)
    np.testing.assert_allclose(np.asarray(traj), np.asarray(ref),
                               rtol=1e-3, atol=1e-3)
    print("KERNEL_OK")
</pallas_src>

<mosaic_0001>
module attributes {stable_mosaic.version = 11 : i64} {
  func.func @neural_ode_kernel(%arg0: memref<8xf32, #tpu.memory_space<smem>>, %arg1: memref<1x8xf32, #tpu.memory_space<vmem>>, %arg2: memref<8x40xf32, #tpu.memory_space<vmem>>, %arg3: memref<1x40xf32, #tpu.memory_space<vmem>>, %arg4: memref<3x40x40xf32, #tpu.memory_space<vmem>>, %arg5: memref<3x1x40xf32, #tpu.memory_space<vmem>>, %arg6: memref<40x8xf32, #tpu.memory_space<vmem>>, %arg7: memref<1x8xf32, #tpu.memory_space<vmem>>, %arg8: memref<8x8xf32, #tpu.memory_space<vmem>>) attributes {dimension_semantics = [], scalar_prefetch = 0 : i64, scratch_operands = 0 : i64, tpu.core_type = #tpu.core_type<tc>} {
    %c0 = arith.constant 0 : index
    %c0_0 = arith.constant 0 : index
    %0 = vector.load %arg2[%c0, %c0_0] : memref<8x40xf32, #tpu.memory_space<vmem>>, vector<8x40xf32>
    %c0_1 = arith.constant 0 : index
    %c0_2 = arith.constant 0 : index
    %1 = vector.load %arg3[%c0_1, %c0_2] : memref<1x40xf32, #tpu.memory_space<vmem>>, vector<1x40xf32>
    %c0_3 = arith.constant 0 : index
    %c0_4 = arith.constant 0 : index
    %c0_5 = arith.constant 0 : index
    %2 = vector.load %arg4[%c0_3, %c0_4, %c0_5] : memref<3x40x40xf32, #tpu.memory_space<vmem>>, vector<1x40x40xf32>
    %3 = vector.shape_cast %2 : vector<1x40x40xf32> to vector<40x40xf32>
    %c1 = arith.constant 1 : index
    %c0_6 = arith.constant 0 : index
    %c0_7 = arith.constant 0 : index
    %4 = vector.load %arg4[%c1, %c0_6, %c0_7] : memref<3x40x40xf32, #tpu.memory_space<vmem>>, vector<1x40x40xf32>
    %5 = vector.shape_cast %4 : vector<1x40x40xf32> to vector<40x40xf32>
    %c2 = arith.constant 2 : index
    %c0_8 = arith.constant 0 : index
    %c0_9 = arith.constant 0 : index
    %6 = vector.load %arg4[%c2, %c0_8, %c0_9] : memref<3x40x40xf32, #tpu.memory_space<vmem>>, vector<1x40x40xf32>
    %7 = vector.shape_cast %6 : vector<1x40x40xf32> to vector<40x40xf32>
    %c0_10 = arith.constant 0 : index
    %c0_11 = arith.constant 0 : index
    %c0_12 = arith.constant 0 : index
    %8 = vector.load %arg5[%c0_10, %c0_11, %c0_12] : memref<3x1x40xf32, #tpu.memory_space<vmem>>, vector<1x1x40xf32>
    %9 = vector.shape_cast %8 : vector<1x1x40xf32> to vector<1x40xf32>
    %c1_13 = arith.constant 1 : index
    %c0_14 = arith.constant 0 : index
    %c0_15 = arith.constant 0 : index
    %10 = vector.load %arg5[%c1_13, %c0_14, %c0_15] : memref<3x1x40xf32, #tpu.memory_space<vmem>>, vector<1x1x40xf32>
    %11 = vector.shape_cast %10 : vector<1x1x40xf32> to vector<1x40xf32>
    %c2_16 = arith.constant 2 : index
    %c0_17 = arith.constant 0 : index
    %c0_18 = arith.constant 0 : index
    %12 = vector.load %arg5[%c2_16, %c0_17, %c0_18] : memref<3x1x40xf32, #tpu.memory_space<vmem>>, vector<1x1x40xf32>
    %13 = vector.shape_cast %12 : vector<1x1x40xf32> to vector<1x40xf32>
    %c0_19 = arith.constant 0 : index
    %c0_20 = arith.constant 0 : index
    %14 = vector.load %arg6[%c0_19, %c0_20] : memref<40x8xf32, #tpu.memory_space<vmem>>, vector<40x8xf32>
    %c0_21 = arith.constant 0 : index
    %c0_22 = arith.constant 0 : index
    %15 = vector.load %arg7[%c0_21, %c0_22] : memref<1x8xf32, #tpu.memory_space<vmem>>, vector<1x8xf32>
    %c0_23 = arith.constant 0 : index
    %c0_24 = arith.constant 0 : index
    %16 = vector.load %arg1[%c0_23, %c0_24] : memref<1x8xf32, #tpu.memory_space<vmem>>, vector<1x8xf32>
    %c0_25 = arith.constant 0 : index
    %c0_26 = arith.constant 0 : index
    %17 = vector.load %arg8[%c0_25, %c0_26] : memref<8x8xf32, #tpu.memory_space<vmem>>, vector<1x8xf32>
    tpu.vector_store %arg8[%c0_25, %c0_26], %16 {strides = array<i32>} : memref<8x8xf32, #tpu.memory_space<vmem>>, vector<1x8xf32>,
    %c1_27 = arith.constant 1 : index
    %18 = memref.load %arg0[%c1_27] : memref<8xf32, #tpu.memory_space<smem>>
    %c0_28 = arith.constant 0 : index
    %19 = memref.load %arg0[%c0_28] : memref<8xf32, #tpu.memory_space<smem>>
    %20 = arith.subf %18, %19 : f32
    %cst = arith.constant dense<0.000000e+00> : vector<1x40xf32>
    %21 = tpu.matmul %16, %0, %cst {dimension_numbers = #tpu.dot_dimension_numbers<[1], [0], [0], [1], [0, 0, 1, 1], [], []>} : vector<1x8xf32>, vector<8x40xf32>, vector<1x40xf32> -> vector<1x40xf32>
    %22 = arith.addf %21, %1 : vector<1x40xf32>
    %23 = math.tanh %22 : vector<1x40xf32>
    %cst_29 = arith.constant dense<0.000000e+00> : vector<1x40xf32>
    %24 = tpu.matmul %23, %3, %cst_29 {dimension_numbers = #tpu.dot_dimension_numbers<[1], [0], [0], [1], [0, 0, 1, 1], [], []>} : vector<1x40xf32>, vector<40x40xf32>, vector<1x40xf32> -> vector<1x40xf32>
    %25 = arith.addf %24, %9 : vector<1x40xf32>
    %26 = math.tanh %25 : vector<1x40xf32>
    %cst_30 = arith.constant dense<0.000000e+00> : vector<1x40xf32>
    %27 = tpu.matmul %26, %5, %cst_30 {dimension_numbers = #tpu.dot_dimension_numbers<[1], [0], [0], [1], [0, 0, 1, 1], [], []>} : vector<1x40xf32>, vector<40x40xf32>, vector<1x40xf32> -> vector<1x40xf32>
    %28 = arith.addf %27, %11 : vector<1x40xf32>
    %29 = math.tanh %28 : vector<1x40xf32>
    %cst_31 = arith.constant dense<0.000000e+00> : vector<1x40xf32>
    %30 = tpu.matmul %29, %7, %cst_31 {dimension_numbers = #tpu.dot_dimension_numbers<[1], [0], [0], [1], [0, 0, 1, 1], [], []>} : vector<1x40xf32>, vector<40x40xf32>, vector<1x40xf32> -> vector<1x40xf32>
    %31 = arith.addf %30, %13 : vector<1x40xf32>
    %32 = math.tanh %31 : vector<1x40xf32>
    %cst_32 = arith.constant dense<0.000000e+00> : vector<1x8xf32>
    %33 = tpu.matmul %32, %14, %cst_32 {dimension_numbers = #tpu.dot_dimension_numbers<[1], [0], [0], [1], [0, 0, 1, 1], [], []>} : vector<1x40xf32>, vector<40x8xf32>, vector<1x8xf32> -> vector<1x8xf32>
    %34 = arith.addf %33, %15 : vector<1x8xf32>
    %cst_33 = arith.constant 5.000000e-01 : f32
    %35 = arith.mulf %cst_33, %20 : f32
    %36 = vector.broadcast %35 : f32 to vector<1x8xf32>
    %37 = arith.mulf %36, %34 : vector<1x8xf32>
    %38 = arith.addf %16, %37 : vector<1x8xf32>
    %cst_34 = arith.constant dense<0.000000e+00> : vector<1x40xf32>
    %39 = tpu.matmul %38, %0, %cst_34 {dimension_numbers = #tpu.dot_dimension_numbers<[1], [0], [0], [1], [0, 0, 1, 1], [], []>} : vector<1x8xf32>, vector<8x40xf32>, vector<1x40xf32> -> vector<1x40xf32>
    %40 = arith.addf %39, %1 : vector<1x40xf32>
    %41 = math.tanh %40 : vector<1x40xf32>
    %cst_35 = arith.constant dense<0.000000e+00> : vector<1x40xf32>
    %42 = tpu.matmul %41, %3, %cst_35 {dimension_numbers = #tpu.dot_dimension_numbers<[1], [0], [0], [1], [0, 0, 1, 1], [], []>} : vector<1x40xf32>, vector<40x40xf32>, vector<1x40xf32> -> vector<1x40xf32>
    %43 = arith.addf %42, %9 : vector<1x40xf32>
    %44 = math.tanh %43 : vector<1x40xf32>
    %cst_36 = arith.constant dense<0.000000e+00> : vector<1x40xf32>
    %45 = tpu.matmul %44, %5, %cst_36 {dimension_numbers = #tpu.dot_dimension_numbers<[1], [0], [0], [1], [0, 0, 1, 1], [], []>} : vector<1x40xf32>, vector<40x40xf32>, vector<1x40xf32> -> vector<1x40xf32>
    %46 = arith.addf %45, %11 : vector<1x40xf32>
    %47 = math.tanh %46 : vector<1x40xf32>
    %cst_37 = arith.constant dense<0.000000e+00> : vector<1x40xf32>
    %48 = tpu.matmul %47, %7, %cst_37 {dimension_numbers = #tpu.dot_dimension_numbers<[1], [0], [0], [1], [0, 0, 1, 1], [], []>} : vector<1x40xf32>, vector<40x40xf32>, vector<1x40xf32> -> vector<1x40xf32>
    %49 = arith.addf %48, %13 : vector<1x40xf32>
    %50 = math.tanh %49 : vector<1x40xf32>
    %cst_38 = arith.constant dense<0.000000e+00> : vector<1x8xf32>
    %51 = tpu.matmul %50, %14, %cst_38 {dimension_numbers = #tpu.dot_dimension_numbers<[1], [0], [0], [1], [0, 0, 1, 1], [], []>} : vector<1x40xf32>, vector<40x8xf32>, vector<1x8xf32> -> vector<1x8xf32>
    %52 = arith.addf %51, %15 : vector<1x8xf32>
    %cst_39 = arith.constant 5.000000e-01 : f32
    %53 = arith.mulf %cst_39, %20 : f32
    %54 = vector.broadcast %53 : f32 to vector<1x8xf32>
    %55 = arith.mulf %54, %52 : vector<1x8xf32>
    %56 = arith.addf %16, %55 : vector<1x8xf32>
    %cst_40 = arith.constant dense<0.000000e+00> : vector<1x40xf32>
    %57 = tpu.matmul %56, %0, %cst_40 {dimension_numbers = #tpu.dot_dimension_numbers<[1], [0], [0], [1], [0, 0, 1, 1], [], []>} : vector<1x8xf32>, vector<8x40xf32>, vector<1x40xf32> -> vector<1x40xf32>
    %58 = arith.addf %57, %1 : vector<1x40xf32>
    %59 = math.tanh %58 : vector<1x40xf32>
    %cst_41 = arith.constant dense<0.000000e+00> : vector<1x40xf32>
    %60 = tpu.matmul %59, %3, %cst_41 {dimension_numbers = #tpu.dot_dimension_numbers<[1], [0], [0], [1], [0, 0, 1, 1], [], []>} : vector<1x40xf32>, vector<40x40xf32>, vector<1x40xf32> -> vector<1x40xf32>
    %61 = arith.addf %60, %9 : vector<1x40xf32>
    %62 = math.tanh %61 : vector<1x40xf32>
    %cst_42 = arith.constant dense<0.000000e+00> : vector<1x40xf32>
    %63 = tpu.matmul %62, %5, %cst_42 {dimension_numbers = #tpu.dot_dimension_numbers<[1], [0], [0], [1], [0, 0, 1, 1], [], []>} : vector<1x40xf32>, vector<40x40xf32>, vector<1x40xf32> -> vector<1x40xf32>
    %64 = arith.addf %63, %11 : vector<1x40xf32>
    %65 = math.tanh %64 : vector<1x40xf32>
    %cst_43 = arith.constant dense<0.000000e+00> : vector<1x40xf32>
    %66 = tpu.matmul %65, %7, %cst_43 {dimension_numbers = #tpu.dot_dimension_numbers<[1], [0], [0], [1], [0, 0, 1, 1], [], []>} : vector<1x40xf32>, vector<40x40xf32>, vector<1x40xf32> -> vector<1x40xf32>
    %67 = arith.addf %66, %13 : vector<1x40xf32>
    %68 = math.tanh %67 : vector<1x40xf32>
    %cst_44 = arith.constant dense<0.000000e+00> : vector<1x8xf32>
    %69 = tpu.matmul %68, %14, %cst_44 {dimension_numbers = #tpu.dot_dimension_numbers<[1], [0], [0], [1], [0, 0, 1, 1], [], []>} : vector<1x40xf32>, vector<40x8xf32>, vector<1x8xf32> -> vector<1x8xf32>
    %70 = arith.addf %69, %15 : vector<1x8xf32>
    %71 = vector.broadcast %20 : f32 to vector<1x8xf32>
    %72 = arith.mulf %71, %70 : vector<1x8xf32>
    %73 = arith.addf %16, %72 : vector<1x8xf32>
    %cst_45 = arith.constant dense<0.000000e+00> : vector<1x40xf32>
    %74 = tpu.matmul %73, %0, %cst_45 {dimension_numbers = #tpu.dot_dimension_numbers<[1], [0], [0], [1], [0, 0, 1, 1], [], []>} : vector<1x8xf32>, vector<8x40xf32>, vector<1x40xf32> -> vector<1x40xf32>
    %75 = arith.addf %74, %1 : vector<1x40xf32>
    %76 = math.tanh %75 : vector<1x40xf32>
    %cst_46 = arith.constant dense<0.000000e+00> : vector<1x40xf32>
    %77 = tpu.matmul %76, %3, %cst_46 {dimension_numbers = #tpu.dot_dimension_numbers<[1], [0], [0], [1], [0, 0, 1, 1], [], []>} : vector<1x40xf32>, vector<40x40xf32>, vector<1x40xf32> -> vector<1x40xf32>
    %78 = arith.addf %77, %9 : vector<1x40xf32>
    %79 = math.tanh %78 : vector<1x40xf32>
    %cst_47 = arith.constant dense<0.000000e+00> : vector<1x40xf32>
    %80 = tpu.matmul %79, %5, %cst_47 {dimension_numbers = #tpu.dot_dimension_numbers<[1], [0], [0], [1], [0, 0, 1, 1], [], []>} : vector<1x40xf32>, vector<40x40xf32>, vector<1x40xf32> -> vector<1x40xf32>
    %81 = arith.addf %80, %11 : vector<1x40xf32>
    %82 = math.tanh %81 : vector<1x40xf32>
    %cst_48 = arith.constant dense<0.000000e+00> : vector<1x40xf32>
    %83 = tpu.matmul %82, %7, %cst_48 {dimension_numbers = #tpu.dot_dimension_numbers<[1], [0], [0], [1], [0, 0, 1, 1], [], []>} : vector<1x40xf32>, vector<40x40xf32>, vector<1x40xf32> -> vector<1x40xf32>
    %84 = arith.addf %83, %13 : vector<1x40xf32>
    %85 = math.tanh %84 : vector<1x40xf32>
    %cst_49 = arith.constant dense<0.000000e+00> : vector<1x8xf32>
    %86 = tpu.matmul %85, %14, %cst_49 {dimension_numbers = #tpu.dot_dimension_numbers<[1], [0], [0], [1], [0, 0, 1, 1], [], []>} : vector<1x40xf32>, vector<40x8xf32>, vector<1x8xf32> -> vector<1x8xf32>
    %87 = arith.addf %86, %15 : vector<1x8xf32>
    %cst_50 = arith.constant 6.000000e+00 : f32
    %88 = arith.divf %20, %cst_50 : f32
    %cst_51 = arith.constant 2.000000e+00 : f32
    %89 = vector.broadcast %cst_51 : f32 to vector<1x8xf32>
    %90 = arith.mulf %89, %52 : vector<1x8xf32>
    %91 = arith.addf %34, %90 : vector<1x8xf32>
    %cst_52 = arith.constant 2.000000e+00 : f32
    %92 = vector.broadcast %cst_52 : f32 to vector<1x8xf32>
    %93 = arith.mulf %92, %70 : vector<1x8xf32>
    %94 = arith.addf %91, %93 : vector<1x8xf32>
    %95 = arith.addf %94, %87 : vector<1x8xf32>
    %96 = vector.broadcast %88 : f32 to vector<1x8xf32>
    %97 = arith.mulf %96, %95 : vector<1x8xf32>
    %98 = arith.addf %16, %97 : vector<1x8xf32>
    %c1_53 = arith.constant 1 : index
    %c0_54 = arith.constant 0 : index
    %99 = vector.load %arg8[%c1_53, %c0_54] : memref<8x8xf32, #tpu.memory_space<vmem>>, vector<1x8xf32>
    tpu.vector_store %arg8[%c1_53, %c0_54], %98 {strides = array<i32>} : memref<8x8xf32, #tpu.memory_space<vmem>>, vector<1x8xf32>,
    %c2_55 = arith.constant 2 : index
    %100 = memref.load %arg0[%c2_55] : memref<8xf32, #tpu.memory_space<smem>>
    %c1_56 = arith.constant 1 : index
    %101 = memref.load %arg0[%c1_56] : memref<8xf32, #tpu.memory_space<smem>>
    %102 = arith.subf %100, %101 : f32
    %cst_57 = arith.constant dense<0.000000e+00> : vector<1x40xf32>
    %103 = tpu.matmul %98, %0, %cst_57 {dimension_numbers = #tpu.dot_dimension_numbers<[1], [0], [0], [1], [0, 0, 1, 1], [], []>} : vector<1x8xf32>, vector<8x40xf32>, vector<1x40xf32> -> vector<1x40xf32>
    %104 = arith.addf %103, %1 : vector<1x40xf32>
    %105 = math.tanh %104 : vector<1x40xf32>
    %cst_58 = arith.constant dense<0.000000e+00> : vector<1x40xf32>
    %106 = tpu.matmul %105, %3, %cst_58 {dimension_numbers = #tpu.dot_dimension_numbers<[1], [0], [0], [1], [0, 0, 1, 1], [], []>} : vector<1x40xf32>, vector<40x40xf32>, vector<1x40xf32> -> vector<1x40xf32>
    %107 = arith.addf %106, %9 : vector<1x40xf32>
    %108 = math.tanh %107 : vector<1x40xf32>
    %cst_59 = arith.constant dense<0.000000e+00> : vector<1x40xf32>
    %109 = tpu.matmul %108, %5, %cst_59 {dimension_numbers = #tpu.dot_dimension_numbers<[1], [0], [0], [1], [0, 0, 1, 1], [], []>} : vector<1x40xf32>, vector<40x40xf32>, vector<1x40xf32> -> vector<1x40xf32>
    %110 = arith.addf %109, %11 : vector<1x40xf32>
    %111 = math.tanh %110 : vector<1x40xf32>
    %cst_60 = arith.constant dense<0.000000e+00> : vector<1x40xf32>
    %112 = tpu.matmul %111, %7, %cst_60 {dimension_numbers = #tpu.dot_dimension_numbers<[1], [0], [0], [1], [0, 0, 1, 1], [], []>} : vector<1x40xf32>, vector<40x40xf32>, vector<1x40xf32> -> vector<1x40xf32>
    %113 = arith.addf %112, %13 : vector<1x40xf32>
    %114 = math.tanh %113 : vector<1x40xf32>
    %cst_61 = arith.constant dense<0.000000e+00> : vector<1x8xf32>
    %115 = tpu.matmul %114, %14, %cst_61 {dimension_numbers = #tpu.dot_dimension_numbers<[1], [0], [0], [1], [0, 0, 1, 1], [], []>} : vector<1x40xf32>, vector<40x8xf32>, vector<1x8xf32> -> vector<1x8xf32>
    %116 = arith.addf %115, %15 : vector<1x8xf32>
    %cst_62 = arith.constant 5.000000e-01 : f32
    %117 = arith.mulf %cst_62, %102 : f32
    %118 = vector.broadcast %117 : f32 to vector<1x8xf32>
    %119 = arith.mulf %118, %116 : vector<1x8xf32>
    %120 = arith.addf %98, %119 : vector<1x8xf32>
    %cst_63 = arith.constant dense<0.000000e+00> : vector<1x40xf32>
    %121 = tpu.matmul %120, %0, %cst_63 {dimension_numbers = #tpu.dot_dimension_numbers<[1], [0], [0], [1], [0, 0, 1, 1], [], []>} : vector<1x8xf32>, vector<8x40xf32>, vector<1x40xf32> -> vector<1x40xf32>
    %122 = arith.addf %121, %1 : vector<1x40xf32>
    %123 = math.tanh %122 : vector<1x40xf32>
    %cst_64 = arith.constant dense<0.000000e+00> : vector<1x40xf32>
    %124 = tpu.matmul %123, %3, %cst_64 {dimension_numbers = #tpu.dot_dimension_numbers<[1], [0], [0], [1], [0, 0, 1, 1], [], []>} : vector<1x40xf32>, vector<40x40xf32>, vector<1x40xf32> -> vector<1x40xf32>
    %125 = arith.addf %124, %9 : vector<1x40xf32>
    %126 = math.tanh %125 : vector<1x40xf32>
    %cst_65 = arith.constant dense<0.000000e+00> : vector<1x40xf32>
    %127 = tpu.matmul %126, %5, %cst_65 {dimension_numbers = #tpu.dot_dimension_numbers<[1], [0], [0], [1], [0, 0, 1, 1], [], []>} : vector<1x40xf32>, vector<40x40xf32>, vector<1x40xf32> -> vector<1x40xf32>
    %128 = arith.addf %127, %11 : vector<1x40xf32>
    %129 = math.tanh %128 : vector<1x40xf32>
    %cst_66 = arith.constant dense<0.000000e+00> : vector<1x40xf32>
    %130 = tpu.matmul %129, %7, %cst_66 {dimension_numbers = #tpu.dot_dimension_numbers<[1], [0], [0], [1], [0, 0, 1, 1], [], []>} : vector<1x40xf32>, vector<40x40xf32>, vector<1x40xf32> -> vector<1x40xf32>
    %131 = arith.addf %130, %13 : vector<1x40xf32>
    %132 = math.tanh %131 : vector<1x40xf32>
    %cst_67 = arith.constant dense<0.000000e+00> : vector<1x8xf32>
    %133 = tpu.matmul %132, %14, %cst_67 {dimension_numbers = #tpu.dot_dimension_numbers<[1], [0], [0], [1], [0, 0, 1, 1], [], []>} : vector<1x40xf32>, vector<40x8xf32>, vector<1x8xf32> -> vector<1x8xf32>
    %134 = arith.addf %133, %15 : vector<1x8xf32>
    %cst_68 = arith.constant 5.000000e-01 : f32
    %135 = arith.mulf %cst_68, %102 : f32
    %136 = vector.broadcast %135 : f32 to vector<1x8xf32>
    %137 = arith.mulf %136, %134 : vector<1x8xf32>
    %138 = arith.addf %98, %137 : vector<1x8xf32>
    %cst_69 = arith.constant dense<0.000000e+00> : vector<1x40xf32>
    %139 = tpu.matmul %138, %0, %cst_69 {dimension_numbers = #tpu.dot_dimension_numbers<[1], [0], [0], [1], [0, 0, 1, 1], [], []>} : vector<1x8xf32>, vector<8x40xf32>, vector<1x40xf32> -> vector<1x40xf32>
    %140 = arith.addf %139, %1 : vector<1x40xf32>
    %141 = math.tanh %140 : vector<1x40xf32>
    %cst_70 = arith.constant dense<0.000000e+00> : vector<1x40xf32>
    %142 = tpu.matmul %141, %3, %cst_70 {dimension_numbers = #tpu.dot_dimension_numbers<[1], [0], [0], [1], [0, 0, 1, 1], [], []>} : vector<1x40xf32>, vector<40x40xf32>, vector<1x40xf32> -> vector<1x40xf32>
    %143 = arith.addf %142, %9 : vector<1x40xf32>
    %144 = math.tanh %143 : vector<1x40xf32>
    %cst_71 = arith.constant dense<0.000000e+00> : vector<1x40xf32>
    %145 = tpu.matmul %144, %5, %cst_71 {dimension_numbers = #tpu.dot_dimension_numbers<[1], [0], [0], [1], [0, 0, 1, 1], [], []>} : vector<1x40xf32>, vector<40x40xf32>, vector<1x40xf32> -> vector<1x40xf32>
    %146 = arith.addf %145, %11 : vector<1x40xf32>
    %147 = math.tanh %146 : vector<1x40xf32>
    %cst_72 = arith.constant dense<0.000000e+00> : vector<1x40xf32>
    %148 = tpu.matmul %147, %7, %cst_72 {dimension_numbers = #tpu.dot_dimension_numbers<[1], [0], [0], [1], [0, 0, 1, 1], [], []>} : vector<1x40xf32>, vector<40x40xf32>, vector<1x40xf32> -> vector<1x40xf32>
    %149 = arith.addf %148, %13 : vector<1x40xf32>
    %150 = math.tanh %149 : vector<1x40xf32>
    %cst_73 = arith.constant dense<0.000000e+00> : vector<1x8xf32>
    %151 = tpu.matmul %150, %14, %cst_73 {dimension_numbers = #tpu.dot_dimension_numbers<[1], [0], [0], [1], [0, 0, 1, 1], [], []>} : vector<1x40xf32>, vector<40x8xf32>, vector<1x8xf32> -> vector<1x8xf32>
    %152 = arith.addf %151, %15 : vector<1x8xf32>
    %153 = vector.broadcast %102 : f32 to vector<1x8xf32>
    %154 = arith.mulf %153, %152 : vector<1x8xf32>
    %155 = arith.addf %98, %154 : vector<1x8xf32>
    %cst_74 = arith.constant dense<0.000000e+00> : vector<1x40xf32>
    %156 = tpu.matmul %155, %0, %cst_74 {dimension_numbers = #tpu.dot_dimension_numbers<[1], [0], [0], [1], [0, 0, 1, 1], [], []>} : vector<1x8xf32>, vector<8x40xf32>, vector<1x40xf32> -> vector<1x40xf32>
    %157 = arith.addf %156, %1 : vector<1x40xf32>
    %158 = math.tanh %157 : vector<1x40xf32>
    %cst_75 = arith.constant dense<0.000000e+00> : vector<1x40xf32>
    %159 = tpu.matmul %158, %3, %cst_75 {dimension_numbers = #tpu.dot_dimension_numbers<[1], [0], [0], [1], [0, 0, 1, 1], [], []>} : vector<1x40xf32>, vector<40x40xf32>, vector<1x40xf32> -> vector<1x40xf32>
    %160 = arith.addf %159, %9 : vector<1x40xf32>
    %161 = math.tanh %160 : vector<1x40xf32>
    %cst_76 = arith.constant dense<0.000000e+00> : vector<1x40xf32>
    %162 = tpu.matmul %161, %5, %cst_76 {dimension_numbers = #tpu.dot_dimension_numbers<[1], [0], [0], [1], [0, 0, 1, 1], [], []>} : vector<1x40xf32>, vector<40x40xf32>, vector<1x40xf32> -> vector<1x40xf32>
    %163 = arith.addf %162, %11 : vector<1x40xf32>
    %164 = math.tanh %163 : vector<1x40xf32>
    %cst_77 = arith.constant dense<0.000000e+00> : vector<1x40xf32>
    %165 = tpu.matmul %164, %7, %cst_77 {dimension_numbers = #tpu.dot_dimension_numbers<[1], [0], [0], [1], [0, 0, 1, 1], [], []>} : vector<1x40xf32>, vector<40x40xf32>, vector<1x40xf32> -> vector<1x40xf32>
    %166 = arith.addf %165, %13 : vector<1x40xf32>
    %167 = math.tanh %166 : vector<1x40xf32>
    %cst_78 = arith.constant dense<0.000000e+00> : vector<1x8xf32>
    %168 = tpu.matmul %167, %14, %cst_78 {dimension_numbers = #tpu.dot_dimension_numbers<[1], [0], [0], [1], [0, 0, 1, 1], [], []>} : vector<1x40xf32>, vector<40x8xf32>, vector<1x8xf32> -> vector<1x8xf32>
    %169 = arith.addf %168, %15 : vector<1x8xf32>
    %cst_79 = arith.constant 6.000000e+00 : f32
    %170 = arith.divf %102, %cst_79 : f32
    %cst_80 = arith.constant 2.000000e+00 : f32
    %171 = vector.broadcast %cst_80 : f32 to vector<1x8xf32>
    %172 = arith.mulf %171, %134 : vector<1x8xf32>
    %173 = arith.addf %116, %172 : vector<1x8xf32>
    %cst_81 = arith.constant 2.000000e+00 : f32
    %174 = vector.broadcast %cst_81 : f32 to vector<1x8xf32>
    %175 = arith.mulf %174, %152 : vector<1x8xf32>
    %176 = arith.addf %173, %175 : vector<1x8xf32>
    %177 = arith.addf %176, %169 : vector<1x8xf32>
    %178 = vector.broadcast %170 : f32 to vector<1x8xf32>
    %179 = arith.mulf %178, %177 : vector<1x8xf32>
    %180 = arith.addf %98, %179 : vector<1x8xf32>
    %c2_82 = arith.constant 2 : index
    %c0_83 = arith.constant 0 : index
    %181 = vector.load %arg8[%c2_82, %c0_83] : memref<8x8xf32, #tpu.memory_space<vmem>>, vector<1x8xf32>
    tpu.vector_store %arg8[%c2_82, %c0_83], %180 {strides = array<i32>} : memref<8x8xf32, #tpu.memory_space<vmem>>, vector<1x8xf32>,
    %c3 = arith.constant 3 : index
    %182 = memref.load %arg0[%c3] : memref<8xf32, #tpu.memory_space<smem>>
    %c2_84 = arith.constant 2 : index
    %183 = memref.load %arg0[%c2_84] : memref<8xf32, #tpu.memory_space<smem>>
    %184 = arith.subf %182, %183 : f32
    %cst_85 = arith.constant dense<0.000000e+00> : vector<1x40xf32>
    %185 = tpu.matmul %180, %0, %cst_85 {dimension_numbers = #tpu.dot_dimension_numbers<[1], [0], [0], [1], [0, 0, 1, 1], [], []>} : vector<1x8xf32>, vector<8x40xf32>, vector<1x40xf32> -> vector<1x40xf32>
    %186 = arith.addf %185, %1 : vector<1x40xf32>
    %187 = math.tanh %186 : vector<1x40xf32>
    %cst_86 = arith.constant dense<0.000000e+00> : vector<1x40xf32>
    %188 = tpu.matmul %187, %3, %cst_86 {dimension_numbers = #tpu.dot_dimension_numbers<[1], [0], [0], [1], [0, 0, 1, 1], [], []>} : vector<1x40xf32>, vector<40x40xf32>, vector<1x40xf32> -> vector<1x40xf32>
    %189 = arith.addf %188, %9 : vector<1x40xf32>
    %190 = math.tanh %189 : vector<1x40xf32>
    %cst_87 = arith.constant dense<0.000000e+00> : vector<1x40xf32>
    %191 = tpu.matmul %190, %5, %cst_87 {dimension_numbers = #tpu.dot_dimension_numbers<[1], [0], [0], [1], [0, 0, 1, 1], [], []>} : vector<1x40xf32>, vector<40x40xf32>, vector<1x40xf32> -> vector<1x40xf32>
    %192 = arith.addf %191, %11 : vector<1x40xf32>
    %193 = math.tanh %192 : vector<1x40xf32>
    %cst_88 = arith.constant dense<0.000000e+00> : vector<1x40xf32>
    %194 = tpu.matmul %193, %7, %cst_88 {dimension_numbers = #tpu.dot_dimension_numbers<[1], [0], [0], [1], [0, 0, 1, 1], [], []>} : vector<1x40xf32>, vector<40x40xf32>, vector<1x40xf32> -> vector<1x40xf32>
    %195 = arith.addf %194, %13 : vector<1x40xf32>
    %196 = math.tanh %195 : vector<1x40xf32>
    %cst_89 = arith.constant dense<0.000000e+00> : vector<1x8xf32>
    %197 = tpu.matmul %196, %14, %cst_89 {dimension_numbers = #tpu.dot_dimension_numbers<[1], [0], [0], [1], [0, 0, 1, 1], [], []>} : vector<1x40xf32>, vector<40x8xf32>, vector<1x8xf32> -> vector<1x8xf32>
    %198 = arith.addf %197, %15 : vector<1x8xf32>
    %cst_90 = arith.constant 5.000000e-01 : f32
    %199 = arith.mulf %cst_90, %184 : f32
    %200 = vector.broadcast %199 : f32 to vector<1x8xf32>
    %201 = arith.mulf %200, %198 : vector<1x8xf32>
    %202 = arith.addf %180, %201 : vector<1x8xf32>
    %cst_91 = arith.constant dense<0.000000e+00> : vector<1x40xf32>
    %203 = tpu.matmul %202, %0, %cst_91 {dimension_numbers = #tpu.dot_dimension_numbers<[1], [0], [0], [1], [0, 0, 1, 1], [], []>} : vector<1x8xf32>, vector<8x40xf32>, vector<1x40xf32> -> vector<1x40xf32>
    %204 = arith.addf %203, %1 : vector<1x40xf32>
    %205 = math.tanh %204 : vector<1x40xf32>
    %cst_92 = arith.constant dense<0.000000e+00> : vector<1x40xf32>
    %206 = tpu.matmul %205, %3, %cst_92 {dimension_numbers = #tpu.dot_dimension_numbers<[1], [0], [0], [1], [0, 0, 1, 1], [], []>} : vector<1x40xf32>, vector<40x40xf32>, vector<1x40xf32> -> vector<1x40xf32>
    %207 = arith.addf %206, %9 : vector<1x40xf32>
    %208 = math.tanh %207 : vector<1x40xf32>
    %cst_93 = arith.constant dense<0.000000e+00> : vector<1x40xf32>
    %209 = tpu.matmul %208, %5, %cst_93 {dimension_numbers = #tpu.dot_dimension_numbers<[1], [0], [0], [1], [0, 0, 1, 1], [], []>} : vector<1x40xf32>, vector<40x40xf32>, vector<1x40xf32> -> vector<1x40xf32>
    %210 = arith.addf %209, %11 : vector<1x40xf32>
    %211 = math.tanh %210 : vector<1x40xf32>
    %cst_94 = arith.constant dense<0.000000e+00> : vector<1x40xf32>
    %212 = tpu.matmul %211, %7, %cst_94 {dimension_numbers = #tpu.dot_dimension_numbers<[1], [0], [0], [1], [0, 0, 1, 1], [], []>} : vector<1x40xf32>, vector<40x40xf32>, vector<1x40xf32> -> vector<1x40xf32>
    %213 = arith.addf %212, %13 : vector<1x40xf32>
    %214 = math.tanh %213 : vector<1x40xf32>
    %cst_95 = arith.constant dense<0.000000e+00> : vector<1x8xf32>
    %215 = tpu.matmul %214, %14, %cst_95 {dimension_numbers = #tpu.dot_dimension_numbers<[1], [0], [0], [1], [0, 0, 1, 1], [], []>} : vector<1x40xf32>, vector<40x8xf32>, vector<1x8xf32> -> vector<1x8xf32>
    %216 = arith.addf %215, %15 : vector<1x8xf32>
    %cst_96 = arith.constant 5.000000e-01 : f32
    %217 = arith.mulf %cst_96, %184 : f32
    %218 = vector.broadcast %217 : f32 to vector<1x8xf32>
    %219 = arith.mulf %218, %216 : vector<1x8xf32>
    %220 = arith.addf %180, %219 : vector<1x8xf32>
    %cst_97 = arith.constant dense<0.000000e+00> : vector<1x40xf32>
    %221 = tpu.matmul %220, %0, %cst_97 {dimension_numbers = #tpu.dot_dimension_numbers<[1], [0], [0], [1], [0, 0, 1, 1], [], []>} : vector<1x8xf32>, vector<8x40xf32>, vector<1x40xf32> -> vector<1x40xf32>
    %222 = arith.addf %221, %1 : vector<1x40xf32>
    %223 = math.tanh %222 : vector<1x40xf32>
    %cst_98 = arith.constant dense<0.000000e+00> : vector<1x40xf32>
    %224 = tpu.matmul %223, %3, %cst_98 {dimension_numbers = #tpu.dot_dimension_numbers<[1], [0], [0], [1], [0, 0, 1, 1], [], []>} : vector<1x40xf32>, vector<40x40xf32>, vector<1x40xf32> -> vector<1x40xf32>
    %225 = arith.addf %224, %9 : vector<1x40xf32>
    %226 = math.tanh %225 : vector<1x40xf32>
    %cst_99 = arith.constant dense<0.000000e+00> : vector<1x40xf32>
    %227 = tpu.matmul %226, %5, %cst_99 {dimension_numbers = #tpu.dot_dimension_numbers<[1], [0], [0], [1], [0, 0, 1, 1], [], []>} : vector<1x40xf32>, vector<40x40xf32>, vector<1x40xf32> -> vector<1x40xf32>
    %228 = arith.addf %227, %11 : vector<1x40xf32>
    %229 = math.tanh %228 : vector<1x40xf32>
    %cst_100 = arith.constant dense<0.000000e+00> : vector<1x40xf32>
    %230 = tpu.matmul %229, %7, %cst_100 {dimension_numbers = #tpu.dot_dimension_numbers<[1], [0], [0], [1], [0, 0, 1, 1], [], []>} : vector<1x40xf32>, vector<40x40xf32>, vector<1x40xf32> -> vector<1x40xf32>
    %231 = arith.addf %230, %13 : vector<1x40xf32>
    %232 = math.tanh %231 : vector<1x40xf32>
    %cst_101 = arith.constant dense<0.000000e+00> : vector<1x8xf32>
    %233 = tpu.matmul %232, %14, %cst_101 {dimension_numbers = #tpu.dot_dimension_numbers<[1], [0], [0], [1], [0, 0, 1, 1], [], []>} : vector<1x40xf32>, vector<40x8xf32>, vector<1x8xf32> -> vector<1x8xf32>
    %234 = arith.addf %233, %15 : vector<1x8xf32>
    %235 = vector.broadcast %184 : f32 to vector<1x8xf32>
    %236 = arith.mulf %235, %234 : vector<1x8xf32>
    %237 = arith.addf %180, %236 : vector<1x8xf32>
    %cst_102 = arith.constant dense<0.000000e+00> : vector<1x40xf32>
    %238 = tpu.matmul %237, %0, %cst_102 {dimension_numbers = #tpu.dot_dimension_numbers<[1], [0], [0], [1], [0, 0, 1, 1], [], []>} : vector<1x8xf32>, vector<8x40xf32>, vector<1x40xf32> -> vector<1x40xf32>
    %239 = arith.addf %238, %1 : vector<1x40xf32>
    %240 = math.tanh %239 : vector<1x40xf32>
    %cst_103 = arith.constant dense<0.000000e+00> : vector<1x40xf32>
    %241 = tpu.matmul %240, %3, %cst_103 {dimension_numbers = #tpu.dot_dimension_numbers<[1], [0], [0], [1], [0, 0, 1, 1], [], []>} : vector<1x40xf32>, vector<40x40xf32>, vector<1x40xf32> -> vector<1x40xf32>
    %242 = arith.addf %241, %9 : vector<1x40xf32>
    %243 = math.tanh %242 : vector<1x40xf32>
    %cst_104 = arith.constant dense<0.000000e+00> : vector<1x40xf32>
    %244 = tpu.matmul %243, %5, %cst_104 {dimension_numbers = #tpu.dot_dimension_numbers<[1], [0], [0], [1], [0, 0, 1, 1], [], []>} : vector<1x40xf32>, vector<40x40xf32>, vector<1x40xf32> -> vector<1x40xf32>
    %245 = arith.addf %244, %11 : vector<1x40xf32>
    %246 = math.tanh %245 : vector<1x40xf32>
    %cst_105 = arith.constant dense<0.000000e+00> : vector<1x40xf32>
    %247 = tpu.matmul %246, %7, %cst_105 {dimension_numbers = #tpu.dot_dimension_numbers<[1], [0], [0], [1], [0, 0, 1, 1], [], []>} : vector<1x40xf32>, vector<40x40xf32>, vector<1x40xf32> -> vector<1x40xf32>
    %248 = arith.addf %247, %13 : vector<1x40xf32>
    %249 = math.tanh %248 : vector<1x40xf32>
    %cst_106 = arith.constant dense<0.000000e+00> : vector<1x8xf32>
    %250 = tpu.matmul %249, %14, %cst_106 {dimension_numbers = #tpu.dot_dimension_numbers<[1], [0], [0], [1], [0, 0, 1, 1], [], []>} : vector<1x40xf32>, vector<40x8xf32>, vector<1x8xf32> -> vector<1x8xf32>
    %251 = arith.addf %250, %15 : vector<1x8xf32>
    %cst_107 = arith.constant 6.000000e+00 : f32
    %252 = arith.divf %184, %cst_107 : f32
    %cst_108 = arith.constant 2.000000e+00 : f32
    %253 = vector.broadcast %cst_108 : f32 to vector<1x8xf32>
    %254 = arith.mulf %253, %216 : vector<1x8xf32>
    %255 = arith.addf %198, %254 : vector<1x8xf32>
    %cst_109 = arith.constant 2.000000e+00 : f32
    %256 = vector.broadcast %cst_109 : f32 to vector<1x8xf32>
    %257 = arith.mulf %256, %234 : vector<1x8xf32>
    %258 = arith.addf %255, %257 : vector<1x8xf32>
    %259 = arith.addf %258, %251 : vector<1x8xf32>
    %260 = vector.broadcast %252 : f32 to vector<1x8xf32>
    %261 = arith.mulf %260, %259 : vector<1x8xf32>
    %262 = arith.addf %180, %261 : vector<1x8xf32>
    %c3_110 = arith.constant 3 : index
    %c0_111 = arith.constant 0 : index
    %263 = vector.load %arg8[%c3_110, %c0_111] : memref<8x8xf32, #tpu.memory_space<vmem>>, vector<1x8xf32>
    tpu.vector_store %arg8[%c3_110, %c0_111], %262 {strides = array<i32>} : memref<8x8xf32, #tpu.memory_space<vmem>>, vector<1x8xf32>,
    %c4 = arith.constant 4 : index
    %264 = memref.load %arg0[%c4] : memref<8xf32, #tpu.memory_space<smem>>
    %c3_112 = arith.constant 3 : index
    %265 = memref.load %arg0[%c3_112] : memref<8xf32, #tpu.memory_space<smem>>
    %266 = arith.subf %264, %265 : f32
    %cst_113 = arith.constant dense<0.000000e+00> : vector<1x40xf32>
    %267 = tpu.matmul %262, %0, %cst_113 {dimension_numbers = #tpu.dot_dimension_numbers<[1], [0], [0], [1], [0, 0, 1, 1], [], []>} : vector<1x8xf32>, vector<8x40xf32>, vector<1x40xf32> -> vector<1x40xf32>
    %268 = arith.addf %267, %1 : vector<1x40xf32>
    %269 = math.tanh %268 : vector<1x40xf32>
    %cst_114 = arith.constant dense<0.000000e+00> : vector<1x40xf32>
    %270 = tpu.matmul %269, %3, %cst_114 {dimension_numbers = #tpu.dot_dimension_numbers<[1], [0], [0], [1], [0, 0, 1, 1], [], []>} : vector<1x40xf32>, vector<40x40xf32>, vector<1x40xf32> -> vector<1x40xf32>
    %271 = arith.addf %270, %9 : vector<1x40xf32>
    %272 = math.tanh %271 : vector<1x40xf32>
    %cst_115 = arith.constant dense<0.000000e+00> : vector<1x40xf32>
    %273 = tpu.matmul %272, %5, %cst_115 {dimension_numbers = #tpu.dot_dimension_numbers<[1], [0], [0], [1], [0, 0, 1, 1], [], []>} : vector<1x40xf32>, vector<40x40xf32>, vector<1x40xf32> -> vector<1x40xf32>
    %274 = arith.addf %273, %11 : vector<1x40xf32>
    %275 = math.tanh %274 : vector<1x40xf32>
    %cst_116 = arith.constant dense<0.000000e+00> : vector<1x40xf32>
    %276 = tpu.matmul %275, %7, %cst_116 {dimension_numbers = #tpu.dot_dimension_numbers<[1], [0], [0], [1], [0, 0, 1, 1], [], []>} : vector<1x40xf32>, vector<40x40xf32>, vector<1x40xf32> -> vector<1x40xf32>
    %277 = arith.addf %276, %13 : vector<1x40xf32>
    %278 = math.tanh %277 : vector<1x40xf32>
    %cst_117 = arith.constant dense<0.000000e+00> : vector<1x8xf32>
    %279 = tpu.matmul %278, %14, %cst_117 {dimension_numbers = #tpu.dot_dimension_numbers<[1], [0], [0], [1], [0, 0, 1, 1], [], []>} : vector<1x40xf32>, vector<40x8xf32>, vector<1x8xf32> -> vector<1x8xf32>
    %280 = arith.addf %279, %15 : vector<1x8xf32>
    %cst_118 = arith.constant 5.000000e-01 : f32
    %281 = arith.mulf %cst_118, %266 : f32
    %282 = vector.broadcast %281 : f32 to vector<1x8xf32>
    %283 = arith.mulf %282, %280 : vector<1x8xf32>
    %284 = arith.addf %262, %283 : vector<1x8xf32>
    %cst_119 = arith.constant dense<0.000000e+00> : vector<1x40xf32>
    %285 = tpu.matmul %284, %0, %cst_119 {dimension_numbers = #tpu.dot_dimension_numbers<[1], [0], [0], [1], [0, 0, 1, 1], [], []>} : vector<1x8xf32>, vector<8x40xf32>, vector<1x40xf32> -> vector<1x40xf32>
    %286 = arith.addf %285, %1 : vector<1x40xf32>
    %287 = math.tanh %286 : vector<1x40xf32>
    %cst_120 = arith.constant dense<0.000000e+00> : vector<1x40xf32>
    %288 = tpu.matmul %287, %3, %cst_120 {dimension_numbers = #tpu.dot_dimension_numbers<[1], [0], [0], [1], [0, 0, 1, 1], [], []>} : vector<1x40xf32>, vector<40x40xf32>, vector<1x40xf32> -> vector<1x40xf32>
    %289 = arith.addf %288, %9 : vector<1x40xf32>
    %290 = math.tanh %289 : vector<1x40xf32>
    %cst_121 = arith.constant dense<0.000000e+00> : vector<1x40xf32>
    %291 = tpu.matmul %290, %5, %cst_121 {dimension_numbers = #tpu.dot_dimension_numbers<[1], [0], [0], [1], [0, 0, 1, 1], [], []>} : vector<1x40xf32>, vector<40x40xf32>, vector<1x40xf32> -> vector<1x40xf32>
    %292 = arith.addf %291, %11 : vector<1x40xf32>
    %293 = math.tanh %292 : vector<1x40xf32>
    %cst_122 = arith.constant dense<0.000000e+00> : vector<1x40xf32>
    %294 = tpu.matmul %293, %7, %cst_122 {dimension_numbers = #tpu.dot_dimension_numbers<[1], [0], [0], [1], [0, 0, 1, 1], [], []>} : vector<1x40xf32>, vector<40x40xf32>, vector<1x40xf32> -> vector<1x40xf32>
    %295 = arith.addf %294, %13 : vector<1x40xf32>
    %296 = math.tanh %295 : vector<1x40xf32>
    %cst_123 = arith.constant dense<0.000000e+00> : vector<1x8xf32>
    %297 = tpu.matmul %296, %14, %cst_123 {dimension_numbers = #tpu.dot_dimension_numbers<[1], [0], [0], [1], [0, 0, 1, 1], [], []>} : vector<1x40xf32>, vector<40x8xf32>, vector<1x8xf32> -> vector<1x8xf32>
    %298 = arith.addf %297, %15 : vector<1x8xf32>
    %cst_124 = arith.constant 5.000000e-01 : f32
    %299 = arith.mulf %cst_124, %266 : f32
    %300 = vector.broadcast %299 : f32 to vector<1x8xf32>
    %301 = arith.mulf %300, %298 : vector<1x8xf32>
    %302 = arith.addf %262, %301 : vector<1x8xf32>
    %cst_125 = arith.constant dense<0.000000e+00> : vector<1x40xf32>
    %303 = tpu.matmul %302, %0, %cst_125 {dimension_numbers = #tpu.dot_dimension_numbers<[1], [0], [0], [1], [0, 0, 1, 1], [], []>} : vector<1x8xf32>, vector<8x40xf32>, vector<1x40xf32> -> vector<1x40xf32>
    %304 = arith.addf %303, %1 : vector<1x40xf32>
    %305 = math.tanh %304 : vector<1x40xf32>
    %cst_126 = arith.constant dense<0.000000e+00> : vector<1x40xf32>
    %306 = tpu.matmul %305, %3, %cst_126 {dimension_numbers = #tpu.dot_dimension_numbers<[1], [0], [0], [1], [0, 0, 1, 1], [], []>} : vector<1x40xf32>, vector<40x40xf32>, vector<1x40xf32> -> vector<1x40xf32>
    %307 = arith.addf %306, %9 : vector<1x40xf32>
    %308 = math.tanh %307 : vector<1x40xf32>
    %cst_127 = arith.constant dense<0.000000e+00> : vector<1x40xf32>
    %309 = tpu.matmul %308, %5, %cst_127 {dimension_numbers = #tpu.dot_dimension_numbers<[1], [0], [0], [1], [0, 0, 1, 1], [], []>} : vector<1x40xf32>, vector<40x40xf32>, vector<1x40xf32> -> vector<1x40xf32>
    %310 = arith.addf %309, %11 : vector<1x40xf32>
    %311 = math.tanh %310 : vector<1x40xf32>
    %cst_128 = arith.constant dense<0.000000e+00> : vector<1x40xf32>
    %312 = tpu.matmul %311, %7, %cst_128 {dimension_numbers = #tpu.dot_dimension_numbers<[1], [0], [0], [1], [0, 0, 1, 1], [], []>} : vector<1x40xf32>, vector<40x40xf32>, vector<1x40xf32> -> vector<1x40xf32>
    %313 = arith.addf %312, %13 : vector<1x40xf32>
    %314 = math.tanh %313 : vector<1x40xf32>
    %cst_129 = arith.constant dense<0.000000e+00> : vector<1x8xf32>
    %315 = tpu.matmul %314, %14, %cst_129 {dimension_numbers = #tpu.dot_dimension_numbers<[1], [0], [0], [1], [0, 0, 1, 1], [], []>} : vector<1x40xf32>, vector<40x8xf32>, vector<1x8xf32> -> vector<1x8xf32>
    %316 = arith.addf %315, %15 : vector<1x8xf32>
    %317 = vector.broadcast %266 : f32 to vector<1x8xf32>
    %318 = arith.mulf %317, %316 : vector<1x8xf32>
    %319 = arith.addf %262, %318 : vector<1x8xf32>
    %cst_130 = arith.constant dense<0.000000e+00> : vector<1x40xf32>
    %320 = tpu.matmul %319, %0, %cst_130 {dimension_numbers = #tpu.dot_dimension_numbers<[1], [0], [0], [1], [0, 0, 1, 1], [], []>} : vector<1x8xf32>, vector<8x40xf32>, vector<1x40xf32> -> vector<1x40xf32>
    %321 = arith.addf %320, %1 : vector<1x40xf32>
    %322 = math.tanh %321 : vector<1x40xf32>
    %cst_131 = arith.constant dense<0.000000e+00> : vector<1x40xf32>
    %323 = tpu.matmul %322, %3, %cst_131 {dimension_numbers = #tpu.dot_dimension_numbers<[1], [0], [0], [1], [0, 0, 1, 1], [], []>} : vector<1x40xf32>, vector<40x40xf32>, vector<1x40xf32> -> vector<1x40xf32>
    %324 = arith.addf %323, %9 : vector<1x40xf32>
    %325 = math.tanh %324 : vector<1x40xf32>
    %cst_132 = arith.constant dense<0.000000e+00> : vector<1x40xf32>
    %326 = tpu.matmul %325, %5, %cst_132 {dimension_numbers = #tpu.dot_dimension_numbers<[1], [0], [0], [1], [0, 0, 1, 1], [], []>} : vector<1x40xf32>, vector<40x40xf32>, vector<1x40xf32> -> vector<1x40xf32>
    %327 = arith.addf %326, %11 : vector<1x40xf32>
    %328 = math.tanh %327 : vector<1x40xf32>
    %cst_133 = arith.constant dense<0.000000e+00> : vector<1x40xf32>
    %329 = tpu.matmul %328, %7, %cst_133 {dimension_numbers = #tpu.dot_dimension_numbers<[1], [0], [0], [1], [0, 0, 1, 1], [], []>} : vector<1x40xf32>, vector<40x40xf32>, vector<1x40xf32> -> vector<1x40xf32>
    %330 = arith.addf %329, %13 : vector<1x40xf32>
    %331 = math.tanh %330 : vector<1x40xf32>
    %cst_134 = arith.constant dense<0.000000e+00> : vector<1x8xf32>
    %332 = tpu.matmul %331, %14, %cst_134 {dimension_numbers = #tpu.dot_dimension_numbers<[1], [0], [0], [1], [0, 0, 1, 1], [], []>} : vector<1x40xf32>, vector<40x8xf32>, vector<1x8xf32> -> vector<1x8xf32>
    %333 = arith.addf %332, %15 : vector<1x8xf32>
    %cst_135 = arith.constant 6.000000e+00 : f32
    %334 = arith.divf %266, %cst_135 : f32
    %cst_136 = arith.constant 2.000000e+00 : f32
    %335 = vector.broadcast %cst_136 : f32 to vector<1x8xf32>
    %336 = arith.mulf %335, %298 : vector<1x8xf32>
    %337 = arith.addf %280, %336 : vector<1x8xf32>
    %cst_137 = arith.constant 2.000000e+00 : f32
    %338 = vector.broadcast %cst_137 : f32 to vector<1x8xf32>
    %339 = arith.mulf %338, %316 : vector<1x8xf32>
    %340 = arith.addf %337, %339 : vector<1x8xf32>
    %341 = arith.addf %340, %333 : vector<1x8xf32>
    %342 = vector.broadcast %334 : f32 to vector<1x8xf32>
    %343 = arith.mulf %342, %341 : vector<1x8xf32>
    %344 = arith.addf %262, %343 : vector<1x8xf32>
    %c4_138 = arith.constant 4 : index
    %c0_139 = arith.constant 0 : index
    %345 = vector.load %arg8[%c4_138, %c0_139] : memref<8x8xf32, #tpu.memory_space<vmem>>, vector<1x8xf32>
    tpu.vector_store %arg8[%c4_138, %c0_139], %344 {strides = array<i32>} : memref<8x8xf32, #tpu.memory_space<vmem>>, vector<1x8xf32>,
    %c5 = arith.constant 5 : index
    %346 = memref.load %arg0[%c5] : memref<8xf32, #tpu.memory_space<smem>>
    %c4_140 = arith.constant 4 : index
    %347 = memref.load %arg0[%c4_140] : memref<8xf32, #tpu.memory_space<smem>>
    %348 = arith.subf %346, %347 : f32
    %cst_141 = arith.constant dense<0.000000e+00> : vector<1x40xf32>
    %349 = tpu.matmul %344, %0, %cst_141 {dimension_numbers = #tpu.dot_dimension_numbers<[1], [0], [0], [1], [0, 0, 1, 1], [], []>} : vector<1x8xf32>, vector<8x40xf32>, vector<1x40xf32> -> vector<1x40xf32>
    %350 = arith.addf %349, %1 : vector<1x40xf32>
    %351 = math.tanh %350 : vector<1x40xf32>
    %cst_142 = arith.constant dense<0.000000e+00> : vector<1x40xf32>
    %352 = tpu.matmul %351, %3, %cst_142 {dimension_numbers = #tpu.dot_dimension_numbers<[1], [0], [0], [1], [0, 0, 1, 1], [], []>} : vector<1x40xf32>, vector<40x40xf32>, vector<1x40xf32> -> vector<1x40xf32>
    %353 = arith.addf %352, %9 : vector<1x40xf32>
    %354 = math.tanh %353 : vector<1x40xf32>
    %cst_143 = arith.constant dense<0.000000e+00> : vector<1x40xf32>
    %355 = tpu.matmul %354, %5, %cst_143 {dimension_numbers = #tpu.dot_dimension_numbers<[1], [0], [0], [1], [0, 0, 1, 1], [], []>} : vector<1x40xf32>, vector<40x40xf32>, vector<1x40xf32> -> vector<1x40xf32>
    %356 = arith.addf %355, %11 : vector<1x40xf32>
    %357 = math.tanh %356 : vector<1x40xf32>
    %cst_144 = arith.constant dense<0.000000e+00> : vector<1x40xf32>
    %358 = tpu.matmul %357, %7, %cst_144 {dimension_numbers = #tpu.dot_dimension_numbers<[1], [0], [0], [1], [0, 0, 1, 1], [], []>} : vector<1x40xf32>, vector<40x40xf32>, vector<1x40xf32> -> vector<1x40xf32>
    %359 = arith.addf %358, %13 : vector<1x40xf32>
    %360 = math.tanh %359 : vector<1x40xf32>
    %cst_145 = arith.constant dense<0.000000e+00> : vector<1x8xf32>
    %361 = tpu.matmul %360, %14, %cst_145 {dimension_numbers = #tpu.dot_dimension_numbers<[1], [0], [0], [1], [0, 0, 1, 1], [], []>} : vector<1x40xf32>, vector<40x8xf32>, vector<1x8xf32> -> vector<1x8xf32>
    %362 = arith.addf %361, %15 : vector<1x8xf32>
    %cst_146 = arith.constant 5.000000e-01 : f32
    %363 = arith.mulf %cst_146, %348 : f32
    %364 = vector.broadcast %363 : f32 to vector<1x8xf32>
    %365 = arith.mulf %364, %362 : vector<1x8xf32>
    %366 = arith.addf %344, %365 : vector<1x8xf32>
    %cst_147 = arith.constant dense<0.000000e+00> : vector<1x40xf32>
    %367 = tpu.matmul %366, %0, %cst_147 {dimension_numbers = #tpu.dot_dimension_numbers<[1], [0], [0], [1], [0, 0, 1, 1], [], []>} : vector<1x8xf32>, vector<8x40xf32>, vector<1x40xf32> -> vector<1x40xf32>
    %368 = arith.addf %367, %1 : vector<1x40xf32>
    %369 = math.tanh %368 : vector<1x40xf32>
    %cst_148 = arith.constant dense<0.000000e+00> : vector<1x40xf32>
    %370 = tpu.matmul %369, %3, %cst_148 {dimension_numbers = #tpu.dot_dimension_numbers<[1], [0], [0], [1], [0, 0, 1, 1], [], []>} : vector<1x40xf32>, vector<40x40xf32>, vector<1x40xf32> -> vector<1x40xf32>
    %371 = arith.addf %370, %9 : vector<1x40xf32>
    %372 = math.tanh %371 : vector<1x40xf32>
    %cst_149 = arith.constant dense<0.000000e+00> : vector<1x40xf32>
    %373 = tpu.matmul %372, %5, %cst_149 {dimension_numbers = #tpu.dot_dimension_numbers<[1], [0], [0], [1], [0, 0, 1, 1], [], []>} : vector<1x40xf32>, vector<40x40xf32>, vector<1x40xf32> -> vector<1x40xf32>
    %374 = arith.addf %373, %11 : vector<1x40xf32>
    %375 = math.tanh %374 : vector<1x40xf32>
    %cst_150 = arith.constant dense<0.000000e+00> : vector<1x40xf32>
    %376 = tpu.matmul %375, %7, %cst_150 {dimension_numbers = #tpu.dot_dimension_numbers<[1], [0], [0], [1], [0, 0, 1, 1], [], []>} : vector<1x40xf32>, vector<40x40xf32>, vector<1x40xf32> -> vector<1x40xf32>
    %377 = arith.addf %376, %13 : vector<1x40xf32>
    %378 = math.tanh %377 : vector<1x40xf32>
    %cst_151 = arith.constant dense<0.000000e+00> : vector<1x8xf32>
    %379 = tpu.matmul %378, %14, %cst_151 {dimension_numbers = #tpu.dot_dimension_numbers<[1], [0], [0], [1], [0, 0, 1, 1], [], []>} : vector<1x40xf32>, vector<40x8xf32>, vector<1x8xf32> -> vector<1x8xf32>
    %380 = arith.addf %379, %15 : vector<1x8xf32>
    %cst_152 = arith.constant 5.000000e-01 : f32
    %381 = arith.mulf %cst_152, %348 : f32
    %382 = vector.broadcast %381 : f32 to vector<1x8xf32>
    %383 = arith.mulf %382, %380 : vector<1x8xf32>
    %384 = arith.addf %344, %383 : vector<1x8xf32>
    %cst_153 = arith.constant dense<0.000000e+00> : vector<1x40xf32>
    %385 = tpu.matmul %384, %0, %cst_153 {dimension_numbers = #tpu.dot_dimension_numbers<[1], [0], [0], [1], [0, 0, 1, 1], [], []>} : vector<1x8xf32>, vector<8x40xf32>, vector<1x40xf32> -> vector<1x40xf32>
    %386 = arith.addf %385, %1 : vector<1x40xf32>
    %387 = math.tanh %386 : vector<1x40xf32>
    %cst_154 = arith.constant dense<0.000000e+00> : vector<1x40xf32>
    %388 = tpu.matmul %387, %3, %cst_154 {dimension_numbers = #tpu.dot_dimension_numbers<[1], [0], [0], [1], [0, 0, 1, 1], [], []>} : vector<1x40xf32>, vector<40x40xf32>, vector<1x40xf32> -> vector<1x40xf32>
    %389 = arith.addf %388, %9 : vector<1x40xf32>
    %390 = math.tanh %389 : vector<1x40xf32>
    %cst_155 = arith.constant dense<0.000000e+00> : vector<1x40xf32>
    %391 = tpu.matmul %390, %5, %cst_155 {dimension_numbers = #tpu.dot_dimension_numbers<[1], [0], [0], [1], [0, 0, 1, 1], [], []>} : vector<1x40xf32>, vector<40x40xf32>, vector<1x40xf32> -> vector<1x40xf32>
    %392 = arith.addf %391, %11 : vector<1x40xf32>
    %393 = math.tanh %392 : vector<1x40xf32>
    %cst_156 = arith.constant dense<0.000000e+00> : vector<1x40xf32>
    %394 = tpu.matmul %393, %7, %cst_156 {dimension_numbers = #tpu.dot_dimension_numbers<[1], [0], [0], [1], [0, 0, 1, 1], [], []>} : vector<1x40xf32>, vector<40x40xf32>, vector<1x40xf32> -> vector<1x40xf32>
    %395 = arith.addf %394, %13 : vector<1x40xf32>
    %396 = math.tanh %395 : vector<1x40xf32>
    %cst_157 = arith.constant dense<0.000000e+00> : vector<1x8xf32>
    %397 = tpu.matmul %396, %14, %cst_157 {dimension_numbers = #tpu.dot_dimension_numbers<[1], [0], [0], [1], [0, 0, 1, 1], [], []>} : vector<1x40xf32>, vector<40x8xf32>, vector<1x8xf32> -> vector<1x8xf32>
    %398 = arith.addf %397, %15 : vector<1x8xf32>
    %399 = vector.broadcast %348 : f32 to vector<1x8xf32>
    %400 = arith.mulf %399, %398 : vector<1x8xf32>
    %401 = arith.addf %344, %400 : vector<1x8xf32>
    %cst_158 = arith.constant dense<0.000000e+00> : vector<1x40xf32>
    %402 = tpu.matmul %401, %0, %cst_158 {dimension_numbers = #tpu.dot_dimension_numbers<[1], [0], [0], [1], [0, 0, 1, 1], [], []>} : vector<1x8xf32>, vector<8x40xf32>, vector<1x40xf32> -> vector<1x40xf32>
    %403 = arith.addf %402, %1 : vector<1x40xf32>
    %404 = math.tanh %403 : vector<1x40xf32>
    %cst_159 = arith.constant dense<0.000000e+00> : vector<1x40xf32>
    %405 = tpu.matmul %404, %3, %cst_159 {dimension_numbers = #tpu.dot_dimension_numbers<[1], [0], [0], [1], [0, 0, 1, 1], [], []>} : vector<1x40xf32>, vector<40x40xf32>, vector<1x40xf32> -> vector<1x40xf32>
    %406 = arith.addf %405, %9 : vector<1x40xf32>
    %407 = math.tanh %406 : vector<1x40xf32>
    %cst_160 = arith.constant dense<0.000000e+00> : vector<1x40xf32>
    %408 = tpu.matmul %407, %5, %cst_160 {dimension_numbers = #tpu.dot_dimension_numbers<[1], [0], [0], [1], [0, 0, 1, 1], [], []>} : vector<1x40xf32>, vector<40x40xf32>, vector<1x40xf32> -> vector<1x40xf32>
    %409 = arith.addf %408, %11 : vector<1x40xf32>
    %410 = math.tanh %409 : vector<1x40xf32>
    %cst_161 = arith.constant dense<0.000000e+00> : vector<1x40xf32>
    %411 = tpu.matmul %410, %7, %cst_161 {dimension_numbers = #tpu.dot_dimension_numbers<[1], [0], [0], [1], [0, 0, 1, 1], [], []>} : vector<1x40xf32>, vector<40x40xf32>, vector<1x40xf32> -> vector<1x40xf32>
    %412 = arith.addf %411, %13 : vector<1x40xf32>
    %413 = math.tanh %412 : vector<1x40xf32>
    %cst_162 = arith.constant dense<0.000000e+00> : vector<1x8xf32>
    %414 = tpu.matmul %413, %14, %cst_162 {dimension_numbers = #tpu.dot_dimension_numbers<[1], [0], [0], [1], [0, 0, 1, 1], [], []>} : vector<1x40xf32>, vector<40x8xf32>, vector<1x8xf32> -> vector<1x8xf32>
    %415 = arith.addf %414, %15 : vector<1x8xf32>
    %cst_163 = arith.constant 6.000000e+00 : f32
    %416 = arith.divf %348, %cst_163 : f32
    %cst_164 = arith.constant 2.000000e+00 : f32
    %417 = vector.broadcast %cst_164 : f32 to vector<1x8xf32>
    %418 = arith.mulf %417, %380 : vector<1x8xf32>
    %419 = arith.addf %362, %418 : vector<1x8xf32>
    %cst_165 = arith.constant 2.000000e+00 : f32
    %420 = vector.broadcast %cst_165 : f32 to vector<1x8xf32>
    %421 = arith.mulf %420, %398 : vector<1x8xf32>
    %422 = arith.addf %419, %421 : vector<1x8xf32>
    %423 = arith.addf %422, %415 : vector<1x8xf32>
    %424 = vector.broadcast %416 : f32 to vector<1x8xf32>
    %425 = arith.mulf %424, %423 : vector<1x8xf32>
    %426 = arith.addf %344, %425 : vector<1x8xf32>
    %c5_166 = arith.constant 5 : index
    %c0_167 = arith.constant 0 : index
    %427 = vector.load %arg8[%c5_166, %c0_167] : memref<8x8xf32, #tpu.memory_space<vmem>>, vector<1x8xf32>
    tpu.vector_store %arg8[%c5_166, %c0_167], %426 {strides = array<i32>} : memref<8x8xf32, #tpu.memory_space<vmem>>, vector<1x8xf32>,
    %c6 = arith.constant 6 : index
    %428 = memref.load %arg0[%c6] : memref<8xf32, #tpu.memory_space<smem>>
    %c5_168 = arith.constant 5 : index
    %429 = memref.load %arg0[%c5_168] : memref<8xf32, #tpu.memory_space<smem>>
    %430 = arith.subf %428, %429 : f32
    %cst_169 = arith.constant dense<0.000000e+00> : vector<1x40xf32>
    %431 = tpu.matmul %426, %0, %cst_169 {dimension_numbers = #tpu.dot_dimension_numbers<[1], [0], [0], [1], [0, 0, 1, 1], [], []>} : vector<1x8xf32>, vector<8x40xf32>, vector<1x40xf32> -> vector<1x40xf32>
    %432 = arith.addf %431, %1 : vector<1x40xf32>
    %433 = math.tanh %432 : vector<1x40xf32>
    %cst_170 = arith.constant dense<0.000000e+00> : vector<1x40xf32>
    %434 = tpu.matmul %433, %3, %cst_170 {dimension_numbers = #tpu.dot_dimension_numbers<[1], [0], [0], [1], [0, 0, 1, 1], [], []>} : vector<1x40xf32>, vector<40x40xf32>, vector<1x40xf32> -> vector<1x40xf32>
    %435 = arith.addf %434, %9 : vector<1x40xf32>
    %436 = math.tanh %435 : vector<1x40xf32>
    %cst_171 = arith.constant dense<0.000000e+00> : vector<1x40xf32>
    %437 = tpu.matmul %436, %5, %cst_171 {dimension_numbers = #tpu.dot_dimension_numbers<[1], [0], [0], [1], [0, 0, 1, 1], [], []>} : vector<1x40xf32>, vector<40x40xf32>, vector<1x40xf32> -> vector<1x40xf32>
    %438 = arith.addf %437, %11 : vector<1x40xf32>
    %439 = math.tanh %438 : vector<1x40xf32>
    %cst_172 = arith.constant dense<0.000000e+00> : vector<1x40xf32>
    %440 = tpu.matmul %439, %7, %cst_172 {dimension_numbers = #tpu.dot_dimension_numbers<[1], [0], [0], [1], [0, 0, 1, 1], [], []>} : vector<1x40xf32>, vector<40x40xf32>, vector<1x40xf32> -> vector<1x40xf32>
    %441 = arith.addf %440, %13 : vector<1x40xf32>
    %442 = math.tanh %441 : vector<1x40xf32>
    %cst_173 = arith.constant dense<0.000000e+00> : vector<1x8xf32>
    %443 = tpu.matmul %442, %14, %cst_173 {dimension_numbers = #tpu.dot_dimension_numbers<[1], [0], [0], [1], [0, 0, 1, 1], [], []>} : vector<1x40xf32>, vector<40x8xf32>, vector<1x8xf32> -> vector<1x8xf32>
    %444 = arith.addf %443, %15 : vector<1x8xf32>
    %cst_174 = arith.constant 5.000000e-01 : f32
    %445 = arith.mulf %cst_174, %430 : f32
    %446 = vector.broadcast %445 : f32 to vector<1x8xf32>
    %447 = arith.mulf %446, %444 : vector<1x8xf32>
    %448 = arith.addf %426, %447 : vector<1x8xf32>
    %cst_175 = arith.constant dense<0.000000e+00> : vector<1x40xf32>
    %449 = tpu.matmul %448, %0, %cst_175 {dimension_numbers = #tpu.dot_dimension_numbers<[1], [0], [0], [1], [0, 0, 1, 1], [], []>} : vector<1x8xf32>, vector<8x40xf32>, vector<1x40xf32> -> vector<1x40xf32>
    %450 = arith.addf %449, %1 : vector<1x40xf32>
    %451 = math.tanh %450 : vector<1x40xf32>
    %cst_176 = arith.constant dense<0.000000e+00> : vector<1x40xf32>
    %452 = tpu.matmul %451, %3, %cst_176 {dimension_numbers = #tpu.dot_dimension_numbers<[1], [0], [0], [1], [0, 0, 1, 1], [], []>} : vector<1x40xf32>, vector<40x40xf32>, vector<1x40xf32> -> vector<1x40xf32>
    %453 = arith.addf %452, %9 : vector<1x40xf32>
    %454 = math.tanh %453 : vector<1x40xf32>
    %cst_177 = arith.constant dense<0.000000e+00> : vector<1x40xf32>
    %455 = tpu.matmul %454, %5, %cst_177 {dimension_numbers = #tpu.dot_dimension_numbers<[1], [0], [0], [1], [0, 0, 1, 1], [], []>} : vector<1x40xf32>, vector<40x40xf32>, vector<1x40xf32> -> vector<1x40xf32>
    %456 = arith.addf %455, %11 : vector<1x40xf32>
    %457 = math.tanh %456 : vector<1x40xf32>
    %cst_178 = arith.constant dense<0.000000e+00> : vector<1x40xf32>
    %458 = tpu.matmul %457, %7, %cst_178 {dimension_numbers = #tpu.dot_dimension_numbers<[1], [0], [0], [1], [0, 0, 1, 1], [], []>} : vector<1x40xf32>, vector<40x40xf32>, vector<1x40xf32> -> vector<1x40xf32>
    %459 = arith.addf %458, %13 : vector<1x40xf32>
    %460 = math.tanh %459 : vector<1x40xf32>
    %cst_179 = arith.constant dense<0.000000e+00> : vector<1x8xf32>
    %461 = tpu.matmul %460, %14, %cst_179 {dimension_numbers = #tpu.dot_dimension_numbers<[1], [0], [0], [1], [0, 0, 1, 1], [], []>} : vector<1x40xf32>, vector<40x8xf32>, vector<1x8xf32> -> vector<1x8xf32>
    %462 = arith.addf %461, %15 : vector<1x8xf32>
    %cst_180 = arith.constant 5.000000e-01 : f32
    %463 = arith.mulf %cst_180, %430 : f32
    %464 = vector.broadcast %463 : f32 to vector<1x8xf32>
    %465 = arith.mulf %464, %462 : vector<1x8xf32>
    %466 = arith.addf %426, %465 : vector<1x8xf32>
    %cst_181 = arith.constant dense<0.000000e+00> : vector<1x40xf32>
    %467 = tpu.matmul %466, %0, %cst_181 {dimension_numbers = #tpu.dot_dimension_numbers<[1], [0], [0], [1], [0, 0, 1, 1], [], []>} : vector<1x8xf32>, vector<8x40xf32>, vector<1x40xf32> -> vector<1x40xf32>
    %468 = arith.addf %467, %1 : vector<1x40xf32>
    %469 = math.tanh %468 : vector<1x40xf32>
    %cst_182 = arith.constant dense<0.000000e+00> : vector<1x40xf32>
    %470 = tpu.matmul %469, %3, %cst_182 {dimension_numbers = #tpu.dot_dimension_numbers<[1], [0], [0], [1], [0, 0, 1, 1], [], []>} : vector<1x40xf32>, vector<40x40xf32>, vector<1x40xf32> -> vector<1x40xf32>
    %471 = arith.addf %470, %9 : vector<1x40xf32>
    %472 = math.tanh %471 : vector<1x40xf32>
    %cst_183 = arith.constant dense<0.000000e+00> : vector<1x40xf32>
    %473 = tpu.matmul %472, %5, %cst_183 {dimension_numbers = #tpu.dot_dimension_numbers<[1], [0], [0], [1], [0, 0, 1, 1], [], []>} : vector<1x40xf32>, vector<40x40xf32>, vector<1x40xf32> -> vector<1x40xf32>
    %474 = arith.addf %473, %11 : vector<1x40xf32>
    %475 = math.tanh %474 : vector<1x40xf32>
    %cst_184 = arith.constant dense<0.000000e+00> : vector<1x40xf32>
    %476 = tpu.matmul %475, %7, %cst_184 {dimension_numbers = #tpu.dot_dimension_numbers<[1], [0], [0], [1], [0, 0, 1, 1], [], []>} : vector<1x40xf32>, vector<40x40xf32>, vector<1x40xf32> -> vector<1x40xf32>
    %477 = arith.addf %476, %13 : vector<1x40xf32>
    %478 = math.tanh %477 : vector<1x40xf32>
    %cst_185 = arith.constant dense<0.000000e+00> : vector<1x8xf32>
    %479 = tpu.matmul %478, %14, %cst_185 {dimension_numbers = #tpu.dot_dimension_numbers<[1], [0], [0], [1], [0, 0, 1, 1], [], []>} : vector<1x40xf32>, vector<40x8xf32>, vector<1x8xf32> -> vector<1x8xf32>
    %480 = arith.addf %479, %15 : vector<1x8xf32>
    %481 = vector.broadcast %430 : f32 to vector<1x8xf32>
    %482 = arith.mulf %481, %480 : vector<1x8xf32>
    %483 = arith.addf %426, %482 : vector<1x8xf32>
    %cst_186 = arith.constant dense<0.000000e+00> : vector<1x40xf32>
    %484 = tpu.matmul %483, %0, %cst_186 {dimension_numbers = #tpu.dot_dimension_numbers<[1], [0], [0], [1], [0, 0, 1, 1], [], []>} : vector<1x8xf32>, vector<8x40xf32>, vector<1x40xf32> -> vector<1x40xf32>
    %485 = arith.addf %484, %1 : vector<1x40xf32>
    %486 = math.tanh %485 : vector<1x40xf32>
    %cst_187 = arith.constant dense<0.000000e+00> : vector<1x40xf32>
    %487 = tpu.matmul %486, %3, %cst_187 {dimension_numbers = #tpu.dot_dimension_numbers<[1], [0], [0], [1], [0, 0, 1, 1], [], []>} : vector<1x40xf32>, vector<40x40xf32>, vector<1x40xf32> -> vector<1x40xf32>
    %488 = arith.addf %487, %9 : vector<1x40xf32>
    %489 = math.tanh %488 : vector<1x40xf32>
    %cst_188 = arith.constant dense<0.000000e+00> : vector<1x40xf32>
    %490 = tpu.matmul %489, %5, %cst_188 {dimension_numbers = #tpu.dot_dimension_numbers<[1], [0], [0], [1], [0, 0, 1, 1], [], []>} : vector<1x40xf32>, vector<40x40xf32>, vector<1x40xf32> -> vector<1x40xf32>
    %491 = arith.addf %490, %11 : vector<1x40xf32>
    %492 = math.tanh %491 : vector<1x40xf32>
    %cst_189 = arith.constant dense<0.000000e+00> : vector<1x40xf32>
    %493 = tpu.matmul %492, %7, %cst_189 {dimension_numbers = #tpu.dot_dimension_numbers<[1], [0], [0], [1], [0, 0, 1, 1], [], []>} : vector<1x40xf32>, vector<40x40xf32>, vector<1x40xf32> -> vector<1x40xf32>
    %494 = arith.addf %493, %13 : vector<1x40xf32>
    %495 = math.tanh %494 : vector<1x40xf32>
    %cst_190 = arith.constant dense<0.000000e+00> : vector<1x8xf32>
    %496 = tpu.matmul %495, %14, %cst_190 {dimension_numbers = #tpu.dot_dimension_numbers<[1], [0], [0], [1], [0, 0, 1, 1], [], []>} : vector<1x40xf32>, vector<40x8xf32>, vector<1x8xf32> -> vector<1x8xf32>
    %497 = arith.addf %496, %15 : vector<1x8xf32>
    %cst_191 = arith.constant 6.000000e+00 : f32
    %498 = arith.divf %430, %cst_191 : f32
    %cst_192 = arith.constant 2.000000e+00 : f32
    %499 = vector.broadcast %cst_192 : f32 to vector<1x8xf32>
    %500 = arith.mulf %499, %462 : vector<1x8xf32>
    %501 = arith.addf %444, %500 : vector<1x8xf32>
    %cst_193 = arith.constant 2.000000e+00 : f32
    %502 = vector.broadcast %cst_193 : f32 to vector<1x8xf32>
    %503 = arith.mulf %502, %480 : vector<1x8xf32>
    %504 = arith.addf %501, %503 : vector<1x8xf32>
    %505 = arith.addf %504, %497 : vector<1x8xf32>
    %506 = vector.broadcast %498 : f32 to vector<1x8xf32>
    %507 = arith.mulf %506, %505 : vector<1x8xf32>
    %508 = arith.addf %426, %507 : vector<1x8xf32>
    %c6_194 = arith.constant 6 : index
    %c0_195 = arith.constant 0 : index
    %509 = vector.load %arg8[%c6_194, %c0_195] : memref<8x8xf32, #tpu.memory_space<vmem>>, vector<1x8xf32>
    tpu.vector_store %arg8[%c6_194, %c0_195], %508 {strides = array<i32>} : memref<8x8xf32, #tpu.memory_space<vmem>>, vector<1x8xf32>,
    %c7 = arith.constant 7 : index
    %510 = memref.load %arg0[%c7] : memref<8xf32, #tpu.memory_space<smem>>
    %c6_196 = arith.constant 6 : index
    %511 = memref.load %arg0[%c6_196] : memref<8xf32, #tpu.memory_space<smem>>
    %512 = arith.subf %510, %511 : f32
    %cst_197 = arith.constant dense<0.000000e+00> : vector<1x40xf32>
    %513 = tpu.matmul %508, %0, %cst_197 {dimension_numbers = #tpu.dot_dimension_numbers<[1], [0], [0], [1], [0, 0, 1, 1], [], []>} : vector<1x8xf32>, vector<8x40xf32>, vector<1x40xf32> -> vector<1x40xf32>
    %514 = arith.addf %513, %1 : vector<1x40xf32>
    %515 = math.tanh %514 : vector<1x40xf32>
    %cst_198 = arith.constant dense<0.000000e+00> : vector<1x40xf32>
    %516 = tpu.matmul %515, %3, %cst_198 {dimension_numbers = #tpu.dot_dimension_numbers<[1], [0], [0], [1], [0, 0, 1, 1], [], []>} : vector<1x40xf32>, vector<40x40xf32>, vector<1x40xf32> -> vector<1x40xf32>
    %517 = arith.addf %516, %9 : vector<1x40xf32>
    %518 = math.tanh %517 : vector<1x40xf32>
    %cst_199 = arith.constant dense<0.000000e+00> : vector<1x40xf32>
    %519 = tpu.matmul %518, %5, %cst_199 {dimension_numbers = #tpu.dot_dimension_numbers<[1], [0], [0], [1], [0, 0, 1, 1], [], []>} : vector<1x40xf32>, vector<40x40xf32>, vector<1x40xf32> -> vector<1x40xf32>
    %520 = arith.addf %519, %11 : vector<1x40xf32>
    %521 = math.tanh %520 : vector<1x40xf32>
    %cst_200 = arith.constant dense<0.000000e+00> : vector<1x40xf32>
    %522 = tpu.matmul %521, %7, %cst_200 {dimension_numbers = #tpu.dot_dimension_numbers<[1], [0], [0], [1], [0, 0, 1, 1], [], []>} : vector<1x40xf32>, vector<40x40xf32>, vector<1x40xf32> -> vector<1x40xf32>
    %523 = arith.addf %522, %13 : vector<1x40xf32>
    %524 = math.tanh %523 : vector<1x40xf32>
    %cst_201 = arith.constant dense<0.000000e+00> : vector<1x8xf32>
    %525 = tpu.matmul %524, %14, %cst_201 {dimension_numbers = #tpu.dot_dimension_numbers<[1], [0], [0], [1], [0, 0, 1, 1], [], []>} : vector<1x40xf32>, vector<40x8xf32>, vector<1x8xf32> -> vector<1x8xf32>
    %526 = arith.addf %525, %15 : vector<1x8xf32>
    %cst_202 = arith.constant 5.000000e-01 : f32
    %527 = arith.mulf %cst_202, %512 : f32
    %528 = vector.broadcast %527 : f32 to vector<1x8xf32>
    %529 = arith.mulf %528, %526 : vector<1x8xf32>
    %530 = arith.addf %508, %529 : vector<1x8xf32>
    %cst_203 = arith.constant dense<0.000000e+00> : vector<1x40xf32>
    %531 = tpu.matmul %530, %0, %cst_203 {dimension_numbers = #tpu.dot_dimension_numbers<[1], [0], [0], [1], [0, 0, 1, 1], [], []>} : vector<1x8xf32>, vector<8x40xf32>, vector<1x40xf32> -> vector<1x40xf32>
    %532 = arith.addf %531, %1 : vector<1x40xf32>
    %533 = math.tanh %532 : vector<1x40xf32>
    %cst_204 = arith.constant dense<0.000000e+00> : vector<1x40xf32>
    %534 = tpu.matmul %533, %3, %cst_204 {dimension_numbers = #tpu.dot_dimension_numbers<[1], [0], [0], [1], [0, 0, 1, 1], [], []>} : vector<1x40xf32>, vector<40x40xf32>, vector<1x40xf32> -> vector<1x40xf32>
    %535 = arith.addf %534, %9 : vector<1x40xf32>
    %536 = math.tanh %535 : vector<1x40xf32>
    %cst_205 = arith.constant dense<0.000000e+00> : vector<1x40xf32>
    %537 = tpu.matmul %536, %5, %cst_205 {dimension_numbers = #tpu.dot_dimension_numbers<[1], [0], [0], [1], [0, 0, 1, 1], [], []>} : vector<1x40xf32>, vector<40x40xf32>, vector<1x40xf32> -> vector<1x40xf32>
    %538 = arith.addf %537, %11 : vector<1x40xf32>
    %539 = math.tanh %538 : vector<1x40xf32>
    %cst_206 = arith.constant dense<0.000000e+00> : vector<1x40xf32>
    %540 = tpu.matmul %539, %7, %cst_206 {dimension_numbers = #tpu.dot_dimension_numbers<[1], [0], [0], [1], [0, 0, 1, 1], [], []>} : vector<1x40xf32>, vector<40x40xf32>, vector<1x40xf32> -> vector<1x40xf32>
    %541 = arith.addf %540, %13 : vector<1x40xf32>
    %542 = math.tanh %541 : vector<1x40xf32>
    %cst_207 = arith.constant dense<0.000000e+00> : vector<1x8xf32>
    %543 = tpu.matmul %542, %14, %cst_207 {dimension_numbers = #tpu.dot_dimension_numbers<[1], [0], [0], [1], [0, 0, 1, 1], [], []>} : vector<1x40xf32>, vector<40x8xf32>, vector<1x8xf32> -> vector<1x8xf32>
    %544 = arith.addf %543, %15 : vector<1x8xf32>
    %cst_208 = arith.constant 5.000000e-01 : f32
    %545 = arith.mulf %cst_208, %512 : f32
    %546 = vector.broadcast %545 : f32 to vector<1x8xf32>
    %547 = arith.mulf %546, %544 : vector<1x8xf32>
    %548 = arith.addf %508, %547 : vector<1x8xf32>
    %cst_209 = arith.constant dense<0.000000e+00> : vector<1x40xf32>
    %549 = tpu.matmul %548, %0, %cst_209 {dimension_numbers = #tpu.dot_dimension_numbers<[1], [0], [0], [1], [0, 0, 1, 1], [], []>} : vector<1x8xf32>, vector<8x40xf32>, vector<1x40xf32> -> vector<1x40xf32>
    %550 = arith.addf %549, %1 : vector<1x40xf32>
    %551 = math.tanh %550 : vector<1x40xf32>
    %cst_210 = arith.constant dense<0.000000e+00> : vector<1x40xf32>
    %552 = tpu.matmul %551, %3, %cst_210 {dimension_numbers = #tpu.dot_dimension_numbers<[1], [0], [0], [1], [0, 0, 1, 1], [], []>} : vector<1x40xf32>, vector<40x40xf32>, vector<1x40xf32> -> vector<1x40xf32>
    %553 = arith.addf %552, %9 : vector<1x40xf32>
    %554 = math.tanh %553 : vector<1x40xf32>
    %cst_211 = arith.constant dense<0.000000e+00> : vector<1x40xf32>
    %555 = tpu.matmul %554, %5, %cst_211 {dimension_numbers = #tpu.dot_dimension_numbers<[1], [0], [0], [1], [0, 0, 1, 1], [], []>} : vector<1x40xf32>, vector<40x40xf32>, vector<1x40xf32> -> vector<1x40xf32>
    %556 = arith.addf %555, %11 : vector<1x40xf32>
    %557 = math.tanh %556 : vector<1x40xf32>
    %cst_212 = arith.constant dense<0.000000e+00> : vector<1x40xf32>
    %558 = tpu.matmul %557, %7, %cst_212 {dimension_numbers = #tpu.dot_dimension_numbers<[1], [0], [0], [1], [0, 0, 1, 1], [], []>} : vector<1x40xf32>, vector<40x40xf32>, vector<1x40xf32> -> vector<1x40xf32>
    %559 = arith.addf %558, %13 : vector<1x40xf32>
    %560 = math.tanh %559 : vector<1x40xf32>
    %cst_213 = arith.constant dense<0.000000e+00> : vector<1x8xf32>
    %561 = tpu.matmul %560, %14, %cst_213 {dimension_numbers = #tpu.dot_dimension_numbers<[1], [0], [0], [1], [0, 0, 1, 1], [], []>} : vector<1x40xf32>, vector<40x8xf32>, vector<1x8xf32> -> vector<1x8xf32>
    %562 = arith.addf %561, %15 : vector<1x8xf32>
    %563 = vector.broadcast %512 : f32 to vector<1x8xf32>
    %564 = arith.mulf %563, %562 : vector<1x8xf32>
    %565 = arith.addf %508, %564 : vector<1x8xf32>
    %cst_214 = arith.constant dense<0.000000e+00> : vector<1x40xf32>
    %566 = tpu.matmul %565, %0, %cst_214 {dimension_numbers = #tpu.dot_dimension_numbers<[1], [0], [0], [1], [0, 0, 1, 1], [], []>} : vector<1x8xf32>, vector<8x40xf32>, vector<1x40xf32> -> vector<1x40xf32>
    %567 = arith.addf %566, %1 : vector<1x40xf32>
    %568 = math.tanh %567 : vector<1x40xf32>
    %cst_215 = arith.constant dense<0.000000e+00> : vector<1x40xf32>
    %569 = tpu.matmul %568, %3, %cst_215 {dimension_numbers = #tpu.dot_dimension_numbers<[1], [0], [0], [1], [0, 0, 1, 1], [], []>} : vector<1x40xf32>, vector<40x40xf32>, vector<1x40xf32> -> vector<1x40xf32>
    %570 = arith.addf %569, %9 : vector<1x40xf32>
    %571 = math.tanh %570 : vector<1x40xf32>
    %cst_216 = arith.constant dense<0.000000e+00> : vector<1x40xf32>
    %572 = tpu.matmul %571, %5, %cst_216 {dimension_numbers = #tpu.dot_dimension_numbers<[1], [0], [0], [1], [0, 0, 1, 1], [], []>} : vector<1x40xf32>, vector<40x40xf32>, vector<1x40xf32> -> vector<1x40xf32>
    %573 = arith.addf %572, %11 : vector<1x40xf32>
    %574 = math.tanh %573 : vector<1x40xf32>
    %cst_217 = arith.constant dense<0.000000e+00> : vector<1x40xf32>
    %575 = tpu.matmul %574, %7, %cst_217 {dimension_numbers = #tpu.dot_dimension_numbers<[1], [0], [0], [1], [0, 0, 1, 1], [], []>} : vector<1x40xf32>, vector<40x40xf32>, vector<1x40xf32> -> vector<1x40xf32>
    %576 = arith.addf %575, %13 : vector<1x40xf32>
    %577 = math.tanh %576 : vector<1x40xf32>
    %cst_218 = arith.constant dense<0.000000e+00> : vector<1x8xf32>
    %578 = tpu.matmul %577, %14, %cst_218 {dimension_numbers = #tpu.dot_dimension_numbers<[1], [0], [0], [1], [0, 0, 1, 1], [], []>} : vector<1x40xf32>, vector<40x8xf32>, vector<1x8xf32> -> vector<1x8xf32>
    %579 = arith.addf %578, %15 : vector<1x8xf32>
    %cst_219 = arith.constant 6.000000e+00 : f32
    %580 = arith.divf %512, %cst_219 : f32
    %cst_220 = arith.constant 2.000000e+00 : f32
    %581 = vector.broadcast %cst_220 : f32 to vector<1x8xf32>
    %582 = arith.mulf %581, %544 : vector<1x8xf32>
    %583 = arith.addf %526, %582 : vector<1x8xf32>
    %cst_221 = arith.constant 2.000000e+00 : f32
    %584 = vector.broadcast %cst_221 : f32 to vector<1x8xf32>
    %585 = arith.mulf %584, %562 : vector<1x8xf32>
    %586 = arith.addf %583, %585 : vector<1x8xf32>
    %587 = arith.addf %586, %579 : vector<1x8xf32>
    %588 = vector.broadcast %580 : f32 to vector<1x8xf32>
    %589 = arith.mulf %588, %587 : vector<1x8xf32>
    %590 = arith.addf %508, %589 : vector<1x8xf32>
    %c7_222 = arith.constant 7 : index
    %c0_223 = arith.constant 0 : index
    %591 = vector.load %arg8[%c7_222, %c0_223] : memref<8x8xf32, #tpu.memory_space<vmem>>, vector<1x8xf32>
    tpu.vector_store %arg8[%c7_222, %c0_223], %590 {strides = array<i32>} : memref<8x8xf32, #tpu.memory_space<vmem>>, vector<1x8xf32>,
    return
  }
}

</mosaic_0001>

<llo_original>
// kernel: tpu_custom_call.1
$region0: #{tpu_custom_call.1}
  #allocation0 [shape = 'u32[]', space=smem, size = 0x4, offset = 0x4, fixed_abs, tag = 'smem constant byte address 0x4 - core index']
  #allocation1 [shape = 'u32[144,128]{1,0:T(1,128)}', space=vmem, size = 0x12000, scoped, tag = 'internal scratch']
  %s0 = inlined_call_operand.vmem [shape: f32[8], index: 0, kind: input, shape index: {}]
  %s1 = inlined_call_operand.vmem [shape: f32[1,8], index: 1, kind: input, shape index: {}]
  %s2 = inlined_call_operand.vmem [shape: f32[8,40], index: 2, kind: input, shape index: {}]
  %s3 = inlined_call_operand.vmem [shape: f32[1,40], index: 3, kind: input, shape index: {}]
  %s4 = inlined_call_operand.hbm [shape: f32[3,40,40], index: 4, kind: input, shape index: {}]
  %s5 = inlined_call_operand.vmem [shape: f32[3,1,40], index: 5, kind: input, shape index: {}]
  %s6 = inlined_call_operand.vmem [shape: f32[40,8], index: 6, kind: input, shape index: {}]
  %s7 = inlined_call_operand.vmem [shape: f32[1,8], index: 7, kind: input, shape index: {}]
  %s8 = inlined_call_operand.hbm [shape: f32[8,8], index: 8, kind: output, shape index: {}]
  %s9 = sld [smem:[#allocation0]]
  $region50: #{tpu_custom_call.1} parent=0
    _
  %s11 = ssub.s32 1, %s9
  %s12 = scalar_select 0, %s11, %s9
  $region1: #{tpu_custom_call.1} parent=0
    #allocation2 [shape = 'u8[512]{0}', space=smem, size = 0x200, scoped, tag = 'input window, operand 0, single buffered']
    #allocation3 [shape = 's32[1]{0}', space=sflag, size = 0x4, scoped, tag = 'scoped memory for tpu_custom_call.1']
    #allocation4 [shape = 's32[1]{0}', space=sflag, size = 0x4, scoped, tag = 'scoped memory for tpu_custom_call.1']
    #allocation5 [shape = 's32[1]{0}', space=sflag, size = 0x4, scoped, tag = 'scoped memory for tpu_custom_call.1']
    #allocation6 [shape = 'u8[61440]{0}', space=vmem, size = 0xf000, scoped, tag = 'input window, operand 4, single buffered']
    #allocation7 [shape = 'u8[4096]{0}', space=vmem, size = 0x1000, scoped, tag = 'output window, operand 0, single buffered']
    %13 = vsyncpa [#allocation5], 0
    %14 = vsyncpa [#allocation3], 0
    %15 = vsyncpa [#allocation4], 0
    // Predicated region
    $region2: #{tpu_custom_call.1} parent=1 // pred_check
      _
    $region3: #{tpu_custom_call.1} parent=1 // pred_check_branch
      %17 = sbr.rel (0) target = $region5
    $region4: #{tpu_custom_call.1} parent=1 // pred_region
      %s19 = ssub.s32 16, 16
      %20 = vsyncadd [#allocation5], %s19
      %s22 = sshll.u32 %s0, 4
      %s23 = int_to_ptr.vmem [resolvable:$true] %s22
      %25 = dma.vmem_to_smem %s23, 16, [#allocation2], [#allocation5]
    $region5: #{tpu_custom_call.1} parent=1 // pred_fallthru
      _
    // Predicated region
    $region6: #{tpu_custom_call.1} parent=1 // pred_check
      _
    $region7: #{tpu_custom_call.1} parent=1 // pred_check_branch
      %27 = sbr.rel (0) target = $region9
    $region8: #{tpu_custom_call.1} parent=1 // pred_region
      _
    $region9: #{tpu_custom_call.1} parent=1 // pred_fallthru
      _
    // Predicated region
    $region10: #{tpu_custom_call.1} parent=1 // pred_check
      _
    $region11: #{tpu_custom_call.1} parent=1 // pred_check_branch
      %29 = sbr.rel (0) target = $region13
    $region12: #{tpu_custom_call.1} parent=1 // pred_region
      _
    $region13: #{tpu_custom_call.1} parent=1 // pred_fallthru
      _
    // Predicated region
    $region14: #{tpu_custom_call.1} parent=1 // pred_check
      _
    $region15: #{tpu_custom_call.1} parent=1 // pred_check_branch
      %31 = sbr.rel (0) target = $region17
    $region16: #{tpu_custom_call.1} parent=1 // pred_region
      _
    $region17: #{tpu_custom_call.1} parent=1 // pred_fallthru
      _
    // Predicated region
    $region18: #{tpu_custom_call.1} parent=1 // pred_check
      _
    $region19: #{tpu_custom_call.1} parent=1 // pred_check_branch
      %33 = sbr.rel (0) target = $region21
    $region20: #{tpu_custom_call.1} parent=1 // pred_region
      %s35 = ssub.s32 1920, 1920
      %36 = vsyncadd [#allocation3], %s35
      %s37 = sshll.u32 [#allocation6], 4
      %s38 = int_to_ptr.vmem [resolvable:$true] %s37
      %43 = dma.hbm_to_vmem [thread:$0]  %s4, 1920, %s38, [#allocation3], 128, 128, 8
    $region21: #{tpu_custom_call.1} parent=1 // pred_fallthru
      _
    // Predicated region
    $region22: #{tpu_custom_call.1} parent=1 // pred_check
      _
    $region23: #{tpu_custom_call.1} parent=1 // pred_check_branch
      %45 = sbr.rel (0) target = $region25
    $region24: #{tpu_custom_call.1} parent=1 // pred_region
      _
    $region25: #{tpu_custom_call.1} parent=1 // pred_fallthru
      _
    // Predicated region
    $region26: #{tpu_custom_call.1} parent=1 // pred_check
      _
    $region27: #{tpu_custom_call.1} parent=1 // pred_check_branch
      %47 = sbr.rel (0) target = $region29
    $region28: #{tpu_custom_call.1} parent=1 // pred_region
      _
    $region29: #{tpu_custom_call.1} parent=1 // pred_fallthru
      _
    // Predicated region
    $region30: #{tpu_custom_call.1} parent=1 // pred_check
      _
    $region31: #{tpu_custom_call.1} parent=1 // pred_check_branch
      %49 = sbr.rel (0) target = $region33
    $region32: #{tpu_custom_call.1} parent=1 // pred_region
      _
    $region33: #{tpu_custom_call.1} parent=1 // pred_fallthru
      _
    // Predicated region
    $region34: #{tpu_custom_call.1} parent=1 // pred_check
      _
    $region35: #{tpu_custom_call.1} parent=1 // pred_check_branch
      %51 = sbr.rel (0) target = $region37
    $region36: #{tpu_custom_call.1} parent=1 // pred_region
      %52 = dma.done [#allocation5], 16
    $region37: #{tpu_custom_call.1} parent=1 // pred_fallthru
      _
    // Predicated region
    $region38: #{tpu_custom_call.1} parent=1 // pred_check
      _
    $region39: #{tpu_custom_call.1} parent=1 // pred_check_branch
      %54 = sbr.rel (0) target = $region41
    $region40: #{tpu_custom_call.1} parent=1 // pred_region
      %55 = dma.done [#allocation3], 1920
    $region41: #{tpu_custom_call.1} parent=1 // pred_fallthru
      _
    %56 = sfence
    %v57 = vld [vmem:[%s2] sm:$0xff]
    %v58 = vld [vmem:[%s3] sm:$0x1]
    %v59 = vld [vmem:[#allocation6] sm:$0xff]
    %v60 = vld [vmem:[#allocation6 + $0x8] sm:$0xff]
    %v61 = vld [vmem:[#allocation6 + $0x10] sm:$0xff]
    %v62 = vld [vmem:[#allocation6 + $0x18] sm:$0xff]
    %v63 = vld [vmem:[#allocation6 + $0x20] sm:$0xff]
    %s64 = scalar_lea.vmem [#allocation6], 40
    %v65 = vld [vmem:[%s64] sm:$0xff]
    %v66 = vld [vmem:[%s64 + $0x8] sm:$0xff]
    %v67 = vld [vmem:[%s64 + $0x10] sm:$0xff]
    %v68 = vld [vmem:[%s64 + $0x18] sm:$0xff]
    %v69 = vld [vmem:[%s64 + $0x20] sm:$0xff]
    %s70 = scalar_lea.vmem [#allocation6], 80
    %v71 = vld [vmem:[%s70] sm:$0xff]
    %v72 = vld [vmem:[%s70 + $0x8] sm:$0xff]
    %v73 = vld [vmem:[%s70 + $0x10] sm:$0xff]
    %v74 = vld [vmem:[%s70 + $0x18] sm:$0xff]
    %v75 = vld [vmem:[%s70 + $0x20] sm:$0xff]
    %v76 = vld [vmem:[%s5] sm:$0x1]
    %s77 = scalar_lea.vmem %s5, 1
    %v78 = vld [vmem:[%s77] sm:$0x1]
    %s79 = scalar_lea.vmem %s5, 2
    %v80 = vld [vmem:[%s79] sm:$0x1]
    %v81 = vld [vmem:[%s6] sm:$0xff]
    %v82 = vld [vmem:[%s6 + $0x8] sm:$0xff]
    %v83 = vld [vmem:[%s6 + $0x10] sm:$0xff]
    %v84 = vld [vmem:[%s6 + $0x18] sm:$0xff]
    %v85 = vld [vmem:[%s6 + $0x20] sm:$0xff]
    %v86 = vld [vmem:[%s7] sm:$0x1]
    %v87 = vld [vmem:[%s1] sm:$0x1]
    %vm88 = vcmask 57344
    %89 = vst.msk [vmem:[#allocation7] sm:$0x1] %vm88, %v87
    %s90 = sld [smem:[#allocation2 + $0x1]]
    %s91 = sld [smem:[#allocation2]]
    %s92 = ssub.f32 %s90, %s91
    %vm93 = vcmask 64512
    %v95 = vsel %vm93, %v87, 0
    %97 = vmatprep.subr.mxu0 0.0
    %98 = vmatpush1.msra.mxu0 %v57
    %99 = vmatprep.subr.mxu0 0.0
    %100 = vmatpush1.msra.mxu0 0.0
    %101 = vmatprep.subr.mxu0 0.0
    %102 = vmatpush1.msra.mxu0 0.0
    %103 = vmatprep.subr.mxu0 0.0
    %104 = vmatpush1.msra.mxu0 0.0
    %105 = vmatprep.subr.mxu0 0.0
    %106 = vmatpush1.msra.mxu0 0.0
    %107 = vmatprep.subr.mxu0 0.0
    %108 = vmatpush1.msra.mxu0 0.0
    %109 = vmatprep.subr.mxu0 0.0
    %110 = vmatpush1.msra.mxu0 0.0
    %111 = vmatprep.subr.mxu0 0.0
    %112 = vmatpush1.msra.mxu0 0.0
    %113 = vmatprep.subr.mxu0 0.0
    %114 = vmatpush1.msra.mxu0 0.0
    %115 = vmatprep.subr.mxu0 0.0
    %116 = vmatpush1.msra.mxu0 0.0
    %117 = vmatprep.subr.mxu0 0.0
    %118 = vmatpush1.msra.mxu0 0.0
    %119 = vmatprep.subr.mxu0 0.0
    %120 = vmatpush1.msra.mxu0 0.0
    %121 = vmatprep.subr.mxu0 0.0
    %122 = vmatpush1.msra.mxu0 0.0
    %123 = vmatprep.subr.mxu0 0.0
    %124 = vmatpush1.msra.mxu0 0.0
    %125 = vmatprep.subr.mxu0 0.0
    %126 = vmatpush1.msra.mxu0 0.0
    %127 = vmatprep.subr.mxu0 0.0
    %128 = vmatpush1.msra.mxu0 0.0
    %129 = vmatprep.subr.mxu0 0.0
    %130 = vmatpush1.msra.mxu0 0.0
    %131 = vmatprep.subr.mxu0 0.0
    %132 = vmatpush1.msra.mxu0 0.0
    %133 = vmatprep.subr.mxu0 0.0
    %134 = vmatpush1.msra.mxu0 0.0
    %135 = vmatprep.subr.mxu0 0.0
    %136 = vmatpush1.msra.mxu0 0.0
    %137 = vmatprep.subr.mxu0 0.0
    %138 = vmatpush1.msra.mxu0 0.0
    %139 = vmatprep.subr.mxu0 0.0
    %140 = vmatpush1.msra.mxu0 0.0
    %141 = vmatprep.subr.mxu0 0.0
    %142 = vmatpush1.msra.mxu0 0.0
    %143 = vmatprep.subr.mxu0 0.0
    %144 = vmatpush1.msra.mxu0 0.0
    %145 = vmatprep.subr.mxu0 0.0
    %146 = vmatpush1.msra.mxu0 0.0
    %147 = vmatprep.subr.mxu0 0.0
    %148 = vmatpush1.msra.mxu0 0.0
    %149 = vmatprep.subr.mxu0 0.0
    %150 = vmatpush1.msra.mxu0 0.0
    %151 = vmatprep.subr.mxu0 0.0
    %152 = vmatpush1.msra.mxu0 0.0
    %153 = vmatprep.subr.mxu0 0.0
    %154 = vmatpush1.msra.mxu0 0.0
    %155 = vmatprep.subr.mxu0 0.0
    %156 = vmatpush1.msra.mxu0 0.0
    %157 = vmatprep.subr.mxu0 0.0
    %158 = vmatpush1.msra.mxu0 0.0
    %159 = vmatprep.subr.mxu0 0.0
    %160 = vmatpush1.msra.mxu0 0.0
    %161 = vmatprep.mubr.f32.mxu0 0.0
    %162 = vmatmul.mubr.f32.gmra.mrb[0].mxu0 %v95
    %v163 = vpop.f32.mrb[0].mxu0
    %v164 = vadd.f32 %v58, %v163
    %v165 = vpop.f32.mrb[0].mxu0
    %166 = vdwg.mxu0
    %v167 = vtanh.pop %v164
    %vm168 = vcmask 326656
    %v170 = vsel %vm168, %v167, 0
    %172 = vmatprep.subr.mxu0 0.0
    %173 = vmatpush1.msra.mxu0 %v59
    %174 = vmatprep.subr.mxu0 0.0
    %175 = vmatpush1.msra.mxu0 %v60
    %176 = vmatprep.subr.mxu0 0.0
    %177 = vmatpush1.msra.mxu0 %v61
    %178 = vmatprep.subr.mxu0 0.0
    %179 = vmatpush1.msra.mxu0 %v62
    %180 = vmatprep.subr.mxu0 0.0
    %181 = vmatpush1.msra.mxu0 %v63
    %182 = vmatprep.subr.mxu0 0.0
    %183 = vmatpush1.msra.mxu0 0.0
    %184 = vmatprep.subr.mxu0 0.0
    %185 = vmatpush1.msra.mxu0 0.0
    %186 = vmatprep.subr.mxu0 0.0
    %187 = vmatpush1.msra.mxu0 0.0
    %188 = vmatprep.subr.mxu0 0.0
    %189 = vmatpush1.msra.mxu0 0.0
    %190 = vmatprep.subr.mxu0 0.0
    %191 = vmatpush1.msra.mxu0 0.0
    %192 = vmatprep.subr.mxu0 0.0
    %193 = vmatpush1.msra.mxu0 0.0
    %194 = vmatprep.subr.mxu0 0.0
    %195 = vmatpush1.msra.mxu0 0.0
    %196 = vmatprep.subr.mxu0 0.0
    %197 = vmatpush1.msra.mxu0 0.0
    %198 = vmatprep.subr.mxu0 0.0
    %199 = vmatpush1.msra.mxu0 0.0
    %200 = vmatprep.subr.mxu0 0.0
    %201 = vmatpush1.msra.mxu0 0.0
    %202 = vmatprep.subr.mxu0 0.0
    %203 = vmatpush1.msra.mxu0 0.0
    %204 = vmatprep.subr.mxu0 0.0
    %205 = vmatpush1.msra.mxu0 0.0
    %206 = vmatprep.subr.mxu0 0.0
    %207 = vmatpush1.msra.mxu0 0.0
    %208 = vmatprep.subr.mxu0 0.0
    %209 = vmatpush1.msra.mxu0 0.0
    %210 = vmatprep.subr.mxu0 0.0
    %211 = vmatpush1.msra.mxu0 0.0
    %212 = vmatprep.subr.mxu0 0.0
    %213 = vmatpush1.msra.mxu0 0.0
    %214 = vmatprep.subr.mxu0 0.0
    %215 = vmatpush1.msra.mxu0 0.0
    %216 = vmatprep.subr.mxu0 0.0
    %217 = vmatpush1.msra.mxu0 0.0
    %218 = vmatprep.subr.mxu0 0.0
    %219 = vmatpush1.msra.mxu0 0.0
    %220 = vmatprep.subr.mxu0 0.0
    %221 = vmatpush1.msra.mxu0 0.0
    %222 = vmatprep.subr.mxu0 0.0
    %223 = vmatpush1.msra.mxu0 0.0
    %224 = vmatprep.subr.mxu0 0.0
    %225 = vmatpush1.msra.mxu0 0.0
    %226 = vmatprep.subr.mxu0 0.0
    %227 = vmatpush1.msra.mxu0 0.0
    %228 = vmatprep.subr.mxu0 0.0
    %229 = vmatpush1.msra.mxu0 0.0
    %230 = vmatprep.subr.mxu0 0.0
    %231 = vmatpush1.msra.mxu0 0.0
    %232 = vmatprep.subr.mxu0 0.0
    %233 = vmatpush1.msra.mxu0 0.0
    %234 = vmatprep.subr.mxu0 0.0
    %235 = vmatpush1.msra.mxu0 0.0
    %236 = vmatprep.mubr.f32.mxu0 0.0
    %237 = vmatmul.mubr.f32.gmra.mrb[0].mxu0 %v170
    %v238 = vpop.f32.mrb[0].mxu0
    %v239 = vadd.f32 %v76, %v238
    %v240 = vpop.f32.mrb[0].mxu0
    %241 = vdwg.mxu0
    %v242 = vtanh.pop %v239
    %v244 = vsel %vm168, %v242, 0
    %246 = vmatprep.subr.mxu0 0.0
    %247 = vmatpush1.msra.mxu0 %v65
    %248 = vmatprep.subr.mxu0 0.0
    %249 = vmatpush1.msra.mxu0 %v66
    %250 = vmatprep.subr.mxu0 0.0
    %251 = vmatpush1.msra.mxu0 %v67
    %252 = vmatprep.subr.mxu0 0.0
    %253 = vmatpush1.msra.mxu0 %v68
    %254 = vmatprep.subr.mxu0 0.0
    %255 = vmatpush1.msra.mxu0 %v69
    %256 = vmatprep.subr.mxu0 0.0
    %257 = vmatpush1.msra.mxu0 0.0
    %258 = vmatprep.subr.mxu0 0.0
    %259 = vmatpush1.msra.mxu0 0.0
    %260 = vmatprep.subr.mxu0 0.0
    %261 = vmatpush1.msra.mxu0 0.0
    %262 = vmatprep.subr.mxu0 0.0
    %263 = vmatpush1.msra.mxu0 0.0
    %264 = vmatprep.subr.mxu0 0.0
    %265 = vmatpush1.msra.mxu0 0.0
    %266 = vmatprep.subr.mxu0 0.0
    %267 = vmatpush1.msra.mxu0 0.0
    %268 = vmatprep.subr.mxu0 0.0
    %269 = vmatpush1.msra.mxu0 0.0
    %270 = vmatprep.subr.mxu0 0.0
    %271 = vmatpush1.msra.mxu0 0.0
    %272 = vmatprep.subr.mxu0 0.0
    %273 = vmatpush1.msra.mxu0 0.0
    %274 = vmatprep.subr.mxu0 0.0
    %275 = vmatpush1.msra.mxu0 0.0
    %276 = vmatprep.subr.mxu0 0.0
    %277 = vmatpush1.msra.mxu0 0.0
    %278 = vmatprep.subr.mxu0 0.0
    %279 = vmatpush1.msra.mxu0 0.0
    %280 = vmatprep.subr.mxu0 0.0
    %281 = vmatpush1.msra.mxu0 0.0
    %282 = vmatprep.subr.mxu0 0.0
    %283 = vmatpush1.msra.mxu0 0.0
    %284 = vmatprep.subr.mxu0 0.0
    %285 = vmatpush1.msra.mxu0 0.0
    %286 = vmatprep.subr.mxu0 0.0
    %287 = vmatpush1.msra.mxu0 0.0
    %288 = vmatprep.subr.mxu0 0.0
    %289 = vmatpush1.msra.mxu0 0.0
    %290 = vmatprep.subr.mxu0 0.0
    %291 = vmatpush1.msra.mxu0 0.0
    %292 = vmatprep.subr.mxu0 0.0
    %293 = vmatpush1.msra.mxu0 0.0
    %294 = vmatprep.subr.mxu0 0.0
    %295 = vmatpush1.msra.mxu0 0.0
    %296 = vmatprep.subr.mxu0 0.0
    %297 = vmatpush1.msra.mxu0 0.0
    %298 = vmatprep.subr.mxu0 0.0
    %299 = vmatpush1.msra.mxu0 0.0
    %300 = vmatprep.subr.mxu0 0.0
    %301 = vmatpush1.msra.mxu0 0.0
    %302 = vmatprep.subr.mxu0 0.0
    %303 = vmatpush1.msra.mxu0 0.0
    %304 = vmatprep.subr.mxu0 0.0
    %305 = vmatpush1.msra.mxu0 0.0
    %306 = vmatprep.subr.mxu0 0.0
    %307 = vmatpush1.msra.mxu0 0.0
    %308 = vmatprep.subr.mxu0 0.0
    %309 = vmatpush1.msra.mxu0 0.0
    %310 = vmatprep.mubr.f32.mxu0 0.0
    %311 = vmatmul.mubr.f32.gmra.mrb[0].mxu0 %v244
    %v312 = vpop.f32.mrb[0].mxu0
    %v313 = vadd.f32 %v78, %v312
    %v314 = vpop.f32.mrb[0].mxu0
    %315 = vdwg.mxu0
    %v316 = vtanh.pop %v313
    %v318 = vsel %vm168, %v316, 0
    %320 = vmatprep.subr.mxu0 0.0
    %321 = vmatpush1.msra.mxu0 %v71
    %322 = vmatprep.subr.mxu0 0.0
    %323 = vmatpush1.msra.mxu0 %v72
    %324 = vmatprep.subr.mxu0 0.0
    %325 = vmatpush1.msra.mxu0 %v73
    %326 = vmatprep.subr.mxu0 0.0
    %327 = vmatpush1.msra.mxu0 %v74
    %328 = vmatprep.subr.mxu0 0.0
    %329 = vmatpush1.msra.mxu0 %v75
    %330 = vmatprep.subr.mxu0 0.0
    %331 = vmatpush1.msra.mxu0 0.0
    %332 = vmatprep.subr.mxu0 0.0
    %333 = vmatpush1.msra.mxu0 0.0
    %334 = vmatprep.subr.mxu0 0.0
    %335 = vmatpush1.msra.mxu0 0.0
    %336 = vmatprep.subr.mxu0 0.0
    %337 = vmatpush1.msra.mxu0 0.0
    %338 = vmatprep.subr.mxu0 0.0
    %339 = vmatpush1.msra.mxu0 0.0
    %340 = vmatprep.subr.mxu0 0.0
    %341 = vmatpush1.msra.mxu0 0.0
    %342 = vmatprep.subr.mxu0 0.0
    %343 = vmatpush1.msra.mxu0 0.0
    %344 = vmatprep.subr.mxu0 0.0
    %345 = vmatpush1.msra.mxu0 0.0
    %346 = vmatprep.subr.mxu0 0.0
    %347 = vmatpush1.msra.mxu0 0.0
    %348 = vmatprep.subr.mxu0 0.0
    %349 = vmatpush1.msra.mxu0 0.0
    %350 = vmatprep.subr.mxu0 0.0
    %351 = vmatpush1.msra.mxu0 0.0
    %352 = vmatprep.subr.mxu0 0.0
    %353 = vmatpush1.msra.mxu0 0.0
    %354 = vmatprep.subr.mxu0 0.0
    %355 = vmatpush1.msra.mxu0 0.0
    %356 = vmatprep.subr.mxu0 0.0
    %357 = vmatpush1.msra.mxu0 0.0
    %358 = vmatprep.subr.mxu0 0.0
    %359 = vmatpush1.msra.mxu0 0.0
    %360 = vmatprep.subr.mxu0 0.0
    %361 = vmatpush1.msra.mxu0 0.0
    %362 = vmatprep.subr.mxu0 0.0
    %363 = vmatpush1.msra.mxu0 0.0
    %364 = vmatprep.subr.mxu0 0.0
    %365 = vmatpush1.msra.mxu0 0.0
    %366 = vmatprep.subr.mxu0 0.0
    %367 = vmatpush1.msra.mxu0 0.0
    %368 = vmatprep.subr.mxu0 0.0
    %369 = vmatpush1.msra.mxu0 0.0
    %370 = vmatprep.subr.mxu0 0.0
    %371 = vmatpush1.msra.mxu0 0.0
    %372 = vmatprep.subr.mxu0 0.0
    %373 = vmatpush1.msra.mxu0 0.0
    %374 = vmatprep.subr.mxu0 0.0
    %375 = vmatpush1.msra.mxu0 0.0
    %376 = vmatprep.subr.mxu0 0.0
    %377 = vmatpush1.msra.mxu0 0.0
    %378 = vmatprep.subr.mxu0 0.0
    %379 = vmatpush1.msra.mxu0 0.0
    %380 = vmatprep.subr.mxu0 0.0
    %381 = vmatpush1.msra.mxu0 0.0
    %382 = vmatprep.subr.mxu0 0.0
    %383 = vmatpush1.msra.mxu0 0.0
    %384 = vmatprep.mubr.f32.mxu0 0.0
    %385 = vmatmul.mubr.f32.gmra.mrb[0].mxu0 %v318
    %v386 = vpop.f32.mrb[0].mxu0
    %v387 = vadd.f32 %v80, %v386
    %v388 = vpop.f32.mrb[0].mxu0
    %389 = vdwg.mxu0
    %v390 = vtanh.pop %v387
    %v392 = vsel %vm168, %v390, 0
    %394 = vmatprep.subr.mxu0 0.0
    %395 = vmatpush1.msra.mxu0 %v81
    %396 = vmatprep.subr.mxu0 0.0
    %397 = vmatpush1.msra.mxu0 %v82
    %398 = vmatprep.subr.mxu0 0.0
    %399 = vmatpush1.msra.mxu0 %v83
    %400 = vmatprep.subr.mxu0 0.0
    %401 = vmatpush1.msra.mxu0 %v84
    %402 = vmatprep.subr.mxu0 0.0
    %403 = vmatpush1.msra.mxu0 %v85
    %404 = vmatprep.subr.mxu0 0.0
    %405 = vmatpush1.msra.mxu0 0.0
    %406 = vmatprep.subr.mxu0 0.0
    %407 = vmatpush1.msra.mxu0 0.0
    %408 = vmatprep.subr.mxu0 0.0
    %409 = vmatpush1.msra.mxu0 0.0
    %410 = vmatprep.subr.mxu0 0.0
    %411 = vmatpush1.msra.mxu0 0.0
    %412 = vmatprep.subr.mxu0 0.0
    %413 = vmatpush1.msra.mxu0 0.0
    %414 = vmatprep.subr.mxu0 0.0
    %415 = vmatpush1.msra.mxu0 0.0
    %416 = vmatprep.subr.mxu0 0.0
    %417 = vmatpush1.msra.mxu0 0.0
    %418 = vmatprep.subr.mxu0 0.0
    %419 = vmatpush1.msra.mxu0 0.0
    %420 = vmatprep.subr.mxu0 0.0
    %421 = vmatpush1.msra.mxu0 0.0
    %422 = vmatprep.subr.mxu0 0.0
    %423 = vmatpush1.msra.mxu0 0.0
    %424 = vmatprep.subr.mxu0 0.0
    %425 = vmatpush1.msra.mxu0 0.0
    %426 = vmatprep.subr.mxu0 0.0
    %427 = vmatpush1.msra.mxu0 0.0
    %428 = vmatprep.subr.mxu0 0.0
    %429 = vmatpush1.msra.mxu0 0.0
    %430 = vmatprep.subr.mxu0 0.0
    %431 = vmatpush1.msra.mxu0 0.0
    %432 = vmatprep.subr.mxu0 0.0
    %433 = vmatpush1.msra.mxu0 0.0
    %434 = vmatprep.subr.mxu0 0.0
    %435 = vmatpush1.msra.mxu0 0.0
    %436 = vmatprep.subr.mxu0 0.0
    %437 = vmatpush1.msra.mxu0 0.0
    %438 = vmatprep.subr.mxu0 0.0
    %439 = vmatpush1.msra.mxu0 0.0
    %440 = vmatprep.subr.mxu0 0.0
    %441 = vmatpush1.msra.mxu0 0.0
    %442 = vmatprep.subr.mxu0 0.0
    %443 = vmatpush1.msra.mxu0 0.0
    %444 = vmatprep.subr.mxu0 0.0
    %445 = vmatpush1.msra.mxu0 0.0
    %446 = vmatprep.subr.mxu0 0.0
    %447 = vmatpush1.msra.mxu0 0.0
    %448 = vmatprep.subr.mxu0 0.0
    %449 = vmatpush1.msra.mxu0 0.0
    %450 = vmatprep.subr.mxu0 0.0
    %451 = vmatpush1.msra.mxu0 0.0
    %452 = vmatprep.subr.mxu0 0.0
    %453 = vmatpush1.msra.mxu0 0.0
    %454 = vmatprep.subr.mxu0 0.0
    %455 = vmatpush1.msra.mxu0 0.0
    %456 = vmatprep.subr.mxu0 0.0
    %457 = vmatpush1.msra.mxu0 0.0
    %458 = vmatprep.mubr.f32.mxu0 0.0
    %459 = vmatmul.mubr.f32.gmra.mrb[0].mxu0 %v392
    %v460 = vpop.f32.mrb[0].mxu0
    %v461 = vadd.f32 %v86, %v460
    %v462 = vpop.f32.mrb[0].mxu0
    %463 = vdwg.mxu0
    %s464 = smul.f32 %s92, 0.5
    %v465 = vstv %s464
    %v466 = vmul.f32 %v465, %v461
    %v467 = vadd.f32 %v87, %v466
    %v469 = vsel %vm93, %v467, 0
    %471 = vmatprep.subr.mxu0 0.0
    %472 = vmatpush1.msra.mxu0 %v57
    %473 = vmatprep.subr.mxu0 0.0
    %474 = vmatpush1.msra.mxu0 0.0
    %475 = vmatprep.subr.mxu0 0.0
    %476 = vmatpush1.msra.mxu0 0.0
    %477 = vmatprep.subr.mxu0 0.0
    %478 = vmatpush1.msra.mxu0 0.0
    %479 = vmatprep.subr.mxu0 0.0
    %480 = vmatpush1.msra.mxu0 0.0
    %481 = vmatprep.subr.mxu0 0.0
    %482 = vmatpush1.msra.mxu0 0.0
    %483 = vmatprep.subr.mxu0 0.0
    %484 = vmatpush1.msra.mxu0 0.0
    %485 = vmatprep.subr.mxu0 0.0
    %486 = vmatpush1.msra.mxu0 0.0
    %487 = vmatprep.subr.mxu0 0.0
    %488 = vmatpush1.msra.mxu0 0.0
    %489 = vmatprep.subr.mxu0 0.0
    %490 = vmatpush1.msra.mxu0 0.0
    %491 = vmatprep.subr.mxu0 0.0
    %492 = vmatpush1.msra.mxu0 0.0
    %493 = vmatprep.subr.mxu0 0.0
    %494 = vmatpush1.msra.mxu0 0.0
    %495 = vmatprep.subr.mxu0 0.0
    %496 = vmatpush1.msra.mxu0 0.0
    %497 = vmatprep.subr.mxu0 0.0
    %498 = vmatpush1.msra.mxu0 0.0
    %499 = vmatprep.subr.mxu0 0.0
    %500 = vmatpush1.msra.mxu0 0.0
    %501 = vmatprep.subr.mxu0 0.0
    %502 = vmatpush1.msra.mxu0 0.0
    %503 = vmatprep.subr.mxu0 0.0
    %504 = vmatpush1.msra.mxu0 0.0
    %505 = vmatprep.subr.mxu0 0.0
    %506 = vmatpush1.msra.mxu0 0.0
    %507 = vmatprep.subr.mxu0 0.0
    %508 = vmatpush1.msra.mxu0 0.0
    %509 = vmatprep.subr.mxu0 0.0
    %510 = vmatpush1.msra.mxu0 0.0
    %511 = vmatprep.subr.mxu0 0.0
    %512 = vmatpush1.msra.mxu0 0.0
    %513 = vmatprep.subr.mxu0 0.0
    %514 = vmatpush1.msra.mxu0 0.0
    %515 = vmatprep.subr.mxu0 0.0
    %516 = vmatpush1.msra.mxu0 0.0
    %517 = vmatprep.subr.mxu0 0.0
    %518 = vmatpush1.msra.mxu0 0.0
    %519 = vmatprep.subr.mxu0 0.0
    %520 = vmatpush1.msra.mxu0 0.0
    %521 = vmatprep.subr.mxu0 0.0
    %522 = vmatpush1.msra.mxu0 0.0
    %523 = vmatprep.subr.mxu0 0.0
    %524 = vmatpush1.msra.mxu0 0.0
    %525 = vmatprep.subr.mxu0 0.0
    %526 = vmatpush1.msra.mxu0 0.0
    %527 = vmatprep.subr.mxu0 0.0
    %528 = vmatpush1.msra.mxu0 0.0
    %529 = vmatprep.subr.mxu0 0.0
    %530 = vmatpush1.msra.mxu0 0.0
    %531 = vmatprep.subr.mxu0 0.0
    %532 = vmatpush1.msra.mxu0 0.0
    %533 = vmatprep.subr.mxu0 0.0
    %534 = vmatpush1.msra.mxu0 0.0
    %535 = vmatprep.mubr.f32.mxu0 0.0
    %536 = vmatmul.mubr.f32.gmra.mrb[0].mxu0 %v469
    %v537 = vpop.f32.mrb[0].mxu0
    %v538 = vadd.f32 %v58, %v537
    %v539 = vpop.f32.mrb[0].mxu0
    %540 = vdwg.mxu0
    %v541 = vtanh.pop %v538
    %v543 = vsel %vm168, %v541, 0
    %545 = vmatprep.subr.mxu0 0.0
    %546 = vmatpush1.msra.mxu0 %v59
    %547 = vmatprep.subr.mxu0 0.0
    %548 = vmatpush1.msra.mxu0 %v60
    %549 = vmatprep.subr.mxu0 0.0
    %550 = vmatpush1.msra.mxu0 %v61
    %551 = vmatprep.subr.mxu0 0.0
    %552 = vmatpush1.msra.mxu0 %v62
    %553 = vmatprep.subr.mxu0 0.0
    %554 = vmatpush1.msra.mxu0 %v63
    %555 = vmatprep.subr.mxu0 0.0
    %556 = vmatpush1.msra.mxu0 0.0
    %557 = vmatprep.subr.mxu0 0.0
    %558 = vmatpush1.msra.mxu0 0.0
    %559 = vmatprep.subr.mxu0 0.0
    %560 = vmatpush1.msra.mxu0 0.0
    %561 = vmatprep.subr.mxu0 0.0
    %562 = vmatpush1.msra.mxu0 0.0
    %563 = vmatprep.subr.mxu0 0.0
    %564 = vmatpush1.msra.mxu0 0.0
    %565 = vmatprep.subr.mxu0 0.0
    %566 = vmatpush1.msra.mxu0 0.0
    %567 = vmatprep.subr.mxu0 0.0
    %568 = vmatpush1.msra.mxu0 0.0
    %569 = vmatprep.subr.mxu0 0.0
    %570 = vmatpush1.msra.mxu0 0.0
    %571 = vmatprep.subr.mxu0 0.0
    %572 = vmatpush1.msra.mxu0 0.0
    %573 = vmatprep.subr.mxu0 0.0
    %574 = vmatpush1.msra.mxu0 0.0
    %575 = vmatprep.subr.mxu0 0.0
    %576 = vmatpush1.msra.mxu0 0.0
    %577 = vmatprep.subr.mxu0 0.0
    %578 = vmatpush1.msra.mxu0 0.0
    %579 = vmatprep.subr.mxu0 0.0
    %580 = vmatpush1.msra.mxu0 0.0
    %581 = vmatprep.subr.mxu0 0.0
    %582 = vmatpush1.msra.mxu0 0.0
    %583 = vmatprep.subr.mxu0 0.0
    %584 = vmatpush1.msra.mxu0 0.0
    %585 = vmatprep.subr.mxu0 0.0
    %586 = vmatpush1.msra.mxu0 0.0
    %587 = vmatprep.subr.mxu0 0.0
    %588 = vmatpush1.msra.mxu0 0.0
    %589 = vmatprep.subr.mxu0 0.0
    %590 = vmatpush1.msra.mxu0 0.0
    %591 = vmatprep.subr.mxu0 0.0
    %592 = vmatpush1.msra.mxu0 0.0
    %593 = vmatprep.subr.mxu0 0.0
    %594 = vmatpush1.msra.mxu0 0.0
    %595 = vmatprep.subr.mxu0 0.0
    %596 = vmatpush1.msra.mxu0 0.0
    %597 = vmatprep.subr.mxu0 0.0
    %598 = vmatpush1.msra.mxu0 0.0
    %599 = vmatprep.subr.mxu0 0.0
    %600 = vmatpush1.msra.mxu0 0.0
    %601 = vmatprep.subr.mxu0 0.0
    %602 = vmatpush1.msra.mxu0 0.0
    %603 = vmatprep.subr.mxu0 0.0
    %604 = vmatpush1.msra.mxu0 0.0
    %605 = vmatprep.subr.mxu0 0.0
    %606 = vmatpush1.msra.mxu0 0.0
    %607 = vmatprep.subr.mxu0 0.0
    %608 = vmatpush1.msra.mxu0 0.0
    %609 = vmatprep.mubr.f32.mxu0 0.0
    %610 = vmatmul.mubr.f32.gmra.mrb[0].mxu0 %v543
    %v611 = vpop.f32.mrb[0].mxu0
    %v612 = vadd.f32 %v76, %v611
    %v613 = vpop.f32.mrb[0].mxu0
    %614 = vdwg.mxu0
    %v615 = vtanh.pop %v612
    %v617 = vsel %vm168, %v615, 0
    %619 = vmatprep.subr.mxu0 0.0
    %620 = vmatpush1.msra.mxu0 %v65
    %621 = vmatprep.subr.mxu0 0.0
    %622 = vmatpush1.msra.mxu0 %v66
    %623 = vmatprep.subr.mxu0 0.0
    %624 = vmatpush1.msra.mxu0 %v67
    %625 = vmatprep.subr.mxu0 0.0
    %626 = vmatpush1.msra.mxu0 %v68
    %627 = vmatprep.subr.mxu0 0.0
    %628 = vmatpush1.msra.mxu0 %v69
    %629 = vmatprep.subr.mxu0 0.0
    %630 = vmatpush1.msra.mxu0 0.0
    %631 = vmatprep.subr.mxu0 0.0
    %632 = vmatpush1.msra.mxu0 0.0
    %633 = vmatprep.subr.mxu0 0.0
    %634 = vmatpush1.msra.mxu0 0.0
    %635 = vmatprep.subr.mxu0 0.0
    %636 = vmatpush1.msra.mxu0 0.0
    %637 = vmatprep.subr.mxu0 0.0
    %638 = vmatpush1.msra.mxu0 0.0
    %639 = vmatprep.subr.mxu0 0.0
    %640 = vmatpush1.msra.mxu0 0.0
    %641 = vmatprep.subr.mxu0 0.0
    %642 = vmatpush1.msra.mxu0 0.0
    %643 = vmatprep.subr.mxu0 0.0
    %644 = vmatpush1.msra.mxu0 0.0
    %645 = vmatprep.subr.mxu0 0.0
    %646 = vmatpush1.msra.mxu0 0.0
    %647 = vmatprep.subr.mxu0 0.0
    %648 = vmatpush1.msra.mxu0 0.0
    %649 = vmatprep.subr.mxu0 0.0
    %650 = vmatpush1.msra.mxu0 0.0
    %651 = vmatprep.subr.mxu0 0.0
    %652 = vmatpush1.msra.mxu0 0.0
    %653 = vmatprep.subr.mxu0 0.0
    %654 = vmatpush1.msra.mxu0 0.0
    %655 = vmatprep.subr.mxu0 0.0
    %656 = vmatpush1.msra.mxu0 0.0
    %657 = vmatprep.subr.mxu0 0.0
    %658 = vmatpush1.msra.mxu0 0.0
    %659 = vmatprep.subr.mxu0 0.0
    %660 = vmatpush1.msra.mxu0 0.0
    %661 = vmatprep.subr.mxu0 0.0
    %662 = vmatpush1.msra.mxu0 0.0
    %663 = vmatprep.subr.mxu0 0.0
    %664 = vmatpush1.msra.mxu0 0.0
    %665 = vmatprep.subr.mxu0 0.0
    %666 = vmatpush1.msra.mxu0 0.0
    %667 = vmatprep.subr.mxu0 0.0
    %668 = vmatpush1.msra.mxu0 0.0
    %669 = vmatprep.subr.mxu0 0.0
    %670 = vmatpush1.msra.mxu0 0.0
    %671 = vmatprep.subr.mxu0 0.0
    %672 = vmatpush1.msra.mxu0 0.0
    %673 = vmatprep.subr.mxu0 0.0
    %674 = vmatpush1.msra.mxu0 0.0
    %675 = vmatprep.subr.mxu0 0.0
    %676 = vmatpush1.msra.mxu0 0.0
    %677 = vmatprep.subr.mxu0 0.0
    %678 = vmatpush1.msra.mxu0 0.0
    %679 = vmatprep.subr.mxu0 0.0
    %680 = vmatpush1.msra.mxu0 0.0
    %681 = vmatprep.subr.mxu0 0.0
    %682 = vmatpush1.msra.mxu0 0.0
    %683 = vmatprep.mubr.f32.mxu0 0.0
    %684 = vmatmul.mubr.f32.gmra.mrb[0].mxu0 %v617
    %v685 = vpop.f32.mrb[0].mxu0
    %v686 = vadd.f32 %v78, %v685
    %v687 = vpop.f32.mrb[0].mxu0
    %688 = vdwg.mxu0
    %v689 = vtanh.pop %v686
    %v691 = vsel %vm168, %v689, 0
    %693 = vmatprep.subr.mxu0 0.0
    %694 = vmatpush1.msra.mxu0 %v71
    %695 = vmatprep.subr.mxu0 0.0
    %696 = vmatpush1.msra.mxu0 %v72
    %697 = vmatprep.subr.mxu0 0.0
    %698 = vmatpush1.msra.mxu0 %v73
    %699 = vmatprep.subr.mxu0 0.0
    %700 = vmatpush1.msra.mxu0 %v74
    %701 = vmatprep.subr.mxu0 0.0
    %702 = vmatpush1.msra.mxu0 %v75
    %703 = vmatprep.subr.mxu0 0.0
    %704 = vmatpush1.msra.mxu0 0.0
    %705 = vmatprep.subr.mxu0 0.0
    %706 = vmatpush1.msra.mxu0 0.0
    %707 = vmatprep.subr.mxu0 0.0
    %708 = vmatpush1.msra.mxu0 0.0
    %709 = vmatprep.subr.mxu0 0.0
    %710 = vmatpush1.msra.mxu0 0.0
    %711 = vmatprep.subr.mxu0 0.0
    %712 = vmatpush1.msra.mxu0 0.0
    %713 = vmatprep.subr.mxu0 0.0
    %714 = vmatpush1.msra.mxu0 0.0
    %715 = vmatprep.subr.mxu0 0.0
    %716 = vmatpush1.msra.mxu0 0.0
    %717 = vmatprep.subr.mxu0 0.0
    %718 = vmatpush1.msra.mxu0 0.0
    %719 = vmatprep.subr.mxu0 0.0
    %720 = vmatpush1.msra.mxu0 0.0
    %721 = vmatprep.subr.mxu0 0.0
    %722 = vmatpush1.msra.mxu0 0.0
    %723 = vmatprep.subr.mxu0 0.0
    %724 = vmatpush1.msra.mxu0 0.0
    %725 = vmatprep.subr.mxu0 0.0
    %726 = vmatpush1.msra.mxu0 0.0
    %727 = vmatprep.subr.mxu0 0.0
    %728 = vmatpush1.msra.mxu0 0.0
    %729 = vmatprep.subr.mxu0 0.0
    %730 = vmatpush1.msra.mxu0 0.0
    %731 = vmatprep.subr.mxu0 0.0
    %732 = vmatpush1.msra.mxu0 0.0
    %733 = vmatprep.subr.mxu0 0.0
    %734 = vmatpush1.msra.mxu0 0.0
    %735 = vmatprep.subr.mxu0 0.0
    %736 = vmatpush1.msra.mxu0 0.0
    %737 = vmatprep.subr.mxu0 0.0
    %738 = vmatpush1.msra.mxu0 0.0
    %739 = vmatprep.subr.mxu0 0.0
    %740 = vmatpush1.msra.mxu0 0.0
    %741 = vmatprep.subr.mxu0 0.0
    %742 = vmatpush1.msra.mxu0 0.0
    %743 = vmatprep.subr.mxu0 0.0
    %744 = vmatpush1.msra.mxu0 0.0
    %745 = vmatprep.subr.mxu0 0.0
    %746 = vmatpush1.msra.mxu0 0.0
    %747 = vmatprep.subr.mxu0 0.0
    %748 = vmatpush1.msra.mxu0 0.0
    %749 = vmatprep.subr.mxu0 0.0
    %750 = vmatpush1.msra.mxu0 0.0
    %751 = vmatprep.subr.mxu0 0.0
    %752 = vmatpush1.msra.mxu0 0.0
    %753 = vmatprep.subr.mxu0 0.0
    %754 = vmatpush1.msra.mxu0 0.0
    %755 = vmatprep.subr.mxu0 0.0
    %756 = vmatpush1.msra.mxu0 0.0
    %757 = vmatprep.mubr.f32.mxu0 0.0
    %758 = vmatmul.mubr.f32.gmra.mrb[0].mxu0 %v691
    %v759 = vpop.f32.mrb[0].mxu0
    %v760 = vadd.f32 %v80, %v759
    %v761 = vpop.f32.mrb[0].mxu0
    %762 = vdwg.mxu0
    %v763 = vtanh.pop %v760
    %v765 = vsel %vm168, %v763, 0
    %767 = vmatprep.subr.mxu0 0.0
    %768 = vmatpush1.msra.mxu0 %v81
    %769 = vmatprep.subr.mxu0 0.0
    %770 = vmatpush1.msra.mxu0 %v82
    %771 = vmatprep.subr.mxu0 0.0
    %772 = vmatpush1.msra.mxu0 %v83
    %773 = vmatprep.subr.mxu0 0.0
    %774 = vmatpush1.msra.mxu0 %v84
    %775 = vmatprep.subr.mxu0 0.0
    %776 = vmatpush1.msra.mxu0 %v85
    %777 = vmatprep.subr.mxu0 0.0
    %778 = vmatpush1.msra.mxu0 0.0
    %779 = vmatprep.subr.mxu0 0.0
    %780 = vmatpush1.msra.mxu0 0.0
    %781 = vmatprep.subr.mxu0 0.0
    %782 = vmatpush1.msra.mxu0 0.0
    %783 = vmatprep.subr.mxu0 0.0
    %784 = vmatpush1.msra.mxu0 0.0
    %785 = vmatprep.subr.mxu0 0.0
    %786 = vmatpush1.msra.mxu0 0.0
    %787 = vmatprep.subr.mxu0 0.0
    %788 = vmatpush1.msra.mxu0 0.0
    %789 = vmatprep.subr.mxu0 0.0
    %790 = vmatpush1.msra.mxu0 0.0
    %791 = vmatprep.subr.mxu0 0.0
    %792 = vmatpush1.msra.mxu0 0.0
    %793 = vmatprep.subr.mxu0 0.0
    %794 = vmatpush1.msra.mxu0 0.0
    %795 = vmatprep.subr.mxu0 0.0
    %796 = vmatpush1.msra.mxu0 0.0
    %797 = vmatprep.subr.mxu0 0.0
    %798 = vmatpush1.msra.mxu0 0.0
    %799 = vmatprep.subr.mxu0 0.0
    %800 = vmatpush1.msra.mxu0 0.0
    %801 = vmatprep.subr.mxu0 0.0
    %802 = vmatpush1.msra.mxu0 0.0
    %803 = vmatprep.subr.mxu0 0.0
    %804 = vmatpush1.msra.mxu0 0.0
    %805 = vmatprep.subr.mxu0 0.0
    %806 = vmatpush1.msra.mxu0 0.0
    %807 = vmatprep.subr.mxu0 0.0
    %808 = vmatpush1.msra.mxu0 0.0
    %809 = vmatprep.subr.mxu0 0.0
    %810 = vmatpush1.msra.mxu0 0.0
    %811 = vmatprep.subr.mxu0 0.0
    %812 = vmatpush1.msra.mxu0 0.0
    %813 = vmatprep.subr.mxu0 0.0
    %814 = vmatpush1.msra.mxu0 0.0
    %815 = vmatprep.subr.mxu0 0.0
    %816 = vmatpush1.msra.mxu0 0.0
    %817 = vmatprep.subr.mxu0 0.0
    %818 = vmatpush1.msra.mxu0 0.0
    %819 = vmatprep.subr.mxu0 0.0
    %820 = vmatpush1.msra.mxu0 0.0
    %821 = vmatprep.subr.mxu0 0.0
    %822 = vmatpush1.msra.mxu0 0.0
    %823 = vmatprep.subr.mxu0 0.0
    %824 = vmatpush1.msra.mxu0 0.0
    %825 = vmatprep.subr.mxu0 0.0
    %826 = vmatpush1.msra.mxu0 0.0
    %827 = vmatprep.subr.mxu0 0.0
    %828 = vmatpush1.msra.mxu0 0.0
    %829 = vmatprep.subr.mxu0 0.0
    %830 = vmatpush1.msra.mxu0 0.0
    %831 = vmatprep.mubr.f32.mxu0 0.0
    %832 = vmatmul.mubr.f32.gmra.mrb[0].mxu0 %v765
    %v833 = vpop.f32.mrb[0].mxu0
    %v834 = vadd.f32 %v86, %v833
    %v835 = vpop.f32.mrb[0].mxu0
    %836 = vdwg.mxu0
    %v837 = vmul.f32 %v465, %v834
    %v838 = vadd.f32 %v87, %v837
    %v840 = vsel %vm93, %v838, 0
    %842 = vmatprep.subr.mxu0 0.0
    %843 = vmatpush1.msra.mxu0 %v57
    %844 = vmatprep.subr.mxu0 0.0
    %845 = vmatpush1.msra.mxu0 0.0
    %846 = vmatprep.subr.mxu0 0.0
    %847 = vmatpush1.msra.mxu0 0.0
    %848 = vmatprep.subr.mxu0 0.0
    %849 = vmatpush1.msra.mxu0 0.0
    %850 = vmatprep.subr.mxu0 0.0
    %851 = vmatpush1.msra.mxu0 0.0
    %852 = vmatprep.subr.mxu0 0.0
    %853 = vmatpush1.msra.mxu0 0.0
    %854 = vmatprep.subr.mxu0 0.0
    %855 = vmatpush1.msra.mxu0 0.0
    %856 = vmatprep.subr.mxu0 0.0
    %857 = vmatpush1.msra.mxu0 0.0
    %858 = vmatprep.subr.mxu0 0.0
    %859 = vmatpush1.msra.mxu0 0.0
    %860 = vmatprep.subr.mxu0 0.0
    %861 = vmatpush1.msra.mxu0 0.0
    %862 = vmatprep.subr.mxu0 0.0
    %863 = vmatpush1.msra.mxu0 0.0
    %864 = vmatprep.subr.mxu0 0.0
    %865 = vmatpush1.msra.mxu0 0.0
    %866 = vmatprep.subr.mxu0 0.0
    %867 = vmatpush1.msra.mxu0 0.0
    %868 = vmatprep.subr.mxu0 0.0
    %869 = vmatpush1.msra.mxu0 0.0
    %870 = vmatprep.subr.mxu0 0.0
    %871 = vmatpush1.msra.mxu0 0.0
    %872 = vmatprep.subr.mxu0 0.0
    %873 = vmatpush1.msra.mxu0 0.0
    %874 = vmatprep.subr.mxu0 0.0
    %875 = vmatpush1.msra.mxu0 0.0
    %876 = vmatprep.subr.mxu0 0.0
    %877 = vmatpush1.msra.mxu0 0.0
    %878 = vmatprep.subr.mxu0 0.0
    %879 = vmatpush1.msra.mxu0 0.0
    %880 = vmatprep.subr.mxu0 0.0
    %881 = vmatpush1.msra.mxu0 0.0
    %882 = vmatprep.subr.mxu0 0.0
    %883 = vmatpush1.msra.mxu0 0.0
    %884 = vmatprep.subr.mxu0 0.0
    %885 = vmatpush1.msra.mxu0 0.0
    %886 = vmatprep.subr.mxu0 0.0
    %887 = vmatpush1.msra.mxu0 0.0
    %888 = vmatprep.subr.mxu0 0.0
    %889 = vmatpush1.msra.mxu0 0.0
    %890 = vmatprep.subr.mxu0 0.0
    %891 = vmatpush1.msra.mxu0 0.0
    %892 = vmatprep.subr.mxu0 0.0
    %893 = vmatpush1.msra.mxu0 0.0
    %894 = vmatprep.subr.mxu0 0.0
    %895 = vmatpush1.msra.mxu0 0.0
    %896 = vmatprep.subr.mxu0 0.0
    %897 = vmatpush1.msra.mxu0 0.0
    %898 = vmatprep.subr.mxu0 0.0
    %899 = vmatpush1.msra.mxu0 0.0
    %900 = vmatprep.subr.mxu0 0.0
    %901 = vmatpush1.msra.mxu0 0.0
    %902 = vmatprep.subr.mxu0 0.0
    %903 = vmatpush1.msra.mxu0 0.0
    %904 = vmatprep.subr.mxu0 0.0
    %905 = vmatpush1.msra.mxu0 0.0
    %906 = vmatprep.mubr.f32.mxu0 0.0
    %907 = vmatmul.mubr.f32.gmra.mrb[0].mxu0 %v840
    %v908 = vpop.f32.mrb[0].mxu0
    %v909 = vadd.f32 %v58, %v908
    %v910 = vpop.f32.mrb[0].mxu0
    %911 = vdwg.mxu0
    %v912 = vtanh.pop %v909
    %v914 = vsel %vm168, %v912, 0
    %916 = vmatprep.subr.mxu0 0.0
    %917 = vmatpush1.msra.mxu0 %v59
    %918 = vmatprep.subr.mxu0 0.0
    %919 = vmatpush1.msra.mxu0 %v60
    %920 = vmatprep.subr.mxu0 0.0
    %921 = vmatpush1.msra.mxu0 %v61
    %922 = vmatprep.subr.mxu0 0.0
    %923 = vmatpush1.msra.mxu0 %v62
    %924 = vmatprep.subr.mxu0 0.0
    %925 = vmatpush1.msra.mxu0 %v63
    %926 = vmatprep.subr.mxu0 0.0
    %927 = vmatpush1.msra.mxu0 0.0
    %928 = vmatprep.subr.mxu0 0.0
    %929 = vmatpush1.msra.mxu0 0.0
    %930 = vmatprep.subr.mxu0 0.0
    %931 = vmatpush1.msra.mxu0 0.0
    %932 = vmatprep.subr.mxu0 0.0
    %933 = vmatpush1.msra.mxu0 0.0
    %934 = vmatprep.subr.mxu0 0.0
    %935 = vmatpush1.msra.mxu0 0.0
    %936 = vmatprep.subr.mxu0 0.0
    %937 = vmatpush1.msra.mxu0 0.0
    %938 = vmatprep.subr.mxu0 0.0
    %939 = vmatpush1.msra.mxu0 0.0
    %940 = vmatprep.subr.mxu0 0.0
    %941 = vmatpush1.msra.mxu0 0.0
    %942 = vmatprep.subr.mxu0 0.0
    %943 = vmatpush1.msra.mxu0 0.0
    %944 = vmatprep.subr.mxu0 0.0
    %945 = vmatpush1.msra.mxu0 0.0
    %946 = vmatprep.subr.mxu0 0.0
    %947 = vmatpush1.msra.mxu0 0.0
    %948 = vmatprep.subr.mxu0 0.0
    %949 = vmatpush1.msra.mxu0 0.0
    %950 = vmatprep.subr.mxu0 0.0
    %951 = vmatpush1.msra.mxu0 0.0
    %952 = vmatprep.subr.mxu0 0.0
    %953 = vmatpush1.msra.mxu0 0.0
    %954 = vmatprep.subr.mxu0 0.0
    %955 = vmatpush1.msra.mxu0 0.0
    %956 = vmatprep.subr.mxu0 0.0
    %957 = vmatpush1.msra.mxu0 0.0
    %958 = vmatprep.subr.mxu0 0.0
    %959 = vmatpush1.msra.mxu0 0.0
    %960 = vmatprep.subr.mxu0 0.0
    %961 = vmatpush1.msra.mxu0 0.0
    %962 = vmatprep.subr.mxu0 0.0
    %963 = vmatpush1.msra.mxu0 0.0
    %964 = vmatprep.subr.mxu0 0.0
    %965 = vmatpush1.msra.mxu0 0.0
    %966 = vmatprep.subr.mxu0 0.0
    %967 = vmatpush1.msra.mxu0 0.0
    %968 = vmatprep.subr.mxu0 0.0
    %969 = vmatpush1.msra.mxu0 0.0
    %970 = vmatprep.subr.mxu0 0.0
    %971 = vmatpush1.msra.mxu0 0.0
    %972 = vmatprep.subr.mxu0 0.0
    %973 = vmatpush1.msra.mxu0 0.0
    %974 = vmatprep.subr.mxu0 0.0
    %975 = vmatpush1.msra.mxu0 0.0
    %976 = vmatprep.subr.mxu0 0.0
    %977 = vmatpush1.msra.mxu0 0.0
    %978 = vmatprep.subr.mxu0 0.0
    %979 = vmatpush1.msra.mxu0 0.0
    %980 = vmatprep.mubr.f32.mxu0 0.0
    %981 = vmatmul.mubr.f32.gmra.mrb[0].mxu0 %v914
    %v982 = vpop.f32.mrb[0].mxu0
    %v983 = vadd.f32 %v76, %v982
    %v984 = vpop.f32.mrb[0].mxu0
    %985 = vdwg.mxu0
    %v986 = vtanh.pop %v983
    %v988 = vsel %vm168, %v986, 0
    %990 = vmatprep.subr.mxu0 0.0
    %991 = vmatpush1.msra.mxu0 %v65
    %992 = vmatprep.subr.mxu0 0.0
    %993 = vmatpush1.msra.mxu0 %v66
    %994 = vmatprep.subr.mxu0 0.0
    %995 = vmatpush1.msra.mxu0 %v67
    %996 = vmatprep.subr.mxu0 0.0
    %997 = vmatpush1.msra.mxu0 %v68
    %998 = vmatprep.subr.mxu0 0.0
    %999 = vmatpush1.msra.mxu0 %v69
    %1000 = vmatprep.subr.mxu0 0.0
    %1001 = vmatpush1.msra.mxu0 0.0
    %1002 = vmatprep.subr.mxu0 0.0
    %1003 = vmatpush1.msra.mxu0 0.0
    %1004 = vmatprep.subr.mxu0 0.0
    %1005 = vmatpush1.msra.mxu0 0.0
    %1006 = vmatprep.subr.mxu0 0.0
    %1007 = vmatpush1.msra.mxu0 0.0
    %1008 = vmatprep.subr.mxu0 0.0
    %1009 = vmatpush1.msra.mxu0 0.0
    %1010 = vmatprep.subr.mxu0 0.0
    %1011 = vmatpush1.msra.mxu0 0.0
    %1012 = vmatprep.subr.mxu0 0.0
    %1013 = vmatpush1.msra.mxu0 0.0
    %1014 = vmatprep.subr.mxu0 0.0
    %1015 = vmatpush1.msra.mxu0 0.0
    %1016 = vmatprep.subr.mxu0 0.0
    %1017 = vmatpush1.msra.mxu0 0.0
    %1018 = vmatprep.subr.mxu0 0.0
    %1019 = vmatpush1.msra.mxu0 0.0
    %1020 = vmatprep.subr.mxu0 0.0
    %1021 = vmatpush1.msra.mxu0 0.0
    %1022 = vmatprep.subr.mxu0 0.0
    %1023 = vmatpush1.msra.mxu0 0.0
    %1024 = vmatprep.subr.mxu0 0.0
    %1025 = vmatpush1.msra.mxu0 0.0
    %1026 = vmatprep.subr.mxu0 0.0
    %1027 = vmatpush1.msra.mxu0 0.0
    %1028 = vmatprep.subr.mxu0 0.0
    %1029 = vmatpush1.msra.mxu0 0.0
    %1030 = vmatprep.subr.mxu0 0.0
    %1031 = vmatpush1.msra.mxu0 0.0
    %1032 = vmatprep.subr.mxu0 0.0
    %1033 = vmatpush1.msra.mxu0 0.0
    %1034 = vmatprep.subr.mxu0 0.0
    %1035 = vmatpush1.msra.mxu0 0.0
    %1036 = vmatprep.subr.mxu0 0.0
    %1037 = vmatpush1.msra.mxu0 0.0
    %1038 = vmatprep.subr.mxu0 0.0
    %1039 = vmatpush1.msra.mxu0 0.0
    %1040 = vmatprep.subr.mxu0 0.0
    %1041 = vmatpush1.msra.mxu0 0.0
    %1042 = vmatprep.subr.mxu0 0.0
    %1043 = vmatpush1.msra.mxu0 0.0
    %1044 = vmatprep.subr.mxu0 0.0
    %1045 = vmatpush1.msra.mxu0 0.0
    %1046 = vmatprep.subr.mxu0 0.0
    %1047 = vmatpush1.msra.mxu0 0.0
    %1048 = vmatprep.subr.mxu0 0.0
    %1049 = vmatpush1.msra.mxu0 0.0
    %1050 = vmatprep.subr.mxu0 0.0
    %1051 = vmatpush1.msra.mxu0 0.0
    %1052 = vmatprep.subr.mxu0 0.0
    %1053 = vmatpush1.msra.mxu0 0.0
    %1054 = vmatprep.mubr.f32.mxu0 0.0
    %1055 = vmatmul.mubr.f32.gmra.mrb[0].mxu0 %v988
    %v1056 = vpop.f32.mrb[0].mxu0
    %v1057 = vadd.f32 %v78, %v1056
    %v1058 = vpop.f32.mrb[0].mxu0
    %1059 = vdwg.mxu0
    %v1060 = vtanh.pop %v1057
    %v1062 = vsel %vm168, %v1060, 0
    %1064 = vmatprep.subr.mxu0 0.0
    %1065 = vmatpush1.msra.mxu0 %v71
    %1066 = vmatprep.subr.mxu0 0.0
    %1067 = vmatpush1.msra.mxu0 %v72
    %1068 = vmatprep.subr.mxu0 0.0
    %1069 = vmatpush1.msra.mxu0 %v73
    %1070 = vmatprep.subr.mxu0 0.0
    %1071 = vmatpush1.msra.mxu0 %v74
    %1072 = vmatprep.subr.mxu0 0.0
    %1073 = vmatpush1.msra.mxu0 %v75
    %1074 = vmatprep.subr.mxu0 0.0
    %1075 = vmatpush1.msra.mxu0 0.0
    %1076 = vmatprep.subr.mxu0 0.0
    %1077 = vmatpush1.msra.mxu0 0.0
    %1078 = vmatprep.subr.mxu0 0.0
    %1079 = vmatpush1.msra.mxu0 0.0
    %1080 = vmatprep.subr.mxu0 0.0
    %1081 = vmatpush1.msra.mxu0 0.0
    %1082 = vmatprep.subr.mxu0 0.0
    %1083 = vmatpush1.msra.mxu0 0.0
    %1084 = vmatprep.subr.mxu0 0.0
    %1085 = vmatpush1.msra.mxu0 0.0
    %1086 = vmatprep.subr.mxu0 0.0
    %1087 = vmatpush1.msra.mxu0 0.0
    %1088 = vmatprep.subr.mxu0 0.0
    %1089 = vmatpush1.msra.mxu0 0.0
    %1090 = vmatprep.subr.mxu0 0.0
    %1091 = vmatpush1.msra.mxu0 0.0
    %1092 = vmatprep.subr.mxu0 0.0
    %1093 = vmatpush1.msra.mxu0 0.0
    %1094 = vmatprep.subr.mxu0 0.0
    %1095 = vmatpush1.msra.mxu0 0.0
    %1096 = vmatprep.subr.mxu0 0.0
    %1097 = vmatpush1.msra.mxu0 0.0
    %1098 = vmatprep.subr.mxu0 0.0
    %1099 = vmatpush1.msra.mxu0 0.0
    %1100 = vmatprep.subr.mxu0 0.0
    %1101 = vmatpush1.msra.mxu0 0.0
    %1102 = vmatprep.subr.mxu0 0.0
    %1103 = vmatpush1.msra.mxu0 0.0
    %1104 = vmatprep.subr.mxu0 0.0
    %1105 = vmatpush1.msra.mxu0 0.0
    %1106 = vmatprep.subr.mxu0 0.0
    %1107 = vmatpush1.msra.mxu0 0.0
    %1108 = vmatprep.subr.mxu0 0.0
    %1109 = vmatpush1.msra.mxu0 0.0
    %1110 = vmatprep.subr.mxu0 0.0
    %1111 = vmatpush1.msra.mxu0 0.0
    %1112 = vmatprep.subr.mxu0 0.0
    %1113 = vmatpush1.msra.mxu0 0.0
    %1114 = vmatprep.subr.mxu0 0.0
    %1115 = vmatpush1.msra.mxu0 0.0
    %1116 = vmatprep.subr.mxu0 0.0
    %1117 = vmatpush1.msra.mxu0 0.0
    %1118 = vmatprep.subr.mxu0 0.0
    %1119 = vmatpush1.msra.mxu0 0.0
    %1120 = vmatprep.subr.mxu0 0.0
    %1121 = vmatpush1.msra.mxu0 0.0
    %1122 = vmatprep.subr.mxu0 0.0
    %1123 = vmatpush1.msra.mxu0 0.0
    %1124 = vmatprep.subr.mxu0 0.0
    %1125 = vmatpush1.msra.mxu0 0.0
    %1126 = vmatprep.subr.mxu0 0.0
    %1127 = vmatpush1.msra.mxu0 0.0
    %1128 = vmatprep.mubr.f32.mxu0 0.0
    %1129 = vmatmul.mubr.f32.gmra.mrb[0].mxu0 %v1062
    %v1130 = vpop.f32.mrb[0].mxu0
    %v1131 = vadd.f32 %v80, %v1130
    %v1132 = vpop.f32.mrb[0].mxu0
    %1133 = vdwg.mxu0
    %v1134 = vtanh.pop %v1131
    %v1136 = vsel %vm168, %v1134, 0
    %1138 = vmatprep.subr.mxu0 0.0
    %1139 = vmatpush1.msra.mxu0 %v81
    %1140 = vmatprep.subr.mxu0 0.0
    %1141 = vmatpush1.msra.mxu0 %v82
    %1142 = vmatprep.subr.mxu0 0.0
    %1143 = vmatpush1.msra.mxu0 %v83
    %1144 = vmatprep.subr.mxu0 0.0
    %1145 = vmatpush1.msra.mxu0 %v84
    %1146 = vmatprep.subr.mxu0 0.0
    %1147 = vmatpush1.msra.mxu0 %v85
    %1148 = vmatprep.subr.mxu0 0.0
    %1149 = vmatpush1.msra.mxu0 0.0
    %1150 = vmatprep.subr.mxu0 0.0
    %1151 = vmatpush1.msra.mxu0 0.0
    %1152 = vmatprep.subr.mxu0 0.0
    %1153 = vmatpush1.msra.mxu0 0.0
    %1154 = vmatprep.subr.mxu0 0.0
    %1155 = vmatpush1.msra.mxu0 0.0
    %1156 = vmatprep.subr.mxu0 0.0
    %1157 = vmatpush1.msra.mxu0 0.0
    %1158 = vmatprep.subr.mxu0 0.0
    %1159 = vmatpush1.msra.mxu0 0.0
    %1160 = vmatprep.subr.mxu0 0.0
    %1161 = vmatpush1.msra.mxu0 0.0
    %1162 = vmatprep.subr.mxu0 0.0
    %1163 = vmatpush1.msra.mxu0 0.0
    %1164 = vmatprep.subr.mxu0 0.0
    %1165 = vmatpush1.msra.mxu0 0.0
    %1166 = vmatprep.subr.mxu0 0.0
    %1167 = vmatpush1.msra.mxu0 0.0
    %1168 = vmatprep.subr.mxu0 0.0
    %1169 = vmatpush1.msra.mxu0 0.0
    %1170 = vmatprep.subr.mxu0 0.0
    %1171 = vmatpush1.msra.mxu0 0.0
    %1172 = vmatprep.subr.mxu0 0.0
    %1173 = vmatpush1.msra.mxu0 0.0
    %1174 = vmatprep.subr.mxu0 0.0
    %1175 = vmatpush1.msra.mxu0 0.0
    %1176 = vmatprep.subr.mxu0 0.0
    %1177 = vmatpush1.msra.mxu0 0.0
    %1178 = vmatprep.subr.mxu0 0.0
    %1179 = vmatpush1.msra.mxu0 0.0
    %1180 = vmatprep.subr.mxu0 0.0
    %1181 = vmatpush1.msra.mxu0 0.0
    %1182 = vmatprep.subr.mxu0 0.0
    %1183 = vmatpush1.msra.mxu0 0.0
    %1184 = vmatprep.subr.mxu0 0.0
    %1185 = vmatpush1.msra.mxu0 0.0
    %1186 = vmatprep.subr.mxu0 0.0
    %1187 = vmatpush1.msra.mxu0 0.0
    %1188 = vmatprep.subr.mxu0 0.0
    %1189 = vmatpush1.msra.mxu0 0.0
    %1190 = vmatprep.subr.mxu0 0.0
    %1191 = vmatpush1.msra.mxu0 0.0
    %1192 = vmatprep.subr.mxu0 0.0
    %1193 = vmatpush1.msra.mxu0 0.0
    %1194 = vmatprep.subr.mxu0 0.0
    %1195 = vmatpush1.msra.mxu0 0.0
    %1196 = vmatprep.subr.mxu0 0.0
    %1197 = vmatpush1.msra.mxu0 0.0
    %1198 = vmatprep.subr.mxu0 0.0
    %1199 = vmatpush1.msra.mxu0 0.0
    %1200 = vmatprep.subr.mxu0 0.0
    %1201 = vmatpush1.msra.mxu0 0.0
    %1202 = vmatprep.mubr.f32.mxu0 0.0
    %1203 = vmatmul.mubr.f32.gmra.mrb[0].mxu0 %v1136
    %v1204 = vpop.f32.mrb[0].mxu0
    %v1205 = vadd.f32 %v86, %v1204
    %v1206 = vpop.f32.mrb[0].mxu0
    %1207 = vdwg.mxu0
    %v1208 = vstv %s92
    %v1209 = vmul.f32 %v1208, %v1205
    %v1210 = vadd.f32 %v87, %v1209
    %v1212 = vsel %vm93, %v1210, 0
    %1214 = vmatprep.subr.mxu0 0.0
    %1215 = vmatpush1.msra.mxu0 %v57
    %1216 = vmatprep.subr.mxu0 0.0
    %1217 = vmatpush1.msra.mxu0 0.0
    %1218 = vmatprep.subr.mxu0 0.0
    %1219 = vmatpush1.msra.mxu0 0.0
    %1220 = vmatprep.subr.mxu0 0.0
    %1221 = vmatpush1.msra.mxu0 0.0
    %1222 = vmatprep.subr.mxu0 0.0
    %1223 = vmatpush1.msra.mxu0 0.0
    %1224 = vmatprep.subr.mxu0 0.0
    %1225 = vmatpush1.msra.mxu0 0.0
    %1226 = vmatprep.subr.mxu0 0.0
    %1227 = vmatpush1.msra.mxu0 0.0
    %1228 = vmatprep.subr.mxu0 0.0
    %1229 = vmatpush1.msra.mxu0 0.0
    %1230 = vmatprep.subr.mxu0 0.0
    %1231 = vmatpush1.msra.mxu0 0.0
    %1232 = vmatprep.subr.mxu0 0.0
    %1233 = vmatpush1.msra.mxu0 0.0
    %1234 = vmatprep.subr.mxu0 0.0
    %1235 = vmatpush1.msra.mxu0 0.0
    %1236 = vmatprep.subr.mxu0 0.0
    %1237 = vmatpush1.msra.mxu0 0.0
    %1238 = vmatprep.subr.mxu0 0.0
    %1239 = vmatpush1.msra.mxu0 0.0
    %1240 = vmatprep.subr.mxu0 0.0
    %1241 = vmatpush1.msra.mxu0 0.0
    %1242 = vmatprep.subr.mxu0 0.0
    %1243 = vmatpush1.msra.mxu0 0.0
    %1244 = vmatprep.subr.mxu0 0.0
    %1245 = vmatpush1.msra.mxu0 0.0
    %1246 = vmatprep.subr.mxu0 0.0
    %1247 = vmatpush1.msra.mxu0 0.0
    %1248 = vmatprep.subr.mxu0 0.0
    %1249 = vmatpush1.msra.mxu0 0.0
    %1250 = vmatprep.subr.mxu0 0.0
    %1251 = vmatpush1.msra.mxu0 0.0
    %1252 = vmatprep.subr.mxu0 0.0
    %1253 = vmatpush1.msra.mxu0 0.0
    %1254 = vmatprep.subr.mxu0 0.0
    %1255 = vmatpush1.msra.mxu0 0.0
    %1256 = vmatprep.subr.mxu0 0.0
    %1257 = vmatpush1.msra.mxu0 0.0
    %1258 = vmatprep.subr.mxu0 0.0
    %1259 = vmatpush1.msra.mxu0 0.0
    %1260 = vmatprep.subr.mxu0 0.0
    %1261 = vmatpush1.msra.mxu0 0.0
    %1262 = vmatprep.subr.mxu0 0.0
    %1263 = vmatpush1.msra.mxu0 0.0
    %1264 = vmatprep.subr.mxu0 0.0
    %1265 = vmatpush1.msra.mxu0 0.0
    %1266 = vmatprep.subr.mxu0 0.0
    %1267 = vmatpush1.msra.mxu0 0.0
    %1268 = vmatprep.subr.mxu0 0.0
    %1269 = vmatpush1.msra.mxu0 0.0
    %1270 = vmatprep.subr.mxu0 0.0
    %1271 = vmatpush1.msra.mxu0 0.0
    %1272 = vmatprep.subr.mxu0 0.0
    %1273 = vmatpush1.msra.mxu0 0.0
    %1274 = vmatprep.subr.mxu0 0.0
    %1275 = vmatpush1.msra.mxu0 0.0
    %1276 = vmatprep.subr.mxu0 0.0
    %1277 = vmatpush1.msra.mxu0 0.0
    %1278 = vmatprep.mubr.f32.mxu0 0.0
    %1279 = vmatmul.mubr.f32.gmra.mrb[0].mxu0 %v1212
    %v1280 = vpop.f32.mrb[0].mxu0
    %v1281 = vadd.f32 %v58, %v1280
    %v1282 = vpop.f32.mrb[0].mxu0
    %1283 = vdwg.mxu0
    %v1284 = vtanh.pop %v1281
    %v1286 = vsel %vm168, %v1284, 0
    %1288 = vmatprep.subr.mxu0 0.0
    %1289 = vmatpush1.msra.mxu0 %v59
    %1290 = vmatprep.subr.mxu0 0.0
    %1291 = vmatpush1.msra.mxu0 %v60
    %1292 = vmatprep.subr.mxu0 0.0
    %1293 = vmatpush1.msra.mxu0 %v61
    %1294 = vmatprep.subr.mxu0 0.0
    %1295 = vmatpush1.msra.mxu0 %v62
    %1296 = vmatprep.subr.mxu0 0.0
    %1297 = vmatpush1.msra.mxu0 %v63
    %1298 = vmatprep.subr.mxu0 0.0
    %1299 = vmatpush1.msra.mxu0 0.0
    %1300 = vmatprep.subr.mxu0 0.0
    %1301 = vmatpush1.msra.mxu0 0.0
    %1302 = vmatprep.subr.mxu0 0.0
    %1303 = vmatpush1.msra.mxu0 0.0
    %1304 = vmatprep.subr.mxu0 0.0
    %1305 = vmatpush1.msra.mxu0 0.0
    %1306 = vmatprep.subr.mxu0 0.0
    %1307 = vmatpush1.msra.mxu0 0.0
    %1308 = vmatprep.subr.mxu0 0.0
    %1309 = vmatpush1.msra.mxu0 0.0
    %1310 = vmatprep.subr.mxu0 0.0
    %1311 = vmatpush1.msra.mxu0 0.0
    %1312 = vmatprep.subr.mxu0 0.0
    %1313 = vmatpush1.msra.mxu0 0.0
    %1314 = vmatprep.subr.mxu0 0.0
    %1315 = vmatpush1.msra.mxu0 0.0
    %1316 = vmatprep.subr.mxu0 0.0
    %1317 = vmatpush1.msra.mxu0 0.0
    %1318 = vmatprep.subr.mxu0 0.0
    %1319 = vmatpush1.msra.mxu0 0.0
    %1320 = vmatprep.subr.mxu0 0.0
    %1321 = vmatpush1.msra.mxu0 0.0
    %1322 = vmatprep.subr.mxu0 0.0
    %1323 = vmatpush1.msra.mxu0 0.0
    %1324 = vmatprep.subr.mxu0 0.0
    %1325 = vmatpush1.msra.mxu0 0.0
    %1326 = vmatprep.subr.mxu0 0.0
    %1327 = vmatpush1.msra.mxu0 0.0
    %1328 = vmatprep.subr.mxu0 0.0
    %1329 = vmatpush1.msra.mxu0 0.0
    %1330 = vmatprep.subr.mxu0 0.0
    %1331 = vmatpush1.msra.mxu0 0.0
    %1332 = vmatprep.subr.mxu0 0.0
    %1333 = vmatpush1.msra.mxu0 0.0
    %1334 = vmatprep.subr.mxu0 0.0
    %1335 = vmatpush1.msra.mxu0 0.0
    %1336 = vmatprep.subr.mxu0 0.0
    %1337 = vmatpush1.msra.mxu0 0.0
    %1338 = vmatprep.subr.mxu0 0.0
    %1339 = vmatpush1.msra.mxu0 0.0
    %1340 = vmatprep.subr.mxu0 0.0
    %1341 = vmatpush1.msra.mxu0 0.0
    %1342 = vmatprep.subr.mxu0 0.0
    %1343 = vmatpush1.msra.mxu0 0.0
    %1344 = vmatprep.subr.mxu0 0.0
    %1345 = vmatpush1.msra.mxu0 0.0
    %1346 = vmatprep.subr.mxu0 0.0
    %1347 = vmatpush1.msra.mxu0 0.0
    %1348 = vmatprep.subr.mxu0 0.0
    %1349 = vmatpush1.msra.mxu0 0.0
    %1350 = vmatprep.subr.mxu0 0.0
    %1351 = vmatpush1.msra.mxu0 0.0
    %1352 = vmatprep.mubr.f32.mxu0 0.0
    %1353 = vmatmul.mubr.f32.gmra.mrb[0].mxu0 %v1286
    %v1354 = vpop.f32.mrb[0].mxu0
    %v1355 = vadd.f32 %v76, %v1354
    %v1356 = vpop.f32.mrb[0].mxu0
    %1357 = vdwg.mxu0
    %v1358 = vtanh.pop %v1355
    %v1360 = vsel %vm168, %v1358, 0
    %1362 = vmatprep.subr.mxu0 0.0
    %1363 = vmatpush1.msra.mxu0 %v65
    %1364 = vmatprep.subr.mxu0 0.0
    %1365 = vmatpush1.msra.mxu0 %v66
    %1366 = vmatprep.subr.mxu0 0.0
    %1367 = vmatpush1.msra.mxu0 %v67
    %1368 = vmatprep.subr.mxu0 0.0
    %1369 = vmatpush1.msra.mxu0 %v68
    %1370 = vmatprep.subr.mxu0 0.0
    %1371 = vmatpush1.msra.mxu0 %v69
    %1372 = vmatprep.subr.mxu0 0.0
    %1373 = vmatpush1.msra.mxu0 0.0
    %1374 = vmatprep.subr.mxu0 0.0
    %1375 = vmatpush1.msra.mxu0 0.0
    %1376 = vmatprep.subr.mxu0 0.0
    %1377 = vmatpush1.msra.mxu0 0.0
    %1378 = vmatprep.subr.mxu0 0.0
    %1379 = vmatpush1.msra.mxu0 0.0
    %1380 = vmatprep.subr.mxu0 0.0
    %1381 = vmatpush1.msra.mxu0 0.0
    %1382 = vmatprep.subr.mxu0 0.0
    %1383 = vmatpush1.msra.mxu0 0.0
    %1384 = vmatprep.subr.mxu0 0.0
    %1385 = vmatpush1.msra.mxu0 0.0
    %1386 = vmatprep.subr.mxu0 0.0
    %1387 = vmatpush1.msra.mxu0 0.0
    %1388 = vmatprep.subr.mxu0 0.0
    %1389 = vmatpush1.msra.mxu0 0.0
    %1390 = vmatprep.subr.mxu0 0.0
    %1391 = vmatpush1.msra.mxu0 0.0
    %1392 = vmatprep.subr.mxu0 0.0
    %1393 = vmatpush1.msra.mxu0 0.0
    %1394 = vmatprep.subr.mxu0 0.0
    %1395 = vmatpush1.msra.mxu0 0.0
    %1396 = vmatprep.subr.mxu0 0.0
    %1397 = vmatpush1.msra.mxu0 0.0
    %1398 = vmatprep.subr.mxu0 0.0
    %1399 = vmatpush1.msra.mxu0 0.0
    %1400 = vmatprep.subr.mxu0 0.0
    %1401 = vmatpush1.msra.mxu0 0.0
    %1402 = vmatprep.subr.mxu0 0.0
    %1403 = vmatpush1.msra.mxu0 0.0
    %1404 = vmatprep.subr.mxu0 0.0
    %1405 = vmatpush1.msra.mxu0 0.0
    %1406 = vmatprep.subr.mxu0 0.0
    %1407 = vmatpush1.msra.mxu0 0.0
    %1408 = vmatprep.subr.mxu0 0.0
    %1409 = vmatpush1.msra.mxu0 0.0
    %1410 = vmatprep.subr.mxu0 0.0
    %1411 = vmatpush1.msra.mxu0 0.0
    %1412 = vmatprep.subr.mxu0 0.0
    %1413 = vmatpush1.msra.mxu0 0.0
    %1414 = vmatprep.subr.mxu0 0.0
    %1415 = vmatpush1.msra.mxu0 0.0
    %1416 = vmatprep.subr.mxu0 0.0
    %1417 = vmatpush1.msra.mxu0 0.0
    %1418 = vmatprep.subr.mxu0 0.0
    %1419 = vmatpush1.msra.mxu0 0.0
    %1420 = vmatprep.subr.mxu0 0.0
    %1421 = vmatpush1.msra.mxu0 0.0
    %1422 = vmatprep.subr.mxu0 0.0
    %1423 = vmatpush1.msra.mxu0 0.0
    %1424 = vmatprep.subr.mxu0 0.0
    %1425 = vmatpush1.msra.mxu0 0.0
    %1426 = vmatprep.mubr.f32.mxu0 0.0
    %1427 = vmatmul.mubr.f32.gmra.mrb[0].mxu0 %v1360
    %v1428 = vpop.f32.mrb[0].mxu0
    %v1429 = vadd.f32 %v78, %v1428
    %v1430 = vpop.f32.mrb[0].mxu0
    %1431 = vdwg.mxu0
    %v1432 = vtanh.pop %v1429
    %v1434 = vsel %vm168, %v1432, 0
    %1436 = vmatprep.subr.mxu0 0.0
    %1437 = vmatpush1.msra.mxu0 %v71
    %1438 = vmatprep.subr.mxu0 0.0
    %1439 = vmatpush1.msra.mxu0 %v72
    %1440 = vmatprep.subr.mxu0 0.0
    %1441 = vmatpush1.msra.mxu0 %v73
    %1442 = vmatprep.subr.mxu0 0.0
    %1443 = vmatpush1.msra.mxu0 %v74
    %1444 = vmatprep.subr.mxu0 0.0
    %1445 = vmatpush1.msra.mxu0 %v75
    %1446 = vmatprep.subr.mxu0 0.0
    %1447 = vmatpush1.msra.mxu0 0.0
    %1448 = vmatprep.subr.mxu0 0.0
    %1449 = vmatpush1.msra.mxu0 0.0
    %1450 = vmatprep.subr.mxu0 0.0
    %1451 = vmatpush1.msra.mxu0 0.0
    %1452 = vmatprep.subr.mxu0 0.0
    %1453 = vmatpush1.msra.mxu0 0.0
    %1454 = vmatprep.subr.mxu0 0.0
    %1455 = vmatpush1.msra.mxu0 0.0
    %1456 = vmatprep.subr.mxu0 0.0
    %1457 = vmatpush1.msra.mxu0 0.0
    %1458 = vmatprep.subr.mxu0 0.0
    %1459 = vmatpush1.msra.mxu0 0.0
    %1460 = vmatprep.subr.mxu0 0.0
    %1461 = vmatpush1.msra.mxu0 0.0
    %1462 = vmatprep.subr.mxu0 0.0
    %1463 = vmatpush1.msra.mxu0 0.0
    %1464 = vmatprep.subr.mxu0 0.0
    %1465 = vmatpush1.msra.mxu0 0.0
    %1466 = vmatprep.subr.mxu0 0.0
    %1467 = vmatpush1.msra.mxu0 0.0
    %1468 = vmatprep.subr.mxu0 0.0
    %1469 = vmatpush1.msra.mxu0 0.0
    %1470 = vmatprep.subr.mxu0 0.0
    %1471 = vmatpush1.msra.mxu0 0.0
    %1472 = vmatprep.subr.mxu0 0.0
    %1473 = vmatpush1.msra.mxu0 0.0
    %1474 = vmatprep.subr.mxu0 0.0
    %1475 = vmatpush1.msra.mxu0 0.0
    %1476 = vmatprep.subr.mxu0 0.0
    %1477 = vmatpush1.msra.mxu0 0.0
    %1478 = vmatprep.subr.mxu0 0.0
    %1479 = vmatpush1.msra.mxu0 0.0
    %1480 = vmatprep.subr.mxu0 0.0
    %1481 = vmatpush1.msra.mxu0 0.0
    %1482 = vmatprep.subr.mxu0 0.0
    %1483 = vmatpush1.msra.mxu0 0.0
    %1484 = vmatprep.subr.mxu0 0.0
    %1485 = vmatpush1.msra.mxu0 0.0
    %1486 = vmatprep.subr.mxu0 0.0
    %1487 = vmatpush1.msra.mxu0 0.0
    %1488 = vmatprep.subr.mxu0 0.0
    %1489 = vmatpush1.msra.mxu0 0.0
    %1490 = vmatprep.subr.mxu0 0.0
    %1491 = vmatpush1.msra.mxu0 0.0
    %1492 = vmatprep.subr.mxu0 0.0
    %1493 = vmatpush1.msra.mxu0 0.0
    %1494 = vmatprep.subr.mxu0 0.0
    %1495 = vmatpush1.msra.mxu0 0.0
    %1496 = vmatprep.subr.mxu0 0.0
    %1497 = vmatpush1.msra.mxu0 0.0
    %1498 = vmatprep.subr.mxu0 0.0
    %1499 = vmatpush1.msra.mxu0 0.0
    %1500 = vmatprep.mubr.f32.mxu0 0.0
    %1501 = vmatmul.mubr.f32.gmra.mrb[0].mxu0 %v1434
    %v1502 = vpop.f32.mrb[0].mxu0
    %v1503 = vadd.f32 %v80, %v1502
    %v1504 = vpop.f32.mrb[0].mxu0
    %1505 = vdwg.mxu0
    %v1506 = vtanh.pop %v1503
    %v1508 = vsel %vm168, %v1506, 0
    %1510 = vmatprep.subr.mxu0 0.0
    %1511 = vmatpush1.msra.mxu0 %v81
    %1512 = vmatprep.subr.mxu0 0.0
    %1513 = vmatpush1.msra.mxu0 %v82
    %1514 = vmatprep.subr.mxu0 0.0
    %1515 = vmatpush1.msra.mxu0 %v83
    %1516 = vmatprep.subr.mxu0 0.0
    %1517 = vmatpush1.msra.mxu0 %v84
    %1518 = vmatprep.subr.mxu0 0.0
    %1519 = vmatpush1.msra.mxu0 %v85
    %1520 = vmatprep.subr.mxu0 0.0
    %1521 = vmatpush1.msra.mxu0 0.0
    %1522 = vmatprep.subr.mxu0 0.0
    %1523 = vmatpush1.msra.mxu0 0.0
    %1524 = vmatprep.subr.mxu0 0.0
    %1525 = vmatpush1.msra.mxu0 0.0
    %1526 = vmatprep.subr.mxu0 0.0
    %1527 = vmatpush1.msra.mxu0 0.0
    %1528 = vmatprep.subr.mxu0 0.0
    %1529 = vmatpush1.msra.mxu0 0.0
    %1530 = vmatprep.subr.mxu0 0.0
    %1531 = vmatpush1.msra.mxu0 0.0
    %1532 = vmatprep.subr.mxu0 0.0
    %1533 = vmatpush1.msra.mxu0 0.0
    %1534 = vmatprep.subr.mxu0 0.0
    %1535 = vmatpush1.msra.mxu0 0.0
    %1536 = vmatprep.subr.mxu0 0.0
    %1537 = vmatpush1.msra.mxu0 0.0
    %1538 = vmatprep.subr.mxu0 0.0
    %1539 = vmatpush1.msra.mxu0 0.0
    %1540 = vmatprep.subr.mxu0 0.0
    %1541 = vmatpush1.msra.mxu0 0.0
    %1542 = vmatprep.subr.mxu0 0.0
    %1543 = vmatpush1.msra.mxu0 0.0
    %1544 = vmatprep.subr.mxu0 0.0
    %1545 = vmatpush1.msra.mxu0 0.0
    %1546 = vmatprep.subr.mxu0 0.0
    %1547 = vmatpush1.msra.mxu0 0.0
    %1548 = vmatprep.subr.mxu0 0.0
    %1549 = vmatpush1.msra.mxu0 0.0
    %1550 = vmatprep.subr.mxu0 0.0
    %1551 = vmatpush1.msra.mxu0 0.0
    %1552 = vmatprep.subr.mxu0 0.0
    %1553 = vmatpush1.msra.mxu0 0.0
    %1554 = vmatprep.subr.mxu0 0.0
    %1555 = vmatpush1.msra.mxu0 0.0
    %1556 = vmatprep.subr.mxu0 0.0
    %1557 = vmatpush1.msra.mxu0 0.0
    %1558 = vmatprep.subr.mxu0 0.0
    %1559 = vmatpush1.msra.mxu0 0.0
    %1560 = vmatprep.subr.mxu0 0.0
    %1561 = vmatpush1.msra.mxu0 0.0
    %1562 = vmatprep.subr.mxu0 0.0
    %1563 = vmatpush1.msra.mxu0 0.0
    %1564 = vmatprep.subr.mxu0 0.0
    %1565 = vmatpush1.msra.mxu0 0.0
    %1566 = vmatprep.subr.mxu0 0.0
    %1567 = vmatpush1.msra.mxu0 0.0
    %1568 = vmatprep.subr.mxu0 0.0
    %1569 = vmatpush1.msra.mxu0 0.0
    %1570 = vmatprep.subr.mxu0 0.0
    %1571 = vmatpush1.msra.mxu0 0.0
    %1572 = vmatprep.subr.mxu0 0.0
    %1573 = vmatpush1.msra.mxu0 0.0
    %1574 = vmatprep.mubr.f32.mxu0 0.0
    %1575 = vmatmul.mubr.f32.gmra.mrb[0].mxu0 %v1508
    %v1576 = vpop.f32.mrb[0].mxu0
    %v1577 = vadd.f32 %v86, %v1576
    %v1578 = vpop.f32.mrb[0].mxu0
    %1579 = vdwg.mxu0
    %v1580 = vrcp.pop 6.0
    %s1581 = vtos %v1580
    %s1582 = smul.f32 %s92, %s1581
    %v1583 = vmul.f32 %v834, 2.0
    %v1584 = vadd.f32 %v461, %v1583
    %v1585 = vmul.f32 %v1205, 2.0
    %v1586 = vadd.f32 %v1584, %v1585
    %v1587 = vadd.f32 %v1586, %v1577
    %v1588 = vstv %s1582
    %v1589 = vmul.f32 %v1588, %v1587
    %v1590 = vadd.f32 %v87, %v1589
    %1591 = vst.msk [vmem:[#allocation7 + $0x1] sm:$0x1] %vm88, %v1590
    %s1592 = sld [smem:[#allocation2 + $0x2]]
    %s1593 = sld [smem:[#allocation2 + $0x1]]
    %s1594 = ssub.f32 %s1592, %s1593
    %v1596 = vsel %vm93, %v1590, 0
    %1598 = vmatprep.subr.mxu0 0.0
    %1599 = vmatpush1.msra.mxu0 %v57
    %1600 = vmatprep.subr.mxu0 0.0
    %1601 = vmatpush1.msra.mxu0 0.0
    %1602 = vmatprep.subr.mxu0 0.0
    %1603 = vmatpush1.msra.mxu0 0.0
    %1604 = vmatprep.subr.mxu0 0.0
    %1605 = vmatpush1.msra.mxu0 0.0
    %1606 = vmatprep.subr.mxu0 0.0
    %1607 = vmatpush1.msra.mxu0 0.0
    %1608 = vmatprep.subr.mxu0 0.0
    %1609 = vmatpush1.msra.mxu0 0.0
    %1610 = vmatprep.subr.mxu0 0.0
    %1611 = vmatpush1.msra.mxu0 0.0
    %1612 = vmatprep.subr.mxu0 0.0
    %1613 = vmatpush1.msra.mxu0 0.0
    %1614 = vmatprep.subr.mxu0 0.0
    %1615 = vmatpush1.msra.mxu0 0.0
    %1616 = vmatprep.subr.mxu0 0.0
    %1617 = vmatpush1.msra.mxu0 0.0
    %1618 = vmatprep.subr.mxu0 0.0
    %1619 = vmatpush1.msra.mxu0 0.0
    %1620 = vmatprep.subr.mxu0 0.0
    %1621 = vmatpush1.msra.mxu0 0.0
    %1622 = vmatprep.subr.mxu0 0.0
    %1623 = vmatpush1.msra.mxu0 0.0
    %1624 = vmatprep.subr.mxu0 0.0
    %1625 = vmatpush1.msra.mxu0 0.0
    %1626 = vmatprep.subr.mxu0 0.0
    %1627 = vmatpush1.msra.mxu0 0.0
    %1628 = vmatprep.subr.mxu0 0.0
    %1629 = vmatpush1.msra.mxu0 0.0
    %1630 = vmatprep.subr.mxu0 0.0
    %1631 = vmatpush1.msra.mxu0 0.0
    %1632 = vmatprep.subr.mxu0 0.0
    %1633 = vmatpush1.msra.mxu0 0.0
    %1634 = vmatprep.subr.mxu0 0.0
    %1635 = vmatpush1.msra.mxu0 0.0
    %1636 = vmatprep.subr.mxu0 0.0
    %1637 = vmatpush1.msra.mxu0 0.0
    %1638 = vmatprep.subr.mxu0 0.0
    %1639 = vmatpush1.msra.mxu0 0.0
    %1640 = vmatprep.subr.mxu0 0.0
    %1641 = vmatpush1.msra.mxu0 0.0
    %1642 = vmatprep.subr.mxu0 0.0
    %1643 = vmatpush1.msra.mxu0 0.0
    %1644 = vmatprep.subr.mxu0 0.0
    %1645 = vmatpush1.msra.mxu0 0.0
    %1646 = vmatprep.subr.mxu0 0.0
    %1647 = vmatpush1.msra.mxu0 0.0
    %1648 = vmatprep.subr.mxu0 0.0
    %1649 = vmatpush1.msra.mxu0 0.0
    %1650 = vmatprep.subr.mxu0 0.0
    %1651 = vmatpush1.msra.mxu0 0.0
    %1652 = vmatprep.subr.mxu0 0.0
    %1653 = vmatpush1.msra.mxu0 0.0
    %1654 = vmatprep.subr.mxu0 0.0
    %1655 = vmatpush1.msra.mxu0 0.0
    %1656 = vmatprep.subr.mxu0 0.0
    %1657 = vmatpush1.msra.mxu0 0.0
    %1658 = vmatprep.subr.mxu0 0.0
    %1659 = vmatpush1.msra.mxu0 0.0
    %1660 = vmatprep.subr.mxu0 0.0
    %1661 = vmatpush1.msra.mxu0 0.0
    %1662 = vmatprep.mubr.f32.mxu0 0.0
    %1663 = vmatmul.mubr.f32.gmra.mrb[0].mxu0 %v1596
    %v1664 = vpop.f32.mrb[0].mxu0
    %v1665 = vadd.f32 %v58, %v1664
    %v1666 = vpop.f32.mrb[0].mxu0
    %1667 = vdwg.mxu0
    %v1668 = vtanh.pop %v1665
    %v1670 = vsel %vm168, %v1668, 0
    %1672 = vmatprep.subr.mxu0 0.0
    %1673 = vmatpush1.msra.mxu0 %v59
    %1674 = vmatprep.subr.mxu0 0.0
    %1675 = vmatpush1.msra.mxu0 %v60
    %1676 = vmatprep.subr.mxu0 0.0
    %1677 = vmatpush1.msra.mxu0 %v61
    %1678 = vmatprep.subr.mxu0 0.0
    %1679 = vmatpush1.msra.mxu0 %v62
    %1680 = vmatprep.subr.mxu0 0.0
    %1681 = vmatpush1.msra.mxu0 %v63
    %1682 = vmatprep.subr.mxu0 0.0
    %1683 = vmatpush1.msra.mxu0 0.0
    %1684 = vmatprep.subr.mxu0 0.0
    %1685 = vmatpush1.msra.mxu0 0.0
    %1686 = vmatprep.subr.mxu0 0.0
    %1687 = vmatpush1.msra.mxu0 0.0
    %1688 = vmatprep.subr.mxu0 0.0
    %1689 = vmatpush1.msra.mxu0 0.0
    %1690 = vmatprep.subr.mxu0 0.0
    %1691 = vmatpush1.msra.mxu0 0.0
    %1692 = vmatprep.subr.mxu0 0.0
    %1693 = vmatpush1.msra.mxu0 0.0
    %1694 = vmatprep.subr.mxu0 0.0
    %1695 = vmatpush1.msra.mxu0 0.0
    %1696 = vmatprep.subr.mxu0 0.0
    %1697 = vmatpush1.msra.mxu0 0.0
    %1698 = vmatprep.subr.mxu0 0.0
    %1699 = vmatpush1.msra.mxu0 0.0
    %1700 = vmatprep.subr.mxu0 0.0
    %1701 = vmatpush1.msra.mxu0 0.0
    %1702 = vmatprep.subr.mxu0 0.0
    %1703 = vmatpush1.msra.mxu0 0.0
    %1704 = vmatprep.subr.mxu0 0.0
    %1705 = vmatpush1.msra.mxu0 0.0
    %1706 = vmatprep.subr.mxu0 0.0
    %1707 = vmatpush1.msra.mxu0 0.0
    %1708 = vmatprep.subr.mxu0 0.0
    %1709 = vmatpush1.msra.mxu0 0.0
    %1710 = vmatprep.subr.mxu0 0.0
    %1711 = vmatpush1.msra.mxu0 0.0
    %1712 = vmatprep.subr.mxu0 0.0
    %1713 = vmatpush1.msra.mxu0 0.0
    %1714 = vmatprep.subr.mxu0 0.0
    %1715 = vmatpush1.msra.mxu0 0.0
    %1716 = vmatprep.subr.mxu0 0.0
    %1717 = vmatpush1.msra.mxu0 0.0
    %1718 = vmatprep.subr.mxu0 0.0
    %1719 = vmatpush1.msra.mxu0 0.0
    %1720 = vmatprep.subr.mxu0 0.0
    %1721 = vmatpush1.msra.mxu0 0.0
    %1722 = vmatprep.subr.mxu0 0.0
    %1723 = vmatpush1.msra.mxu0 0.0
    %1724 = vmatprep.subr.mxu0 0.0
    %1725 = vmatpush1.msra.mxu0 0.0
    %1726 = vmatprep.subr.mxu0 0.0
    %1727 = vmatpush1.msra.mxu0 0.0
    %1728 = vmatprep.subr.mxu0 0.0
    %1729 = vmatpush1.msra.mxu0 0.0
    %1730 = vmatprep.subr.mxu0 0.0
    %1731 = vmatpush1.msra.mxu0 0.0
    %1732 = vmatprep.subr.mxu0 0.0
    %1733 = vmatpush1.msra.mxu0 0.0
    %1734 = vmatprep.subr.mxu0 0.0
    %1735 = vmatpush1.msra.mxu0 0.0
    %1736 = vmatprep.mubr.f32.mxu0 0.0
    %1737 = vmatmul.mubr.f32.gmra.mrb[0].mxu0 %v1670
    %v1738 = vpop.f32.mrb[0].mxu0
    %v1739 = vadd.f32 %v76, %v1738
    %v1740 = vpop.f32.mrb[0].mxu0
    %1741 = vdwg.mxu0
    %v1742 = vtanh.pop %v1739
    %v1744 = vsel %vm168, %v1742, 0
    %1746 = vmatprep.subr.mxu0 0.0
    %1747 = vmatpush1.msra.mxu0 %v65
    %1748 = vmatprep.subr.mxu0 0.0
    %1749 = vmatpush1.msra.mxu0 %v66
    %1750 = vmatprep.subr.mxu0 0.0
    %1751 = vmatpush1.msra.mxu0 %v67
    %1752 = vmatprep.subr.mxu0 0.0
    %1753 = vmatpush1.msra.mxu0 %v68
    %1754 = vmatprep.subr.mxu0 0.0
    %1755 = vmatpush1.msra.mxu0 %v69
    %1756 = vmatprep.subr.mxu0 0.0
    %1757 = vmatpush1.msra.mxu0 0.0
    %1758 = vmatprep.subr.mxu0 0.0
    %1759 = vmatpush1.msra.mxu0 0.0
    %1760 = vmatprep.subr.mxu0 0.0
    %1761 = vmatpush1.msra.mxu0 0.0
    %1762 = vmatprep.subr.mxu0 0.0
    %1763 = vmatpush1.msra.mxu0 0.0
    %1764 = vmatprep.subr.mxu0 0.0
    %1765 = vmatpush1.msra.mxu0 0.0
    %1766 = vmatprep.subr.mxu0 0.0
    %1767 = vmatpush1.msra.mxu0 0.0
    %1768 = vmatprep.subr.mxu0 0.0
    %1769 = vmatpush1.msra.mxu0 0.0
    %1770 = vmatprep.subr.mxu0 0.0
    %1771 = vmatpush1.msra.mxu0 0.0
    %1772 = vmatprep.subr.mxu0 0.0
    %1773 = vmatpush1.msra.mxu0 0.0
    %1774 = vmatprep.subr.mxu0 0.0
    %1775 = vmatpush1.msra.mxu0 0.0
    %1776 = vmatprep.subr.mxu0 0.0
    %1777 = vmatpush1.msra.mxu0 0.0
    %1778 = vmatprep.subr.mxu0 0.0
    %1779 = vmatpush1.msra.mxu0 0.0
    %1780 = vmatprep.subr.mxu0 0.0
    %1781 = vmatpush1.msra.mxu0 0.0
    %1782 = vmatprep.subr.mxu0 0.0
    %1783 = vmatpush1.msra.mxu0 0.0
    %1784 = vmatprep.subr.mxu0 0.0
    %1785 = vmatpush1.msra.mxu0 0.0
    %1786 = vmatprep.subr.mxu0 0.0
    %1787 = vmatpush1.msra.mxu0 0.0
    %1788 = vmatprep.subr.mxu0 0.0
    %1789 = vmatpush1.msra.mxu0 0.0
    %1790 = vmatprep.subr.mxu0 0.0
    %1791 = vmatpush1.msra.mxu0 0.0
    %1792 = vmatprep.subr.mxu0 0.0
    %1793 = vmatpush1.msra.mxu0 0.0
    %1794 = vmatprep.subr.mxu0 0.0
    %1795 = vmatpush1.msra.mxu0 0.0
    %1796 = vmatprep.subr.mxu0 0.0
    %1797 = vmatpush1.msra.mxu0 0.0
    %1798 = vmatprep.subr.mxu0 0.0
    %1799 = vmatpush1.msra.mxu0 0.0
    %1800 = vmatprep.subr.mxu0 0.0
    %1801 = vmatpush1.msra.mxu0 0.0
    %1802 = vmatprep.subr.mxu0 0.0
    %1803 = vmatpush1.msra.mxu0 0.0
    %1804 = vmatprep.subr.mxu0 0.0
    %1805 = vmatpush1.msra.mxu0 0.0
    %1806 = vmatprep.subr.mxu0 0.0
    %1807 = vmatpush1.msra.mxu0 0.0
    %1808 = vmatprep.subr.mxu0 0.0
    %1809 = vmatpush1.msra.mxu0 0.0
    %1810 = vmatprep.mubr.f32.mxu0 0.0
    %1811 = vmatmul.mubr.f32.gmra.mrb[0].mxu0 %v1744
    %v1812 = vpop.f32.mrb[0].mxu0
    %v1813 = vadd.f32 %v78, %v1812
    %v1814 = vpop.f32.mrb[0].mxu0
    %1815 = vdwg.mxu0
    %v1816 = vtanh.pop %v1813
    %v1818 = vsel %vm168, %v1816, 0
    %1820 = vmatprep.subr.mxu0 0.0
    %1821 = vmatpush1.msra.mxu0 %v71
    %1822 = vmatprep.subr.mxu0 0.0
    %1823 = vmatpush1.msra.mxu0 %v72
    %1824 = vmatprep.subr.mxu0 0.0
    %1825 = vmatpush1.msra.mxu0 %v73
    %1826 = vmatprep.subr.mxu0 0.0
    %1827 = vmatpush1.msra.mxu0 %v74
    %1828 = vmatprep.subr.mxu0 0.0
    %1829 = vmatpush1.msra.mxu0 %v75
    %1830 = vmatprep.subr.mxu0 0.0
    %1831 = vmatpush1.msra.mxu0 0.0
    %1832 = vmatprep.subr.mxu0 0.0
    %1833 = vmatpush1.msra.mxu0 0.0
    %1834 = vmatprep.subr.mxu0 0.0
    %1835 = vmatpush1.msra.mxu0 0.0
    %1836 = vmatprep.subr.mxu0 0.0
    %1837 = vmatpush1.msra.mxu0 0.0
    %1838 = vmatprep.subr.mxu0 0.0
    %1839 = vmatpush1.msra.mxu0 0.0
    %1840 = vmatprep.subr.mxu0 0.0
    %1841 = vmatpush1.msra.mxu0 0.0
    %1842 = vmatprep.subr.mxu0 0.0
    %1843 = vmatpush1.msra.mxu0 0.0
    %1844 = vmatprep.subr.mxu0 0.0
    %1845 = vmatpush1.msra.mxu0 0.0
    %1846 = vmatprep.subr.mxu0 0.0
    %1847 = vmatpush1.msra.mxu0 0.0
    %1848 = vmatprep.subr.mxu0 0.0
    %1849 = vmatpush1.msra.mxu0 0.0
    %1850 = vmatprep.subr.mxu0 0.0
    %1851 = vmatpush1.msra.mxu0 0.0
    %1852 = vmatprep.subr.mxu0 0.0
    %1853 = vmatpush1.msra.mxu0 0.0
    %1854 = vmatprep.subr.mxu0 0.0
    %1855 = vmatpush1.msra.mxu0 0.0
    %1856 = vmatprep.subr.mxu0 0.0
    %1857 = vmatpush1.msra.mxu0 0.0
    %1858 = vmatprep.subr.mxu0 0.0
    %1859 = vmatpush1.msra.mxu0 0.0
    %1860 = vmatprep.subr.mxu0 0.0
    %1861 = vmatpush1.msra.mxu0 0.0
    %1862 = vmatprep.subr.mxu0 0.0
    %1863 = vmatpush1.msra.mxu0 0.0
    %1864 = vmatprep.subr.mxu0 0.0
    %1865 = vmatpush1.msra.mxu0 0.0
    %1866 = vmatprep.subr.mxu0 0.0
    %1867 = vmatpush1.msra.mxu0 0.0
    %1868 = vmatprep.subr.mxu0 0.0
    %1869 = vmatpush1.msra.mxu0 0.0
    %1870 = vmatprep.subr.mxu0 0.0
    %1871 = vmatpush1.msra.mxu0 0.0
    %1872 = vmatprep.subr.mxu0 0.0
    %1873 = vmatpush1.msra.mxu0 0.0
    %1874 = vmatprep.subr.mxu0 0.0
    %1875 = vmatpush1.msra.mxu0 0.0
    %1876 = vmatprep.subr.mxu0 0.0
    %1877 = vmatpush1.msra.mxu0 0.0
    %1878 = vmatprep.subr.mxu0 0.0
    %1879 = vmatpush1.msra.mxu0 0.0
    %1880 = vmatprep.subr.mxu0 0.0
    %1881 = vmatpush1.msra.mxu0 0.0
    %1882 = vmatprep.subr.mxu0 0.0
    %1883 = vmatpush1.msra.mxu0 0.0
    %1884 = vmatprep.mubr.f32.mxu0 0.0
    %1885 = vmatmul.mubr.f32.gmra.mrb[0].mxu0 %v1818
    %v1886 = vpop.f32.mrb[0].mxu0
    %v1887 = vadd.f32 %v80, %v1886
    %v1888 = vpop.f32.mrb[0].mxu0
    %1889 = vdwg.mxu0
    %v1890 = vtanh.pop %v1887
    %v1892 = vsel %vm168, %v1890, 0
    %1894 = vmatprep.subr.mxu0 0.0
    %1895 = vmatpush1.msra.mxu0 %v81
    %1896 = vmatprep.subr.mxu0 0.0
    %1897 = vmatpush1.msra.mxu0 %v82
    %1898 = vmatprep.subr.mxu0 0.0
    %1899 = vmatpush1.msra.mxu0 %v83
    %1900 = vmatprep.subr.mxu0 0.0
    %1901 = vmatpush1.msra.mxu0 %v84
    %1902 = vmatprep.subr.mxu0 0.0
    %1903 = vmatpush1.msra.mxu0 %v85
    %1904 = vmatprep.subr.mxu0 0.0
    %1905 = vmatpush1.msra.mxu0 0.0
    %1906 = vmatprep.subr.mxu0 0.0
    %1907 = vmatpush1.msra.mxu0 0.0
    %1908 = vmatprep.subr.mxu0 0.0
    %1909 = vmatpush1.msra.mxu0 0.0
    %1910 = vmatprep.subr.mxu0 0.0
    %1911 = vmatpush1.msra.mxu0 0.0
    %1912 = vmatprep.subr.mxu0 0.0
    %1913 = vmatpush1.msra.mxu0 0.0
    %1914 = vmatprep.subr.mxu0 0.0
    %1915 = vmatpush1.msra.mxu0 0.0
    %1916 = vmatprep.subr.mxu0 0.0
    %1917 = vmatpush1.msra.mxu0 0.0
    %1918 = vmatprep.subr.mxu0 0.0
    %1919 = vmatpush1.msra.mxu0 0.0
    %1920 = vmatprep.subr.mxu0 0.0
    %1921 = vmatpush1.msra.mxu0 0.0
    %1922 = vmatprep.subr.mxu0 0.0
    %1923 = vmatpush1.msra.mxu0 0.0
    %1924 = vmatprep.subr.mxu0 0.0
    %1925 = vmatpush1.msra.mxu0 0.0
    %1926 = vmatprep.subr.mxu0 0.0
    %1927 = vmatpush1.msra.mxu0 0.0
    %1928 = vmatprep.subr.mxu0 0.0
    %1929 = vmatpush1.msra.mxu0 0.0
    %1930 = vmatprep.subr.mxu0 0.0
    %1931 = vmatpush1.msra.mxu0 0.0
    %1932 = vmatprep.subr.mxu0 0.0
    %1933 = vmatpush1.msra.mxu0 0.0
    %1934 = vmatprep.subr.mxu0 0.0
    %1935 = vmatpush1.msra.mxu0 0.0
    %1936 = vmatprep.subr.mxu0 0.0
    %1937 = vmatpush1.msra.mxu0 0.0
    %1938 = vmatprep.subr.mxu0 0.0
    %1939 = vmatpush1.msra.mxu0 0.0
    %1940 = vmatprep.subr.mxu0 0.0
    %1941 = vmatpush1.msra.mxu0 0.0
    %1942 = vmatprep.subr.mxu0 0.0
    %1943 = vmatpush1.msra.mxu0 0.0
    %1944 = vmatprep.subr.mxu0 0.0
    %1945 = vmatpush1.msra.mxu0 0.0
    %1946 = vmatprep.subr.mxu0 0.0
    %1947 = vmatpush1.msra.mxu0 0.0
    %1948 = vmatprep.subr.mxu0 0.0
    %1949 = vmatpush1.msra.mxu0 0.0
    %1950 = vmatprep.subr.mxu0 0.0
    %1951 = vmatpush1.msra.mxu0 0.0
    %1952 = vmatprep.subr.mxu0 0.0
    %1953 = vmatpush1.msra.mxu0 0.0
    %1954 = vmatprep.subr.mxu0 0.0
    %1955 = vmatpush1.msra.mxu0 0.0
    %1956 = vmatprep.subr.mxu0 0.0
    %1957 = vmatpush1.msra.mxu0 0.0
    %1958 = vmatprep.mubr.f32.mxu0 0.0
    %1959 = vmatmul.mubr.f32.gmra.mrb[0].mxu0 %v1892
    %v1960 = vpop.f32.mrb[0].mxu0
    %v1961 = vadd.f32 %v86, %v1960
    %v1962 = vpop.f32.mrb[0].mxu0
    %1963 = vdwg.mxu0
    %s1964 = smul.f32 %s1594, 0.5
    %v1965 = vstv %s1964
    %v1966 = vmul.f32 %v1965, %v1961
    %v1967 = vadd.f32 %v1590, %v1966
    %v1969 = vsel %vm93, %v1967, 0
    %1971 = vmatprep.subr.mxu0 0.0
    %1972 = vmatpush1.msra.mxu0 %v57
    %1973 = vmatprep.subr.mxu0 0.0
    %1974 = vmatpush1.msra.mxu0 0.0
    %1975 = vmatprep.subr.mxu0 0.0
    %1976 = vmatpush1.msra.mxu0 0.0
    %1977 = vmatprep.subr.mxu0 0.0
    %1978 = vmatpush1.msra.mxu0 0.0
    %1979 = vmatprep.subr.mxu0 0.0
    %1980 = vmatpush1.msra.mxu0 0.0
    %1981 = vmatprep.subr.mxu0 0.0
    %1982 = vmatpush1.msra.mxu0 0.0
    %1983 = vmatprep.subr.mxu0 0.0
    %1984 = vmatpush1.msra.mxu0 0.0
    %1985 = vmatprep.subr.mxu0 0.0
    %1986 = vmatpush1.msra.mxu0 0.0
    %1987 = vmatprep.subr.mxu0 0.0
    %1988 = vmatpush1.msra.mxu0 0.0
    %1989 = vmatprep.subr.mxu0 0.0
    %1990 = vmatpush1.msra.mxu0 0.0
    %1991 = vmatprep.subr.mxu0 0.0
    %1992 = vmatpush1.msra.mxu0 0.0
    %1993 = vmatprep.subr.mxu0 0.0
    %1994 = vmatpush1.msra.mxu0 0.0
    %1995 = vmatprep.subr.mxu0 0.0
    %1996 = vmatpush1.msra.mxu0 0.0
    %1997 = vmatprep.subr.mxu0 0.0
    %1998 = vmatpush1.msra.mxu0 0.0
    %1999 = vmatprep.subr.mxu0 0.0
    %2000 = vmatpush1.msra.mxu0 0.0
    %2001 = vmatprep.subr.mxu0 0.0
    %2002 = vmatpush1.msra.mxu0 0.0
    %2003 = vmatprep.subr.mxu0 0.0
    %2004 = vmatpush1.msra.mxu0 0.0
    %2005 = vmatprep.subr.mxu0 0.0
    %2006 = vmatpush1.msra.mxu0 0.0
    %2007 = vmatprep.subr.mxu0 0.0
    %2008 = vmatpush1.msra.mxu0 0.0
    %2009 = vmatprep.subr.mxu0 0.0
    %2010 = vmatpush1.msra.mxu0 0.0
    %2011 = vmatprep.subr.mxu0 0.0
    %2012 = vmatpush1.msra.mxu0 0.0
    %2013 = vmatprep.subr.mxu0 0.0
    %2014 = vmatpush1.msra.mxu0 0.0
    %2015 = vmatprep.subr.mxu0 0.0
    %2016 = vmatpush1.msra.mxu0 0.0
    %2017 = vmatprep.subr.mxu0 0.0
    %2018 = vmatpush1.msra.mxu0 0.0
    %2019 = vmatprep.subr.mxu0 0.0
    %2020 = vmatpush1.msra.mxu0 0.0
    %2021 = vmatprep.subr.mxu0 0.0
    %2022 = vmatpush1.msra.mxu0 0.0
    %2023 = vmatprep.subr.mxu0 0.0
    %2024 = vmatpush1.msra.mxu0 0.0
    %2025 = vmatprep.subr.mxu0 0.0
    %2026 = vmatpush1.msra.mxu0 0.0
    %2027 = vmatprep.subr.mxu0 0.0
    %2028 = vmatpush1.msra.mxu0 0.0
    %2029 = vmatprep.subr.mxu0 0.0
    %2030 = vmatpush1.msra.mxu0 0.0
    %2031 = vmatprep.subr.mxu0 0.0
    %2032 = vmatpush1.msra.mxu0 0.0
    %2033 = vmatprep.subr.mxu0 0.0
    %2034 = vmatpush1.msra.mxu0 0.0
    %2035 = vmatprep.mubr.f32.mxu0 0.0
    %2036 = vmatmul.mubr.f32.gmra.mrb[0].mxu0 %v1969
    %v2037 = vpop.f32.mrb[0].mxu0
    %v2038 = vadd.f32 %v58, %v2037
    %v2039 = vpop.f32.mrb[0].mxu0
    %2040 = vdwg.mxu0
    %v2041 = vtanh.pop %v2038
    %v2043 = vsel %vm168, %v2041, 0
    %2045 = vmatprep.subr.mxu0 0.0
    %2046 = vmatpush1.msra.mxu0 %v59
    %2047 = vmatprep.subr.mxu0 0.0
    %2048 = vmatpush1.msra.mxu0 %v60
    %2049 = vmatprep.subr.mxu0 0.0
    %2050 = vmatpush1.msra.mxu0 %v61
    %2051 = vmatprep.subr.mxu0 0.0
    %2052 = vmatpush1.msra.mxu0 %v62
    %2053 = vmatprep.subr.mxu0 0.0
    %2054 = vmatpush1.msra.mxu0 %v63
    %2055 = vmatprep.subr.mxu0 0.0
    %2056 = vmatpush1.msra.mxu0 0.0
    %2057 = vmatprep.subr.mxu0 0.0
    %2058 = vmatpush1.msra.mxu0 0.0
    %2059 = vmatprep.subr.mxu0 0.0
    %2060 = vmatpush1.msra.mxu0 0.0
    %2061 = vmatprep.subr.mxu0 0.0
    %2062 = vmatpush1.msra.mxu0 0.0
    %2063 = vmatprep.subr.mxu0 0.0
    %2064 = vmatpush1.msra.mxu0 0.0
    %2065 = vmatprep.subr.mxu0 0.0
    %2066 = vmatpush1.msra.mxu0 0.0
    %2067 = vmatprep.subr.mxu0 0.0
    %2068 = vmatpush1.msra.mxu0 0.0
    %2069 = vmatprep.subr.mxu0 0.0
    %2070 = vmatpush1.msra.mxu0 0.0
    %2071 = vmatprep.subr.mxu0 0.0
    %2072 = vmatpush1.msra.mxu0 0.0
    %2073 = vmatprep.subr.mxu0 0.0
    %2074 = vmatpush1.msra.mxu0 0.0
    %2075 = vmatprep.subr.mxu0 0.0
    %2076 = vmatpush1.msra.mxu0 0.0
    %2077 = vmatprep.subr.mxu0 0.0
    %2078 = vmatpush1.msra.mxu0 0.0
    %2079 = vmatprep.subr.mxu0 0.0
    %2080 = vmatpush1.msra.mxu0 0.0
    %2081 = vmatprep.subr.mxu0 0.0
    %2082 = vmatpush1.msra.mxu0 0.0
    %2083 = vmatprep.subr.mxu0 0.0
    %2084 = vmatpush1.msra.mxu0 0.0
    %2085 = vmatprep.subr.mxu0 0.0
    %2086 = vmatpush1.msra.mxu0 0.0
    %2087 = vmatprep.subr.mxu0 0.0
    %2088 = vmatpush1.msra.mxu0 0.0
    %2089 = vmatprep.subr.mxu0 0.0
    %2090 = vmatpush1.msra.mxu0 0.0
    %2091 = vmatprep.subr.mxu0 0.0
    %2092 = vmatpush1.msra.mxu0 0.0
    %2093 = vmatprep.subr.mxu0 0.0
    %2094 = vmatpush1.msra.mxu0 0.0
    %2095 = vmatprep.subr.mxu0 0.0
    %2096 = vmatpush1.msra.mxu0 0.0
    %2097 = vmatprep.subr.mxu0 0.0
    %2098 = vmatpush1.msra.mxu0 0.0
    %2099 = vmatprep.subr.mxu0 0.0
    %2100 = vmatpush1.msra.mxu0 0.0
    %2101 = vmatprep.subr.mxu0 0.0
    %2102 = vmatpush1.msra.mxu0 0.0
    %2103 = vmatprep.subr.mxu0 0.0
    %2104 = vmatpush1.msra.mxu0 0.0
    %2105 = vmatprep.subr.mxu0 0.0
    %2106 = vmatpush1.msra.mxu0 0.0
    %2107 = vmatprep.subr.mxu0 0.0
    %2108 = vmatpush1.msra.mxu0 0.0
    %2109 = vmatprep.mubr.f32.mxu0 0.0
    %2110 = vmatmul.mubr.f32.gmra.mrb[0].mxu0 %v2043
    %v2111 = vpop.f32.mrb[0].mxu0
    %v2112 = vadd.f32 %v76, %v2111
    %v2113 = vpop.f32.mrb[0].mxu0
    %2114 = vdwg.mxu0
    %v2115 = vtanh.pop %v2112
    %v2117 = vsel %vm168, %v2115, 0
    %2119 = vmatprep.subr.mxu0 0.0
    %2120 = vmatpush1.msra.mxu0 %v65
    %2121 = vmatprep.subr.mxu0 0.0
    %2122 = vmatpush1.msra.mxu0 %v66
    %2123 = vmatprep.subr.mxu0 0.0
    %2124 = vmatpush1.msra.mxu0 %v67
    %2125 = vmatprep.subr.mxu0 0.0
    %2126 = vmatpush1.msra.mxu0 %v68
    %2127 = vmatprep.subr.mxu0 0.0
    %2128 = vmatpush1.msra.mxu0 %v69
    %2129 = vmatprep.subr.mxu0 0.0
    %2130 = vmatpush1.msra.mxu0 0.0
    %2131 = vmatprep.subr.mxu0 0.0
    %2132 = vmatpush1.msra.mxu0 0.0
    %2133 = vmatprep.subr.mxu0 0.0
    %2134 = vmatpush1.msra.mxu0 0.0
    %2135 = vmatprep.subr.mxu0 0.0
    %2136 = vmatpush1.msra.mxu0 0.0
    %2137 = vmatprep.subr.mxu0 0.0
    %2138 = vmatpush1.msra.mxu0 0.0
    %2139 = vmatprep.subr.mxu0 0.0
    %2140 = vmatpush1.msra.mxu0 0.0
    %2141 = vmatprep.subr.mxu0 0.0
    %2142 = vmatpush1.msra.mxu0 0.0
    %2143 = vmatprep.subr.mxu0 0.0
    %2144 = vmatpush1.msra.mxu0 0.0
    %2145 = vmatprep.subr.mxu0 0.0
    %2146 = vmatpush1.msra.mxu0 0.0
    %2147 = vmatprep.subr.mxu0 0.0
    %2148 = vmatpush1.msra.mxu0 0.0
    %2149 = vmatprep.subr.mxu0 0.0
    %2150 = vmatpush1.msra.mxu0 0.0
    %2151 = vmatprep.subr.mxu0 0.0
    %2152 = vmatpush1.msra.mxu0 0.0
    %2153 = vmatprep.subr.mxu0 0.0
    %2154 = vmatpush1.msra.mxu0 0.0
    %2155 = vmatprep.subr.mxu0 0.0
    %2156 = vmatpush1.msra.mxu0 0.0
    %2157 = vmatprep.subr.mxu0 0.0
    %2158 = vmatpush1.msra.mxu0 0.0
    %2159 = vmatprep.subr.mxu0 0.0
    %2160 = vmatpush1.msra.mxu0 0.0
    %2161 = vmatprep.subr.mxu0 0.0
    %2162 = vmatpush1.msra.mxu0 0.0
    %2163 = vmatprep.subr.mxu0 0.0
    %2164 = vmatpush1.msra.mxu0 0.0
    %2165 = vmatprep.subr.mxu0 0.0
    %2166 = vmatpush1.msra.mxu0 0.0
    %2167 = vmatprep.subr.mxu0 0.0
    %2168 = vmatpush1.msra.mxu0 0.0
    %2169 = vmatprep.subr.mxu0 0.0
    %2170 = vmatpush1.msra.mxu0 0.0
    %2171 = vmatprep.subr.mxu0 0.0
    %2172 = vmatpush1.msra.mxu0 0.0
    %2173 = vmatprep.subr.mxu0 0.0
    %2174 = vmatpush1.msra.mxu0 0.0
    %2175 = vmatprep.subr.mxu0 0.0
    %2176 = vmatpush1.msra.mxu0 0.0
    %2177 = vmatprep.subr.mxu0 0.0
    %2178 = vmatpush1.msra.mxu0 0.0
    %2179 = vmatprep.subr.mxu0 0.0
    %2180 = vmatpush1.msra.mxu0 0.0
    %2181 = vmatprep.subr.mxu0 0.0
    %2182 = vmatpush1.msra.mxu0 0.0
    %2183 = vmatprep.mubr.f32.mxu0 0.0
    %2184 = vmatmul.mubr.f32.gmra.mrb[0].mxu0 %v2117
    %v2185 = vpop.f32.mrb[0].mxu0
    %v2186 = vadd.f32 %v78, %v2185
    %v2187 = vpop.f32.mrb[0].mxu0
    %2188 = vdwg.mxu0
    %v2189 = vtanh.pop %v2186
    %v2191 = vsel %vm168, %v2189, 0
    %2193 = vmatprep.subr.mxu0 0.0
    %2194 = vmatpush1.msra.mxu0 %v71
    %2195 = vmatprep.subr.mxu0 0.0
    %2196 = vmatpush1.msra.mxu0 %v72
    %2197 = vmatprep.subr.mxu0 0.0
    %2198 = vmatpush1.msra.mxu0 %v73
    %2199 = vmatprep.subr.mxu0 0.0
    %2200 = vmatpush1.msra.mxu0 %v74
    %2201 = vmatprep.subr.mxu0 0.0
    %2202 = vmatpush1.msra.mxu0 %v75
    %2203 = vmatprep.subr.mxu0 0.0
    %2204 = vmatpush1.msra.mxu0 0.0
    %2205 = vmatprep.subr.mxu0 0.0
    %2206 = vmatpush1.msra.mxu0 0.0
    %2207 = vmatprep.subr.mxu0 0.0
    %2208 = vmatpush1.msra.mxu0 0.0
    %2209 = vmatprep.subr.mxu0 0.0
    %2210 = vmatpush1.msra.mxu0 0.0
    %2211 = vmatprep.subr.mxu0 0.0
    %2212 = vmatpush1.msra.mxu0 0.0
    %2213 = vmatprep.subr.mxu0 0.0
    %2214 = vmatpush1.msra.mxu0 0.0
    %2215 = vmatprep.subr.mxu0 0.0
    %2216 = vmatpush1.msra.mxu0 0.0
    %2217 = vmatprep.subr.mxu0 0.0
    %2218 = vmatpush1.msra.mxu0 0.0
    %2219 = vmatprep.subr.mxu0 0.0
    %2220 = vmatpush1.msra.mxu0 0.0
    %2221 = vmatprep.subr.mxu0 0.0
    %2222 = vmatpush1.msra.mxu0 0.0
    %2223 = vmatprep.subr.mxu0 0.0
    %2224 = vmatpush1.msra.mxu0 0.0
    %2225 = vmatprep.subr.mxu0 0.0
    %2226 = vmatpush1.msra.mxu0 0.0
    %2227 = vmatprep.subr.mxu0 0.0
    %2228 = vmatpush1.msra.mxu0 0.0
    %2229 = vmatprep.subr.mxu0 0.0
    %2230 = vmatpush1.msra.mxu0 0.0
    %2231 = vmatprep.subr.mxu0 0.0
    %2232 = vmatpush1.msra.mxu0 0.0
    %2233 = vmatprep.subr.mxu0 0.0
    %2234 = vmatpush1.msra.mxu0 0.0
    %2235 = vmatprep.subr.mxu0 0.0
    %2236 = vmatpush1.msra.mxu0 0.0
    %2237 = vmatprep.subr.mxu0 0.0
    %2238 = vmatpush1.msra.mxu0 0.0
    %2239 = vmatprep.subr.mxu0 0.0
    %2240 = vmatpush1.msra.mxu0 0.0
    %2241 = vmatprep.subr.mxu0 0.0
    %2242 = vmatpush1.msra.mxu0 0.0
    %2243 = vmatprep.subr.mxu0 0.0
    %2244 = vmatpush1.msra.mxu0 0.0
    %2245 = vmatprep.subr.mxu0 0.0
    %2246 = vmatpush1.msra.mxu0 0.0
    %2247 = vmatprep.subr.mxu0 0.0
    %2248 = vmatpush1.msra.mxu0 0.0
    %2249 = vmatprep.subr.mxu0 0.0
    %2250 = vmatpush1.msra.mxu0 0.0
    %2251 = vmatprep.subr.mxu0 0.0
    %2252 = vmatpush1.msra.mxu0 0.0
    %2253 = vmatprep.subr.mxu0 0.0
    %2254 = vmatpush1.msra.mxu0 0.0
    %2255 = vmatprep.subr.mxu0 0.0
    %2256 = vmatpush1.msra.mxu0 0.0
    %2257 = vmatprep.mubr.f32.mxu0 0.0
    %2258 = vmatmul.mubr.f32.gmra.mrb[0].mxu0 %v2191
    %v2259 = vpop.f32.mrb[0].mxu0
    %v2260 = vadd.f32 %v80, %v2259
    %v2261 = vpop.f32.mrb[0].mxu0
    %2262 = vdwg.mxu0
    %v2263 = vtanh.pop %v2260
    %v2265 = vsel %vm168, %v2263, 0
    %2267 = vmatprep.subr.mxu0 0.0
    %2268 = vmatpush1.msra.mxu0 %v81
    %2269 = vmatprep.subr.mxu0 0.0
    %2270 = vmatpush1.msra.mxu0 %v82
    %2271 = vmatprep.subr.mxu0 0.0
    %2272 = vmatpush1.msra.mxu0 %v83
    %2273 = vmatprep.subr.mxu0 0.0
    %2274 = vmatpush1.msra.mxu0 %v84
    %2275 = vmatprep.subr.mxu0 0.0
    %2276 = vmatpush1.msra.mxu0 %v85
    %2277 = vmatprep.subr.mxu0 0.0
    %2278 = vmatpush1.msra.mxu0 0.0
    %2279 = vmatprep.subr.mxu0 0.0
    %2280 = vmatpush1.msra.mxu0 0.0
    %2281 = vmatprep.subr.mxu0 0.0
    %2282 = vmatpush1.msra.mxu0 0.0
    %2283 = vmatprep.subr.mxu0 0.0
    %2284 = vmatpush1.msra.mxu0 0.0
    %2285 = vmatprep.subr.mxu0 0.0
    %2286 = vmatpush1.msra.mxu0 0.0
    %2287 = vmatprep.subr.mxu0 0.0
    %2288 = vmatpush1.msra.mxu0 0.0
    %2289 = vmatprep.subr.mxu0 0.0
    %2290 = vmatpush1.msra.mxu0 0.0
    %2291 = vmatprep.subr.mxu0 0.0
    %2292 = vmatpush1.msra.mxu0 0.0
    %2293 = vmatprep.subr.mxu0 0.0
    %2294 = vmatpush1.msra.mxu0 0.0
    %2295 = vmatprep.subr.mxu0 0.0
    %2296 = vmatpush1.msra.mxu0 0.0
    %2297 = vmatprep.subr.mxu0 0.0
    %2298 = vmatpush1.msra.mxu0 0.0
    %2299 = vmatprep.subr.mxu0 0.0
    %2300 = vmatpush1.msra.mxu0 0.0
    %2301 = vmatprep.subr.mxu0 0.0
    %2302 = vmatpush1.msra.mxu0 0.0
    %2303 = vmatprep.subr.mxu0 0.0
    %2304 = vmatpush1.msra.mxu0 0.0
    %2305 = vmatprep.subr.mxu0 0.0
    %2306 = vmatpush1.msra.mxu0 0.0
    %2307 = vmatprep.subr.mxu0 0.0
    %2308 = vmatpush1.msra.mxu0 0.0
    %2309 = vmatprep.subr.mxu0 0.0
    %2310 = vmatpush1.msra.mxu0 0.0
    %2311 = vmatprep.subr.mxu0 0.0
    %2312 = vmatpush1.msra.mxu0 0.0
    %2313 = vmatprep.subr.mxu0 0.0
    %2314 = vmatpush1.msra.mxu0 0.0
    %2315 = vmatprep.subr.mxu0 0.0
    %2316 = vmatpush1.msra.mxu0 0.0
    %2317 = vmatprep.subr.mxu0 0.0
    %2318 = vmatpush1.msra.mxu0 0.0
    %2319 = vmatprep.subr.mxu0 0.0
    %2320 = vmatpush1.msra.mxu0 0.0
    %2321 = vmatprep.subr.mxu0 0.0
    %2322 = vmatpush1.msra.mxu0 0.0
    %2323 = vmatprep.subr.mxu0 0.0
    %2324 = vmatpush1.msra.mxu0 0.0
    %2325 = vmatprep.subr.mxu0 0.0
    %2326 = vmatpush1.msra.mxu0 0.0
    %2327 = vmatprep.subr.mxu0 0.0
    %2328 = vmatpush1.msra.mxu0 0.0
    %2329 = vmatprep.subr.mxu0 0.0
    %2330 = vmatpush1.msra.mxu0 0.0
    %2331 = vmatprep.mubr.f32.mxu0 0.0
    %2332 = vmatmul.mubr.f32.gmra.mrb[0].mxu0 %v2265
    %v2333 = vpop.f32.mrb[0].mxu0
    %v2334 = vadd.f32 %v86, %v2333
    %v2335 = vpop.f32.mrb[0].mxu0
    %2336 = vdwg.mxu0
    %v2337 = vmul.f32 %v1965, %v2334
    %v2338 = vadd.f32 %v1590, %v2337
    %v2340 = vsel %vm93, %v2338, 0
    %2342 = vmatprep.subr.mxu0 0.0
    %2343 = vmatpush1.msra.mxu0 %v57
    %2344 = vmatprep.subr.mxu0 0.0
    %2345 = vmatpush1.msra.mxu0 0.0
    %2346 = vmatprep.subr.mxu0 0.0
    %2347 = vmatpush1.msra.mxu0 0.0
    %2348 = vmatprep.subr.mxu0 0.0
    %2349 = vmatpush1.msra.mxu0 0.0
    %2350 = vmatprep.subr.mxu0 0.0
    %2351 = vmatpush1.msra.mxu0 0.0
    %2352 = vmatprep.subr.mxu0 0.0
    %2353 = vmatpush1.msra.mxu0 0.0
    %2354 = vmatprep.subr.mxu0 0.0
    %2355 = vmatpush1.msra.mxu0 0.0
    %2356 = vmatprep.subr.mxu0 0.0
    %2357 = vmatpush1.msra.mxu0 0.0
    %2358 = vmatprep.subr.mxu0 0.0
    %2359 = vmatpush1.msra.mxu0 0.0
    %2360 = vmatprep.subr.mxu0 0.0
    %2361 = vmatpush1.msra.mxu0 0.0
    %2362 = vmatprep.subr.mxu0 0.0
    %2363 = vmatpush1.msra.mxu0 0.0
    %2364 = vmatprep.subr.mxu0 0.0
    %2365 = vmatpush1.msra.mxu0 0.0
    %2366 = vmatprep.subr.mxu0 0.0
    %2367 = vmatpush1.msra.mxu0 0.0
    %2368 = vmatprep.subr.mxu0 0.0
    %2369 = vmatpush1.msra.mxu0 0.0
    %2370 = vmatprep.subr.mxu0 0.0
    %2371 = vmatpush1.msra.mxu0 0.0
    %2372 = vmatprep.subr.mxu0 0.0
    %2373 = vmatpush1.msra.mxu0 0.0
    %2374 = vmatprep.subr.mxu0 0.0
    %2375 = vmatpush1.msra.mxu0 0.0
    %2376 = vmatprep.subr.mxu0 0.0
    %2377 = vmatpush1.msra.mxu0 0.0
    %2378 = vmatprep.subr.mxu0 0.0
    %2379 = vmatpush1.msra.mxu0 0.0
    %2380 = vmatprep.subr.mxu0 0.0
    %2381 = vmatpush1.msra.mxu0 0.0
    %2382 = vmatprep.subr.mxu0 0.0
    %2383 = vmatpush1.msra.mxu0 0.0
    %2384 = vmatprep.subr.mxu0 0.0
    %2385 = vmatpush1.msra.mxu0 0.0
    %2386 = vmatprep.subr.mxu0 0.0
    %2387 = vmatpush1.msra.mxu0 0.0
    %2388 = vmatprep.subr.mxu0 0.0
    %2389 = vmatpush1.msra.mxu0 0.0
    %2390 = vmatprep.subr.mxu0 0.0
    %2391 = vmatpush1.msra.mxu0 0.0
    %2392 = vmatprep.subr.mxu0 0.0
    %2393 = vmatpush1.msra.mxu0 0.0
    %2394 = vmatprep.subr.mxu0 0.0
    %2395 = vmatpush1.msra.mxu0 0.0
    %2396 = vmatprep.subr.mxu0 0.0
    %2397 = vmatpush1.msra.mxu0 0.0
    %2398 = vmatprep.subr.mxu0 0.0
    %2399 = vmatpush1.msra.mxu0 0.0
    %2400 = vmatprep.subr.mxu0 0.0
    %2401 = vmatpush1.msra.mxu0 0.0
    %2402 = vmatprep.subr.mxu0 0.0
    %2403 = vmatpush1.msra.mxu0 0.0
    %2404 = vmatprep.subr.mxu0 0.0
    %2405 = vmatpush1.msra.mxu0 0.0
    %2406 = vmatprep.mubr.f32.mxu0 0.0
    %2407 = vmatmul.mubr.f32.gmra.mrb[0].mxu0 %v2340
    %v2408 = vpop.f32.mrb[0].mxu0
    %v2409 = vadd.f32 %v58, %v2408
    %v2410 = vpop.f32.mrb[0].mxu0
    %2411 = vdwg.mxu0
    %v2412 = vtanh.pop %v2409
    %v2414 = vsel %vm168, %v2412, 0
    %2416 = vmatprep.subr.mxu0 0.0
    %2417 = vmatpush1.msra.mxu0 %v59
    %2418 = vmatprep.subr.mxu0 0.0
    %2419 = vmatpush1.msra.mxu0 %v60
    %2420 = vmatprep.subr.mxu0 0.0
    %2421 = vmatpush1.msra.mxu0 %v61
    %2422 = vmatprep.subr.mxu0 0.0
    %2423 = vmatpush1.msra.mxu0 %v62
    %2424 = vmatprep.subr.mxu0 0.0
    %2425 = vmatpush1.msra.mxu0 %v63
    %2426 = vmatprep.subr.mxu0 0.0
    %2427 = vmatpush1.msra.mxu0 0.0
    %2428 = vmatprep.subr.mxu0 0.0
    %2429 = vmatpush1.msra.mxu0 0.0
    %2430 = vmatprep.subr.mxu0 0.0
    %2431 = vmatpush1.msra.mxu0 0.0
    %2432 = vmatprep.subr.mxu0 0.0
    %2433 = vmatpush1.msra.mxu0 0.0
    %2434 = vmatprep.subr.mxu0 0.0
    %2435 = vmatpush1.msra.mxu0 0.0
    %2436 = vmatprep.subr.mxu0 0.0
    %2437 = vmatpush1.msra.mxu0 0.0
    %2438 = vmatprep.subr.mxu0 0.0
    %2439 = vmatpush1.msra.mxu0 0.0
    %2440 = vmatprep.subr.mxu0 0.0
    %2441 = vmatpush1.msra.mxu0 0.0
    %2442 = vmatprep.subr.mxu0 0.0
    %2443 = vmatpush1.msra.mxu0 0.0
    %2444 = vmatprep.subr.mxu0 0.0
    %2445 = vmatpush1.msra.mxu0 0.0
    %2446 = vmatprep.subr.mxu0 0.0
    %2447 = vmatpush1.msra.mxu0 0.0
    %2448 = vmatprep.subr.mxu0 0.0
    %2449 = vmatpush1.msra.mxu0 0.0
    %2450 = vmatprep.subr.mxu0 0.0
    %2451 = vmatpush1.msra.mxu0 0.0
    %2452 = vmatprep.subr.mxu0 0.0
    %2453 = vmatpush1.msra.mxu0 0.0
    %2454 = vmatprep.subr.mxu0 0.0
    %2455 = vmatpush1.msra.mxu0 0.0
    %2456 = vmatprep.subr.mxu0 0.0
    %2457 = vmatpush1.msra.mxu0 0.0
    %2458 = vmatprep.subr.mxu0 0.0
    %2459 = vmatpush1.msra.mxu0 0.0
    %2460 = vmatprep.subr.mxu0 0.0
    %2461 = vmatpush1.msra.mxu0 0.0
    %2462 = vmatprep.subr.mxu0 0.0
    %2463 = vmatpush1.msra.mxu0 0.0
    %2464 = vmatprep.subr.mxu0 0.0
    %2465 = vmatpush1.msra.mxu0 0.0
    %2466 = vmatprep.subr.mxu0 0.0
    %2467 = vmatpush1.msra.mxu0 0.0
    %2468 = vmatprep.subr.mxu0 0.0
    %2469 = vmatpush1.msra.mxu0 0.0
    %2470 = vmatprep.subr.mxu0 0.0
    %2471 = vmatpush1.msra.mxu0 0.0
    %2472 = vmatprep.subr.mxu0 0.0
    %2473 = vmatpush1.msra.mxu0 0.0
    %2474 = vmatprep.subr.mxu0 0.0
    %2475 = vmatpush1.msra.mxu0 0.0
    %2476 = vmatprep.subr.mxu0 0.0
    %2477 = vmatpush1.msra.mxu0 0.0
    %2478 = vmatprep.subr.mxu0 0.0
    %2479 = vmatpush1.msra.mxu0 0.0
    %2480 = vmatprep.mubr.f32.mxu0 0.0
    %2481 = vmatmul.mubr.f32.gmra.mrb[0].mxu0 %v2414
    %v2482 = vpop.f32.mrb[0].mxu0
    %v2483 = vadd.f32 %v76, %v2482
    %v2484 = vpop.f32.mrb[0].mxu0
    %2485 = vdwg.mxu0
    %v2486 = vtanh.pop %v2483
    %v2488 = vsel %vm168, %v2486, 0
    %2490 = vmatprep.subr.mxu0 0.0
    %2491 = vmatpush1.msra.mxu0 %v65
    %2492 = vmatprep.subr.mxu0 0.0
    %2493 = vmatpush1.msra.mxu0 %v66
    %2494 = vmatprep.subr.mxu0 0.0
    %2495 = vmatpush1.msra.mxu0 %v67
    %2496 = vmatprep.subr.mxu0 0.0
    %2497 = vmatpush1.msra.mxu0 %v68
    %2498 = vmatprep.subr.mxu0 0.0
    %2499 = vmatpush1.msra.mxu0 %v69
    %2500 = vmatprep.subr.mxu0 0.0
    %2501 = vmatpush1.msra.mxu0 0.0
    %2502 = vmatprep.subr.mxu0 0.0
    %2503 = vmatpush1.msra.mxu0 0.0
    %2504 = vmatprep.subr.mxu0 0.0
    %2505 = vmatpush1.msra.mxu0 0.0
    %2506 = vmatprep.subr.mxu0 0.0
    %2507 = vmatpush1.msra.mxu0 0.0
    %2508 = vmatprep.subr.mxu0 0.0
    %2509 = vmatpush1.msra.mxu0 0.0
    %2510 = vmatprep.subr.mxu0 0.0
    %2511 = vmatpush1.msra.mxu0 0.0
    %2512 = vmatprep.subr.mxu0 0.0
    %2513 = vmatpush1.msra.mxu0 0.0
    %2514 = vmatprep.subr.mxu0 0.0
    %2515 = vmatpush1.msra.mxu0 0.0
    %2516 = vmatprep.subr.mxu0 0.0
    %2517 = vmatpush1.msra.mxu0 0.0
    %2518 = vmatprep.subr.mxu0 0.0
    %2519 = vmatpush1.msra.mxu0 0.0
    %2520 = vmatprep.subr.mxu0 0.0
    %2521 = vmatpush1.msra.mxu0 0.0
    %2522 = vmatprep.subr.mxu0 0.0
    %2523 = vmatpush1.msra.mxu0 0.0
    %2524 = vmatprep.subr.mxu0 0.0
    %2525 = vmatpush1.msra.mxu0 0.0
    %2526 = vmatprep.subr.mxu0 0.0
    %2527 = vmatpush1.msra.mxu0 0.0
    %2528 = vmatprep.subr.mxu0 0.0
    %2529 = vmatpush1.msra.mxu0 0.0
    %2530 = vmatprep.subr.mxu0 0.0
    %2531 = vmatpush1.msra.mxu0 0.0
    %2532 = vmatprep.subr.mxu0 0.0
    %2533 = vmatpush1.msra.mxu0 0.0
    %2534 = vmatprep.subr.mxu0 0.0
    %2535 = vmatpush1.msra.mxu0 0.0
    %2536 = vmatprep.subr.mxu0 0.0
    %2537 = vmatpush1.msra.mxu0 0.0
    %2538 = vmatprep.subr.mxu0 0.0
    %2539 = vmatpush1.msra.mxu0 0.0
    %2540 = vmatprep.subr.mxu0 0.0
    %2541 = vmatpush1.msra.mxu0 0.0
    %2542 = vmatprep.subr.mxu0 0.0
    %2543 = vmatpush1.msra.mxu0 0.0
    %2544 = vmatprep.subr.mxu0 0.0
    %2545 = vmatpush1.msra.mxu0 0.0
    %2546 = vmatprep.subr.mxu0 0.0
    %2547 = vmatpush1.msra.mxu0 0.0
    %2548 = vmatprep.subr.mxu0 0.0
    %2549 = vmatpush1.msra.mxu0 0.0
    %2550 = vmatprep.subr.mxu0 0.0
    %2551 = vmatpush1.msra.mxu0 0.0
    %2552 = vmatprep.subr.mxu0 0.0
    %2553 = vmatpush1.msra.mxu0 0.0
    %2554 = vmatprep.mubr.f32.mxu0 0.0
    %2555 = vmatmul.mubr.f32.gmra.mrb[0].mxu0 %v2488
    %v2556 = vpop.f32.mrb[0].mxu0
    %v2557 = vadd.f32 %v78, %v2556
    %v2558 = vpop.f32.mrb[0].mxu0
    %2559 = vdwg.mxu0
    %v2560 = vtanh.pop %v2557
    %v2562 = vsel %vm168, %v2560, 0
    %2564 = vmatprep.subr.mxu0 0.0
    %2565 = vmatpush1.msra.mxu0 %v71
    %2566 = vmatprep.subr.mxu0 0.0
    %2567 = vmatpush1.msra.mxu0 %v72
    %2568 = vmatprep.subr.mxu0 0.0
    %2569 = vmatpush1.msra.mxu0 %v73
    %2570 = vmatprep.subr.mxu0 0.0
    %2571 = vmatpush1.msra.mxu0 %v74
    %2572 = vmatprep.subr.mxu0 0.0
    %2573 = vmatpush1.msra.mxu0 %v75
    %2574 = vmatprep.subr.mxu0 0.0
    %2575 = vmatpush1.msra.mxu0 0.0
    %2576 = vmatprep.subr.mxu0 0.0
    %2577 = vmatpush1.msra.mxu0 0.0
    %2578 = vmatprep.subr.mxu0 0.0
    %2579 = vmatpush1.msra.mxu0 0.0
    %2580 = vmatprep.subr.mxu0 0.0
    %2581 = vmatpush1.msra.mxu0 0.0
    %2582 = vmatprep.subr.mxu0 0.0
    %2583 = vmatpush1.msra.mxu0 0.0
    %2584 = vmatprep.subr.mxu0 0.0
    %2585 = vmatpush1.msra.mxu0 0.0
    %2586 = vmatprep.subr.mxu0 0.0
    %2587 = vmatpush1.msra.mxu0 0.0
    %2588 = vmatprep.subr.mxu0 0.0
    %2589 = vmatpush1.msra.mxu0 0.0
    %2590 = vmatprep.subr.mxu0 0.0
    %2591 = vmatpush1.msra.mxu0 0.0
    %2592 = vmatprep.subr.mxu0 0.0
    %2593 = vmatpush1.msra.mxu0 0.0
    %2594 = vmatprep.subr.mxu0 0.0
    %2595 = vmatpush1.msra.mxu0 0.0
    %2596 = vmatprep.subr.mxu0 0.0
    %2597 = vmatpush1.msra.mxu0 0.0
    %2598 = vmatprep.subr.mxu0 0.0
    %2599 = vmatpush1.msra.mxu0 0.0
    %2600 = vmatprep.subr.mxu0 0.0
    %2601 = vmatpush1.msra.mxu0 0.0
    %2602 = vmatprep.subr.mxu0 0.0
    %2603 = vmatpush1.msra.mxu0 0.0
    %2604 = vmatprep.subr.mxu0 0.0
    %2605 = vmatpush1.msra.mxu0 0.0
    %2606 = vmatprep.subr.mxu0 0.0
    %2607 = vmatpush1.msra.mxu0 0.0
    %2608 = vmatprep.subr.mxu0 0.0
    %2609 = vmatpush1.msra.mxu0 0.0
    %2610 = vmatprep.subr.mxu0 0.0
    %2611 = vmatpush1.msra.mxu0 0.0
    %2612 = vmatprep.subr.mxu0 0.0
    %2613 = vmatpush1.msra.mxu0 0.0
    %2614 = vmatprep.subr.mxu0 0.0
    %2615 = vmatpush1.msra.mxu0 0.0
    %2616 = vmatprep.subr.mxu0 0.0
    %2617 = vmatpush1.msra.mxu0 0.0
    %2618 = vmatprep.subr.mxu0 0.0
    %2619 = vmatpush1.msra.mxu0 0.0
    %2620 = vmatprep.subr.mxu0 0.0
    %2621 = vmatpush1.msra.mxu0 0.0
    %2622 = vmatprep.subr.mxu0 0.0
    %2623 = vmatpush1.msra.mxu0 0.0
    %2624 = vmatprep.subr.mxu0 0.0
    %2625 = vmatpush1.msra.mxu0 0.0
    %2626 = vmatprep.subr.mxu0 0.0
    %2627 = vmatpush1.msra.mxu0 0.0
    %2628 = vmatprep.mubr.f32.mxu0 0.0
    %2629 = vmatmul.mubr.f32.gmra.mrb[0].mxu0 %v2562
    %v2630 = vpop.f32.mrb[0].mxu0
    %v2631 = vadd.f32 %v80, %v2630
    %v2632 = vpop.f32.mrb[0].mxu0
    %2633 = vdwg.mxu0
    %v2634 = vtanh.pop %v2631
    %v2636 = vsel %vm168, %v2634, 0
    %2638 = vmatprep.subr.mxu0 0.0
    %2639 = vmatpush1.msra.mxu0 %v81
    %2640 = vmatprep.subr.mxu0 0.0
    %2641 = vmatpush1.msra.mxu0 %v82
    %2642 = vmatprep.subr.mxu0 0.0
    %2643 = vmatpush1.msra.mxu0 %v83
    %2644 = vmatprep.subr.mxu0 0.0
    %2645 = vmatpush1.msra.mxu0 %v84
    %2646 = vmatprep.subr.mxu0 0.0
    %2647 = vmatpush1.msra.mxu0 %v85
    %2648 = vmatprep.subr.mxu0 0.0
    %2649 = vmatpush1.msra.mxu0 0.0
    %2650 = vmatprep.subr.mxu0 0.0
    %2651 = vmatpush1.msra.mxu0 0.0
    %2652 = vmatprep.subr.mxu0 0.0
    %2653 = vmatpush1.msra.mxu0 0.0
    %2654 = vmatprep.subr.mxu0 0.0
    %2655 = vmatpush1.msra.mxu0 0.0
    %2656 = vmatprep.subr.mxu0 0.0
    %2657 = vmatpush1.msra.mxu0 0.0
    %2658 = vmatprep.subr.mxu0 0.0
    %2659 = vmatpush1.msra.mxu0 0.0
    %2660 = vmatprep.subr.mxu0 0.0
    %2661 = vmatpush1.msra.mxu0 0.0
    %2662 = vmatprep.subr.mxu0 0.0
    %2663 = vmatpush1.msra.mxu0 0.0
    %2664 = vmatprep.subr.mxu0 0.0
    %2665 = vmatpush1.msra.mxu0 0.0
    %2666 = vmatprep.subr.mxu0 0.0
    %2667 = vmatpush1.msra.mxu0 0.0
    %2668 = vmatprep.subr.mxu0 0.0
    %2669 = vmatpush1.msra.mxu0 0.0
    %2670 = vmatprep.subr.mxu0 0.0
    %2671 = vmatpush1.msra.mxu0 0.0
    %2672 = vmatprep.subr.mxu0 0.0
    %2673 = vmatpush1.msra.mxu0 0.0
    %2674 = vmatprep.subr.mxu0 0.0
    %2675 = vmatpush1.msra.mxu0 0.0
    %2676 = vmatprep.subr.mxu0 0.0
    %2677 = vmatpush1.msra.mxu0 0.0
    %2678 = vmatprep.subr.mxu0 0.0
    %2679 = vmatpush1.msra.mxu0 0.0
    %2680 = vmatprep.subr.mxu0 0.0
    %2681 = vmatpush1.msra.mxu0 0.0
    %2682 = vmatprep.subr.mxu0 0.0
    %2683 = vmatpush1.msra.mxu0 0.0
    %2684 = vmatprep.subr.mxu0 0.0
    %2685 = vmatpush1.msra.mxu0 0.0
    %2686 = vmatprep.subr.mxu0 0.0
    %2687 = vmatpush1.msra.mxu0 0.0
    %2688 = vmatprep.subr.mxu0 0.0
    %2689 = vmatpush1.msra.mxu0 0.0
    %2690 = vmatprep.subr.mxu0 0.0
    %2691 = vmatpush1.msra.mxu0 0.0
    %2692 = vmatprep.subr.mxu0 0.0
    %2693 = vmatpush1.msra.mxu0 0.0
    %2694 = vmatprep.subr.mxu0 0.0
    %2695 = vmatpush1.msra.mxu0 0.0
    %2696 = vmatprep.subr.mxu0 0.0
    %2697 = vmatpush1.msra.mxu0 0.0
    %2698 = vmatprep.subr.mxu0 0.0
    %2699 = vmatpush1.msra.mxu0 0.0
    %2700 = vmatprep.subr.mxu0 0.0
    %2701 = vmatpush1.msra.mxu0 0.0
    %2702 = vmatprep.mubr.f32.mxu0 0.0
    %2703 = vmatmul.mubr.f32.gmra.mrb[0].mxu0 %v2636
    %v2704 = vpop.f32.mrb[0].mxu0
    %v2705 = vadd.f32 %v86, %v2704
    %v2706 = vpop.f32.mrb[0].mxu0
    %2707 = vdwg.mxu0
    %v2708 = vstv %s1594
    %v2709 = vmul.f32 %v2708, %v2705
    %v2710 = vadd.f32 %v1590, %v2709
    %v2712 = vsel %vm93, %v2710, 0
    %2714 = vmatprep.subr.mxu0 0.0
    %2715 = vmatpush1.msra.mxu0 %v57
    %2716 = vmatprep.subr.mxu0 0.0
    %2717 = vmatpush1.msra.mxu0 0.0
    %2718 = vmatprep.subr.mxu0 0.0
    %2719 = vmatpush1.msra.mxu0 0.0
    %2720 = vmatprep.subr.mxu0 0.0
    %2721 = vmatpush1.msra.mxu0 0.0
    %2722 = vmatprep.subr.mxu0 0.0
    %2723 = vmatpush1.msra.mxu0 0.0
    %2724 = vmatprep.subr.mxu0 0.0
    %2725 = vmatpush1.msra.mxu0 0.0
    %2726 = vmatprep.subr.mxu0 0.0
    %2727 = vmatpush1.msra.mxu0 0.0
    %2728 = vmatprep.subr.mxu0 0.0
    %2729 = vmatpush1.msra.mxu0 0.0
    %2730 = vmatprep.subr.mxu0 0.0
    %2731 = vmatpush1.msra.mxu0 0.0
    %2732 = vmatprep.subr.mxu0 0.0
    %2733 = vmatpush1.msra.mxu0 0.0
    %2734 = vmatprep.subr.mxu0 0.0
    %2735 = vmatpush1.msra.mxu0 0.0
    %2736 = vmatprep.subr.mxu0 0.0
    %2737 = vmatpush1.msra.mxu0 0.0
    %2738 = vmatprep.subr.mxu0 0.0
    %2739 = vmatpush1.msra.mxu0 0.0
    %2740 = vmatprep.subr.mxu0 0.0
    %2741 = vmatpush1.msra.mxu0 0.0
    %2742 = vmatprep.subr.mxu0 0.0
    %2743 = vmatpush1.msra.mxu0 0.0
    %2744 = vmatprep.subr.mxu0 0.0
    %2745 = vmatpush1.msra.mxu0 0.0
    %2746 = vmatprep.subr.mxu0 0.0
    %2747 = vmatpush1.msra.mxu0 0.0
    %2748 = vmatprep.subr.mxu0 0.0
    %2749 = vmatpush1.msra.mxu0 0.0
    %2750 = vmatprep.subr.mxu0 0.0
    %2751 = vmatpush1.msra.mxu0 0.0
    %2752 = vmatprep.subr.mxu0 0.0
    %2753 = vmatpush1.msra.mxu0 0.0
    %2754 = vmatprep.subr.mxu0 0.0
    %2755 = vmatpush1.msra.mxu0 0.0
    %2756 = vmatprep.subr.mxu0 0.0
    %2757 = vmatpush1.msra.mxu0 0.0
    %2758 = vmatprep.subr.mxu0 0.0
    %2759 = vmatpush1.msra.mxu0 0.0
    %2760 = vmatprep.subr.mxu0 0.0
    %2761 = vmatpush1.msra.mxu0 0.0
    %2762 = vmatprep.subr.mxu0 0.0
    %2763 = vmatpush1.msra.mxu0 0.0
    %2764 = vmatprep.subr.mxu0 0.0
    %2765 = vmatpush1.msra.mxu0 0.0
    %2766 = vmatprep.subr.mxu0 0.0
    %2767 = vmatpush1.msra.mxu0 0.0
    %2768 = vmatprep.subr.mxu0 0.0
    %2769 = vmatpush1.msra.mxu0 0.0
    %2770 = vmatprep.subr.mxu0 0.0
    %2771 = vmatpush1.msra.mxu0 0.0
    %2772 = vmatprep.subr.mxu0 0.0
    %2773 = vmatpush1.msra.mxu0 0.0
    %2774 = vmatprep.subr.mxu0 0.0
    %2775 = vmatpush1.msra.mxu0 0.0
    %2776 = vmatprep.subr.mxu0 0.0
    %2777 = vmatpush1.msra.mxu0 0.0
    %2778 = vmatprep.mubr.f32.mxu0 0.0
    %2779 = vmatmul.mubr.f32.gmra.mrb[0].mxu0 %v2712
    %v2780 = vpop.f32.mrb[0].mxu0
    %v2781 = vadd.f32 %v58, %v2780
    %v2782 = vpop.f32.mrb[0].mxu0
    %2783 = vdwg.mxu0
    %v2784 = vtanh.pop %v2781
    %v2786 = vsel %vm168, %v2784, 0
    %2788 = vmatprep.subr.mxu0 0.0
    %2789 = vmatpush1.msra.mxu0 %v59
    %2790 = vmatprep.subr.mxu0 0.0
    %2791 = vmatpush1.msra.mxu0 %v60
    %2792 = vmatprep.subr.mxu0 0.0
    %2793 = vmatpush1.msra.mxu0 %v61
    %2794 = vmatprep.subr.mxu0 0.0
    %2795 = vmatpush1.msra.mxu0 %v62
    %2796 = vmatprep.subr.mxu0 0.0
    %2797 = vmatpush1.msra.mxu0 %v63
    %2798 = vmatprep.subr.mxu0 0.0
    %2799 = vmatpush1.msra.mxu0 0.0
    %2800 = vmatprep.subr.mxu0 0.0
    %2801 = vmatpush1.msra.mxu0 0.0
    %2802 = vmatprep.subr.mxu0 0.0
    %2803 = vmatpush1.msra.mxu0 0.0
    %2804 = vmatprep.subr.mxu0 0.0
    %2805 = vmatpush1.msra.mxu0 0.0
    %2806 = vmatprep.subr.mxu0 0.0
    %2807 = vmatpush1.msra.mxu0 0.0
    %2808 = vmatprep.subr.mxu0 0.0
    %2809 = vmatpush1.msra.mxu0 0.0
    %2810 = vmatprep.subr.mxu0 0.0
    %2811 = vmatpush1.msra.mxu0 0.0
    %2812 = vmatprep.subr.mxu0 0.0
    %2813 = vmatpush1.msra.mxu0 0.0
    %2814 = vmatprep.subr.mxu0 0.0
    %2815 = vmatpush1.msra.mxu0 0.0
    %2816 = vmatprep.subr.mxu0 0.0
    %2817 = vmatpush1.msra.mxu0 0.0
    %2818 = vmatprep.subr.mxu0 0.0
    %2819 = vmatpush1.msra.mxu0 0.0
    %2820 = vmatprep.subr.mxu0 0.0
    %2821 = vmatpush1.msra.mxu0 0.0
    %2822 = vmatprep.subr.mxu0 0.0
    %2823 = vmatpush1.msra.mxu0 0.0
    %2824 = vmatprep.subr.mxu0 0.0
    %2825 = vmatpush1.msra.mxu0 0.0
    %2826 = vmatprep.subr.mxu0 0.0
    %2827 = vmatpush1.msra.mxu0 0.0
    %2828 = vmatprep.subr.mxu0 0.0
    %2829 = vmatpush1.msra.mxu0 0.0
    %2830 = vmatprep.subr.mxu0 0.0
    %2831 = vmatpush1.msra.mxu0 0.0
    %2832 = vmatprep.subr.mxu0 0.0
    %2833 = vmatpush1.msra.mxu0 0.0
    %2834 = vmatprep.subr.mxu0 0.0
    %2835 = vmatpush1.msra.mxu0 0.0
    %2836 = vmatprep.subr.mxu0 0.0
    %2837 = vmatpush1.msra.mxu0 0.0
    %2838 = vmatprep.subr.mxu0 0.0
    %2839 = vmatpush1.msra.mxu0 0.0
    %2840 = vmatprep.subr.mxu0 0.0
    %2841 = vmatpush1.msra.mxu0 0.0
    %2842 = vmatprep.subr.mxu0 0.0
    %2843 = vmatpush1.msra.mxu0 0.0
    %2844 = vmatprep.subr.mxu0 0.0
    %2845 = vmatpush1.msra.mxu0 0.0
    %2846 = vmatprep.subr.mxu0 0.0
    %2847 = vmatpush1.msra.mxu0 0.0
    %2848 = vmatprep.subr.mxu0 0.0
    %2849 = vmatpush1.msra.mxu0 0.0
    %2850 = vmatprep.subr.mxu0 0.0
    %2851 = vmatpush1.msra.mxu0 0.0
    %2852 = vmatprep.mubr.f32.mxu0 0.0
    %2853 = vmatmul.mubr.f32.gmra.mrb[0].mxu0 %v2786
    %v2854 = vpop.f32.mrb[0].mxu0
    %v2855 = vadd.f32 %v76, %v2854
    %v2856 = vpop.f32.mrb[0].mxu0
    %2857 = vdwg.mxu0
    %v2858 = vtanh.pop %v2855
    %v2860 = vsel %vm168, %v2858, 0
    %2862 = vmatprep.subr.mxu0 0.0
    %2863 = vmatpush1.msra.mxu0 %v65
    %2864 = vmatprep.subr.mxu0 0.0
    %2865 = vmatpush1.msra.mxu0 %v66
    %2866 = vmatprep.subr.mxu0 0.0
    %2867 = vmatpush1.msra.mxu0 %v67
    %2868 = vmatprep.subr.mxu0 0.0
    %2869 = vmatpush1.msra.mxu0 %v68
    %2870 = vmatprep.subr.mxu0 0.0
    %2871 = vmatpush1.msra.mxu0 %v69
    %2872 = vmatprep.subr.mxu0 0.0
    %2873 = vmatpush1.msra.mxu0 0.0
    %2874 = vmatprep.subr.mxu0 0.0
    %2875 = vmatpush1.msra.mxu0 0.0
    %2876 = vmatprep.subr.mxu0 0.0
    %2877 = vmatpush1.msra.mxu0 0.0
    %2878 = vmatprep.subr.mxu0 0.0
    %2879 = vmatpush1.msra.mxu0 0.0
    %2880 = vmatprep.subr.mxu0 0.0
    %2881 = vmatpush1.msra.mxu0 0.0
    %2882 = vmatprep.subr.mxu0 0.0
    %2883 = vmatpush1.msra.mxu0 0.0
    %2884 = vmatprep.subr.mxu0 0.0
    %2885 = vmatpush1.msra.mxu0 0.0
    %2886 = vmatprep.subr.mxu0 0.0
    %2887 = vmatpush1.msra.mxu0 0.0
    %2888 = vmatprep.subr.mxu0 0.0
    %2889 = vmatpush1.msra.mxu0 0.0
    %2890 = vmatprep.subr.mxu0 0.0
    %2891 = vmatpush1.msra.mxu0 0.0
    %2892 = vmatprep.subr.mxu0 0.0
    %2893 = vmatpush1.msra.mxu0 0.0
    %2894 = vmatprep.subr.mxu0 0.0
    %2895 = vmatpush1.msra.mxu0 0.0
    %2896 = vmatprep.subr.mxu0 0.0
    %2897 = vmatpush1.msra.mxu0 0.0
    %2898 = vmatprep.subr.mxu0 0.0
    %2899 = vmatpush1.msra.mxu0 0.0
    %2900 = vmatprep.subr.mxu0 0.0
    %2901 = vmatpush1.msra.mxu0 0.0
    %2902 = vmatprep.subr.mxu0 0.0
    %2903 = vmatpush1.msra.mxu0 0.0
    %2904 = vmatprep.subr.mxu0 0.0
    %2905 = vmatpush1.msra.mxu0 0.0
    %2906 = vmatprep.subr.mxu0 0.0
    %2907 = vmatpush1.msra.mxu0 0.0
    %2908 = vmatprep.subr.mxu0 0.0
    %2909 = vmatpush1.msra.mxu0 0.0
    %2910 = vmatprep.subr.mxu0 0.0
    %2911 = vmatpush1.msra.mxu0 0.0
    %2912 = vmatprep.subr.mxu0 0.0
    %2913 = vmatpush1.msra.mxu0 0.0
    %2914 = vmatprep.subr.mxu0 0.0
    %2915 = vmatpush1.msra.mxu0 0.0
    %2916 = vmatprep.subr.mxu0 0.0
    %2917 = vmatpush1.msra.mxu0 0.0
    %2918 = vmatprep.subr.mxu0 0.0
    %2919 = vmatpush1.msra.mxu0 0.0
    %2920 = vmatprep.subr.mxu0 0.0
    %2921 = vmatpush1.msra.mxu0 0.0
    %2922 = vmatprep.subr.mxu0 0.0
    %2923 = vmatpush1.msra.mxu0 0.0
    %2924 = vmatprep.subr.mxu0 0.0
    %2925 = vmatpush1.msra.mxu0 0.0
    %2926 = vmatprep.mubr.f32.mxu0 0.0
    %2927 = vmatmul.mubr.f32.gmra.mrb[0].mxu0 %v2860
    %v2928 = vpop.f32.mrb[0].mxu0
    %v2929 = vadd.f32 %v78, %v2928
    %v2930 = vpop.f32.mrb[0].mxu0
    %2931 = vdwg.mxu0
    %v2932 = vtanh.pop %v2929
    %v2934 = vsel %vm168, %v2932, 0
    %2936 = vmatprep.subr.mxu0 0.0
    %2937 = vmatpush1.msra.mxu0 %v71
    %2938 = vmatprep.subr.mxu0 0.0
    %2939 = vmatpush1.msra.mxu0 %v72
    %2940 = vmatprep.subr.mxu0 0.0
    %2941 = vmatpush1.msra.mxu0 %v73
    %2942 = vmatprep.subr.mxu0 0.0
    %2943 = vmatpush1.msra.mxu0 %v74
    %2944 = vmatprep.subr.mxu0 0.0
    %2945 = vmatpush1.msra.mxu0 %v75
    %2946 = vmatprep.subr.mxu0 0.0
    %2947 = vmatpush1.msra.mxu0 0.0
    %2948 = vmatprep.subr.mxu0 0.0
    %2949 = vmatpush1.msra.mxu0 0.0
    %2950 = vmatprep.subr.mxu0 0.0
    %2951 = vmatpush1.msra.mxu0 0.0
    %2952 = vmatprep.subr.mxu0 0.0
    %2953 = vmatpush1.msra.mxu0 0.0
    %2954 = vmatprep.subr.mxu0 0.0
    %2955 = vmatpush1.msra.mxu0 0.0
    %2956 = vmatprep.subr.mxu0 0.0
    %2957 = vmatpush1.msra.mxu0 0.0
    %2958 = vmatprep.subr.mxu0 0.0
    %2959 = vmatpush1.msra.mxu0 0.0
    %2960 = vmatprep.subr.mxu0 0.0
    %2961 = vmatpush1.msra.mxu0 0.0
    %2962 = vmatprep.subr.mxu0 0.0
    %2963 = vmatpush1.msra.mxu0 0.0
    %2964 = vmatprep.subr.mxu0 0.0
    %2965 = vmatpush1.msra.mxu0 0.0
    %2966 = vmatprep.subr.mxu0 0.0
    %2967 = vmatpush1.msra.mxu0 0.0
    %2968 = vmatprep.subr.mxu0 0.0
    %2969 = vmatpush1.msra.mxu0 0.0
    %2970 = vmatprep.subr.mxu0 0.0
    %2971 = vmatpush1.msra.mxu0 0.0
    %2972 = vmatprep.subr.mxu0 0.0
    %2973 = vmatpush1.msra.mxu0 0.0
    %2974 = vmatprep.subr.mxu0 0.0
    %2975 = vmatpush1.msra.mxu0 0.0
    %2976 = vmatprep.subr.mxu0 0.0
    %2977 = vmatpush1.msra.mxu0 0.0
    %2978 = vmatprep.subr.mxu0 0.0
    %2979 = vmatpush1.msra.mxu0 0.0
    %2980 = vmatprep.subr.mxu0 0.0
    %2981 = vmatpush1.msra.mxu0 0.0
    %2982 = vmatprep.subr.mxu0 0.0
    %2983 = vmatpush1.msra.mxu0 0.0
    %2984 = vmatprep.subr.mxu0 0.0
    %2985 = vmatpush1.msra.mxu0 0.0
    %2986 = vmatprep.subr.mxu0 0.0
    %2987 = vmatpush1.msra.mxu0 0.0
    %2988 = vmatprep.subr.mxu0 0.0
    %2989 = vmatpush1.msra.mxu0 0.0
    %2990 = vmatprep.subr.mxu0 0.0
    %2991 = vmatpush1.msra.mxu0 0.0
    %2992 = vmatprep.subr.mxu0 0.0
    %2993 = vmatpush1.msra.mxu0 0.0
    %2994 = vmatprep.subr.mxu0 0.0
    %2995 = vmatpush1.msra.mxu0 0.0
    %2996 = vmatprep.subr.mxu0 0.0
    %2997 = vmatpush1.msra.mxu0 0.0
    %2998 = vmatprep.subr.mxu0 0.0
    %2999 = vmatpush1.msra.mxu0 0.0
    %3000 = vmatprep.mubr.f32.mxu0 0.0
    %3001 = vmatmul.mubr.f32.gmra.mrb[0].mxu0 %v2934
    %v3002 = vpop.f32.mrb[0].mxu0
    %v3003 = vadd.f32 %v80, %v3002
    %v3004 = vpop.f32.mrb[0].mxu0
    %3005 = vdwg.mxu0
    %v3006 = vtanh.pop %v3003
    %v3008 = vsel %vm168, %v3006, 0
    %3010 = vmatprep.subr.mxu0 0.0
    %3011 = vmatpush1.msra.mxu0 %v81
    %3012 = vmatprep.subr.mxu0 0.0
    %3013 = vmatpush1.msra.mxu0 %v82
    %3014 = vmatprep.subr.mxu0 0.0
    %3015 = vmatpush1.msra.mxu0 %v83
    %3016 = vmatprep.subr.mxu0 0.0
    %3017 = vmatpush1.msra.mxu0 %v84
    %3018 = vmatprep.subr.mxu0 0.0
    %3019 = vmatpush1.msra.mxu0 %v85
    %3020 = vmatprep.subr.mxu0 0.0
    %3021 = vmatpush1.msra.mxu0 0.0
    %3022 = vmatprep.subr.mxu0 0.0
    %3023 = vmatpush1.msra.mxu0 0.0
    %3024 = vmatprep.subr.mxu0 0.0
    %3025 = vmatpush1.msra.mxu0 0.0
    %3026 = vmatprep.subr.mxu0 0.0
    %3027 = vmatpush1.msra.mxu0 0.0
    %3028 = vmatprep.subr.mxu0 0.0
    %3029 = vmatpush1.msra.mxu0 0.0
    %3030 = vmatprep.subr.mxu0 0.0
    %3031 = vmatpush1.msra.mxu0 0.0
    %3032 = vmatprep.subr.mxu0 0.0
    %3033 = vmatpush1.msra.mxu0 0.0
    %3034 = vmatprep.subr.mxu0 0.0
    %3035 = vmatpush1.msra.mxu0 0.0
    %3036 = vmatprep.subr.mxu0 0.0
    %3037 = vmatpush1.msra.mxu0 0.0
    %3038 = vmatprep.subr.mxu0 0.0
    %3039 = vmatpush1.msra.mxu0 0.0
    %3040 = vmatprep.subr.mxu0 0.0
    %3041 = vmatpush1.msra.mxu0 0.0
    %3042 = vmatprep.subr.mxu0 0.0
    %3043 = vmatpush1.msra.mxu0 0.0
    %3044 = vmatprep.subr.mxu0 0.0
    %3045 = vmatpush1.msra.mxu0 0.0
    %3046 = vmatprep.subr.mxu0 0.0
    %3047 = vmatpush1.msra.mxu0 0.0
    %3048 = vmatprep.subr.mxu0 0.0
    %3049 = vmatpush1.msra.mxu0 0.0
    %3050 = vmatprep.subr.mxu0 0.0
    %3051 = vmatpush1.msra.mxu0 0.0
    %3052 = vmatprep.subr.mxu0 0.0
    %3053 = vmatpush1.msra.mxu0 0.0
    %3054 = vmatprep.subr.mxu0 0.0
    %3055 = vmatpush1.msra.mxu0 0.0
    %3056 = vmatprep.subr.mxu0 0.0
    %3057 = vmatpush1.msra.mxu0 0.0
    %3058 = vmatprep.subr.mxu0 0.0
    %3059 = vmatpush1.msra.mxu0 0.0
    %3060 = vmatprep.subr.mxu0 0.0
    %3061 = vmatpush1.msra.mxu0 0.0
    %3062 = vmatprep.subr.mxu0 0.0
    %3063 = vmatpush1.msra.mxu0 0.0
    %3064 = vmatprep.subr.mxu0 0.0
    %3065 = vmatpush1.msra.mxu0 0.0
    %3066 = vmatprep.subr.mxu0 0.0
    %3067 = vmatpush1.msra.mxu0 0.0
    %3068 = vmatprep.subr.mxu0 0.0
    %3069 = vmatpush1.msra.mxu0 0.0
    %3070 = vmatprep.subr.mxu0 0.0
    %3071 = vmatpush1.msra.mxu0 0.0
    %3072 = vmatprep.subr.mxu0 0.0
    %3073 = vmatpush1.msra.mxu0 0.0
    %3074 = vmatprep.mubr.f32.mxu0 0.0
    %3075 = vmatmul.mubr.f32.gmra.mrb[0].mxu0 %v3008
    %v3076 = vpop.f32.mrb[0].mxu0
    %v3077 = vadd.f32 %v86, %v3076
    %v3078 = vpop.f32.mrb[0].mxu0
    %3079 = vdwg.mxu0
    %v3080 = vrcp.pop 6.0
    %s3081 = vtos %v3080
    %s3082 = smul.f32 %s1594, %s3081
    %v3083 = vmul.f32 %v2334, 2.0
    %v3084 = vadd.f32 %v1961, %v3083
    %v3085 = vmul.f32 %v2705, 2.0
    %v3086 = vadd.f32 %v3084, %v3085
    %v3087 = vadd.f32 %v3086, %v3077
    %v3088 = vstv %s3082
    %v3089 = vmul.f32 %v3088, %v3087
    %v3090 = vadd.f32 %v1590, %v3089
    %3091 = vst.msk [vmem:[#allocation7 + $0x2] sm:$0x1] %vm88, %v3090
    %s3092 = sld [smem:[#allocation2 + $0x3]]
    %s3093 = sld [smem:[#allocation2 + $0x2]]
    %s3094 = ssub.f32 %s3092, %s3093
    %v3096 = vsel %vm93, %v3090, 0
    %3098 = vmatprep.subr.mxu0 0.0
    %3099 = vmatpush1.msra.mxu0 %v57
    %3100 = vmatprep.subr.mxu0 0.0
    %3101 = vmatpush1.msra.mxu0 0.0
    %3102 = vmatprep.subr.mxu0 0.0
    %3103 = vmatpush1.msra.mxu0 0.0
    %3104 = vmatprep.subr.mxu0 0.0
    %3105 = vmatpush1.msra.mxu0 0.0
    %3106 = vmatprep.subr.mxu0 0.0
    %3107 = vmatpush1.msra.mxu0 0.0
    %3108 = vmatprep.subr.mxu0 0.0
    %3109 = vmatpush1.msra.mxu0 0.0
    %3110 = vmatprep.subr.mxu0 0.0
    %3111 = vmatpush1.msra.mxu0 0.0
    %3112 = vmatprep.subr.mxu0 0.0
    %3113 = vmatpush1.msra.mxu0 0.0
    %3114 = vmatprep.subr.mxu0 0.0
    %3115 = vmatpush1.msra.mxu0 0.0
    %3116 = vmatprep.subr.mxu0 0.0
    %3117 = vmatpush1.msra.mxu0 0.0
    %3118 = vmatprep.subr.mxu0 0.0
    %3119 = vmatpush1.msra.mxu0 0.0
    %3120 = vmatprep.subr.mxu0 0.0
    %3121 = vmatpush1.msra.mxu0 0.0
    %3122 = vmatprep.subr.mxu0 0.0
    %3123 = vmatpush1.msra.mxu0 0.0
    %3124 = vmatprep.subr.mxu0 0.0
    %3125 = vmatpush1.msra.mxu0 0.0
    %3126 = vmatprep.subr.mxu0 0.0
    %3127 = vmatpush1.msra.mxu0 0.0
    %3128 = vmatprep.subr.mxu0 0.0
    %3129 = vmatpush1.msra.mxu0 0.0
    %3130 = vmatprep.subr.mxu0 0.0
    %3131 = vmatpush1.msra.mxu0 0.0
    %3132 = vmatprep.subr.mxu0 0.0
    %3133 = vmatpush1.msra.mxu0 0.0
    %3134 = vmatprep.subr.mxu0 0.0
    %3135 = vmatpush1.msra.mxu0 0.0
    %3136 = vmatprep.subr.mxu0 0.0
    %3137 = vmatpush1.msra.mxu0 0.0
    %3138 = vmatprep.subr.mxu0 0.0
    %3139 = vmatpush1.msra.mxu0 0.0
    %3140 = vmatprep.subr.mxu0 0.0
    %3141 = vmatpush1.msra.mxu0 0.0
    %3142 = vmatprep.subr.mxu0 0.0
    %3143 = vmatpush1.msra.mxu0 0.0
    %3144 = vmatprep.subr.mxu0 0.0
    %3145 = vmatpush1.msra.mxu0 0.0
    %3146 = vmatprep.subr.mxu0 0.0
    %3147 = vmatpush1.msra.mxu0 0.0
    %3148 = vmatprep.subr.mxu0 0.0
    %3149 = vmatpush1.msra.mxu0 0.0
    %3150 = vmatprep.subr.mxu0 0.0
    %3151 = vmatpush1.msra.mxu0 0.0
    %3152 = vmatprep.subr.mxu0 0.0
    %3153 = vmatpush1.msra.mxu0 0.0
    %3154 = vmatprep.subr.mxu0 0.0
    %3155 = vmatpush1.msra.mxu0 0.0
    %3156 = vmatprep.subr.mxu0 0.0
    %3157 = vmatpush1.msra.mxu0 0.0
    %3158 = vmatprep.subr.mxu0 0.0
    %3159 = vmatpush1.msra.mxu0 0.0
    %3160 = vmatprep.subr.mxu0 0.0
    %3161 = vmatpush1.msra.mxu0 0.0
    %3162 = vmatprep.mubr.f32.mxu0 0.0
    %3163 = vmatmul.mubr.f32.gmra.mrb[0].mxu0 %v3096
    %v3164 = vpop.f32.mrb[0].mxu0
    %v3165 = vadd.f32 %v58, %v3164
    %v3166 = vpop.f32.mrb[0].mxu0
    %3167 = vdwg.mxu0
    %v3168 = vtanh.pop %v3165
    %v3170 = vsel %vm168, %v3168, 0
    %3172 = vmatprep.subr.mxu0 0.0
    %3173 = vmatpush1.msra.mxu0 %v59
    %3174 = vmatprep.subr.mxu0 0.0
    %3175 = vmatpush1.msra.mxu0 %v60
    %3176 = vmatprep.subr.mxu0 0.0
    %3177 = vmatpush1.msra.mxu0 %v61
    %3178 = vmatprep.subr.mxu0 0.0
    %3179 = vmatpush1.msra.mxu0 %v62
    %3180 = vmatprep.subr.mxu0 0.0
    %3181 = vmatpush1.msra.mxu0 %v63
    %3182 = vmatprep.subr.mxu0 0.0
    %3183 = vmatpush1.msra.mxu0 0.0
    %3184 = vmatprep.subr.mxu0 0.0
    %3185 = vmatpush1.msra.mxu0 0.0
    %3186 = vmatprep.subr.mxu0 0.0
    %3187 = vmatpush1.msra.mxu0 0.0
    %3188 = vmatprep.subr.mxu0 0.0
    %3189 = vmatpush1.msra.mxu0 0.0
    %3190 = vmatprep.subr.mxu0 0.0
    %3191 = vmatpush1.msra.mxu0 0.0
    %3192 = vmatprep.subr.mxu0 0.0
    %3193 = vmatpush1.msra.mxu0 0.0
    %3194 = vmatprep.subr.mxu0 0.0
    %3195 = vmatpush1.msra.mxu0 0.0
    %3196 = vmatprep.subr.mxu0 0.0
    %3197 = vmatpush1.msra.mxu0 0.0
    %3198 = vmatprep.subr.mxu0 0.0
    %3199 = vmatpush1.msra.mxu0 0.0
    %3200 = vmatprep.subr.mxu0 0.0
    %3201 = vmatpush1.msra.mxu0 0.0
    %3202 = vmatprep.subr.mxu0 0.0
    %3203 = vmatpush1.msra.mxu0 0.0
    %3204 = vmatprep.subr.mxu0 0.0
    %3205 = vmatpush1.msra.mxu0 0.0
    %3206 = vmatprep.subr.mxu0 0.0
    %3207 = vmatpush1.msra.mxu0 0.0
    %3208 = vmatprep.subr.mxu0 0.0
    %3209 = vmatpush1.msra.mxu0 0.0
    %3210 = vmatprep.subr.mxu0 0.0
    %3211 = vmatpush1.msra.mxu0 0.0
    %3212 = vmatprep.subr.mxu0 0.0
    %3213 = vmatpush1.msra.mxu0 0.0
    %3214 = vmatprep.subr.mxu0 0.0
    %3215 = vmatpush1.msra.mxu0 0.0
    %3216 = vmatprep.subr.mxu0 0.0
    %3217 = vmatpush1.msra.mxu0 0.0
    %3218 = vmatprep.subr.mxu0 0.0
    %3219 = vmatpush1.msra.mxu0 0.0
    %3220 = vmatprep.subr.mxu0 0.0
    %3221 = vmatpush1.msra.mxu0 0.0
    %3222 = vmatprep.subr.mxu0 0.0
    %3223 = vmatpush1.msra.mxu0 0.0
    %3224 = vmatprep.subr.mxu0 0.0
    %3225 = vmatpush1.msra.mxu0 0.0
    %3226 = vmatprep.subr.mxu0 0.0
    %3227 = vmatpush1.msra.mxu0 0.0
    %3228 = vmatprep.subr.mxu0 0.0
    %3229 = vmatpush1.msra.mxu0 0.0
    %3230 = vmatprep.subr.mxu0 0.0
    %3231 = vmatpush1.msra.mxu0 0.0
    %3232 = vmatprep.subr.mxu0 0.0
    %3233 = vmatpush1.msra.mxu0 0.0
    %3234 = vmatprep.subr.mxu0 0.0
    %3235 = vmatpush1.msra.mxu0 0.0
    %3236 = vmatprep.mubr.f32.mxu0 0.0
    %3237 = vmatmul.mubr.f32.gmra.mrb[0].mxu0 %v3170
    %v3238 = vpop.f32.mrb[0].mxu0
    %v3239 = vadd.f32 %v76, %v3238
    %v3240 = vpop.f32.mrb[0].mxu0
    %3241 = vdwg.mxu0
    %v3242 = vtanh.pop %v3239
    %v3244 = vsel %vm168, %v3242, 0
    %3246 = vmatprep.subr.mxu0 0.0
    %3247 = vmatpush1.msra.mxu0 %v65
    %3248 = vmatprep.subr.mxu0 0.0
    %3249 = vmatpush1.msra.mxu0 %v66
    %3250 = vmatprep.subr.mxu0 0.0
    %3251 = vmatpush1.msra.mxu0 %v67
    %3252 = vmatprep.subr.mxu0 0.0
    %3253 = vmatpush1.msra.mxu0 %v68
    %3254 = vmatprep.subr.mxu0 0.0
    %3255 = vmatpush1.msra.mxu0 %v69
    %3256 = vmatprep.subr.mxu0 0.0
    %3257 = vmatpush1.msra.mxu0 0.0
    %3258 = vmatprep.subr.mxu0 0.0
    %3259 = vmatpush1.msra.mxu0 0.0
    %3260 = vmatprep.subr.mxu0 0.0
    %3261 = vmatpush1.msra.mxu0 0.0
    %3262 = vmatprep.subr.mxu0 0.0
    %3263 = vmatpush1.msra.mxu0 0.0
    %3264 = vmatprep.subr.mxu0 0.0
    %3265 = vmatpush1.msra.mxu0 0.0
    %3266 = vmatprep.subr.mxu0 0.0
    %3267 = vmatpush1.msra.mxu0 0.0
    %3268 = vmatprep.subr.mxu0 0.0
    %3269 = vmatpush1.msra.mxu0 0.0
    %3270 = vmatprep.subr.mxu0 0.0
    %3271 = vmatpush1.msra.mxu0 0.0
    %3272 = vmatprep.subr.mxu0 0.0
    %3273 = vmatpush1.msra.mxu0 0.0
    %3274 = vmatprep.subr.mxu0 0.0
    %3275 = vmatpush1.msra.mxu0 0.0
    %3276 = vmatprep.subr.mxu0 0.0
    %3277 = vmatpush1.msra.mxu0 0.0
    %3278 = vmatprep.subr.mxu0 0.0
    %3279 = vmatpush1.msra.mxu0 0.0
    %3280 = vmatprep.subr.mxu0 0.0
    %3281 = vmatpush1.msra.mxu0 0.0
    %3282 = vmatprep.subr.mxu0 0.0
    %3283 = vmatpush1.msra.mxu0 0.0
    %3284 = vmatprep.subr.mxu0 0.0
    %3285 = vmatpush1.msra.mxu0 0.0
    %3286 = vmatprep.subr.mxu0 0.0
    %3287 = vmatpush1.msra.mxu0 0.0
    %3288 = vmatprep.subr.mxu0 0.0
    %3289 = vmatpush1.msra.mxu0 0.0
    %3290 = vmatprep.subr.mxu0 0.0
    %3291 = vmatpush1.msra.mxu0 0.0
    %3292 = vmatprep.subr.mxu0 0.0
    %3293 = vmatpush1.msra.mxu0 0.0
    %3294 = vmatprep.subr.mxu0 0.0
    %3295 = vmatpush1.msra.mxu0 0.0
    %3296 = vmatprep.subr.mxu0 0.0
    %3297 = vmatpush1.msra.mxu0 0.0
    %3298 = vmatprep.subr.mxu0 0.0
    %3299 = vmatpush1.msra.mxu0 0.0
    %3300 = vmatprep.subr.mxu0 0.0
    %3301 = vmatpush1.msra.mxu0 0.0
    %3302 = vmatprep.subr.mxu0 0.0
    %3303 = vmatpush1.msra.mxu0 0.0
    %3304 = vmatprep.subr.mxu0 0.0
    %3305 = vmatpush1.msra.mxu0 0.0
    %3306 = vmatprep.subr.mxu0 0.0
    %3307 = vmatpush1.msra.mxu0 0.0
    %3308 = vmatprep.subr.mxu0 0.0
    %3309 = vmatpush1.msra.mxu0 0.0
    %3310 = vmatprep.mubr.f32.mxu0 0.0
    %3311 = vmatmul.mubr.f32.gmra.mrb[0].mxu0 %v3244
    %v3312 = vpop.f32.mrb[0].mxu0
    %v3313 = vadd.f32 %v78, %v3312
    %v3314 = vpop.f32.mrb[0].mxu0
    %3315 = vdwg.mxu0
    %v3316 = vtanh.pop %v3313
    %v3318 = vsel %vm168, %v3316, 0
    %3320 = vmatprep.subr.mxu0 0.0
    %3321 = vmatpush1.msra.mxu0 %v71
    %3322 = vmatprep.subr.mxu0 0.0
    %3323 = vmatpush1.msra.mxu0 %v72
    %3324 = vmatprep.subr.mxu0 0.0
    %3325 = vmatpush1.msra.mxu0 %v73
    %3326 = vmatprep.subr.mxu0 0.0
    %3327 = vmatpush1.msra.mxu0 %v74
    %3328 = vmatprep.subr.mxu0 0.0
    %3329 = vmatpush1.msra.mxu0 %v75
    %3330 = vmatprep.subr.mxu0 0.0
    %3331 = vmatpush1.msra.mxu0 0.0
    %3332 = vmatprep.subr.mxu0 0.0
    %3333 = vmatpush1.msra.mxu0 0.0
    %3334 = vmatprep.subr.mxu0 0.0
    %3335 = vmatpush1.msra.mxu0 0.0
    %3336 = vmatprep.subr.mxu0 0.0
    %3337 = vmatpush1.msra.mxu0 0.0
    %3338 = vmatprep.subr.mxu0 0.0
    %3339 = vmatpush1.msra.mxu0 0.0
    %3340 = vmatprep.subr.mxu0 0.0
    %3341 = vmatpush1.msra.mxu0 0.0
    %3342 = vmatprep.subr.mxu0 0.0
    %3343 = vmatpush1.msra.mxu0 0.0
    %3344 = vmatprep.subr.mxu0 0.0
    %3345 = vmatpush1.msra.mxu0 0.0
    %3346 = vmatprep.subr.mxu0 0.0
    %3347 = vmatpush1.msra.mxu0 0.0
    %3348 = vmatprep.subr.mxu0 0.0
    %3349 = vmatpush1.msra.mxu0 0.0
    %3350 = vmatprep.subr.mxu0 0.0
    %3351 = vmatpush1.msra.mxu0 0.0
    %3352 = vmatprep.subr.mxu0 0.0
    %3353 = vmatpush1.msra.mxu0 0.0
    %3354 = vmatprep.subr.mxu0 0.0
    %3355 = vmatpush1.msra.mxu0 0.0
    %3356 = vmatprep.subr.mxu0 0.0
    %3357 = vmatpush1.msra.mxu0 0.0
    %3358 = vmatprep.subr.mxu0 0.0
    %3359 = vmatpush1.msra.mxu0 0.0
    %3360 = vmatprep.subr.mxu0 0.0
    %3361 = vmatpush1.msra.mxu0 0.0
    %3362 = vmatprep.subr.mxu0 0.0
    %3363 = vmatpush1.msra.mxu0 0.0
    %3364 = vmatprep.subr.mxu0 0.0
    %3365 = vmatpush1.msra.mxu0 0.0
    %3366 = vmatprep.subr.mxu0 0.0
    %3367 = vmatpush1.msra.mxu0 0.0
    %3368 = vmatprep.subr.mxu0 0.0
    %3369 = vmatpush1.msra.mxu0 0.0
    %3370 = vmatprep.subr.mxu0 0.0
    %3371 = vmatpush1.msra.mxu0 0.0
    %3372 = vmatprep.subr.mxu0 0.0
    %3373 = vmatpush1.msra.mxu0 0.0
    %3374 = vmatprep.subr.mxu0 0.0
    %3375 = vmatpush1.msra.mxu0 0.0
    %3376 = vmatprep.subr.mxu0 0.0
    %3377 = vmatpush1.msra.mxu0 0.0
    %3378 = vmatprep.subr.mxu0 0.0
    %3379 = vmatpush1.msra.mxu0 0.0
    %3380 = vmatprep.subr.mxu0 0.0
    %3381 = vmatpush1.msra.mxu0 0.0
    %3382 = vmatprep.subr.mxu0 0.0
    %3383 = vmatpush1.msra.mxu0 0.0
    %3384 = vmatprep.mubr.f32.mxu0 0.0
    %3385 = vmatmul.mubr.f32.gmra.mrb[0].mxu0 %v3318
    %v3386 = vpop.f32.mrb[0].mxu0
    %v3387 = vadd.f32 %v80, %v3386
    %v3388 = vpop.f32.mrb[0].mxu0
    %3389 = vdwg.mxu0
    %v3390 = vtanh.pop %v3387
    %v3392 = vsel %vm168, %v3390, 0
    %3394 = vmatprep.subr.mxu0 0.0
    %3395 = vmatpush1.msra.mxu0 %v81
    %3396 = vmatprep.subr.mxu0 0.0
    %3397 = vmatpush1.msra.mxu0 %v82
    %3398 = vmatprep.subr.mxu0 0.0
    %3399 = vmatpush1.msra.mxu0 %v83
    %3400 = vmatprep.subr.mxu0 0.0
    %3401 = vmatpush1.msra.mxu0 %v84
    %3402 = vmatprep.subr.mxu0 0.0
    %3403 = vmatpush1.msra.mxu0 %v85
    %3404 = vmatprep.subr.mxu0 0.0
    %3405 = vmatpush1.msra.mxu0 0.0
    %3406 = vmatprep.subr.mxu0 0.0
    %3407 = vmatpush1.msra.mxu0 0.0
    %3408 = vmatprep.subr.mxu0 0.0
    %3409 = vmatpush1.msra.mxu0 0.0
    %3410 = vmatprep.subr.mxu0 0.0
    %3411 = vmatpush1.msra.mxu0 0.0
    %3412 = vmatprep.subr.mxu0 0.0
    %3413 = vmatpush1.msra.mxu0 0.0
    %3414 = vmatprep.subr.mxu0 0.0
    %3415 = vmatpush1.msra.mxu0 0.0
    %3416 = vmatprep.subr.mxu0 0.0
    %3417 = vmatpush1.msra.mxu0 0.0
    %3418 = vmatprep.subr.mxu0 0.0
    %3419 = vmatpush1.msra.mxu0 0.0
    %3420 = vmatprep.subr.mxu0 0.0
    %3421 = vmatpush1.msra.mxu0 0.0
    %3422 = vmatprep.subr.mxu0 0.0
    %3423 = vmatpush1.msra.mxu0 0.0
    %3424 = vmatprep.subr.mxu0 0.0
    %3425 = vmatpush1.msra.mxu0 0.0
    %3426 = vmatprep.subr.mxu0 0.0
    %3427 = vmatpush1.msra.mxu0 0.0
    %3428 = vmatprep.subr.mxu0 0.0
    %3429 = vmatpush1.msra.mxu0 0.0
    %3430 = vmatprep.subr.mxu0 0.0
    %3431 = vmatpush1.msra.mxu0 0.0
    %3432 = vmatprep.subr.mxu0 0.0
    %3433 = vmatpush1.msra.mxu0 0.0
    %3434 = vmatprep.subr.mxu0 0.0
    %3435 = vmatpush1.msra.mxu0 0.0
    %3436 = vmatprep.subr.mxu0 0.0
    %3437 = vmatpush1.msra.mxu0 0.0
    %3438 = vmatprep.subr.mxu0 0.0
    %3439 = vmatpush1.msra.mxu0 0.0
    %3440 = vmatprep.subr.mxu0 0.0
    %3441 = vmatpush1.msra.mxu0 0.0
    %3442 = vmatprep.subr.mxu0 0.0
    %3443 = vmatpush1.msra.mxu0 0.0
    %3444 = vmatprep.subr.mxu0 0.0
    %3445 = vmatpush1.msra.mxu0 0.0
    %3446 = vmatprep.subr.mxu0 0.0
    %3447 = vmatpush1.msra.mxu0 0.0
    %3448 = vmatprep.subr.mxu0 0.0
    %3449 = vmatpush1.msra.mxu0 0.0
    %3450 = vmatprep.subr.mxu0 0.0
    %3451 = vmatpush1.msra.mxu0 0.0
    %3452 = vmatprep.subr.mxu0 0.0
    %3453 = vmatpush1.msra.mxu0 0.0
    %3454 = vmatprep.subr.mxu0 0.0
    %3455 = vmatpush1.msra.mxu0 0.0
    %3456 = vmatprep.subr.mxu0 0.0
    %3457 = vmatpush1.msra.mxu0 0.0
    %3458 = vmatprep.mubr.f32.mxu0 0.0
    %3459 = vmatmul.mubr.f32.gmra.mrb[0].mxu0 %v3392
    %v3460 = vpop.f32.mrb[0].mxu0
    %v3461 = vadd.f32 %v86, %v3460
    %v3462 = vpop.f32.mrb[0].mxu0
    %3463 = vdwg.mxu0
    %s3464 = smul.f32 %s3094, 0.5
    %v3465 = vstv %s3464
    %v3466 = vmul.f32 %v3465, %v3461
    %v3467 = vadd.f32 %v3090, %v3466
    %v3469 = vsel %vm93, %v3467, 0
    %3471 = vmatprep.subr.mxu0 0.0
    %3472 = vmatpush1.msra.mxu0 %v57
    %3473 = vmatprep.subr.mxu0 0.0
    %3474 = vmatpush1.msra.mxu0 0.0
    %3475 = vmatprep.subr.mxu0 0.0
    %3476 = vmatpush1.msra.mxu0 0.0
    %3477 = vmatprep.subr.mxu0 0.0
    %3478 = vmatpush1.msra.mxu0 0.0
    %3479 = vmatprep.subr.mxu0 0.0
    %3480 = vmatpush1.msra.mxu0 0.0
    %3481 = vmatprep.subr.mxu0 0.0
    %3482 = vmatpush1.msra.mxu0 0.0
    %3483 = vmatprep.subr.mxu0 0.0
    %3484 = vmatpush1.msra.mxu0 0.0
    %3485 = vmatprep.subr.mxu0 0.0
    %3486 = vmatpush1.msra.mxu0 0.0
    %3487 = vmatprep.subr.mxu0 0.0
    %3488 = vmatpush1.msra.mxu0 0.0
    %3489 = vmatprep.subr.mxu0 0.0
    %3490 = vmatpush1.msra.mxu0 0.0
    %3491 = vmatprep.subr.mxu0 0.0
    %3492 = vmatpush1.msra.mxu0 0.0
    %3493 = vmatprep.subr.mxu0 0.0
    %3494 = vmatpush1.msra.mxu0 0.0
    %3495 = vmatprep.subr.mxu0 0.0
    %3496 = vmatpush1.msra.mxu0 0.0
    %3497 = vmatprep.subr.mxu0 0.0
    %3498 = vmatpush1.msra.mxu0 0.0
    %3499 = vmatprep.subr.mxu0 0.0
    %3500 = vmatpush1.msra.mxu0 0.0
    %3501 = vmatprep.subr.mxu0 0.0
    %3502 = vmatpush1.msra.mxu0 0.0
    %3503 = vmatprep.subr.mxu0 0.0
    %3504 = vmatpush1.msra.mxu0 0.0
    %3505 = vmatprep.subr.mxu0 0.0
    %3506 = vmatpush1.msra.mxu0 0.0
    %3507 = vmatprep.subr.mxu0 0.0
    %3508 = vmatpush1.msra.mxu0 0.0
    %3509 = vmatprep.subr.mxu0 0.0
    %3510 = vmatpush1.msra.mxu0 0.0
    %3511 = vmatprep.subr.mxu0 0.0
    %3512 = vmatpush1.msra.mxu0 0.0
    %3513 = vmatprep.subr.mxu0 0.0
    %3514 = vmatpush1.msra.mxu0 0.0
    %3515 = vmatprep.subr.mxu0 0.0
    %3516 = vmatpush1.msra.mxu0 0.0
    %3517 = vmatprep.subr.mxu0 0.0
    %3518 = vmatpush1.msra.mxu0 0.0
    %3519 = vmatprep.subr.mxu0 0.0
    %3520 = vmatpush1.msra.mxu0 0.0
    %3521 = vmatprep.subr.mxu0 0.0
    %3522 = vmatpush1.msra.mxu0 0.0
    %3523 = vmatprep.subr.mxu0 0.0
    %3524 = vmatpush1.msra.mxu0 0.0
    %3525 = vmatprep.subr.mxu0 0.0
    %3526 = vmatpush1.msra.mxu0 0.0
    %3527 = vmatprep.subr.mxu0 0.0
    %3528 = vmatpush1.msra.mxu0 0.0
    %3529 = vmatprep.subr.mxu0 0.0
    %3530 = vmatpush1.msra.mxu0 0.0
    %3531 = vmatprep.subr.mxu0 0.0
    %3532 = vmatpush1.msra.mxu0 0.0
    %3533 = vmatprep.subr.mxu0 0.0
    %3534 = vmatpush1.msra.mxu0 0.0
    %3535 = vmatprep.mubr.f32.mxu0 0.0
    %3536 = vmatmul.mubr.f32.gmra.mrb[0].mxu0 %v3469
    %v3537 = vpop.f32.mrb[0].mxu0
    %v3538 = vadd.f32 %v58, %v3537
    %v3539 = vpop.f32.mrb[0].mxu0
    %3540 = vdwg.mxu0
    %v3541 = vtanh.pop %v3538
    %v3543 = vsel %vm168, %v3541, 0
    %3545 = vmatprep.subr.mxu0 0.0
    %3546 = vmatpush1.msra.mxu0 %v59
    %3547 = vmatprep.subr.mxu0 0.0
    %3548 = vmatpush1.msra.mxu0 %v60
    %3549 = vmatprep.subr.mxu0 0.0
    %3550 = vmatpush1.msra.mxu0 %v61
    %3551 = vmatprep.subr.mxu0 0.0
    %3552 = vmatpush1.msra.mxu0 %v62
    %3553 = vmatprep.subr.mxu0 0.0
    %3554 = vmatpush1.msra.mxu0 %v63
    %3555 = vmatprep.subr.mxu0 0.0
    %3556 = vmatpush1.msra.mxu0 0.0
    %3557 = vmatprep.subr.mxu0 0.0
    %3558 = vmatpush1.msra.mxu0 0.0
    %3559 = vmatprep.subr.mxu0 0.0
    %3560 = vmatpush1.msra.mxu0 0.0
    %3561 = vmatprep.subr.mxu0 0.0
    %3562 = vmatpush1.msra.mxu0 0.0
    %3563 = vmatprep.subr.mxu0 0.0
    %3564 = vmatpush1.msra.mxu0 0.0
    %3565 = vmatprep.subr.mxu0 0.0
    %3566 = vmatpush1.msra.mxu0 0.0
    %3567 = vmatprep.subr.mxu0 0.0
    %3568 = vmatpush1.msra.mxu0 0.0
    %3569 = vmatprep.subr.mxu0 0.0
    %3570 = vmatpush1.msra.mxu0 0.0
    %3571 = vmatprep.subr.mxu0 0.0
    %3572 = vmatpush1.msra.mxu0 0.0
    %3573 = vmatprep.subr.mxu0 0.0
    %3574 = vmatpush1.msra.mxu0 0.0
    %3575 = vmatprep.subr.mxu0 0.0
    %3576 = vmatpush1.msra.mxu0 0.0
    %3577 = vmatprep.subr.mxu0 0.0
    %3578 = vmatpush1.msra.mxu0 0.0
    %3579 = vmatprep.subr.mxu0 0.0
    %3580 = vmatpush1.msra.mxu0 0.0
    %3581 = vmatprep.subr.mxu0 0.0
    %3582 = vmatpush1.msra.mxu0 0.0
    %3583 = vmatprep.subr.mxu0 0.0
    %3584 = vmatpush1.msra.mxu0 0.0
    %3585 = vmatprep.subr.mxu0 0.0
    %3586 = vmatpush1.msra.mxu0 0.0
    %3587 = vmatprep.subr.mxu0 0.0
    %3588 = vmatpush1.msra.mxu0 0.0
    %3589 = vmatprep.subr.mxu0 0.0
    %3590 = vmatpush1.msra.mxu0 0.0
    %3591 = vmatprep.subr.mxu0 0.0
    %3592 = vmatpush1.msra.mxu0 0.0
    %3593 = vmatprep.subr.mxu0 0.0
    %3594 = vmatpush1.msra.mxu0 0.0
    %3595 = vmatprep.subr.mxu0 0.0
    %3596 = vmatpush1.msra.mxu0 0.0
    %3597 = vmatprep.subr.mxu0 0.0
    %3598 = vmatpush1.msra.mxu0 0.0
    %3599 = vmatprep.subr.mxu0 0.0
    %3600 = vmatpush1.msra.mxu0 0.0
    %3601 = vmatprep.subr.mxu0 0.0
    %3602 = vmatpush1.msra.mxu0 0.0
    %3603 = vmatprep.subr.mxu0 0.0
    %3604 = vmatpush1.msra.mxu0 0.0
    %3605 = vmatprep.subr.mxu0 0.0
    %3606 = vmatpush1.msra.mxu0 0.0
    %3607 = vmatprep.subr.mxu0 0.0
    %3608 = vmatpush1.msra.mxu0 0.0
    %3609 = vmatprep.mubr.f32.mxu0 0.0
    %3610 = vmatmul.mubr.f32.gmra.mrb[0].mxu0 %v3543
    %v3611 = vpop.f32.mrb[0].mxu0
    %v3612 = vadd.f32 %v76, %v3611
    %v3613 = vpop.f32.mrb[0].mxu0
    %3614 = vdwg.mxu0
    %v3615 = vtanh.pop %v3612
    %v3617 = vsel %vm168, %v3615, 0
    %3619 = vmatprep.subr.mxu0 0.0
    %3620 = vmatpush1.msra.mxu0 %v65
    %3621 = vmatprep.subr.mxu0 0.0
    %3622 = vmatpush1.msra.mxu0 %v66
    %3623 = vmatprep.subr.mxu0 0.0
    %3624 = vmatpush1.msra.mxu0 %v67
    %3625 = vmatprep.subr.mxu0 0.0
    %3626 = vmatpush1.msra.mxu0 %v68
    %3627 = vmatprep.subr.mxu0 0.0
    %3628 = vmatpush1.msra.mxu0 %v69
    %3629 = vmatprep.subr.mxu0 0.0
    %3630 = vmatpush1.msra.mxu0 0.0
    %3631 = vmatprep.subr.mxu0 0.0
    %3632 = vmatpush1.msra.mxu0 0.0
    %3633 = vmatprep.subr.mxu0 0.0
    %3634 = vmatpush1.msra.mxu0 0.0
    %3635 = vmatprep.subr.mxu0 0.0
    %3636 = vmatpush1.msra.mxu0 0.0
    %3637 = vmatprep.subr.mxu0 0.0
    %3638 = vmatpush1.msra.mxu0 0.0
    %3639 = vmatprep.subr.mxu0 0.0
    %3640 = vmatpush1.msra.mxu0 0.0
    %3641 = vmatprep.subr.mxu0 0.0
    %3642 = vmatpush1.msra.mxu0 0.0
    %3643 = vmatprep.subr.mxu0 0.0
    %3644 = vmatpush1.msra.mxu0 0.0
    %3645 = vmatprep.subr.mxu0 0.0
    %3646 = vmatpush1.msra.mxu0 0.0
    %3647 = vmatprep.subr.mxu0 0.0
    %3648 = vmatpush1.msra.mxu0 0.0
    %3649 = vmatprep.subr.mxu0 0.0
    %3650 = vmatpush1.msra.mxu0 0.0
    %3651 = vmatprep.subr.mxu0 0.0
    %3652 = vmatpush1.msra.mxu0 0.0
    %3653 = vmatprep.subr.mxu0 0.0
    %3654 = vmatpush1.msra.mxu0 0.0
    %3655 = vmatprep.subr.mxu0 0.0
    %3656 = vmatpush1.msra.mxu0 0.0
    %3657 = vmatprep.subr.mxu0 0.0
    %3658 = vmatpush1.msra.mxu0 0.0
    %3659 = vmatprep.subr.mxu0 0.0
    %3660 = vmatpush1.msra.mxu0 0.0
    %3661 = vmatprep.subr.mxu0 0.0
    %3662 = vmatpush1.msra.mxu0 0.0
    %3663 = vmatprep.subr.mxu0 0.0
    %3664 = vmatpush1.msra.mxu0 0.0
    %3665 = vmatprep.subr.mxu0 0.0
    %3666 = vmatpush1.msra.mxu0 0.0
    %3667 = vmatprep.subr.mxu0 0.0
    %3668 = vmatpush1.msra.mxu0 0.0
    %3669 = vmatprep.subr.mxu0 0.0
    %3670 = vmatpush1.msra.mxu0 0.0
    %3671 = vmatprep.subr.mxu0 0.0
    %3672 = vmatpush1.msra.mxu0 0.0
    %3673 = vmatprep.subr.mxu0 0.0
    %3674 = vmatpush1.msra.mxu0 0.0
    %3675 = vmatprep.subr.mxu0 0.0
    %3676 = vmatpush1.msra.mxu0 0.0
    %3677 = vmatprep.subr.mxu0 0.0
    %3678 = vmatpush1.msra.mxu0 0.0
    %3679 = vmatprep.subr.mxu0 0.0
    %3680 = vmatpush1.msra.mxu0 0.0
    %3681 = vmatprep.subr.mxu0 0.0
    %3682 = vmatpush1.msra.mxu0 0.0
    %3683 = vmatprep.mubr.f32.mxu0 0.0
    %3684 = vmatmul.mubr.f32.gmra.mrb[0].mxu0 %v3617
    %v3685 = vpop.f32.mrb[0].mxu0
    %v3686 = vadd.f32 %v78, %v3685
    %v3687 = vpop.f32.mrb[0].mxu0
    %3688 = vdwg.mxu0
    %v3689 = vtanh.pop %v3686
    %v3691 = vsel %vm168, %v3689, 0
    %3693 = vmatprep.subr.mxu0 0.0
    %3694 = vmatpush1.msra.mxu0 %v71
    %3695 = vmatprep.subr.mxu0 0.0
    %3696 = vmatpush1.msra.mxu0 %v72
    %3697 = vmatprep.subr.mxu0 0.0
    %3698 = vmatpush1.msra.mxu0 %v73
    %3699 = vmatprep.subr.mxu0 0.0
    %3700 = vmatpush1.msra.mxu0 %v74
    %3701 = vmatprep.subr.mxu0 0.0
    %3702 = vmatpush1.msra.mxu0 %v75
    %3703 = vmatprep.subr.mxu0 0.0
    %3704 = vmatpush1.msra.mxu0 0.0
    %3705 = vmatprep.subr.mxu0 0.0
    %3706 = vmatpush1.msra.mxu0 0.0
    %3707 = vmatprep.subr.mxu0 0.0
    %3708 = vmatpush1.msra.mxu0 0.0
    %3709 = vmatprep.subr.mxu0 0.0
    %3710 = vmatpush1.msra.mxu0 0.0
    %3711 = vmatprep.subr.mxu0 0.0
    %3712 = vmatpush1.msra.mxu0 0.0
    %3713 = vmatprep.subr.mxu0 0.0
    %3714 = vmatpush1.msra.mxu0 0.0
    %3715 = vmatprep.subr.mxu0 0.0
    %3716 = vmatpush1.msra.mxu0 0.0
    %3717 = vmatprep.subr.mxu0 0.0
    %3718 = vmatpush1.msra.mxu0 0.0
    %3719 = vmatprep.subr.mxu0 0.0
    %3720 = vmatpush1.msra.mxu0 0.0
    %3721 = vmatprep.subr.mxu0 0.0
    %3722 = vmatpush1.msra.mxu0 0.0
    %3723 = vmatprep.subr.mxu0 0.0
    %3724 = vmatpush1.msra.mxu0 0.0
    %3725 = vmatprep.subr.mxu0 0.0
    %3726 = vmatpush1.msra.mxu0 0.0
    %3727 = vmatprep.subr.mxu0 0.0
    %3728 = vmatpush1.msra.mxu0 0.0
    %3729 = vmatprep.subr.mxu0 0.0
    %3730 = vmatpush1.msra.mxu0 0.0
    %3731 = vmatprep.subr.mxu0 0.0
    %3732 = vmatpush1.msra.mxu0 0.0
    %3733 = vmatprep.subr.mxu0 0.0
    %3734 = vmatpush1.msra.mxu0 0.0
    %3735 = vmatprep.subr.mxu0 0.0
    %3736 = vmatpush1.msra.mxu0 0.0
    %3737 = vmatprep.subr.mxu0 0.0
    %3738 = vmatpush1.msra.mxu0 0.0
    %3739 = vmatprep.subr.mxu0 0.0
    %3740 = vmatpush1.msra.mxu0 0.0
    %3741 = vmatprep.subr.mxu0 0.0
    %3742 = vmatpush1.msra.mxu0 0.0
    %3743 = vmatprep.subr.mxu0 0.0
    %3744 = vmatpush1.msra.mxu0 0.0
    %3745 = vmatprep.subr.mxu0 0.0
    %3746 = vmatpush1.msra.mxu0 0.0
    %3747 = vmatprep.subr.mxu0 0.0
    %3748 = vmatpush1.msra.mxu0 0.0
    %3749 = vmatprep.subr.mxu0 0.0
    %3750 = vmatpush1.msra.mxu0 0.0
    %3751 = vmatprep.subr.mxu0 0.0
    %3752 = vmatpush1.msra.mxu0 0.0
    %3753 = vmatprep.subr.mxu0 0.0
    %3754 = vmatpush1.msra.mxu0 0.0
    %3755 = vmatprep.subr.mxu0 0.0
    %3756 = vmatpush1.msra.mxu0 0.0
    %3757 = vmatprep.mubr.f32.mxu0 0.0
    %3758 = vmatmul.mubr.f32.gmra.mrb[0].mxu0 %v3691
    %v3759 = vpop.f32.mrb[0].mxu0
    %v3760 = vadd.f32 %v80, %v3759
    %v3761 = vpop.f32.mrb[0].mxu0
    %3762 = vdwg.mxu0
    %v3763 = vtanh.pop %v3760
    %v3765 = vsel %vm168, %v3763, 0
    %3767 = vmatprep.subr.mxu0 0.0
    %3768 = vmatpush1.msra.mxu0 %v81
    %3769 = vmatprep.subr.mxu0 0.0
    %3770 = vmatpush1.msra.mxu0 %v82
    %3771 = vmatprep.subr.mxu0 0.0
    %3772 = vmatpush1.msra.mxu0 %v83
    %3773 = vmatprep.subr.mxu0 0.0
    %3774 = vmatpush1.msra.mxu0 %v84
    %3775 = vmatprep.subr.mxu0 0.0
    %3776 = vmatpush1.msra.mxu0 %v85
    %3777 = vmatprep.subr.mxu0 0.0
    %3778 = vmatpush1.msra.mxu0 0.0
    %3779 = vmatprep.subr.mxu0 0.0
    %3780 = vmatpush1.msra.mxu0 0.0
    %3781 = vmatprep.subr.mxu0 0.0
    %3782 = vmatpush1.msra.mxu0 0.0
    %3783 = vmatprep.subr.mxu0 0.0
    %3784 = vmatpush1.msra.mxu0 0.0
    %3785 = vmatprep.subr.mxu0 0.0
    %3786 = vmatpush1.msra.mxu0 0.0
    %3787 = vmatprep.subr.mxu0 0.0
    %3788 = vmatpush1.msra.mxu0 0.0
    %3789 = vmatprep.subr.mxu0 0.0
    %3790 = vmatpush1.msra.mxu0 0.0
    %3791 = vmatprep.subr.mxu0 0.0
    %3792 = vmatpush1.msra.mxu0 0.0
    %3793 = vmatprep.subr.mxu0 0.0
    %3794 = vmatpush1.msra.mxu0 0.0
    %3795 = vmatprep.subr.mxu0 0.0
    %3796 = vmatpush1.msra.mxu0 0.0
    %3797 = vmatprep.subr.mxu0 0.0
    %3798 = vmatpush1.msra.mxu0 0.0
    %3799 = vmatprep.subr.mxu0 0.0
    %3800 = vmatpush1.msra.mxu0 0.0
    %3801 = vmatprep.subr.mxu0 0.0
    %3802 = vmatpush1.msra.mxu0 0.0
    %3803 = vmatprep.subr.mxu0 0.0
    %3804 = vmatpush1.msra.mxu0 0.0
    %3805 = vmatprep.subr.mxu0 0.0
    %3806 = vmatpush1.msra.mxu0 0.0
    %3807 = vmatprep.subr.mxu0 0.0
    %3808 = vmatpush1.msra.mxu0 0.0
    %3809 = vmatprep.subr.mxu0 0.0
    %3810 = vmatpush1.msra.mxu0 0.0
    %3811 = vmatprep.subr.mxu0 0.0
    %3812 = vmatpush1.msra.mxu0 0.0
    %3813 = vmatprep.subr.mxu0 0.0
    %3814 = vmatpush1.msra.mxu0 0.0
    %3815 = vmatprep.subr.mxu0 0.0
    %3816 = vmatpush1.msra.mxu0 0.0
    %3817 = vmatprep.subr.mxu0 0.0
    %3818 = vmatpush1.msra.mxu0 0.0
    %3819 = vmatprep.subr.mxu0 0.0
    %3820 = vmatpush1.msra.mxu0 0.0
    %3821 = vmatprep.subr.mxu0 0.0
    %3822 = vmatpush1.msra.mxu0 0.0
    %3823 = vmatprep.subr.mxu0 0.0
    %3824 = vmatpush1.msra.mxu0 0.0
    %3825 = vmatprep.subr.mxu0 0.0
    %3826 = vmatpush1.msra.mxu0 0.0
    %3827 = vmatprep.subr.mxu0 0.0
    %3828 = vmatpush1.msra.mxu0 0.0
    %3829 = vmatprep.subr.mxu0 0.0
    %3830 = vmatpush1.msra.mxu0 0.0
    %3831 = vmatprep.mubr.f32.mxu0 0.0
    %3832 = vmatmul.mubr.f32.gmra.mrb[0].mxu0 %v3765
    %v3833 = vpop.f32.mrb[0].mxu0
    %v3834 = vadd.f32 %v86, %v3833
    %v3835 = vpop.f32.mrb[0].mxu0
    %3836 = vdwg.mxu0
    %v3837 = vmul.f32 %v3465, %v3834
    %v3838 = vadd.f32 %v3090, %v3837
    %v3840 = vsel %vm93, %v3838, 0
    %3842 = vmatprep.subr.mxu0 0.0
    %3843 = vmatpush1.msra.mxu0 %v57
    %3844 = vmatprep.subr.mxu0 0.0
    %3845 = vmatpush1.msra.mxu0 0.0
    %3846 = vmatprep.subr.mxu0 0.0
    %3847 = vmatpush1.msra.mxu0 0.0
    %3848 = vmatprep.subr.mxu0 0.0
    %3849 = vmatpush1.msra.mxu0 0.0
    %3850 = vmatprep.subr.mxu0 0.0
    %3851 = vmatpush1.msra.mxu0 0.0
    %3852 = vmatprep.subr.mxu0 0.0
    %3853 = vmatpush1.msra.mxu0 0.0
    %3854 = vmatprep.subr.mxu0 0.0
    %3855 = vmatpush1.msra.mxu0 0.0
    %3856 = vmatprep.subr.mxu0 0.0
    %3857 = vmatpush1.msra.mxu0 0.0
    %3858 = vmatprep.subr.mxu0 0.0
    %3859 = vmatpush1.msra.mxu0 0.0
    %3860 = vmatprep.subr.mxu0 0.0
    %3861 = vmatpush1.msra.mxu0 0.0
    %3862 = vmatprep.subr.mxu0 0.0
    %3863 = vmatpush1.msra.mxu0 0.0
    %3864 = vmatprep.subr.mxu0 0.0
    %3865 = vmatpush1.msra.mxu0 0.0
    %3866 = vmatprep.subr.mxu0 0.0
    %3867 = vmatpush1.msra.mxu0 0.0
    %3868 = vmatprep.subr.mxu0 0.0
    %3869 = vmatpush1.msra.mxu0 0.0
    %3870 = vmatprep.subr.mxu0 0.0
    %3871 = vmatpush1.msra.mxu0 0.0
    %3872 = vmatprep.subr.mxu0 0.0
    %3873 = vmatpush1.msra.mxu0 0.0
    %3874 = vmatprep.subr.mxu0 0.0
    %3875 = vmatpush1.msra.mxu0 0.0
    %3876 = vmatprep.subr.mxu0 0.0
    %3877 = vmatpush1.msra.mxu0 0.0
    %3878 = vmatprep.subr.mxu0 0.0
    %3879 = vmatpush1.msra.mxu0 0.0
    %3880 = vmatprep.subr.mxu0 0.0
    %3881 = vmatpush1.msra.mxu0 0.0
    %3882 = vmatprep.subr.mxu0 0.0
    %3883 = vmatpush1.msra.mxu0 0.0
    %3884 = vmatprep.subr.mxu0 0.0
    %3885 = vmatpush1.msra.mxu0 0.0
    %3886 = vmatprep.subr.mxu0 0.0
    %3887 = vmatpush1.msra.mxu0 0.0
    %3888 = vmatprep.subr.mxu0 0.0
    %3889 = vmatpush1.msra.mxu0 0.0
    %3890 = vmatprep.subr.mxu0 0.0
    %3891 = vmatpush1.msra.mxu0 0.0
    %3892 = vmatprep.subr.mxu0 0.0
    %3893 = vmatpush1.msra.mxu0 0.0
    %3894 = vmatprep.subr.mxu0 0.0
    %3895 = vmatpush1.msra.mxu0 0.0
    %3896 = vmatprep.subr.mxu0 0.0
    %3897 = vmatpush1.msra.mxu0 0.0
    %3898 = vmatprep.subr.mxu0 0.0
    %3899 = vmatpush1.msra.mxu0 0.0
    %3900 = vmatprep.subr.mxu0 0.0
    %3901 = vmatpush1.msra.mxu0 0.0
    %3902 = vmatprep.subr.mxu0 0.0
    %3903 = vmatpush1.msra.mxu0 0.0
    %3904 = vmatprep.subr.mxu0 0.0
    %3905 = vmatpush1.msra.mxu0 0.0
    %3906 = vmatprep.mubr.f32.mxu0 0.0
    %3907 = vmatmul.mubr.f32.gmra.mrb[0].mxu0 %v3840
    %v3908 = vpop.f32.mrb[0].mxu0
    %v3909 = vadd.f32 %v58, %v3908
    %v3910 = vpop.f32.mrb[0].mxu0
    %3911 = vdwg.mxu0
    %v3912 = vtanh.pop %v3909
    %v3914 = vsel %vm168, %v3912, 0
    %3916 = vmatprep.subr.mxu0 0.0
    %3917 = vmatpush1.msra.mxu0 %v59
    %3918 = vmatprep.subr.mxu0 0.0
    %3919 = vmatpush1.msra.mxu0 %v60
    %3920 = vmatprep.subr.mxu0 0.0
    %3921 = vmatpush1.msra.mxu0 %v61
    %3922 = vmatprep.subr.mxu0 0.0
    %3923 = vmatpush1.msra.mxu0 %v62
    %3924 = vmatprep.subr.mxu0 0.0
    %3925 = vmatpush1.msra.mxu0 %v63
    %3926 = vmatprep.subr.mxu0 0.0
    %3927 = vmatpush1.msra.mxu0 0.0
    %3928 = vmatprep.subr.mxu0 0.0
    %3929 = vmatpush1.msra.mxu0 0.0
    %3930 = vmatprep.subr.mxu0 0.0
    %3931 = vmatpush1.msra.mxu0 0.0
    %3932 = vmatprep.subr.mxu0 0.0
    %3933 = vmatpush1.msra.mxu0 0.0
    %3934 = vmatprep.subr.mxu0 0.0
    %3935 = vmatpush1.msra.mxu0 0.0
    %3936 = vmatprep.subr.mxu0 0.0
    %3937 = vmatpush1.msra.mxu0 0.0
    %3938 = vmatprep.subr.mxu0 0.0
    %3939 = vmatpush1.msra.mxu0 0.0
    %3940 = vmatprep.subr.mxu0 0.0
    %3941 = vmatpush1.msra.mxu0 0.0
    %3942 = vmatprep.subr.mxu0 0.0
    %3943 = vmatpush1.msra.mxu0 0.0
    %3944 = vmatprep.subr.mxu0 0.0
    %3945 = vmatpush1.msra.mxu0 0.0
    %3946 = vmatprep.subr.mxu0 0.0
    %3947 = vmatpush1.msra.mxu0 0.0
    %3948 = vmatprep.subr.mxu0 0.0
    %3949 = vmatpush1.msra.mxu0 0.0
    %3950 = vmatprep.subr.mxu0 0.0
    %3951 = vmatpush1.msra.mxu0 0.0
    %3952 = vmatprep.subr.mxu0 0.0
    %3953 = vmatpush1.msra.mxu0 0.0
    %3954 = vmatprep.subr.mxu0 0.0
    %3955 = vmatpush1.msra.mxu0 0.0
    %3956 = vmatprep.subr.mxu0 0.0
    %3957 = vmatpush1.msra.mxu0 0.0
    %3958 = vmatprep.subr.mxu0 0.0
    %3959 = vmatpush1.msra.mxu0 0.0
    %3960 = vmatprep.subr.mxu0 0.0
    %3961 = vmatpush1.msra.mxu0 0.0
    %3962 = vmatprep.subr.mxu0 0.0
    %3963 = vmatpush1.msra.mxu0 0.0
    %3964 = vmatprep.subr.mxu0 0.0
    %3965 = vmatpush1.msra.mxu0 0.0
    %3966 = vmatprep.subr.mxu0 0.0
    %3967 = vmatpush1.msra.mxu0 0.0
    %3968 = vmatprep.subr.mxu0 0.0
    %3969 = vmatpush1.msra.mxu0 0.0
    %3970 = vmatprep.subr.mxu0 0.0
    %3971 = vmatpush1.msra.mxu0 0.0
    %3972 = vmatprep.subr.mxu0 0.0
    %3973 = vmatpush1.msra.mxu0 0.0
    %3974 = vmatprep.subr.mxu0 0.0
    %3975 = vmatpush1.msra.mxu0 0.0
    %3976 = vmatprep.subr.mxu0 0.0
    %3977 = vmatpush1.msra.mxu0 0.0
    %3978 = vmatprep.subr.mxu0 0.0
    %3979 = vmatpush1.msra.mxu0 0.0
    %3980 = vmatprep.mubr.f32.mxu0 0.0
    %3981 = vmatmul.mubr.f32.gmra.mrb[0].mxu0 %v3914
    %v3982 = vpop.f32.mrb[0].mxu0
    %v3983 = vadd.f32 %v76, %v3982
    %v3984 = vpop.f32.mrb[0].mxu0
    %3985 = vdwg.mxu0
    %v3986 = vtanh.pop %v3983
    %v3988 = vsel %vm168, %v3986, 0
    %3990 = vmatprep.subr.mxu0 0.0
    %3991 = vmatpush1.msra.mxu0 %v65
    %3992 = vmatprep.subr.mxu0 0.0
    %3993 = vmatpush1.msra.mxu0 %v66
    %3994 = vmatprep.subr.mxu0 0.0
    %3995 = vmatpush1.msra.mxu0 %v67
    %3996 = vmatprep.subr.mxu0 0.0
    %3997 = vmatpush1.msra.mxu0 %v68
    %3998 = vmatprep.subr.mxu0 0.0
    %3999 = vmatpush1.msra.mxu0 %v69
    %4000 = vmatprep.subr.mxu0 0.0
    %4001 = vmatpush1.msra.mxu0 0.0
    %4002 = vmatprep.subr.mxu0 0.0
    %4003 = vmatpush1.msra.mxu0 0.0
    %4004 = vmatprep.subr.mxu0 0.0
    %4005 = vmatpush1.msra.mxu0 0.0
    %4006 = vmatprep.subr.mxu0 0.0
    %4007 = vmatpush1.msra.mxu0 0.0
    %4008 = vmatprep.subr.mxu0 0.0
    %4009 = vmatpush1.msra.mxu0 0.0
    %4010 = vmatprep.subr.mxu0 0.0
    %4011 = vmatpush1.msra.mxu0 0.0
    %4012 = vmatprep.subr.mxu0 0.0
    %4013 = vmatpush1.msra.mxu0 0.0
    %4014 = vmatprep.subr.mxu0 0.0
    %4015 = vmatpush1.msra.mxu0 0.0
    %4016 = vmatprep.subr.mxu0 0.0
    %4017 = vmatpush1.msra.mxu0 0.0
    %4018 = vmatprep.subr.mxu0 0.0
    %4019 = vmatpush1.msra.mxu0 0.0
    %4020 = vmatprep.subr.mxu0 0.0
    %4021 = vmatpush1.msra.mxu0 0.0
    %4022 = vmatprep.subr.mxu0 0.0
    %4023 = vmatpush1.msra.mxu0 0.0
    %4024 = vmatprep.subr.mxu0 0.0
    %4025 = vmatpush1.msra.mxu0 0.0
    %4026 = vmatprep.subr.mxu0 0.0
    %4027 = vmatpush1.msra.mxu0 0.0
    %4028 = vmatprep.subr.mxu0 0.0
    %4029 = vmatpush1.msra.mxu0 0.0
    %4030 = vmatprep.subr.mxu0 0.0
    %4031 = vmatpush1.msra.mxu0 0.0
    %4032 = vmatprep.subr.mxu0 0.0
    %4033 = vmatpush1.msra.mxu0 0.0
    %4034 = vmatprep.subr.mxu0 0.0
    %4035 = vmatpush1.msra.mxu0 0.0
    %4036 = vmatprep.subr.mxu0 0.0
    %4037 = vmatpush1.msra.mxu0 0.0
    %4038 = vmatprep.subr.mxu0 0.0
    %4039 = vmatpush1.msra.mxu0 0.0
    %4040 = vmatprep.subr.mxu0 0.0
    %4041 = vmatpush1.msra.mxu0 0.0
    %4042 = vmatprep.subr.mxu0 0.0
    %4043 = vmatpush1.msra.mxu0 0.0
    %4044 = vmatprep.subr.mxu0 0.0
    %4045 = vmatpush1.msra.mxu0 0.0
    %4046 = vmatprep.subr.mxu0 0.0
    %4047 = vmatpush1.msra.mxu0 0.0
    %4048 = vmatprep.subr.mxu0 0.0
    %4049 = vmatpush1.msra.mxu0 0.0
    %4050 = vmatprep.subr.mxu0 0.0
    %4051 = vmatpush1.msra.mxu0 0.0
    %4052 = vmatprep.subr.mxu0 0.0
    %4053 = vmatpush1.msra.mxu0 0.0
    %4054 = vmatprep.mubr.f32.mxu0 0.0
    %4055 = vmatmul.mubr.f32.gmra.mrb[0].mxu0 %v3988
    %v4056 = vpop.f32.mrb[0].mxu0
    %v4057 = vadd.f32 %v78, %v4056
    %v4058 = vpop.f32.mrb[0].mxu0
    %4059 = vdwg.mxu0
    %v4060 = vtanh.pop %v4057
    %v4062 = vsel %vm168, %v4060, 0
    %4064 = vmatprep.subr.mxu0 0.0
    %4065 = vmatpush1.msra.mxu0 %v71
    %4066 = vmatprep.subr.mxu0 0.0
    %4067 = vmatpush1.msra.mxu0 %v72
    %4068 = vmatprep.subr.mxu0 0.0
    %4069 = vmatpush1.msra.mxu0 %v73
    %4070 = vmatprep.subr.mxu0 0.0
    %4071 = vmatpush1.msra.mxu0 %v74
    %4072 = vmatprep.subr.mxu0 0.0
    %4073 = vmatpush1.msra.mxu0 %v75
    %4074 = vmatprep.subr.mxu0 0.0
    %4075 = vmatpush1.msra.mxu0 0.0
    %4076 = vmatprep.subr.mxu0 0.0
    %4077 = vmatpush1.msra.mxu0 0.0
    %4078 = vmatprep.subr.mxu0 0.0
    %4079 = vmatpush1.msra.mxu0 0.0
    %4080 = vmatprep.subr.mxu0 0.0
    %4081 = vmatpush1.msra.mxu0 0.0
    %4082 = vmatprep.subr.mxu0 0.0
    %4083 = vmatpush1.msra.mxu0 0.0
    %4084 = vmatprep.subr.mxu0 0.0
    %4085 = vmatpush1.msra.mxu0 0.0
    %4086 = vmatprep.subr.mxu0 0.0
    %4087 = vmatpush1.msra.mxu0 0.0
    %4088 = vmatprep.subr.mxu0 0.0
    %4089 = vmatpush1.msra.mxu0 0.0
    %4090 = vmatprep.subr.mxu0 0.0
    %4091 = vmatpush1.msra.mxu0 0.0
    %4092 = vmatprep.subr.mxu0 0.0
    %4093 = vmatpush1.msra.mxu0 0.0
    %4094 = vmatprep.subr.mxu0 0.0
    %4095 = vmatpush1.msra.mxu0 0.0
    %4096 = vmatprep.subr.mxu0 0.0
    %4097 = vmatpush1.msra.mxu0 0.0
    %4098 = vmatprep.subr.mxu0 0.0
    %4099 = vmatpush1.msra.mxu0 0.0
    %4100 = vmatprep.subr.mxu0 0.0
    %4101 = vmatpush1.msra.mxu0 0.0
    %4102 = vmatprep.subr.mxu0 0.0
    %4103 = vmatpush1.msra.mxu0 0.0
    %4104 = vmatprep.subr.mxu0 0.0
    %4105 = vmatpush1.msra.mxu0 0.0
    %4106 = vmatprep.subr.mxu0 0.0
    %4107 = vmatpush1.msra.mxu0 0.0
    %4108 = vmatprep.subr.mxu0 0.0
    %4109 = vmatpush1.msra.mxu0 0.0
    %4110 = vmatprep.subr.mxu0 0.0
    %4111 = vmatpush1.msra.mxu0 0.0
    %4112 = vmatprep.subr.mxu0 0.0
    %4113 = vmatpush1.msra.mxu0 0.0
    %4114 = vmatprep.subr.mxu0 0.0
    %4115 = vmatpush1.msra.mxu0 0.0
    %4116 = vmatprep.subr.mxu0 0.0
    %4117 = vmatpush1.msra.mxu0 0.0
    %4118 = vmatprep.subr.mxu0 0.0
    %4119 = vmatpush1.msra.mxu0 0.0
    %4120 = vmatprep.subr.mxu0 0.0
    %4121 = vmatpush1.msra.mxu0 0.0
    %4122 = vmatprep.subr.mxu0 0.0
    %4123 = vmatpush1.msra.mxu0 0.0
    %4124 = vmatprep.subr.mxu0 0.0
    %4125 = vmatpush1.msra.mxu0 0.0
    %4126 = vmatprep.subr.mxu0 0.0
    %4127 = vmatpush1.msra.mxu0 0.0
    %4128 = vmatprep.mubr.f32.mxu0 0.0
    %4129 = vmatmul.mubr.f32.gmra.mrb[0].mxu0 %v4062
    %v4130 = vpop.f32.mrb[0].mxu0
    %v4131 = vadd.f32 %v80, %v4130
    %v4132 = vpop.f32.mrb[0].mxu0
    %4133 = vdwg.mxu0
    %v4134 = vtanh.pop %v4131
    %v4136 = vsel %vm168, %v4134, 0
    %4138 = vmatprep.subr.mxu0 0.0
    %4139 = vmatpush1.msra.mxu0 %v81
    %4140 = vmatprep.subr.mxu0 0.0
    %4141 = vmatpush1.msra.mxu0 %v82
    %4142 = vmatprep.subr.mxu0 0.0
    %4143 = vmatpush1.msra.mxu0 %v83
    %4144 = vmatprep.subr.mxu0 0.0
    %4145 = vmatpush1.msra.mxu0 %v84
    %4146 = vmatprep.subr.mxu0 0.0
    %4147 = vmatpush1.msra.mxu0 %v85
    %4148 = vmatprep.subr.mxu0 0.0
    %4149 = vmatpush1.msra.mxu0 0.0
    %4150 = vmatprep.subr.mxu0 0.0
    %4151 = vmatpush1.msra.mxu0 0.0
    %4152 = vmatprep.subr.mxu0 0.0
    %4153 = vmatpush1.msra.mxu0 0.0
    %4154 = vmatprep.subr.mxu0 0.0
    %4155 = vmatpush1.msra.mxu0 0.0
    %4156 = vmatprep.subr.mxu0 0.0
    %4157 = vmatpush1.msra.mxu0 0.0
    %4158 = vmatprep.subr.mxu0 0.0
    %4159 = vmatpush1.msra.mxu0 0.0
    %4160 = vmatprep.subr.mxu0 0.0
    %4161 = vmatpush1.msra.mxu0 0.0
    %4162 = vmatprep.subr.mxu0 0.0
    %4163 = vmatpush1.msra.mxu0 0.0
    %4164 = vmatprep.subr.mxu0 0.0
    %4165 = vmatpush1.msra.mxu0 0.0
    %4166 = vmatprep.subr.mxu0 0.0
    %4167 = vmatpush1.msra.mxu0 0.0
    %4168 = vmatprep.subr.mxu0 0.0
    %4169 = vmatpush1.msra.mxu0 0.0
    %4170 = vmatprep.subr.mxu0 0.0
    %4171 = vmatpush1.msra.mxu0 0.0
    %4172 = vmatprep.subr.mxu0 0.0
    %4173 = vmatpush1.msra.mxu0 0.0
    %4174 = vmatprep.subr.mxu0 0.0
    %4175 = vmatpush1.msra.mxu0 0.0
    %4176 = vmatprep.subr.mxu0 0.0
    %4177 = vmatpush1.msra.mxu0 0.0
    %4178 = vmatprep.subr.mxu0 0.0
    %4179 = vmatpush1.msra.mxu0 0.0
    %4180 = vmatprep.subr.mxu0 0.0
    %4181 = vmatpush1.msra.mxu0 0.0
    %4182 = vmatprep.subr.mxu0 0.0
    %4183 = vmatpush1.msra.mxu0 0.0
    %4184 = vmatprep.subr.mxu0 0.0
    %4185 = vmatpush1.msra.mxu0 0.0
    %4186 = vmatprep.subr.mxu0 0.0
    %4187 = vmatpush1.msra.mxu0 0.0
    %4188 = vmatprep.subr.mxu0 0.0
    %4189 = vmatpush1.msra.mxu0 0.0
    %4190 = vmatprep.subr.mxu0 0.0
    %4191 = vmatpush1.msra.mxu0 0.0
    %4192 = vmatprep.subr.mxu0 0.0
    %4193 = vmatpush1.msra.mxu0 0.0
    %4194 = vmatprep.subr.mxu0 0.0
    %4195 = vmatpush1.msra.mxu0 0.0
    %4196 = vmatprep.subr.mxu0 0.0
    %4197 = vmatpush1.msra.mxu0 0.0
    %4198 = vmatprep.subr.mxu0 0.0
    %4199 = vmatpush1.msra.mxu0 0.0
    %4200 = vmatprep.subr.mxu0 0.0
    %4201 = vmatpush1.msra.mxu0 0.0
    %4202 = vmatprep.mubr.f32.mxu0 0.0
    %4203 = vmatmul.mubr.f32.gmra.mrb[0].mxu0 %v4136
    %v4204 = vpop.f32.mrb[0].mxu0
    %v4205 = vadd.f32 %v86, %v4204
    %v4206 = vpop.f32.mrb[0].mxu0
    %4207 = vdwg.mxu0
    %v4208 = vstv %s3094
    %v4209 = vmul.f32 %v4208, %v4205
    %v4210 = vadd.f32 %v3090, %v4209
    %v4212 = vsel %vm93, %v4210, 0
    %4214 = vmatprep.subr.mxu0 0.0
    %4215 = vmatpush1.msra.mxu0 %v57
    %4216 = vmatprep.subr.mxu0 0.0
    %4217 = vmatpush1.msra.mxu0 0.0
    %4218 = vmatprep.subr.mxu0 0.0
    %4219 = vmatpush1.msra.mxu0 0.0
    %4220 = vmatprep.subr.mxu0 0.0
    %4221 = vmatpush1.msra.mxu0 0.0
    %4222 = vmatprep.subr.mxu0 0.0
    %4223 = vmatpush1.msra.mxu0 0.0
    %4224 = vmatprep.subr.mxu0 0.0
    %4225 = vmatpush1.msra.mxu0 0.0
    %4226 = vmatprep.subr.mxu0 0.0
    %4227 = vmatpush1.msra.mxu0 0.0
    %4228 = vmatprep.subr.mxu0 0.0
    %4229 = vmatpush1.msra.mxu0 0.0
    %4230 = vmatprep.subr.mxu0 0.0
    %4231 = vmatpush1.msra.mxu0 0.0
    %4232 = vmatprep.subr.mxu0 0.0
    %4233 = vmatpush1.msra.mxu0 0.0
    %4234 = vmatprep.subr.mxu0 0.0
    %4235 = vmatpush1.msra.mxu0 0.0
    %4236 = vmatprep.subr.mxu0 0.0
    %4237 = vmatpush1.msra.mxu0 0.0
    %4238 = vmatprep.subr.mxu0 0.0
    %4239 = vmatpush1.msra.mxu0 0.0
    %4240 = vmatprep.subr.mxu0 0.0
    %4241 = vmatpush1.msra.mxu0 0.0
    %4242 = vmatprep.subr.mxu0 0.0
    %4243 = vmatpush1.msra.mxu0 0.0
    %4244 = vmatprep.subr.mxu0 0.0
    %4245 = vmatpush1.msra.mxu0 0.0
    %4246 = vmatprep.subr.mxu0 0.0
    %4247 = vmatpush1.msra.mxu0 0.0
    %4248 = vmatprep.subr.mxu0 0.0
    %4249 = vmatpush1.msra.mxu0 0.0
    %4250 = vmatprep.subr.mxu0 0.0
    %4251 = vmatpush1.msra.mxu0 0.0
    %4252 = vmatprep.subr.mxu0 0.0
    %4253 = vmatpush1.msra.mxu0 0.0
    %4254 = vmatprep.subr.mxu0 0.0
    %4255 = vmatpush1.msra.mxu0 0.0
    %4256 = vmatprep.subr.mxu0 0.0
    %4257 = vmatpush1.msra.mxu0 0.0
    %4258 = vmatprep.subr.mxu0 0.0
    %4259 = vmatpush1.msra.mxu0 0.0
    %4260 = vmatprep.subr.mxu0 0.0
    %4261 = vmatpush1.msra.mxu0 0.0
    %4262 = vmatprep.subr.mxu0 0.0
    %4263 = vmatpush1.msra.mxu0 0.0
    %4264 = vmatprep.subr.mxu0 0.0
    %4265 = vmatpush1.msra.mxu0 0.0
    %4266 = vmatprep.subr.mxu0 0.0
    %4267 = vmatpush1.msra.mxu0 0.0
    %4268 = vmatprep.subr.mxu0 0.0
    %4269 = vmatpush1.msra.mxu0 0.0
    %4270 = vmatprep.subr.mxu0 0.0
    %4271 = vmatpush1.msra.mxu0 0.0
    %4272 = vmatprep.subr.mxu0 0.0
    %4273 = vmatpush1.msra.mxu0 0.0
    %4274 = vmatprep.subr.mxu0 0.0
    %4275 = vmatpush1.msra.mxu0 0.0
    %4276 = vmatprep.subr.mxu0 0.0
    %4277 = vmatpush1.msra.mxu0 0.0
    %4278 = vmatprep.mubr.f32.mxu0 0.0
    %4279 = vmatmul.mubr.f32.gmra.mrb[0].mxu0 %v4212
    %v4280 = vpop.f32.mrb[0].mxu0
    %v4281 = vadd.f32 %v58, %v4280
    %v4282 = vpop.f32.mrb[0].mxu0
    %4283 = vdwg.mxu0
    %v4284 = vtanh.pop %v4281
    %v4286 = vsel %vm168, %v4284, 0
    %4288 = vmatprep.subr.mxu0 0.0
    %4289 = vmatpush1.msra.mxu0 %v59
    %4290 = vmatprep.subr.mxu0 0.0
    %4291 = vmatpush1.msra.mxu0 %v60
    %4292 = vmatprep.subr.mxu0 0.0
    %4293 = vmatpush1.msra.mxu0 %v61
    %4294 = vmatprep.subr.mxu0 0.0
    %4295 = vmatpush1.msra.mxu0 %v62
    %4296 = vmatprep.subr.mxu0 0.0
    %4297 = vmatpush1.msra.mxu0 %v63
    %4298 = vmatprep.subr.mxu0 0.0
    %4299 = vmatpush1.msra.mxu0 0.0
    %4300 = vmatprep.subr.mxu0 0.0
    %4301 = vmatpush1.msra.mxu0 0.0
    %4302 = vmatprep.subr.mxu0 0.0
    %4303 = vmatpush1.msra.mxu0 0.0
    %4304 = vmatprep.subr.mxu0 0.0
    %4305 = vmatpush1.msra.mxu0 0.0
    %4306 = vmatprep.subr.mxu0 0.0
    %4307 = vmatpush1.msra.mxu0 0.0
    %4308 = vmatprep.subr.mxu0 0.0
    %4309 = vmatpush1.msra.mxu0 0.0
    %4310 = vmatprep.subr.mxu0 0.0
    %4311 = vmatpush1.msra.mxu0 0.0
    %4312 = vmatprep.subr.mxu0 0.0
    %4313 = vmatpush1.msra.mxu0 0.0
    %4314 = vmatprep.subr.mxu0 0.0
    %4315 = vmatpush1.msra.mxu0 0.0
    %4316 = vmatprep.subr.mxu0 0.0
    %4317 = vmatpush1.msra.mxu0 0.0
    %4318 = vmatprep.subr.mxu0 0.0
    %4319 = vmatpush1.msra.mxu0 0.0
    %4320 = vmatprep.subr.mxu0 0.0
    %4321 = vmatpush1.msra.mxu0 0.0
    %4322 = vmatprep.subr.mxu0 0.0
    %4323 = vmatpush1.msra.mxu0 0.0
    %4324 = vmatprep.subr.mxu0 0.0
    %4325 = vmatpush1.msra.mxu0 0.0
    %4326 = vmatprep.subr.mxu0 0.0
    %4327 = vmatpush1.msra.mxu0 0.0
    %4328 = vmatprep.subr.mxu0 0.0
    %4329 = vmatpush1.msra.mxu0 0.0
    %4330 = vmatprep.subr.mxu0 0.0
    %4331 = vmatpush1.msra.mxu0 0.0
    %4332 = vmatprep.subr.mxu0 0.0
    %4333 = vmatpush1.msra.mxu0 0.0
    %4334 = vmatprep.subr.mxu0 0.0
    %4335 = vmatpush1.msra.mxu0 0.0
    %4336 = vmatprep.subr.mxu0 0.0
    %4337 = vmatpush1.msra.mxu0 0.0
    %4338 = vmatprep.subr.mxu0 0.0
    %4339 = vmatpush1.msra.mxu0 0.0
    %4340 = vmatprep.subr.mxu0 0.0
    %4341 = vmatpush1.msra.mxu0 0.0
    %4342 = vmatprep.subr.mxu0 0.0
    %4343 = vmatpush1.msra.mxu0 0.0
    %4344 = vmatprep.subr.mxu0 0.0
    %4345 = vmatpush1.msra.mxu0 0.0
    %4346 = vmatprep.subr.mxu0 0.0
    %4347 = vmatpush1.msra.mxu0 0.0
    %4348 = vmatprep.subr.mxu0 0.0
    %4349 = vmatpush1.msra.mxu0 0.0
    %4350 = vmatprep.subr.mxu0 0.0
    %4351 = vmatpush1.msra.mxu0 0.0
    %4352 = vmatprep.mubr.f32.mxu0 0.0
    %4353 = vmatmul.mubr.f32.gmra.mrb[0].mxu0 %v4286
    %v4354 = vpop.f32.mrb[0].mxu0
    %v4355 = vadd.f32 %v76, %v4354
    %v4356 = vpop.f32.mrb[0].mxu0
    %4357 = vdwg.mxu0
    %v4358 = vtanh.pop %v4355
    %v4360 = vsel %vm168, %v4358, 0
    %4362 = vmatprep.subr.mxu0 0.0
    %4363 = vmatpush1.msra.mxu0 %v65
    %4364 = vmatprep.subr.mxu0 0.0
    %4365 = vmatpush1.msra.mxu0 %v66
    %4366 = vmatprep.subr.mxu0 0.0
    %4367 = vmatpush1.msra.mxu0 %v67
    %4368 = vmatprep.subr.mxu0 0.0
    %4369 = vmatpush1.msra.mxu0 %v68
    %4370 = vmatprep.subr.mxu0 0.0
    %4371 = vmatpush1.msra.mxu0 %v69
    %4372 = vmatprep.subr.mxu0 0.0
    %4373 = vmatpush1.msra.mxu0 0.0
    %4374 = vmatprep.subr.mxu0 0.0
    %4375 = vmatpush1.msra.mxu0 0.0
    %4376 = vmatprep.subr.mxu0 0.0
    %4377 = vmatpush1.msra.mxu0 0.0
    %4378 = vmatprep.subr.mxu0 0.0
    %4379 = vmatpush1.msra.mxu0 0.0
    %4380 = vmatprep.subr.mxu0 0.0
    %4381 = vmatpush1.msra.mxu0 0.0
    %4382 = vmatprep.subr.mxu0 0.0
    %4383 = vmatpush1.msra.mxu0 0.0
    %4384 = vmatprep.subr.mxu0 0.0
    %4385 = vmatpush1.msra.mxu0 0.0
    %4386 = vmatprep.subr.mxu0 0.0
    %4387 = vmatpush1.msra.mxu0 0.0
    %4388 = vmatprep.subr.mxu0 0.0
    %4389 = vmatpush1.msra.mxu0 0.0
    %4390 = vmatprep.subr.mxu0 0.0
    %4391 = vmatpush1.msra.mxu0 0.0
    %4392 = vmatprep.subr.mxu0 0.0
    %4393 = vmatpush1.msra.mxu0 0.0
    %4394 = vmatprep.subr.mxu0 0.0
    %4395 = vmatpush1.msra.mxu0 0.0
    %4396 = vmatprep.subr.mxu0 0.0
    %4397 = vmatpush1.msra.mxu0 0.0
    %4398 = vmatprep.subr.mxu0 0.0
    %4399 = vmatpush1.msra.mxu0 0.0
    %4400 = vmatprep.subr.mxu0 0.0
    %4401 = vmatpush1.msra.mxu0 0.0
    %4402 = vmatprep.subr.mxu0 0.0
    %4403 = vmatpush1.msra.mxu0 0.0
    %4404 = vmatprep.subr.mxu0 0.0
    %4405 = vmatpush1.msra.mxu0 0.0
    %4406 = vmatprep.subr.mxu0 0.0
    %4407 = vmatpush1.msra.mxu0 0.0
    %4408 = vmatprep.subr.mxu0 0.0
    %4409 = vmatpush1.msra.mxu0 0.0
    %4410 = vmatprep.subr.mxu0 0.0
    %4411 = vmatpush1.msra.mxu0 0.0
    %4412 = vmatprep.subr.mxu0 0.0
    %4413 = vmatpush1.msra.mxu0 0.0
    %4414 = vmatprep.subr.mxu0 0.0
    %4415 = vmatpush1.msra.mxu0 0.0
    %4416 = vmatprep.subr.mxu0 0.0
    %4417 = vmatpush1.msra.mxu0 0.0
    %4418 = vmatprep.subr.mxu0 0.0
    %4419 = vmatpush1.msra.mxu0 0.0
    %4420 = vmatprep.subr.mxu0 0.0
    %4421 = vmatpush1.msra.mxu0 0.0
    %4422 = vmatprep.subr.mxu0 0.0
    %4423 = vmatpush1.msra.mxu0 0.0
    %4424 = vmatprep.subr.mxu0 0.0
    %4425 = vmatpush1.msra.mxu0 0.0
    %4426 = vmatprep.mubr.f32.mxu0 0.0
    %4427 = vmatmul.mubr.f32.gmra.mrb[0].mxu0 %v4360
    %v4428 = vpop.f32.mrb[0].mxu0
    %v4429 = vadd.f32 %v78, %v4428
    %v4430 = vpop.f32.mrb[0].mxu0
    %4431 = vdwg.mxu0
    %v4432 = vtanh.pop %v4429
    %v4434 = vsel %vm168, %v4432, 0
    %4436 = vmatprep.subr.mxu0 0.0
    %4437 = vmatpush1.msra.mxu0 %v71
    %4438 = vmatprep.subr.mxu0 0.0
    %4439 = vmatpush1.msra.mxu0 %v72
    %4440 = vmatprep.subr.mxu0 0.0
    %4441 = vmatpush1.msra.mxu0 %v73
    %4442 = vmatprep.subr.mxu0 0.0
    %4443 = vmatpush1.msra.mxu0 %v74
    %4444 = vmatprep.subr.mxu0 0.0
    %4445 = vmatpush1.msra.mxu0 %v75
    %4446 = vmatprep.subr.mxu0 0.0
    %4447 = vmatpush1.msra.mxu0 0.0
    %4448 = vmatprep.subr.mxu0 0.0
    %4449 = vmatpush1.msra.mxu0 0.0
    %4450 = vmatprep.subr.mxu0 0.0
    %4451 = vmatpush1.msra.mxu0 0.0
    %4452 = vmatprep.subr.mxu0 0.0
    %4453 = vmatpush1.msra.mxu0 0.0
    %4454 = vmatprep.subr.mxu0 0.0
    %4455 = vmatpush1.msra.mxu0 0.0
    %4456 = vmatprep.subr.mxu0 0.0
    %4457 = vmatpush1.msra.mxu0 0.0
    %4458 = vmatprep.subr.mxu0 0.0
    %4459 = vmatpush1.msra.mxu0 0.0
    %4460 = vmatprep.subr.mxu0 0.0
    %4461 = vmatpush1.msra.mxu0 0.0
    %4462 = vmatprep.subr.mxu0 0.0
    %4463 = vmatpush1.msra.mxu0 0.0
    %4464 = vmatprep.subr.mxu0 0.0
    %4465 = vmatpush1.msra.mxu0 0.0
    %4466 = vmatprep.subr.mxu0 0.0
    %4467 = vmatpush1.msra.mxu0 0.0
    %4468 = vmatprep.subr.mxu0 0.0
    %4469 = vmatpush1.msra.mxu0 0.0
    %4470 = vmatprep.subr.mxu0 0.0
    %4471 = vmatpush1.msra.mxu0 0.0
    %4472 = vmatprep.subr.mxu0 0.0
    %4473 = vmatpush1.msra.mxu0 0.0
    %4474 = vmatprep.subr.mxu0 0.0
    %4475 = vmatpush1.msra.mxu0 0.0
    %4476 = vmatprep.subr.mxu0 0.0
    %4477 = vmatpush1.msra.mxu0 0.0
    %4478 = vmatprep.subr.mxu0 0.0
    %4479 = vmatpush1.msra.mxu0 0.0
    %4480 = vmatprep.subr.mxu0 0.0
    %4481 = vmatpush1.msra.mxu0 0.0
    %4482 = vmatprep.subr.mxu0 0.0
    %4483 = vmatpush1.msra.mxu0 0.0
    %4484 = vmatprep.subr.mxu0 0.0
    %4485 = vmatpush1.msra.mxu0 0.0
    %4486 = vmatprep.subr.mxu0 0.0
    %4487 = vmatpush1.msra.mxu0 0.0
    %4488 = vmatprep.subr.mxu0 0.0
    %4489 = vmatpush1.msra.mxu0 0.0
    %4490 = vmatprep.subr.mxu0 0.0
    %4491 = vmatpush1.msra.mxu0 0.0
    %4492 = vmatprep.subr.mxu0 0.0
    %4493 = vmatpush1.msra.mxu0 0.0
    %4494 = vmatprep.subr.mxu0 0.0
    %4495 = vmatpush1.msra.mxu0 0.0
    %4496 = vmatprep.subr.mxu0 0.0
    %4497 = vmatpush1.msra.mxu0 0.0
    %4498 = vmatprep.subr.mxu0 0.0
    %4499 = vmatpush1.msra.mxu0 0.0
    %4500 = vmatprep.mubr.f32.mxu0 0.0
    %4501 = vmatmul.mubr.f32.gmra.mrb[0].mxu0 %v4434
    %v4502 = vpop.f32.mrb[0].mxu0
    %v4503 = vadd.f32 %v80, %v4502
    %v4504 = vpop.f32.mrb[0].mxu0
    %4505 = vdwg.mxu0
    %v4506 = vtanh.pop %v4503
    %v4508 = vsel %vm168, %v4506, 0
    %4510 = vmatprep.subr.mxu0 0.0
    %4511 = vmatpush1.msra.mxu0 %v81
    %4512 = vmatprep.subr.mxu0 0.0
    %4513 = vmatpush1.msra.mxu0 %v82
    %4514 = vmatprep.subr.mxu0 0.0
    %4515 = vmatpush1.msra.mxu0 %v83
    %4516 = vmatprep.subr.mxu0 0.0
    %4517 = vmatpush1.msra.mxu0 %v84
    %4518 = vmatprep.subr.mxu0 0.0
    %4519 = vmatpush1.msra.mxu0 %v85
    %4520 = vmatprep.subr.mxu0 0.0
    %4521 = vmatpush1.msra.mxu0 0.0
    %4522 = vmatprep.subr.mxu0 0.0
    %4523 = vmatpush1.msra.mxu0 0.0
    %4524 = vmatprep.subr.mxu0 0.0
    %4525 = vmatpush1.msra.mxu0 0.0
    %4526 = vmatprep.subr.mxu0 0.0
    %4527 = vmatpush1.msra.mxu0 0.0
    %4528 = vmatprep.subr.mxu0 0.0
    %4529 = vmatpush1.msra.mxu0 0.0
    %4530 = vmatprep.subr.mxu0 0.0
    %4531 = vmatpush1.msra.mxu0 0.0
    %4532 = vmatprep.subr.mxu0 0.0
    %4533 = vmatpush1.msra.mxu0 0.0
    %4534 = vmatprep.subr.mxu0 0.0
    %4535 = vmatpush1.msra.mxu0 0.0
    %4536 = vmatprep.subr.mxu0 0.0
    %4537 = vmatpush1.msra.mxu0 0.0
    %4538 = vmatprep.subr.mxu0 0.0
    %4539 = vmatpush1.msra.mxu0 0.0
    %4540 = vmatprep.subr.mxu0 0.0
    %4541 = vmatpush1.msra.mxu0 0.0
    %4542 = vmatprep.subr.mxu0 0.0
    %4543 = vmatpush1.msra.mxu0 0.0
    %4544 = vmatprep.subr.mxu0 0.0
    %4545 = vmatpush1.msra.mxu0 0.0
    %4546 = vmatprep.subr.mxu0 0.0
    %4547 = vmatpush1.msra.mxu0 0.0
    %4548 = vmatprep.subr.mxu0 0.0
    %4549 = vmatpush1.msra.mxu0 0.0
    %4550 = vmatprep.subr.mxu0 0.0
    %4551 = vmatpush1.msra.mxu0 0.0
    %4552 = vmatprep.subr.mxu0 0.0
    %4553 = vmatpush1.msra.mxu0 0.0
    %4554 = vmatprep.subr.mxu0 0.0
    %4555 = vmatpush1.msra.mxu0 0.0
    %4556 = vmatprep.subr.mxu0 0.0
    %4557 = vmatpush1.msra.mxu0 0.0
    %4558 = vmatprep.subr.mxu0 0.0
    %4559 = vmatpush1.msra.mxu0 0.0
    %4560 = vmatprep.subr.mxu0 0.0
    %4561 = vmatpush1.msra.mxu0 0.0
    %4562 = vmatprep.subr.mxu0 0.0
    %4563 = vmatpush1.msra.mxu0 0.0
    %4564 = vmatprep.subr.mxu0 0.0
    %4565 = vmatpush1.msra.mxu0 0.0
    %4566 = vmatprep.subr.mxu0 0.0
    %4567 = vmatpush1.msra.mxu0 0.0
    %4568 = vmatprep.subr.mxu0 0.0
    %4569 = vmatpush1.msra.mxu0 0.0
    %4570 = vmatprep.subr.mxu0 0.0
    %4571 = vmatpush1.msra.mxu0 0.0
    %4572 = vmatprep.subr.mxu0 0.0
    %4573 = vmatpush1.msra.mxu0 0.0
    %4574 = vmatprep.mubr.f32.mxu0 0.0
    %4575 = vmatmul.mubr.f32.gmra.mrb[0].mxu0 %v4508
    %v4576 = vpop.f32.mrb[0].mxu0
    %v4577 = vadd.f32 %v86, %v4576
    %v4578 = vpop.f32.mrb[0].mxu0
    %4579 = vdwg.mxu0
    %v4580 = vrcp.pop 6.0
    %s4581 = vtos %v4580
    %s4582 = smul.f32 %s3094, %s4581
    %v4583 = vmul.f32 %v3834, 2.0
    %v4584 = vadd.f32 %v3461, %v4583
    %v4585 = vmul.f32 %v4205, 2.0
    %v4586 = vadd.f32 %v4584, %v4585
    %v4587 = vadd.f32 %v4586, %v4577
    %v4588 = vstv %s4582
    %v4589 = vmul.f32 %v4588, %v4587
    %v4590 = vadd.f32 %v3090, %v4589
    %4591 = vst.msk [vmem:[#allocation7 + $0x3] sm:$0x1] %vm88, %v4590
    %s4592 = sld [smem:[#allocation2 + $0x4]]
    %s4593 = sld [smem:[#allocation2 + $0x3]]
    %s4594 = ssub.f32 %s4592, %s4593
    %v4596 = vsel %vm93, %v4590, 0
    %4598 = vmatprep.subr.mxu0 0.0
    %4599 = vmatpush1.msra.mxu0 %v57
    %4600 = vmatprep.subr.mxu0 0.0
    %4601 = vmatpush1.msra.mxu0 0.0
    %4602 = vmatprep.subr.mxu0 0.0
    %4603 = vmatpush1.msra.mxu0 0.0
    %4604 = vmatprep.subr.mxu0 0.0
    %4605 = vmatpush1.msra.mxu0 0.0
    %4606 = vmatprep.subr.mxu0 0.0
    %4607 = vmatpush1.msra.mxu0 0.0
    %4608 = vmatprep.subr.mxu0 0.0
    %4609 = vmatpush1.msra.mxu0 0.0
    %4610 = vmatprep.subr.mxu0 0.0
    %4611 = vmatpush1.msra.mxu0 0.0
    %4612 = vmatprep.subr.mxu0 0.0
    %4613 = vmatpush1.msra.mxu0 0.0
    %4614 = vmatprep.subr.mxu0 0.0
    %4615 = vmatpush1.msra.mxu0 0.0
    %4616 = vmatprep.subr.mxu0 0.0
    %4617 = vmatpush1.msra.mxu0 0.0
    %4618 = vmatprep.subr.mxu0 0.0
    %4619 = vmatpush1.msra.mxu0 0.0
    %4620 = vmatprep.subr.mxu0 0.0
    %4621 = vmatpush1.msra.mxu0 0.0
    %4622 = vmatprep.subr.mxu0 0.0
    %4623 = vmatpush1.msra.mxu0 0.0
    %4624 = vmatprep.subr.mxu0 0.0
    %4625 = vmatpush1.msra.mxu0 0.0
    %4626 = vmatprep.subr.mxu0 0.0
    %4627 = vmatpush1.msra.mxu0 0.0
    %4628 = vmatprep.subr.mxu0 0.0
    %4629 = vmatpush1.msra.mxu0 0.0
    %4630 = vmatprep.subr.mxu0 0.0
    %4631 = vmatpush1.msra.mxu0 0.0
    %4632 = vmatprep.subr.mxu0 0.0
    %4633 = vmatpush1.msra.mxu0 0.0
    %4634 = vmatprep.subr.mxu0 0.0
    %4635 = vmatpush1.msra.mxu0 0.0
    %4636 = vmatprep.subr.mxu0 0.0
    %4637 = vmatpush1.msra.mxu0 0.0
    %4638 = vmatprep.subr.mxu0 0.0
    %4639 = vmatpush1.msra.mxu0 0.0
    %4640 = vmatprep.subr.mxu0 0.0
    %4641 = vmatpush1.msra.mxu0 0.0
    %4642 = vmatprep.subr.mxu0 0.0
    %4643 = vmatpush1.msra.mxu0 0.0
    %4644 = vmatprep.subr.mxu0 0.0
    %4645 = vmatpush1.msra.mxu0 0.0
    %4646 = vmatprep.subr.mxu0 0.0
    %4647 = vmatpush1.msra.mxu0 0.0
    %4648 = vmatprep.subr.mxu0 0.0
    %4649 = vmatpush1.msra.mxu0 0.0
    %4650 = vmatprep.subr.mxu0 0.0
    %4651 = vmatpush1.msra.mxu0 0.0
    %4652 = vmatprep.subr.mxu0 0.0
    %4653 = vmatpush1.msra.mxu0 0.0
    %4654 = vmatprep.subr.mxu0 0.0
    %4655 = vmatpush1.msra.mxu0 0.0
    %4656 = vmatprep.subr.mxu0 0.0
    %4657 = vmatpush1.msra.mxu0 0.0
    %4658 = vmatprep.subr.mxu0 0.0
    %4659 = vmatpush1.msra.mxu0 0.0
    %4660 = vmatprep.subr.mxu0 0.0
    %4661 = vmatpush1.msra.mxu0 0.0
    %4662 = vmatprep.mubr.f32.mxu0 0.0
    %4663 = vmatmul.mubr.f32.gmra.mrb[0].mxu0 %v4596
    %v4664 = vpop.f32.mrb[0].mxu0
    %v4665 = vadd.f32 %v58, %v4664
    %v4666 = vpop.f32.mrb[0].mxu0
    %4667 = vdwg.mxu0
    %v4668 = vtanh.pop %v4665
    %v4670 = vsel %vm168, %v4668, 0
    %4672 = vmatprep.subr.mxu0 0.0
    %4673 = vmatpush1.msra.mxu0 %v59
    %4674 = vmatprep.subr.mxu0 0.0
    %4675 = vmatpush1.msra.mxu0 %v60
    %4676 = vmatprep.subr.mxu0 0.0
    %4677 = vmatpush1.msra.mxu0 %v61
    %4678 = vmatprep.subr.mxu0 0.0
    %4679 = vmatpush1.msra.mxu0 %v62
    %4680 = vmatprep.subr.mxu0 0.0
    %4681 = vmatpush1.msra.mxu0 %v63
    %4682 = vmatprep.subr.mxu0 0.0
    %4683 = vmatpush1.msra.mxu0 0.0
    %4684 = vmatprep.subr.mxu0 0.0
    %4685 = vmatpush1.msra.mxu0 0.0
    %4686 = vmatprep.subr.mxu0 0.0
    %4687 = vmatpush1.msra.mxu0 0.0
    %4688 = vmatprep.subr.mxu0 0.0
    %4689 = vmatpush1.msra.mxu0 0.0
    %4690 = vmatprep.subr.mxu0 0.0
    %4691 = vmatpush1.msra.mxu0 0.0
    %4692 = vmatprep.subr.mxu0 0.0
    %4693 = vmatpush1.msra.mxu0 0.0
    %4694 = vmatprep.subr.mxu0 0.0
    %4695 = vmatpush1.msra.mxu0 0.0
    %4696 = vmatprep.subr.mxu0 0.0
    %4697 = vmatpush1.msra.mxu0 0.0
    %4698 = vmatprep.subr.mxu0 0.0
    %4699 = vmatpush1.msra.mxu0 0.0
    %4700 = vmatprep.subr.mxu0 0.0
    %4701 = vmatpush1.msra.mxu0 0.0
    %4702 = vmatprep.subr.mxu0 0.0
    %4703 = vmatpush1.msra.mxu0 0.0
    %4704 = vmatprep.subr.mxu0 0.0
    %4705 = vmatpush1.msra.mxu0 0.0
    %4706 = vmatprep.subr.mxu0 0.0
    %4707 = vmatpush1.msra.mxu0 0.0
    %4708 = vmatprep.subr.mxu0 0.0
    %4709 = vmatpush1.msra.mxu0 0.0
    %4710 = vmatprep.subr.mxu0 0.0
    %4711 = vmatpush1.msra.mxu0 0.0
    %4712 = vmatprep.subr.mxu0 0.0
    %4713 = vmatpush1.msra.mxu0 0.0
    %4714 = vmatprep.subr.mxu0 0.0
    %4715 = vmatpush1.msra.mxu0 0.0
    %4716 = vmatprep.subr.mxu0 0.0
    %4717 = vmatpush1.msra.mxu0 0.0
    %4718 = vmatprep.subr.mxu0 0.0
    %4719 = vmatpush1.msra.mxu0 0.0
    %4720 = vmatprep.subr.mxu0 0.0
    %4721 = vmatpush1.msra.mxu0 0.0
    %4722 = vmatprep.subr.mxu0 0.0
    %4723 = vmatpush1.msra.mxu0 0.0
    %4724 = vmatprep.subr.mxu0 0.0
    %4725 = vmatpush1.msra.mxu0 0.0
    %4726 = vmatprep.subr.mxu0 0.0
    %4727 = vmatpush1.msra.mxu0 0.0
    %4728 = vmatprep.subr.mxu0 0.0
    %4729 = vmatpush1.msra.mxu0 0.0
    %4730 = vmatprep.subr.mxu0 0.0
    %4731 = vmatpush1.msra.mxu0 0.0
    %4732 = vmatprep.subr.mxu0 0.0
    %4733 = vmatpush1.msra.mxu0 0.0
    %4734 = vmatprep.subr.mxu0 0.0
    %4735 = vmatpush1.msra.mxu0 0.0
    %4736 = vmatprep.mubr.f32.mxu0 0.0
    %4737 = vmatmul.mubr.f32.gmra.mrb[0].mxu0 %v4670
    %v4738 = vpop.f32.mrb[0].mxu0
    %v4739 = vadd.f32 %v76, %v4738
    %v4740 = vpop.f32.mrb[0].mxu0
    %4741 = vdwg.mxu0
    %v4742 = vtanh.pop %v4739
    %v4744 = vsel %vm168, %v4742, 0
    %4746 = vmatprep.subr.mxu0 0.0
    %4747 = vmatpush1.msra.mxu0 %v65
    %4748 = vmatprep.subr.mxu0 0.0
    %4749 = vmatpush1.msra.mxu0 %v66
    %4750 = vmatprep.subr.mxu0 0.0
    %4751 = vmatpush1.msra.mxu0 %v67
    %4752 = vmatprep.subr.mxu0 0.0
    %4753 = vmatpush1.msra.mxu0 %v68
    %4754 = vmatprep.subr.mxu0 0.0
    %4755 = vmatpush1.msra.mxu0 %v69
    %4756 = vmatprep.subr.mxu0 0.0
    %4757 = vmatpush1.msra.mxu0 0.0
    %4758 = vmatprep.subr.mxu0 0.0
    %4759 = vmatpush1.msra.mxu0 0.0
    %4760 = vmatprep.subr.mxu0 0.0
    %4761 = vmatpush1.msra.mxu0 0.0
    %4762 = vmatprep.subr.mxu0 0.0
    %4763 = vmatpush1.msra.mxu0 0.0
    %4764 = vmatprep.subr.mxu0 0.0
    %4765 = vmatpush1.msra.mxu0 0.0
    %4766 = vmatprep.subr.mxu0 0.0
    %4767 = vmatpush1.msra.mxu0 0.0
    %4768 = vmatprep.subr.mxu0 0.0
    %4769 = vmatpush1.msra.mxu0 0.0
    %4770 = vmatprep.subr.mxu0 0.0
    %4771 = vmatpush1.msra.mxu0 0.0
    %4772 = vmatprep.subr.mxu0 0.0
    %4773 = vmatpush1.msra.mxu0 0.0
    %4774 = vmatprep.subr.mxu0 0.0
    %4775 = vmatpush1.msra.mxu0 0.0
    %4776 = vmatprep.subr.mxu0 0.0
    %4777 = vmatpush1.msra.mxu0 0.0
    %4778 = vmatprep.subr.mxu0 0.0
    %4779 = vmatpush1.msra.mxu0 0.0
    %4780 = vmatprep.subr.mxu0 0.0
    %4781 = vmatpush1.msra.mxu0 0.0
    %4782 = vmatprep.subr.mxu0 0.0
    %4783 = vmatpush1.msra.mxu0 0.0
    %4784 = vmatprep.subr.mxu0 0.0
    %4785 = vmatpush1.msra.mxu0 0.0
    %4786 = vmatprep.subr.mxu0 0.0
    %4787 = vmatpush1.msra.mxu0 0.0
    %4788 = vmatprep.subr.mxu0 0.0
    %4789 = vmatpush1.msra.mxu0 0.0
    %4790 = vmatprep.subr.mxu0 0.0
    %4791 = vmatpush1.msra.mxu0 0.0
    %4792 = vmatprep.subr.mxu0 0.0
    %4793 = vmatpush1.msra.mxu0 0.0
    %4794 = vmatprep.subr.mxu0 0.0
    %4795 = vmatpush1.msra.mxu0 0.0
    %4796 = vmatprep.subr.mxu0 0.0
    %4797 = vmatpush1.msra.mxu0 0.0
    %4798 = vmatprep.subr.mxu0 0.0
    %4799 = vmatpush1.msra.mxu0 0.0
    %4800 = vmatprep.subr.mxu0 0.0
    %4801 = vmatpush1.msra.mxu0 0.0
    %4802 = vmatprep.subr.mxu0 0.0
    %4803 = vmatpush1.msra.mxu0 0.0
    %4804 = vmatprep.subr.mxu0 0.0
    %4805 = vmatpush1.msra.mxu0 0.0
    %4806 = vmatprep.subr.mxu0 0.0
    %4807 = vmatpush1.msra.mxu0 0.0
    %4808 = vmatprep.subr.mxu0 0.0
    %4809 = vmatpush1.msra.mxu0 0.0
    %4810 = vmatprep.mubr.f32.mxu0 0.0
    %4811 = vmatmul.mubr.f32.gmra.mrb[0].mxu0 %v4744
    %v4812 = vpop.f32.mrb[0].mxu0
    %v4813 = vadd.f32 %v78, %v4812
    %v4814 = vpop.f32.mrb[0].mxu0
    %4815 = vdwg.mxu0
    %v4816 = vtanh.pop %v4813
    %v4818 = vsel %vm168, %v4816, 0
    %4820 = vmatprep.subr.mxu0 0.0
    %4821 = vmatpush1.msra.mxu0 %v71
    %4822 = vmatprep.subr.mxu0 0.0
    %4823 = vmatpush1.msra.mxu0 %v72
    %4824 = vmatprep.subr.mxu0 0.0
    %4825 = vmatpush1.msra.mxu0 %v73
    %4826 = vmatprep.subr.mxu0 0.0
    %4827 = vmatpush1.msra.mxu0 %v74
    %4828 = vmatprep.subr.mxu0 0.0
    %4829 = vmatpush1.msra.mxu0 %v75
    %4830 = vmatprep.subr.mxu0 0.0
    %4831 = vmatpush1.msra.mxu0 0.0
    %4832 = vmatprep.subr.mxu0 0.0
    %4833 = vmatpush1.msra.mxu0 0.0
    %4834 = vmatprep.subr.mxu0 0.0
    %4835 = vmatpush1.msra.mxu0 0.0
    %4836 = vmatprep.subr.mxu0 0.0
    %4837 = vmatpush1.msra.mxu0 0.0
    %4838 = vmatprep.subr.mxu0 0.0
    %4839 = vmatpush1.msra.mxu0 0.0
    %4840 = vmatprep.subr.mxu0 0.0
    %4841 = vmatpush1.msra.mxu0 0.0
    %4842 = vmatprep.subr.mxu0 0.0
    %4843 = vmatpush1.msra.mxu0 0.0
    %4844 = vmatprep.subr.mxu0 0.0
    %4845 = vmatpush1.msra.mxu0 0.0
    %4846 = vmatprep.subr.mxu0 0.0
    %4847 = vmatpush1.msra.mxu0 0.0
    %4848 = vmatprep.subr.mxu0 0.0
    %4849 = vmatpush1.msra.mxu0 0.0
    %4850 = vmatprep.subr.mxu0 0.0
    %4851 = vmatpush1.msra.mxu0 0.0
    %4852 = vmatprep.subr.mxu0 0.0
    %4853 = vmatpush1.msra.mxu0 0.0
    %4854 = vmatprep.subr.mxu0 0.0
    %4855 = vmatpush1.msra.mxu0 0.0
    %4856 = vmatprep.subr.mxu0 0.0
    %4857 = vmatpush1.msra.mxu0 0.0
    %4858 = vmatprep.subr.mxu0 0.0
    %4859 = vmatpush1.msra.mxu0 0.0
    %4860 = vmatprep.subr.mxu0 0.0
    %4861 = vmatpush1.msra.mxu0 0.0
    %4862 = vmatprep.subr.mxu0 0.0
    %4863 = vmatpush1.msra.mxu0 0.0
    %4864 = vmatprep.subr.mxu0 0.0
    %4865 = vmatpush1.msra.mxu0 0.0
    %4866 = vmatprep.subr.mxu0 0.0
    %4867 = vmatpush1.msra.mxu0 0.0
    %4868 = vmatprep.subr.mxu0 0.0
    %4869 = vmatpush1.msra.mxu0 0.0
    %4870 = vmatprep.subr.mxu0 0.0
    %4871 = vmatpush1.msra.mxu0 0.0
    %4872 = vmatprep.subr.mxu0 0.0
    %4873 = vmatpush1.msra.mxu0 0.0
    %4874 = vmatprep.subr.mxu0 0.0
    %4875 = vmatpush1.msra.mxu0 0.0
    %4876 = vmatprep.subr.mxu0 0.0
    %4877 = vmatpush1.msra.mxu0 0.0
    %4878 = vmatprep.subr.mxu0 0.0
    %4879 = vmatpush1.msra.mxu0 0.0
    %4880 = vmatprep.subr.mxu0 0.0
    %4881 = vmatpush1.msra.mxu0 0.0
    %4882 = vmatprep.subr.mxu0 0.0
    %4883 = vmatpush1.msra.mxu0 0.0
    %4884 = vmatprep.mubr.f32.mxu0 0.0
    %4885 = vmatmul.mubr.f32.gmra.mrb[0].mxu0 %v4818
    %v4886 = vpop.f32.mrb[0].mxu0
    %v4887 = vadd.f32 %v80, %v4886
    %v4888 = vpop.f32.mrb[0].mxu0
    %4889 = vdwg.mxu0
    %v4890 = vtanh.pop %v4887
    %v4892 = vsel %vm168, %v4890, 0
    %4894 = vmatprep.subr.mxu0 0.0
    %4895 = vmatpush1.msra.mxu0 %v81
    %4896 = vmatprep.subr.mxu0 0.0
    %4897 = vmatpush1.msra.mxu0 %v82
    %4898 = vmatprep.subr.mxu0 0.0
    %4899 = vmatpush1.msra.mxu0 %v83
    %4900 = vmatprep.subr.mxu0 0.0
    %4901 = vmatpush1.msra.mxu0 %v84
    %4902 = vmatprep.subr.mxu0 0.0
    %4903 = vmatpush1.msra.mxu0 %v85
    %4904 = vmatprep.subr.mxu0 0.0
    %4905 = vmatpush1.msra.mxu0 0.0
    %4906 = vmatprep.subr.mxu0 0.0
    %4907 = vmatpush1.msra.mxu0 0.0
    %4908 = vmatprep.subr.mxu0 0.0
    %4909 = vmatpush1.msra.mxu0 0.0
    %4910 = vmatprep.subr.mxu0 0.0
    %4911 = vmatpush1.msra.mxu0 0.0
    %4912 = vmatprep.subr.mxu0 0.0
    %4913 = vmatpush1.msra.mxu0 0.0
    %4914 = vmatprep.subr.mxu0 0.0
    %4915 = vmatpush1.msra.mxu0 0.0
    %4916 = vmatprep.subr.mxu0 0.0
    %4917 = vmatpush1.msra.mxu0 0.0
    %4918 = vmatprep.subr.mxu0 0.0
    %4919 = vmatpush1.msra.mxu0 0.0
    %4920 = vmatprep.subr.mxu0 0.0
    %4921 = vmatpush1.msra.mxu0 0.0
    %4922 = vmatprep.subr.mxu0 0.0
    %4923 = vmatpush1.msra.mxu0 0.0
    %4924 = vmatprep.subr.mxu0 0.0
    %4925 = vmatpush1.msra.mxu0 0.0
    %4926 = vmatprep.subr.mxu0 0.0
    %4927 = vmatpush1.msra.mxu0 0.0
    %4928 = vmatprep.subr.mxu0 0.0
    %4929 = vmatpush1.msra.mxu0 0.0
    %4930 = vmatprep.subr.mxu0 0.0
    %4931 = vmatpush1.msra.mxu0 0.0
    %4932 = vmatprep.subr.mxu0 0.0
    %4933 = vmatpush1.msra.mxu0 0.0
    %4934 = vmatprep.subr.mxu0 0.0
    %4935 = vmatpush1.msra.mxu0 0.0
    %4936 = vmatprep.subr.mxu0 0.0
    %4937 = vmatpush1.msra.mxu0 0.0
    %4938 = vmatprep.subr.mxu0 0.0
    %4939 = vmatpush1.msra.mxu0 0.0
    %4940 = vmatprep.subr.mxu0 0.0
    %4941 = vmatpush1.msra.mxu0 0.0
    %4942 = vmatprep.subr.mxu0 0.0
    %4943 = vmatpush1.msra.mxu0 0.0
    %4944 = vmatprep.subr.mxu0 0.0
    %4945 = vmatpush1.msra.mxu0 0.0
    %4946 = vmatprep.subr.mxu0 0.0
    %4947 = vmatpush1.msra.mxu0 0.0
    %4948 = vmatprep.subr.mxu0 0.0
    %4949 = vmatpush1.msra.mxu0 0.0
    %4950 = vmatprep.subr.mxu0 0.0
    %4951 = vmatpush1.msra.mxu0 0.0
    %4952 = vmatprep.subr.mxu0 0.0
    %4953 = vmatpush1.msra.mxu0 0.0
    %4954 = vmatprep.subr.mxu0 0.0
    %4955 = vmatpush1.msra.mxu0 0.0
    %4956 = vmatprep.subr.mxu0 0.0
    %4957 = vmatpush1.msra.mxu0 0.0
    %4958 = vmatprep.mubr.f32.mxu0 0.0
    %4959 = vmatmul.mubr.f32.gmra.mrb[0].mxu0 %v4892
    %v4960 = vpop.f32.mrb[0].mxu0
    %v4961 = vadd.f32 %v86, %v4960
    %v4962 = vpop.f32.mrb[0].mxu0
    %4963 = vdwg.mxu0
    %s4964 = smul.f32 %s4594, 0.5
    %v4965 = vstv %s4964
    %v4966 = vmul.f32 %v4965, %v4961
    %v4967 = vadd.f32 %v4590, %v4966
    %v4969 = vsel %vm93, %v4967, 0
    %4971 = vmatprep.subr.mxu0 0.0
    %4972 = vmatpush1.msra.mxu0 %v57
    %4973 = vmatprep.subr.mxu0 0.0
    %4974 = vmatpush1.msra.mxu0 0.0
    %4975 = vmatprep.subr.mxu0 0.0
    %4976 = vmatpush1.msra.mxu0 0.0
    %4977 = vmatprep.subr.mxu0 0.0
    %4978 = vmatpush1.msra.mxu0 0.0
    %4979 = vmatprep.subr.mxu0 0.0
    %4980 = vmatpush1.msra.mxu0 0.0
    %4981 = vmatprep.subr.mxu0 0.0
    %4982 = vmatpush1.msra.mxu0 0.0
    %4983 = vmatprep.subr.mxu0 0.0
    %4984 = vmatpush1.msra.mxu0 0.0
    %4985 = vmatprep.subr.mxu0 0.0
    %4986 = vmatpush1.msra.mxu0 0.0
    %4987 = vmatprep.subr.mxu0 0.0
    %4988 = vmatpush1.msra.mxu0 0.0
    %4989 = vmatprep.subr.mxu0 0.0
    %4990 = vmatpush1.msra.mxu0 0.0
    %4991 = vmatprep.subr.mxu0 0.0
    %4992 = vmatpush1.msra.mxu0 0.0
    %4993 = vmatprep.subr.mxu0 0.0
    %4994 = vmatpush1.msra.mxu0 0.0
    %4995 = vmatprep.subr.mxu0 0.0
    %4996 = vmatpush1.msra.mxu0 0.0
    %4997 = vmatprep.subr.mxu0 0.0
    %4998 = vmatpush1.msra.mxu0 0.0
    %4999 = vmatprep.subr.mxu0 0.0
    %5000 = vmatpush1.msra.mxu0 0.0
    %5001 = vmatprep.subr.mxu0 0.0
    %5002 = vmatpush1.msra.mxu0 0.0
    %5003 = vmatprep.subr.mxu0 0.0
    %5004 = vmatpush1.msra.mxu0 0.0
    %5005 = vmatprep.subr.mxu0 0.0
    %5006 = vmatpush1.msra.mxu0 0.0
    %5007 = vmatprep.subr.mxu0 0.0
    %5008 = vmatpush1.msra.mxu0 0.0
    %5009 = vmatprep.subr.mxu0 0.0
    %5010 = vmatpush1.msra.mxu0 0.0
    %5011 = vmatprep.subr.mxu0 0.0
    %5012 = vmatpush1.msra.mxu0 0.0
    %5013 = vmatprep.subr.mxu0 0.0
    %5014 = vmatpush1.msra.mxu0 0.0
    %5015 = vmatprep.subr.mxu0 0.0
    %5016 = vmatpush1.msra.mxu0 0.0
    %5017 = vmatprep.subr.mxu0 0.0
    %5018 = vmatpush1.msra.mxu0 0.0
    %5019 = vmatprep.subr.mxu0 0.0
    %5020 = vmatpush1.msra.mxu0 0.0
    %5021 = vmatprep.subr.mxu0 0.0
    %5022 = vmatpush1.msra.mxu0 0.0
    %5023 = vmatprep.subr.mxu0 0.0
    %5024 = vmatpush1.msra.mxu0 0.0
    %5025 = vmatprep.subr.mxu0 0.0
    %5026 = vmatpush1.msra.mxu0 0.0
    %5027 = vmatprep.subr.mxu0 0.0
    %5028 = vmatpush1.msra.mxu0 0.0
    %5029 = vmatprep.subr.mxu0 0.0
    %5030 = vmatpush1.msra.mxu0 0.0
    %5031 = vmatprep.subr.mxu0 0.0
    %5032 = vmatpush1.msra.mxu0 0.0
    %5033 = vmatprep.subr.mxu0 0.0
    %5034 = vmatpush1.msra.mxu0 0.0
    %5035 = vmatprep.mubr.f32.mxu0 0.0
    %5036 = vmatmul.mubr.f32.gmra.mrb[0].mxu0 %v4969
    %v5037 = vpop.f32.mrb[0].mxu0
    %v5038 = vadd.f32 %v58, %v5037
    %v5039 = vpop.f32.mrb[0].mxu0
    %5040 = vdwg.mxu0
    %v5041 = vtanh.pop %v5038
    %v5043 = vsel %vm168, %v5041, 0
    %5045 = vmatprep.subr.mxu0 0.0
    %5046 = vmatpush1.msra.mxu0 %v59
    %5047 = vmatprep.subr.mxu0 0.0
    %5048 = vmatpush1.msra.mxu0 %v60
    %5049 = vmatprep.subr.mxu0 0.0
    %5050 = vmatpush1.msra.mxu0 %v61
    %5051 = vmatprep.subr.mxu0 0.0
    %5052 = vmatpush1.msra.mxu0 %v62
    %5053 = vmatprep.subr.mxu0 0.0
    %5054 = vmatpush1.msra.mxu0 %v63
    %5055 = vmatprep.subr.mxu0 0.0
    %5056 = vmatpush1.msra.mxu0 0.0
    %5057 = vmatprep.subr.mxu0 0.0
    %5058 = vmatpush1.msra.mxu0 0.0
    %5059 = vmatprep.subr.mxu0 0.0
    %5060 = vmatpush1.msra.mxu0 0.0
    %5061 = vmatprep.subr.mxu0 0.0
    %5062 = vmatpush1.msra.mxu0 0.0
    %5063 = vmatprep.subr.mxu0 0.0
    %5064 = vmatpush1.msra.mxu0 0.0
    %5065 = vmatprep.subr.mxu0 0.0
    %5066 = vmatpush1.msra.mxu0 0.0
    %5067 = vmatprep.subr.mxu0 0.0
    %5068 = vmatpush1.msra.mxu0 0.0
    %5069 = vmatprep.subr.mxu0 0.0
    %5070 = vmatpush1.msra.mxu0 0.0
    %5071 = vmatprep.subr.mxu0 0.0
    %5072 = vmatpush1.msra.mxu0 0.0
    %5073 = vmatprep.subr.mxu0 0.0
    %5074 = vmatpush1.msra.mxu0 0.0
    %5075 = vmatprep.subr.mxu0 0.0
    %5076 = vmatpush1.msra.mxu0 0.0
    %5077 = vmatprep.subr.mxu0 0.0
    %5078 = vmatpush1.msra.mxu0 0.0
    %5079 = vmatprep.subr.mxu0 0.0
    %5080 = vmatpush1.msra.mxu0 0.0
    %5081 = vmatprep.subr.mxu0 0.0
    %5082 = vmatpush1.msra.mxu0 0.0
    %5083 = vmatprep.subr.mxu0 0.0
    %5084 = vmatpush1.msra.mxu0 0.0
    %5085 = vmatprep.subr.mxu0 0.0
    %5086 = vmatpush1.msra.mxu0 0.0
    %5087 = vmatprep.subr.mxu0 0.0
    %5088 = vmatpush1.msra.mxu0 0.0
    %5089 = vmatprep.subr.mxu0 0.0
    %5090 = vmatpush1.msra.mxu0 0.0
    %5091 = vmatprep.subr.mxu0 0.0
    %5092 = vmatpush1.msra.mxu0 0.0
    %5093 = vmatprep.subr.mxu0 0.0
    %5094 = vmatpush1.msra.mxu0 0.0
    %5095 = vmatprep.subr.mxu0 0.0
    %5096 = vmatpush1.msra.mxu0 0.0
    %5097 = vmatprep.subr.mxu0 0.0
    %5098 = vmatpush1.msra.mxu0 0.0
    %5099 = vmatprep.subr.mxu0 0.0
    %5100 = vmatpush1.msra.mxu0 0.0
    %5101 = vmatprep.subr.mxu0 0.0
    %5102 = vmatpush1.msra.mxu0 0.0
    %5103 = vmatprep.subr.mxu0 0.0
    %5104 = vmatpush1.msra.mxu0 0.0
    %5105 = vmatprep.subr.mxu0 0.0
    %5106 = vmatpush1.msra.mxu0 0.0
    %5107 = vmatprep.subr.mxu0 0.0
    %5108 = vmatpush1.msra.mxu0 0.0
    %5109 = vmatprep.mubr.f32.mxu0 0.0
    %5110 = vmatmul.mubr.f32.gmra.mrb[0].mxu0 %v5043
    %v5111 = vpop.f32.mrb[0].mxu0
    %v5112 = vadd.f32 %v76, %v5111
    %v5113 = vpop.f32.mrb[0].mxu0
    %5114 = vdwg.mxu0
    %v5115 = vtanh.pop %v5112
    %v5117 = vsel %vm168, %v5115, 0
    %5119 = vmatprep.subr.mxu0 0.0
    %5120 = vmatpush1.msra.mxu0 %v65
    %5121 = vmatprep.subr.mxu0 0.0
    %5122 = vmatpush1.msra.mxu0 %v66
    %5123 = vmatprep.subr.mxu0 0.0
    %5124 = vmatpush1.msra.mxu0 %v67
    %5125 = vmatprep.subr.mxu0 0.0
    %5126 = vmatpush1.msra.mxu0 %v68
    %5127 = vmatprep.subr.mxu0 0.0
    %5128 = vmatpush1.msra.mxu0 %v69
    %5129 = vmatprep.subr.mxu0 0.0
    %5130 = vmatpush1.msra.mxu0 0.0
    %5131 = vmatprep.subr.mxu0 0.0
    %5132 = vmatpush1.msra.mxu0 0.0
    %5133 = vmatprep.subr.mxu0 0.0
    %5134 = vmatpush1.msra.mxu0 0.0
    %5135 = vmatprep.subr.mxu0 0.0
    %5136 = vmatpush1.msra.mxu0 0.0
    %5137 = vmatprep.subr.mxu0 0.0
    %5138 = vmatpush1.msra.mxu0 0.0
    %5139 = vmatprep.subr.mxu0 0.0
    %5140 = vmatpush1.msra.mxu0 0.0
    %5141 = vmatprep.subr.mxu0 0.0
    %5142 = vmatpush1.msra.mxu0 0.0
    %5143 = vmatprep.subr.mxu0 0.0
    %5144 = vmatpush1.msra.mxu0 0.0
    %5145 = vmatprep.subr.mxu0 0.0
    %5146 = vmatpush1.msra.mxu0 0.0
    %5147 = vmatprep.subr.mxu0 0.0
    %5148 = vmatpush1.msra.mxu0 0.0
    %5149 = vmatprep.subr.mxu0 0.0
    %5150 = vmatpush1.msra.mxu0 0.0
    %5151 = vmatprep.subr.mxu0 0.0
    %5152 = vmatpush1.msra.mxu0 0.0
    %5153 = vmatprep.subr.mxu0 0.0
    %5154 = vmatpush1.msra.mxu0 0.0
    %5155 = vmatprep.subr.mxu0 0.0
    %5156 = vmatpush1.msra.mxu0 0.0
    %5157 = vmatprep.subr.mxu0 0.0
    %5158 = vmatpush1.msra.mxu0 0.0
    %5159 = vmatprep.subr.mxu0 0.0
    %5160 = vmatpush1.msra.mxu0 0.0
    %5161 = vmatprep.subr.mxu0 0.0
    %5162 = vmatpush1.msra.mxu0 0.0
    %5163 = vmatprep.subr.mxu0 0.0
    %5164 = vmatpush1.msra.mxu0 0.0
    %5165 = vmatprep.subr.mxu0 0.0
    %5166 = vmatpush1.msra.mxu0 0.0
    %5167 = vmatprep.subr.mxu0 0.0
    %5168 = vmatpush1.msra.mxu0 0.0
    %5169 = vmatprep.subr.mxu0 0.0
    %5170 = vmatpush1.msra.mxu0 0.0
    %5171 = vmatprep.subr.mxu0 0.0
    %5172 = vmatpush1.msra.mxu0 0.0
    %5173 = vmatprep.subr.mxu0 0.0
    %5174 = vmatpush1.msra.mxu0 0.0
    %5175 = vmatprep.subr.mxu0 0.0
    %5176 = vmatpush1.msra.mxu0 0.0
    %5177 = vmatprep.subr.mxu0 0.0
    %5178 = vmatpush1.msra.mxu0 0.0
    %5179 = vmatprep.subr.mxu0 0.0
    %5180 = vmatpush1.msra.mxu0 0.0
    %5181 = vmatprep.subr.mxu0 0.0
    %5182 = vmatpush1.msra.mxu0 0.0
    %5183 = vmatprep.mubr.f32.mxu0 0.0
    %5184 = vmatmul.mubr.f32.gmra.mrb[0].mxu0 %v5117
    %v5185 = vpop.f32.mrb[0].mxu0
    %v5186 = vadd.f32 %v78, %v5185
    %v5187 = vpop.f32.mrb[0].mxu0
    %5188 = vdwg.mxu0
    %v5189 = vtanh.pop %v5186
    %v5191 = vsel %vm168, %v5189, 0
    %5193 = vmatprep.subr.mxu0 0.0
    %5194 = vmatpush1.msra.mxu0 %v71
    %5195 = vmatprep.subr.mxu0 0.0
    %5196 = vmatpush1.msra.mxu0 %v72
    %5197 = vmatprep.subr.mxu0 0.0
    %5198 = vmatpush1.msra.mxu0 %v73
    %5199 = vmatprep.subr.mxu0 0.0
    %5200 = vmatpush1.msra.mxu0 %v74
    %5201 = vmatprep.subr.mxu0 0.0
    %5202 = vmatpush1.msra.mxu0 %v75
    %5203 = vmatprep.subr.mxu0 0.0
    %5204 = vmatpush1.msra.mxu0 0.0
    %5205 = vmatprep.subr.mxu0 0.0
    %5206 = vmatpush1.msra.mxu0 0.0
    %5207 = vmatprep.subr.mxu0 0.0
    %5208 = vmatpush1.msra.mxu0 0.0
    %5209 = vmatprep.subr.mxu0 0.0
    %5210 = vmatpush1.msra.mxu0 0.0
    %5211 = vmatprep.subr.mxu0 0.0
    %5212 = vmatpush1.msra.mxu0 0.0
    %5213 = vmatprep.subr.mxu0 0.0
    %5214 = vmatpush1.msra.mxu0 0.0
    %5215 = vmatprep.subr.mxu0 0.0
    %5216 = vmatpush1.msra.mxu0 0.0
    %5217 = vmatprep.subr.mxu0 0.0
    %5218 = vmatpush1.msra.mxu0 0.0
    %5219 = vmatprep.subr.mxu0 0.0
    %5220 = vmatpush1.msra.mxu0 0.0
    %5221 = vmatprep.subr.mxu0 0.0
    %5222 = vmatpush1.msra.mxu0 0.0
    %5223 = vmatprep.subr.mxu0 0.0
    %5224 = vmatpush1.msra.mxu0 0.0
    %5225 = vmatprep.subr.mxu0 0.0
    %5226 = vmatpush1.msra.mxu0 0.0
    %5227 = vmatprep.subr.mxu0 0.0
    %5228 = vmatpush1.msra.mxu0 0.0
    %5229 = vmatprep.subr.mxu0 0.0
    %5230 = vmatpush1.msra.mxu0 0.0
    %5231 = vmatprep.subr.mxu0 0.0
    %5232 = vmatpush1.msra.mxu0 0.0
    %5233 = vmatprep.subr.mxu0 0.0
    %5234 = vmatpush1.msra.mxu0 0.0
    %5235 = vmatprep.subr.mxu0 0.0
    %5236 = vmatpush1.msra.mxu0 0.0
    %5237 = vmatprep.subr.mxu0 0.0
    %5238 = vmatpush1.msra.mxu0 0.0
    %5239 = vmatprep.subr.mxu0 0.0
    %5240 = vmatpush1.msra.mxu0 0.0
    %5241 = vmatprep.subr.mxu0 0.0
    %5242 = vmatpush1.msra.mxu0 0.0
    %5243 = vmatprep.subr.mxu0 0.0
    %5244 = vmatpush1.msra.mxu0 0.0
    %5245 = vmatprep.subr.mxu0 0.0
    %5246 = vmatpush1.msra.mxu0 0.0
    %5247 = vmatprep.subr.mxu0 0.0
    %5248 = vmatpush1.msra.mxu0 0.0
    %5249 = vmatprep.subr.mxu0 0.0
    %5250 = vmatpush1.msra.mxu0 0.0
    %5251 = vmatprep.subr.mxu0 0.0
    %5252 = vmatpush1.msra.mxu0 0.0
    %5253 = vmatprep.subr.mxu0 0.0
    %5254 = vmatpush1.msra.mxu0 0.0
    %5255 = vmatprep.subr.mxu0 0.0
    %5256 = vmatpush1.msra.mxu0 0.0
    %5257 = vmatprep.mubr.f32.mxu0 0.0
    %5258 = vmatmul.mubr.f32.gmra.mrb[0].mxu0 %v5191
    %v5259 = vpop.f32.mrb[0].mxu0
    %v5260 = vadd.f32 %v80, %v5259
    %v5261 = vpop.f32.mrb[0].mxu0
    %5262 = vdwg.mxu0
    %v5263 = vtanh.pop %v5260
    %v5265 = vsel %vm168, %v5263, 0
    %5267 = vmatprep.subr.mxu0 0.0
    %5268 = vmatpush1.msra.mxu0 %v81
    %5269 = vmatprep.subr.mxu0 0.0
    %5270 = vmatpush1.msra.mxu0 %v82
    %5271 = vmatprep.subr.mxu0 0.0
    %5272 = vmatpush1.msra.mxu0 %v83
    %5273 = vmatprep.subr.mxu0 0.0
    %5274 = vmatpush1.msra.mxu0 %v84
    %5275 = vmatprep.subr.mxu0 0.0
    %5276 = vmatpush1.msra.mxu0 %v85
    %5277 = vmatprep.subr.mxu0 0.0
    %5278 = vmatpush1.msra.mxu0 0.0
    %5279 = vmatprep.subr.mxu0 0.0
    %5280 = vmatpush1.msra.mxu0 0.0
    %5281 = vmatprep.subr.mxu0 0.0
    %5282 = vmatpush1.msra.mxu0 0.0
    %5283 = vmatprep.subr.mxu0 0.0
    %5284 = vmatpush1.msra.mxu0 0.0
    %5285 = vmatprep.subr.mxu0 0.0
    %5286 = vmatpush1.msra.mxu0 0.0
    %5287 = vmatprep.subr.mxu0 0.0
    %5288 = vmatpush1.msra.mxu0 0.0
    %5289 = vmatprep.subr.mxu0 0.0
    %5290 = vmatpush1.msra.mxu0 0.0
    %5291 = vmatprep.subr.mxu0 0.0
    %5292 = vmatpush1.msra.mxu0 0.0
    %5293 = vmatprep.subr.mxu0 0.0
    %5294 = vmatpush1.msra.mxu0 0.0
    %5295 = vmatprep.subr.mxu0 0.0
    %5296 = vmatpush1.msra.mxu0 0.0
    %5297 = vmatprep.subr.mxu0 0.0
    %5298 = vmatpush1.msra.mxu0 0.0
    %5299 = vmatprep.subr.mxu0 0.0
    %5300 = vmatpush1.msra.mxu0 0.0
    %5301 = vmatprep.subr.mxu0 0.0
    %5302 = vmatpush1.msra.mxu0 0.0
    %5303 = vmatprep.subr.mxu0 0.0
    %5304 = vmatpush1.msra.mxu0 0.0
    %5305 = vmatprep.subr.mxu0 0.0
    %5306 = vmatpush1.msra.mxu0 0.0
    %5307 = vmatprep.subr.mxu0 0.0
    %5308 = vmatpush1.msra.mxu0 0.0
    %5309 = vmatprep.subr.mxu0 0.0
    %5310 = vmatpush1.msra.mxu0 0.0
    %5311 = vmatprep.subr.mxu0 0.0
    %5312 = vmatpush1.msra.mxu0 0.0
    %5313 = vmatprep.subr.mxu0 0.0
    %5314 = vmatpush1.msra.mxu0 0.0
    %5315 = vmatprep.subr.mxu0 0.0
    %5316 = vmatpush1.msra.mxu0 0.0
    %5317 = vmatprep.subr.mxu0 0.0
    %5318 = vmatpush1.msra.mxu0 0.0
    %5319 = vmatprep.subr.mxu0 0.0
    %5320 = vmatpush1.msra.mxu0 0.0
    %5321 = vmatprep.subr.mxu0 0.0
    %5322 = vmatpush1.msra.mxu0 0.0
    %5323 = vmatprep.subr.mxu0 0.0
    %5324 = vmatpush1.msra.mxu0 0.0
    %5325 = vmatprep.subr.mxu0 0.0
    %5326 = vmatpush1.msra.mxu0 0.0
    %5327 = vmatprep.subr.mxu0 0.0
    %5328 = vmatpush1.msra.mxu0 0.0
    %5329 = vmatprep.subr.mxu0 0.0
    %5330 = vmatpush1.msra.mxu0 0.0
    %5331 = vmatprep.mubr.f32.mxu0 0.0
    %5332 = vmatmul.mubr.f32.gmra.mrb[0].mxu0 %v5265
    %v5333 = vpop.f32.mrb[0].mxu0
    %v5334 = vadd.f32 %v86, %v5333
    %v5335 = vpop.f32.mrb[0].mxu0
    %5336 = vdwg.mxu0
    %v5337 = vmul.f32 %v4965, %v5334
    %v5338 = vadd.f32 %v4590, %v5337
    %v5340 = vsel %vm93, %v5338, 0
    %5342 = vmatprep.subr.mxu0 0.0
    %5343 = vmatpush1.msra.mxu0 %v57
    %5344 = vmatprep.subr.mxu0 0.0
    %5345 = vmatpush1.msra.mxu0 0.0
    %5346 = vmatprep.subr.mxu0 0.0
    %5347 = vmatpush1.msra.mxu0 0.0
    %5348 = vmatprep.subr.mxu0 0.0
    %5349 = vmatpush1.msra.mxu0 0.0
    %5350 = vmatprep.subr.mxu0 0.0
    %5351 = vmatpush1.msra.mxu0 0.0
    %5352 = vmatprep.subr.mxu0 0.0
    %5353 = vmatpush1.msra.mxu0 0.0
    %5354 = vmatprep.subr.mxu0 0.0
    %5355 = vmatpush1.msra.mxu0 0.0
    %5356 = vmatprep.subr.mxu0 0.0
    %5357 = vmatpush1.msra.mxu0 0.0
    %5358 = vmatprep.subr.mxu0 0.0
    %5359 = vmatpush1.msra.mxu0 0.0
    %5360 = vmatprep.subr.mxu0 0.0
    %5361 = vmatpush1.msra.mxu0 0.0
    %5362 = vmatprep.subr.mxu0 0.0
    %5363 = vmatpush1.msra.mxu0 0.0
    %5364 = vmatprep.subr.mxu0 0.0
    %5365 = vmatpush1.msra.mxu0 0.0
    %5366 = vmatprep.subr.mxu0 0.0
    %5367 = vmatpush1.msra.mxu0 0.0
    %5368 = vmatprep.subr.mxu0 0.0
    %5369 = vmatpush1.msra.mxu0 0.0
    %5370 = vmatprep.subr.mxu0 0.0
    %5371 = vmatpush1.msra.mxu0 0.0
    %5372 = vmatprep.subr.mxu0 0.0
    %5373 = vmatpush1.msra.mxu0 0.0
    %5374 = vmatprep.subr.mxu0 0.0
    %5375 = vmatpush1.msra.mxu0 0.0
    %5376 = vmatprep.subr.mxu0 0.0
    %5377 = vmatpush1.msra.mxu0 0.0
    %5378 = vmatprep.subr.mxu0 0.0
    %5379 = vmatpush1.msra.mxu0 0.0
    %5380 = vmatprep.subr.mxu0 0.0
    %5381 = vmatpush1.msra.mxu0 0.0
    %5382 = vmatprep.subr.mxu0 0.0
    %5383 = vmatpush1.msra.mxu0 0.0
    %5384 = vmatprep.subr.mxu0 0.0
    %5385 = vmatpush1.msra.mxu0 0.0
    %5386 = vmatprep.subr.mxu0 0.0
    %5387 = vmatpush1.msra.mxu0 0.0
    %5388 = vmatprep.subr.mxu0 0.0
    %5389 = vmatpush1.msra.mxu0 0.0
    %5390 = vmatprep.subr.mxu0 0.0
    %5391 = vmatpush1.msra.mxu0 0.0
    %5392 = vmatprep.subr.mxu0 0.0
    %5393 = vmatpush1.msra.mxu0 0.0
    %5394 = vmatprep.subr.mxu0 0.0
    %5395 = vmatpush1.msra.mxu0 0.0
    %5396 = vmatprep.subr.mxu0 0.0
    %5397 = vmatpush1.msra.mxu0 0.0
    %5398 = vmatprep.subr.mxu0 0.0
    %5399 = vmatpush1.msra.mxu0 0.0
    %5400 = vmatprep.subr.mxu0 0.0
    %5401 = vmatpush1.msra.mxu0 0.0
    %5402 = vmatprep.subr.mxu0 0.0
    %5403 = vmatpush1.msra.mxu0 0.0
    %5404 = vmatprep.subr.mxu0 0.0
    %5405 = vmatpush1.msra.mxu0 0.0
    %5406 = vmatprep.mubr.f32.mxu0 0.0
    %5407 = vmatmul.mubr.f32.gmra.mrb[0].mxu0 %v5340
    %v5408 = vpop.f32.mrb[0].mxu0
    %v5409 = vadd.f32 %v58, %v5408
    %v5410 = vpop.f32.mrb[0].mxu0
    %5411 = vdwg.mxu0
    %v5412 = vtanh.pop %v5409
    %v5414 = vsel %vm168, %v5412, 0
    %5416 = vmatprep.subr.mxu0 0.0
    %5417 = vmatpush1.msra.mxu0 %v59
    %5418 = vmatprep.subr.mxu0 0.0
    %5419 = vmatpush1.msra.mxu0 %v60
    %5420 = vmatprep.subr.mxu0 0.0
    %5421 = vmatpush1.msra.mxu0 %v61
    %5422 = vmatprep.subr.mxu0 0.0
    %5423 = vmatpush1.msra.mxu0 %v62
    %5424 = vmatprep.subr.mxu0 0.0
    %5425 = vmatpush1.msra.mxu0 %v63
    %5426 = vmatprep.subr.mxu0 0.0
    %5427 = vmatpush1.msra.mxu0 0.0
    %5428 = vmatprep.subr.mxu0 0.0
    %5429 = vmatpush1.msra.mxu0 0.0
    %5430 = vmatprep.subr.mxu0 0.0
    %5431 = vmatpush1.msra.mxu0 0.0
    %5432 = vmatprep.subr.mxu0 0.0
    %5433 = vmatpush1.msra.mxu0 0.0
    %5434 = vmatprep.subr.mxu0 0.0
    %5435 = vmatpush1.msra.mxu0 0.0
    %5436 = vmatprep.subr.mxu0 0.0
    %5437 = vmatpush1.msra.mxu0 0.0
    %5438 = vmatprep.subr.mxu0 0.0
    %5439 = vmatpush1.msra.mxu0 0.0
    %5440 = vmatprep.subr.mxu0 0.0
    %5441 = vmatpush1.msra.mxu0 0.0
    %5442 = vmatprep.subr.mxu0 0.0
    %5443 = vmatpush1.msra.mxu0 0.0
    %5444 = vmatprep.subr.mxu0 0.0
    %5445 = vmatpush1.msra.mxu0 0.0
    %5446 = vmatprep.subr.mxu0 0.0
    %5447 = vmatpush1.msra.mxu0 0.0
    %5448 = vmatprep.subr.mxu0 0.0
    %5449 = vmatpush1.msra.mxu0 0.0
    %5450 = vmatprep.subr.mxu0 0.0
    %5451 = vmatpush1.msra.mxu0 0.0
    %5452 = vmatprep.subr.mxu0 0.0
    %5453 = vmatpush1.msra.mxu0 0.0
    %5454 = vmatprep.subr.mxu0 0.0
    %5455 = vmatpush1.msra.mxu0 0.0
    %5456 = vmatprep.subr.mxu0 0.0
    %5457 = vmatpush1.msra.mxu0 0.0
    %5458 = vmatprep.subr.mxu0 0.0
    %5459 = vmatpush1.msra.mxu0 0.0
    %5460 = vmatprep.subr.mxu0 0.0
    %5461 = vmatpush1.msra.mxu0 0.0
    %5462 = vmatprep.subr.mxu0 0.0
    %5463 = vmatpush1.msra.mxu0 0.0
    %5464 = vmatprep.subr.mxu0 0.0
    %5465 = vmatpush1.msra.mxu0 0.0
    %5466 = vmatprep.subr.mxu0 0.0
    %5467 = vmatpush1.msra.mxu0 0.0
    %5468 = vmatprep.subr.mxu0 0.0
    %5469 = vmatpush1.msra.mxu0 0.0
    %5470 = vmatprep.subr.mxu0 0.0
    %5471 = vmatpush1.msra.mxu0 0.0
    %5472 = vmatprep.subr.mxu0 0.0
    %5473 = vmatpush1.msra.mxu0 0.0
    %5474 = vmatprep.subr.mxu0 0.0
    %5475 = vmatpush1.msra.mxu0 0.0
    %5476 = vmatprep.subr.mxu0 0.0
    %5477 = vmatpush1.msra.mxu0 0.0
    %5478 = vmatprep.subr.mxu0 0.0
    %5479 = vmatpush1.msra.mxu0 0.0
    %5480 = vmatprep.mubr.f32.mxu0 0.0
    %5481 = vmatmul.mubr.f32.gmra.mrb[0].mxu0 %v5414
    %v5482 = vpop.f32.mrb[0].mxu0
    %v5483 = vadd.f32 %v76, %v5482
    %v5484 = vpop.f32.mrb[0].mxu0
    %5485 = vdwg.mxu0
    %v5486 = vtanh.pop %v5483
    %v5488 = vsel %vm168, %v5486, 0
    %5490 = vmatprep.subr.mxu0 0.0
    %5491 = vmatpush1.msra.mxu0 %v65
    %5492 = vmatprep.subr.mxu0 0.0
    %5493 = vmatpush1.msra.mxu0 %v66
    %5494 = vmatprep.subr.mxu0 0.0
    %5495 = vmatpush1.msra.mxu0 %v67
    %5496 = vmatprep.subr.mxu0 0.0
    %5497 = vmatpush1.msra.mxu0 %v68
    %5498 = vmatprep.subr.mxu0 0.0
    %5499 = vmatpush1.msra.mxu0 %v69
    %5500 = vmatprep.subr.mxu0 0.0
    %5501 = vmatpush1.msra.mxu0 0.0
    %5502 = vmatprep.subr.mxu0 0.0
    %5503 = vmatpush1.msra.mxu0 0.0
    %5504 = vmatprep.subr.mxu0 0.0
    %5505 = vmatpush1.msra.mxu0 0.0
    %5506 = vmatprep.subr.mxu0 0.0
    %5507 = vmatpush1.msra.mxu0 0.0
    %5508 = vmatprep.subr.mxu0 0.0
    %5509 = vmatpush1.msra.mxu0 0.0
    %5510 = vmatprep.subr.mxu0 0.0
    %5511 = vmatpush1.msra.mxu0 0.0
    %5512 = vmatprep.subr.mxu0 0.0
    %5513 = vmatpush1.msra.mxu0 0.0
    %5514 = vmatprep.subr.mxu0 0.0
    %5515 = vmatpush1.msra.mxu0 0.0
    %5516 = vmatprep.subr.mxu0 0.0
    %5517 = vmatpush1.msra.mxu0 0.0
    %5518 = vmatprep.subr.mxu0 0.0
    %5519 = vmatpush1.msra.mxu0 0.0
    %5520 = vmatprep.subr.mxu0 0.0
    %5521 = vmatpush1.msra.mxu0 0.0
    %5522 = vmatprep.subr.mxu0 0.0
    %5523 = vmatpush1.msra.mxu0 0.0
    %5524 = vmatprep.subr.mxu0 0.0
    %5525 = vmatpush1.msra.mxu0 0.0
    %5526 = vmatprep.subr.mxu0 0.0
    %5527 = vmatpush1.msra.mxu0 0.0
    %5528 = vmatprep.subr.mxu0 0.0
    %5529 = vmatpush1.msra.mxu0 0.0
    %5530 = vmatprep.subr.mxu0 0.0
    %5531 = vmatpush1.msra.mxu0 0.0
    %5532 = vmatprep.subr.mxu0 0.0
    %5533 = vmatpush1.msra.mxu0 0.0
    %5534 = vmatprep.subr.mxu0 0.0
    %5535 = vmatpush1.msra.mxu0 0.0
    %5536 = vmatprep.subr.mxu0 0.0
    %5537 = vmatpush1.msra.mxu0 0.0
    %5538 = vmatprep.subr.mxu0 0.0
    %5539 = vmatpush1.msra.mxu0 0.0
    %5540 = vmatprep.subr.mxu0 0.0
    %5541 = vmatpush1.msra.mxu0 0.0
    %5542 = vmatprep.subr.mxu0 0.0
    %5543 = vmatpush1.msra.mxu0 0.0
    %5544 = vmatprep.subr.mxu0 0.0
    %5545 = vmatpush1.msra.mxu0 0.0
    %5546 = vmatprep.subr.mxu0 0.0
    %5547 = vmatpush1.msra.mxu0 0.0
    %5548 = vmatprep.subr.mxu0 0.0
    %5549 = vmatpush1.msra.mxu0 0.0
    %5550 = vmatprep.subr.mxu0 0.0
    %5551 = vmatpush1.msra.mxu0 0.0
    %5552 = vmatprep.subr.mxu0 0.0
    %5553 = vmatpush1.msra.mxu0 0.0
    %5554 = vmatprep.mubr.f32.mxu0 0.0
    %5555 = vmatmul.mubr.f32.gmra.mrb[0].mxu0 %v5488
    %v5556 = vpop.f32.mrb[0].mxu0
    %v5557 = vadd.f32 %v78, %v5556
    %v5558 = vpop.f32.mrb[0].mxu0
    %5559 = vdwg.mxu0
    %v5560 = vtanh.pop %v5557
    %v5562 = vsel %vm168, %v5560, 0
    %5564 = vmatprep.subr.mxu0 0.0
    %5565 = vmatpush1.msra.mxu0 %v71
    %5566 = vmatprep.subr.mxu0 0.0
    %5567 = vmatpush1.msra.mxu0 %v72
    %5568 = vmatprep.subr.mxu0 0.0
    %5569 = vmatpush1.msra.mxu0 %v73
    %5570 = vmatprep.subr.mxu0 0.0
    %5571 = vmatpush1.msra.mxu0 %v74
    %5572 = vmatprep.subr.mxu0 0.0
    %5573 = vmatpush1.msra.mxu0 %v75
    %5574 = vmatprep.subr.mxu0 0.0
    %5575 = vmatpush1.msra.mxu0 0.0
    %5576 = vmatprep.subr.mxu0 0.0
    %5577 = vmatpush1.msra.mxu0 0.0
    %5578 = vmatprep.subr.mxu0 0.0
    %5579 = vmatpush1.msra.mxu0 0.0
    %5580 = vmatprep.subr.mxu0 0.0
    %5581 = vmatpush1.msra.mxu0 0.0
    %5582 = vmatprep.subr.mxu0 0.0
    %5583 = vmatpush1.msra.mxu0 0.0
    %5584 = vmatprep.subr.mxu0 0.0
    %5585 = vmatpush1.msra.mxu0 0.0
    %5586 = vmatprep.subr.mxu0 0.0
    %5587 = vmatpush1.msra.mxu0 0.0
    %5588 = vmatprep.subr.mxu0 0.0
    %5589 = vmatpush1.msra.mxu0 0.0
    %5590 = vmatprep.subr.mxu0 0.0
    %5591 = vmatpush1.msra.mxu0 0.0
    %5592 = vmatprep.subr.mxu0 0.0
    %5593 = vmatpush1.msra.mxu0 0.0
    %5594 = vmatprep.subr.mxu0 0.0
    %5595 = vmatpush1.msra.mxu0 0.0
    %5596 = vmatprep.subr.mxu0 0.0
    %5597 = vmatpush1.msra.mxu0 0.0
    %5598 = vmatprep.subr.mxu0 0.0
    %5599 = vmatpush1.msra.mxu0 0.0
    %5600 = vmatprep.subr.mxu0 0.0
    %5601 = vmatpush1.msra.mxu0 0.0
    %5602 = vmatprep.subr.mxu0 0.0
    %5603 = vmatpush1.msra.mxu0 0.0
    %5604 = vmatprep.subr.mxu0 0.0
    %5605 = vmatpush1.msra.mxu0 0.0
    %5606 = vmatprep.subr.mxu0 0.0
    %5607 = vmatpush1.msra.mxu0 0.0
    %5608 = vmatprep.subr.mxu0 0.0
    %5609 = vmatpush1.msra.mxu0 0.0
    %5610 = vmatprep.subr.mxu0 0.0
    %5611 = vmatpush1.msra.mxu0 0.0
    %5612 = vmatprep.subr.mxu0 0.0
    %5613 = vmatpush1.msra.mxu0 0.0
    %5614 = vmatprep.subr.mxu0 0.0
    %5615 = vmatpush1.msra.mxu0 0.0
    %5616 = vmatprep.subr.mxu0 0.0
    %5617 = vmatpush1.msra.mxu0 0.0
    %5618 = vmatprep.subr.mxu0 0.0
    %5619 = vmatpush1.msra.mxu0 0.0
    %5620 = vmatprep.subr.mxu0 0.0
    %5621 = vmatpush1.msra.mxu0 0.0
    %5622 = vmatprep.subr.mxu0 0.0
    %5623 = vmatpush1.msra.mxu0 0.0
    %5624 = vmatprep.subr.mxu0 0.0
    %5625 = vmatpush1.msra.mxu0 0.0
    %5626 = vmatprep.subr.mxu0 0.0
    %5627 = vmatpush1.msra.mxu0 0.0
    %5628 = vmatprep.mubr.f32.mxu0 0.0
    %5629 = vmatmul.mubr.f32.gmra.mrb[0].mxu0 %v5562
    %v5630 = vpop.f32.mrb[0].mxu0
    %v5631 = vadd.f32 %v80, %v5630
    %v5632 = vpop.f32.mrb[0].mxu0
    %5633 = vdwg.mxu0
    %v5634 = vtanh.pop %v5631
    %v5636 = vsel %vm168, %v5634, 0
    %5638 = vmatprep.subr.mxu0 0.0
    %5639 = vmatpush1.msra.mxu0 %v81
    %5640 = vmatprep.subr.mxu0 0.0
    %5641 = vmatpush1.msra.mxu0 %v82
    %5642 = vmatprep.subr.mxu0 0.0
    %5643 = vmatpush1.msra.mxu0 %v83
    %5644 = vmatprep.subr.mxu0 0.0
    %5645 = vmatpush1.msra.mxu0 %v84
    %5646 = vmatprep.subr.mxu0 0.0
    %5647 = vmatpush1.msra.mxu0 %v85
    %5648 = vmatprep.subr.mxu0 0.0
    %5649 = vmatpush1.msra.mxu0 0.0
    %5650 = vmatprep.subr.mxu0 0.0
    %5651 = vmatpush1.msra.mxu0 0.0
    %5652 = vmatprep.subr.mxu0 0.0
    %5653 = vmatpush1.msra.mxu0 0.0
    %5654 = vmatprep.subr.mxu0 0.0
    %5655 = vmatpush1.msra.mxu0 0.0
    %5656 = vmatprep.subr.mxu0 0.0
    %5657 = vmatpush1.msra.mxu0 0.0
    %5658 = vmatprep.subr.mxu0 0.0
    %5659 = vmatpush1.msra.mxu0 0.0
    %5660 = vmatprep.subr.mxu0 0.0
    %5661 = vmatpush1.msra.mxu0 0.0
    %5662 = vmatprep.subr.mxu0 0.0
    %5663 = vmatpush1.msra.mxu0 0.0
    %5664 = vmatprep.subr.mxu0 0.0
    %5665 = vmatpush1.msra.mxu0 0.0
    %5666 = vmatprep.subr.mxu0 0.0
    %5667 = vmatpush1.msra.mxu0 0.0
    %5668 = vmatprep.subr.mxu0 0.0
    %5669 = vmatpush1.msra.mxu0 0.0
    %5670 = vmatprep.subr.mxu0 0.0
    %5671 = vmatpush1.msra.mxu0 0.0
    %5672 = vmatprep.subr.mxu0 0.0
    %5673 = vmatpush1.msra.mxu0 0.0
    %5674 = vmatprep.subr.mxu0 0.0
    %5675 = vmatpush1.msra.mxu0 0.0
    %5676 = vmatprep.subr.mxu0 0.0
    %5677 = vmatpush1.msra.mxu0 0.0
    %5678 = vmatprep.subr.mxu0 0.0
    %5679 = vmatpush1.msra.mxu0 0.0
    %5680 = vmatprep.subr.mxu0 0.0
    %5681 = vmatpush1.msra.mxu0 0.0
    %5682 = vmatprep.subr.mxu0 0.0
    %5683 = vmatpush1.msra.mxu0 0.0
    %5684 = vmatprep.subr.mxu0 0.0
    %5685 = vmatpush1.msra.mxu0 0.0
    %5686 = vmatprep.subr.mxu0 0.0
    %5687 = vmatpush1.msra.mxu0 0.0
    %5688 = vmatprep.subr.mxu0 0.0
    %5689 = vmatpush1.msra.mxu0 0.0
    %5690 = vmatprep.subr.mxu0 0.0
    %5691 = vmatpush1.msra.mxu0 0.0
    %5692 = vmatprep.subr.mxu0 0.0
    %5693 = vmatpush1.msra.mxu0 0.0
    %5694 = vmatprep.subr.mxu0 0.0
    %5695 = vmatpush1.msra.mxu0 0.0
    %5696 = vmatprep.subr.mxu0 0.0
    %5697 = vmatpush1.msra.mxu0 0.0
    %5698 = vmatprep.subr.mxu0 0.0
    %5699 = vmatpush1.msra.mxu0 0.0
    %5700 = vmatprep.subr.mxu0 0.0
    %5701 = vmatpush1.msra.mxu0 0.0
    %5702 = vmatprep.mubr.f32.mxu0 0.0
    %5703 = vmatmul.mubr.f32.gmra.mrb[0].mxu0 %v5636
    %v5704 = vpop.f32.mrb[0].mxu0
    %v5705 = vadd.f32 %v86, %v5704
    %v5706 = vpop.f32.mrb[0].mxu0
    %5707 = vdwg.mxu0
    %v5708 = vstv %s4594
    %v5709 = vmul.f32 %v5708, %v5705
    %v5710 = vadd.f32 %v4590, %v5709
    %v5712 = vsel %vm93, %v5710, 0
    %5714 = vmatprep.subr.mxu0 0.0
    %5715 = vmatpush1.msra.mxu0 %v57
    %5716 = vmatprep.subr.mxu0 0.0
    %5717 = vmatpush1.msra.mxu0 0.0
    %5718 = vmatprep.subr.mxu0 0.0
    %5719 = vmatpush1.msra.mxu0 0.0
    %5720 = vmatprep.subr.mxu0 0.0
    %5721 = vmatpush1.msra.mxu0 0.0
    %5722 = vmatprep.subr.mxu0 0.0
    %5723 = vmatpush1.msra.mxu0 0.0
    %5724 = vmatprep.subr.mxu0 0.0
    %5725 = vmatpush1.msra.mxu0 0.0
    %5726 = vmatprep.subr.mxu0 0.0
    %5727 = vmatpush1.msra.mxu0 0.0
    %5728 = vmatprep.subr.mxu0 0.0
    %5729 = vmatpush1.msra.mxu0 0.0
    %5730 = vmatprep.subr.mxu0 0.0
    %5731 = vmatpush1.msra.mxu0 0.0
    %5732 = vmatprep.subr.mxu0 0.0
    %5733 = vmatpush1.msra.mxu0 0.0
    %5734 = vmatprep.subr.mxu0 0.0
    %5735 = vmatpush1.msra.mxu0 0.0
    %5736 = vmatprep.subr.mxu0 0.0
    %5737 = vmatpush1.msra.mxu0 0.0
    %5738 = vmatprep.subr.mxu0 0.0
    %5739 = vmatpush1.msra.mxu0 0.0
    %5740 = vmatprep.subr.mxu0 0.0
    %5741 = vmatpush1.msra.mxu0 0.0
    %5742 = vmatprep.subr.mxu0 0.0
    %5743 = vmatpush1.msra.mxu0 0.0
    %5744 = vmatprep.subr.mxu0 0.0
    %5745 = vmatpush1.msra.mxu0 0.0
    %5746 = vmatprep.subr.mxu0 0.0
    %5747 = vmatpush1.msra.mxu0 0.0
    %5748 = vmatprep.subr.mxu0 0.0
    %5749 = vmatpush1.msra.mxu0 0.0
    %5750 = vmatprep.subr.mxu0 0.0
    %5751 = vmatpush1.msra.mxu0 0.0
    %5752 = vmatprep.subr.mxu0 0.0
    %5753 = vmatpush1.msra.mxu0 0.0
    %5754 = vmatprep.subr.mxu0 0.0
    %5755 = vmatpush1.msra.mxu0 0.0
    %5756 = vmatprep.subr.mxu0 0.0
    %5757 = vmatpush1.msra.mxu0 0.0
    %5758 = vmatprep.subr.mxu0 0.0
    %5759 = vmatpush1.msra.mxu0 0.0
    %5760 = vmatprep.subr.mxu0 0.0
    %5761 = vmatpush1.msra.mxu0 0.0
    %5762 = vmatprep.subr.mxu0 0.0
    %5763 = vmatpush1.msra.mxu0 0.0
    %5764 = vmatprep.subr.mxu0 0.0
    %5765 = vmatpush1.msra.mxu0 0.0
    %5766 = vmatprep.subr.mxu0 0.0
    %5767 = vmatpush1.msra.mxu0 0.0
    %5768 = vmatprep.subr.mxu0 0.0
    %5769 = vmatpush1.msra.mxu0 0.0
    %5770 = vmatprep.subr.mxu0 0.0
    %5771 = vmatpush1.msra.mxu0 0.0
    %5772 = vmatprep.subr.mxu0 0.0
    %5773 = vmatpush1.msra.mxu0 0.0
    %5774 = vmatprep.subr.mxu0 0.0
    %5775 = vmatpush1.msra.mxu0 0.0
    %5776 = vmatprep.subr.mxu0 0.0
    %5777 = vmatpush1.msra.mxu0 0.0
    %5778 = vmatprep.mubr.f32.mxu0 0.0
    %5779 = vmatmul.mubr.f32.gmra.mrb[0].mxu0 %v5712
    %v5780 = vpop.f32.mrb[0].mxu0
    %v5781 = vadd.f32 %v58, %v5780
    %v5782 = vpop.f32.mrb[0].mxu0
    %5783 = vdwg.mxu0
    %v5784 = vtanh.pop %v5781
    %v5786 = vsel %vm168, %v5784, 0
    %5788 = vmatprep.subr.mxu0 0.0
    %5789 = vmatpush1.msra.mxu0 %v59
    %5790 = vmatprep.subr.mxu0 0.0
    %5791 = vmatpush1.msra.mxu0 %v60
    %5792 = vmatprep.subr.mxu0 0.0
    %5793 = vmatpush1.msra.mxu0 %v61
    %5794 = vmatprep.subr.mxu0 0.0
    %5795 = vmatpush1.msra.mxu0 %v62
    %5796 = vmatprep.subr.mxu0 0.0
    %5797 = vmatpush1.msra.mxu0 %v63
    %5798 = vmatprep.subr.mxu0 0.0
    %5799 = vmatpush1.msra.mxu0 0.0
    %5800 = vmatprep.subr.mxu0 0.0
    %5801 = vmatpush1.msra.mxu0 0.0
    %5802 = vmatprep.subr.mxu0 0.0
    %5803 = vmatpush1.msra.mxu0 0.0
    %5804 = vmatprep.subr.mxu0 0.0
    %5805 = vmatpush1.msra.mxu0 0.0
    %5806 = vmatprep.subr.mxu0 0.0
    %5807 = vmatpush1.msra.mxu0 0.0
    %5808 = vmatprep.subr.mxu0 0.0
    %5809 = vmatpush1.msra.mxu0 0.0
    %5810 = vmatprep.subr.mxu0 0.0
    %5811 = vmatpush1.msra.mxu0 0.0
    %5812 = vmatprep.subr.mxu0 0.0
    %5813 = vmatpush1.msra.mxu0 0.0
    %5814 = vmatprep.subr.mxu0 0.0
    %5815 = vmatpush1.msra.mxu0 0.0
    %5816 = vmatprep.subr.mxu0 0.0
    %5817 = vmatpush1.msra.mxu0 0.0
    %5818 = vmatprep.subr.mxu0 0.0
    %5819 = vmatpush1.msra.mxu0 0.0
    %5820 = vmatprep.subr.mxu0 0.0
    %5821 = vmatpush1.msra.mxu0 0.0
    %5822 = vmatprep.subr.mxu0 0.0
    %5823 = vmatpush1.msra.mxu0 0.0
    %5824 = vmatprep.subr.mxu0 0.0
    %5825 = vmatpush1.msra.mxu0 0.0
    %5826 = vmatprep.subr.mxu0 0.0
    %5827 = vmatpush1.msra.mxu0 0.0
    %5828 = vmatprep.subr.mxu0 0.0
    %5829 = vmatpush1.msra.mxu0 0.0
    %5830 = vmatprep.subr.mxu0 0.0
    %5831 = vmatpush1.msra.mxu0 0.0
    %5832 = vmatprep.subr.mxu0 0.0
    %5833 = vmatpush1.msra.mxu0 0.0
    %5834 = vmatprep.subr.mxu0 0.0
    %5835 = vmatpush1.msra.mxu0 0.0
    %5836 = vmatprep.subr.mxu0 0.0
    %5837 = vmatpush1.msra.mxu0 0.0
    %5838 = vmatprep.subr.mxu0 0.0
    %5839 = vmatpush1.msra.mxu0 0.0
    %5840 = vmatprep.subr.mxu0 0.0
    %5841 = vmatpush1.msra.mxu0 0.0
    %5842 = vmatprep.subr.mxu0 0.0
    %5843 = vmatpush1.msra.mxu0 0.0
    %5844 = vmatprep.subr.mxu0 0.0
    %5845 = vmatpush1.msra.mxu0 0.0
    %5846 = vmatprep.subr.mxu0 0.0
    %5847 = vmatpush1.msra.mxu0 0.0
    %5848 = vmatprep.subr.mxu0 0.0
    %5849 = vmatpush1.msra.mxu0 0.0
    %5850 = vmatprep.subr.mxu0 0.0
    %5851 = vmatpush1.msra.mxu0 0.0
    %5852 = vmatprep.mubr.f32.mxu0 0.0
    %5853 = vmatmul.mubr.f32.gmra.mrb[0].mxu0 %v5786
    %v5854 = vpop.f32.mrb[0].mxu0
    %v5855 = vadd.f32 %v76, %v5854
    %v5856 = vpop.f32.mrb[0].mxu0
    %5857 = vdwg.mxu0
    %v5858 = vtanh.pop %v5855
    %v5860 = vsel %vm168, %v5858, 0
    %5862 = vmatprep.subr.mxu0 0.0
    %5863 = vmatpush1.msra.mxu0 %v65
    %5864 = vmatprep.subr.mxu0 0.0
    %5865 = vmatpush1.msra.mxu0 %v66
    %5866 = vmatprep.subr.mxu0 0.0
    %5867 = vmatpush1.msra.mxu0 %v67
    %5868 = vmatprep.subr.mxu0 0.0
    %5869 = vmatpush1.msra.mxu0 %v68
    %5870 = vmatprep.subr.mxu0 0.0
    %5871 = vmatpush1.msra.mxu0 %v69
    %5872 = vmatprep.subr.mxu0 0.0
    %5873 = vmatpush1.msra.mxu0 0.0
    %5874 = vmatprep.subr.mxu0 0.0
    %5875 = vmatpush1.msra.mxu0 0.0
    %5876 = vmatprep.subr.mxu0 0.0
    %5877 = vmatpush1.msra.mxu0 0.0
    %5878 = vmatprep.subr.mxu0 0.0
    %5879 = vmatpush1.msra.mxu0 0.0
    %5880 = vmatprep.subr.mxu0 0.0
    %5881 = vmatpush1.msra.mxu0 0.0
    %5882 = vmatprep.subr.mxu0 0.0
    %5883 = vmatpush1.msra.mxu0 0.0
    %5884 = vmatprep.subr.mxu0 0.0
    %5885 = vmatpush1.msra.mxu0 0.0
    %5886 = vmatprep.subr.mxu0 0.0
    %5887 = vmatpush1.msra.mxu0 0.0
    %5888 = vmatprep.subr.mxu0 0.0
    %5889 = vmatpush1.msra.mxu0 0.0
    %5890 = vmatprep.subr.mxu0 0.0
    %5891 = vmatpush1.msra.mxu0 0.0
    %5892 = vmatprep.subr.mxu0 0.0
    %5893 = vmatpush1.msra.mxu0 0.0
    %5894 = vmatprep.subr.mxu0 0.0
    %5895 = vmatpush1.msra.mxu0 0.0
    %5896 = vmatprep.subr.mxu0 0.0
    %5897 = vmatpush1.msra.mxu0 0.0
    %5898 = vmatprep.subr.mxu0 0.0
    %5899 = vmatpush1.msra.mxu0 0.0
    %5900 = vmatprep.subr.mxu0 0.0
    %5901 = vmatpush1.msra.mxu0 0.0
    %5902 = vmatprep.subr.mxu0 0.0
    %5903 = vmatpush1.msra.mxu0 0.0
    %5904 = vmatprep.subr.mxu0 0.0
    %5905 = vmatpush1.msra.mxu0 0.0
    %5906 = vmatprep.subr.mxu0 0.0
    %5907 = vmatpush1.msra.mxu0 0.0
    %5908 = vmatprep.subr.mxu0 0.0
    %5909 = vmatpush1.msra.mxu0 0.0
    %5910 = vmatprep.subr.mxu0 0.0
    %5911 = vmatpush1.msra.mxu0 0.0
    %5912 = vmatprep.subr.mxu0 0.0
    %5913 = vmatpush1.msra.mxu0 0.0
    %5914 = vmatprep.subr.mxu0 0.0
    %5915 = vmatpush1.msra.mxu0 0.0
    %5916 = vmatprep.subr.mxu0 0.0
    %5917 = vmatpush1.msra.mxu0 0.0
    %5918 = vmatprep.subr.mxu0 0.0
    %5919 = vmatpush1.msra.mxu0 0.0
    %5920 = vmatprep.subr.mxu0 0.0
    %5921 = vmatpush1.msra.mxu0 0.0
    %5922 = vmatprep.subr.mxu0 0.0
    %5923 = vmatpush1.msra.mxu0 0.0
    %5924 = vmatprep.subr.mxu0 0.0
    %5925 = vmatpush1.msra.mxu0 0.0
    %5926 = vmatprep.mubr.f32.mxu0 0.0
    %5927 = vmatmul.mubr.f32.gmra.mrb[0].mxu0 %v5860
    %v5928 = vpop.f32.mrb[0].mxu0
    %v5929 = vadd.f32 %v78, %v5928
    %v5930 = vpop.f32.mrb[0].mxu0
    %5931 = vdwg.mxu0
    %v5932 = vtanh.pop %v5929
    %v5934 = vsel %vm168, %v5932, 0
    %5936 = vmatprep.subr.mxu0 0.0
    %5937 = vmatpush1.msra.mxu0 %v71
    %5938 = vmatprep.subr.mxu0 0.0
    %5939 = vmatpush1.msra.mxu0 %v72
    %5940 = vmatprep.subr.mxu0 0.0
    %5941 = vmatpush1.msra.mxu0 %v73
    %5942 = vmatprep.subr.mxu0 0.0
    %5943 = vmatpush1.msra.mxu0 %v74
    %5944 = vmatprep.subr.mxu0 0.0
    %5945 = vmatpush1.msra.mxu0 %v75
    %5946 = vmatprep.subr.mxu0 0.0
    %5947 = vmatpush1.msra.mxu0 0.0
    %5948 = vmatprep.subr.mxu0 0.0
    %5949 = vmatpush1.msra.mxu0 0.0
    %5950 = vmatprep.subr.mxu0 0.0
    %5951 = vmatpush1.msra.mxu0 0.0
    %5952 = vmatprep.subr.mxu0 0.0
    %5953 = vmatpush1.msra.mxu0 0.0
    %5954 = vmatprep.subr.mxu0 0.0
    %5955 = vmatpush1.msra.mxu0 0.0
    %5956 = vmatprep.subr.mxu0 0.0
    %5957 = vmatpush1.msra.mxu0 0.0
    %5958 = vmatprep.subr.mxu0 0.0
    %5959 = vmatpush1.msra.mxu0 0.0
    %5960 = vmatprep.subr.mxu0 0.0
    %5961 = vmatpush1.msra.mxu0 0.0
    %5962 = vmatprep.subr.mxu0 0.0
    %5963 = vmatpush1.msra.mxu0 0.0
    %5964 = vmatprep.subr.mxu0 0.0
    %5965 = vmatpush1.msra.mxu0 0.0
    %5966 = vmatprep.subr.mxu0 0.0
    %5967 = vmatpush1.msra.mxu0 0.0
    %5968 = vmatprep.subr.mxu0 0.0
    %5969 = vmatpush1.msra.mxu0 0.0
    %5970 = vmatprep.subr.mxu0 0.0
    %5971 = vmatpush1.msra.mxu0 0.0
    %5972 = vmatprep.subr.mxu0 0.0
    %5973 = vmatpush1.msra.mxu0 0.0
    %5974 = vmatprep.subr.mxu0 0.0
    %5975 = vmatpush1.msra.mxu0 0.0
    %5976 = vmatprep.subr.mxu0 0.0
    %5977 = vmatpush1.msra.mxu0 0.0
    %5978 = vmatprep.subr.mxu0 0.0
    %5979 = vmatpush1.msra.mxu0 0.0
    %5980 = vmatprep.subr.mxu0 0.0
    %5981 = vmatpush1.msra.mxu0 0.0
    %5982 = vmatprep.subr.mxu0 0.0
    %5983 = vmatpush1.msra.mxu0 0.0
    %5984 = vmatprep.subr.mxu0 0.0
    %5985 = vmatpush1.msra.mxu0 0.0
    %5986 = vmatprep.subr.mxu0 0.0
    %5987 = vmatpush1.msra.mxu0 0.0
    %5988 = vmatprep.subr.mxu0 0.0
    %5989 = vmatpush1.msra.mxu0 0.0
    %5990 = vmatprep.subr.mxu0 0.0
    %5991 = vmatpush1.msra.mxu0 0.0
    %5992 = vmatprep.subr.mxu0 0.0
    %5993 = vmatpush1.msra.mxu0 0.0
    %5994 = vmatprep.subr.mxu0 0.0
    %5995 = vmatpush1.msra.mxu0 0.0
    %5996 = vmatprep.subr.mxu0 0.0
    %5997 = vmatpush1.msra.mxu0 0.0
    %5998 = vmatprep.subr.mxu0 0.0
    %5999 = vmatpush1.msra.mxu0 0.0
    %6000 = vmatprep.mubr.f32.mxu0 0.0
    %6001 = vmatmul.mubr.f32.gmra.mrb[0].mxu0 %v5934
    %v6002 = vpop.f32.mrb[0].mxu0
    %v6003 = vadd.f32 %v80, %v6002
    %v6004 = vpop.f32.mrb[0].mxu0
    %6005 = vdwg.mxu0
    %v6006 = vtanh.pop %v6003
    %v6008 = vsel %vm168, %v6006, 0
    %6010 = vmatprep.subr.mxu0 0.0
    %6011 = vmatpush1.msra.mxu0 %v81
    %6012 = vmatprep.subr.mxu0 0.0
    %6013 = vmatpush1.msra.mxu0 %v82
    %6014 = vmatprep.subr.mxu0 0.0
    %6015 = vmatpush1.msra.mxu0 %v83
    %6016 = vmatprep.subr.mxu0 0.0
    %6017 = vmatpush1.msra.mxu0 %v84
    %6018 = vmatprep.subr.mxu0 0.0
    %6019 = vmatpush1.msra.mxu0 %v85
    %6020 = vmatprep.subr.mxu0 0.0
    %6021 = vmatpush1.msra.mxu0 0.0
    %6022 = vmatprep.subr.mxu0 0.0
    %6023 = vmatpush1.msra.mxu0 0.0
    %6024 = vmatprep.subr.mxu0 0.0
    %6025 = vmatpush1.msra.mxu0 0.0
    %6026 = vmatprep.subr.mxu0 0.0
    %6027 = vmatpush1.msra.mxu0 0.0
    %6028 = vmatprep.subr.mxu0 0.0
    %6029 = vmatpush1.msra.mxu0 0.0
    %6030 = vmatprep.subr.mxu0 0.0
    %6031 = vmatpush1.msra.mxu0 0.0
    %6032 = vmatprep.subr.mxu0 0.0
    %6033 = vmatpush1.msra.mxu0 0.0
    %6034 = vmatprep.subr.mxu0 0.0
    %6035 = vmatpush1.msra.mxu0 0.0
    %6036 = vmatprep.subr.mxu0 0.0
    %6037 = vmatpush1.msra.mxu0 0.0
    %6038 = vmatprep.subr.mxu0 0.0
    %6039 = vmatpush1.msra.mxu0 0.0
    %6040 = vmatprep.subr.mxu0 0.0
    %6041 = vmatpush1.msra.mxu0 0.0
    %6042 = vmatprep.subr.mxu0 0.0
    %6043 = vmatpush1.msra.mxu0 0.0
    %6044 = vmatprep.subr.mxu0 0.0
    %6045 = vmatpush1.msra.mxu0 0.0
    %6046 = vmatprep.subr.mxu0 0.0
    %6047 = vmatpush1.msra.mxu0 0.0
    %6048 = vmatprep.subr.mxu0 0.0
    %6049 = vmatpush1.msra.mxu0 0.0
    %6050 = vmatprep.subr.mxu0 0.0
    %6051 = vmatpush1.msra.mxu0 0.0
    %6052 = vmatprep.subr.mxu0 0.0
    %6053 = vmatpush1.msra.mxu0 0.0
    %6054 = vmatprep.subr.mxu0 0.0
    %6055 = vmatpush1.msra.mxu0 0.0
    %6056 = vmatprep.subr.mxu0 0.0
    %6057 = vmatpush1.msra.mxu0 0.0
    %6058 = vmatprep.subr.mxu0 0.0
    %6059 = vmatpush1.msra.mxu0 0.0
    %6060 = vmatprep.subr.mxu0 0.0
    %6061 = vmatpush1.msra.mxu0 0.0
    %6062 = vmatprep.subr.mxu0 0.0
    %6063 = vmatpush1.msra.mxu0 0.0
    %6064 = vmatprep.subr.mxu0 0.0
    %6065 = vmatpush1.msra.mxu0 0.0
    %6066 = vmatprep.subr.mxu0 0.0
    %6067 = vmatpush1.msra.mxu0 0.0
    %6068 = vmatprep.subr.mxu0 0.0
    %6069 = vmatpush1.msra.mxu0 0.0
    %6070 = vmatprep.subr.mxu0 0.0
    %6071 = vmatpush1.msra.mxu0 0.0
    %6072 = vmatprep.subr.mxu0 0.0
    %6073 = vmatpush1.msra.mxu0 0.0
    %6074 = vmatprep.mubr.f32.mxu0 0.0
    %6075 = vmatmul.mubr.f32.gmra.mrb[0].mxu0 %v6008
    %v6076 = vpop.f32.mrb[0].mxu0
    %v6077 = vadd.f32 %v86, %v6076
    %v6078 = vpop.f32.mrb[0].mxu0
    %6079 = vdwg.mxu0
    %v6080 = vrcp.pop 6.0
    %s6081 = vtos %v6080
    %s6082 = smul.f32 %s4594, %s6081
    %v6083 = vmul.f32 %v5334, 2.0
    %v6084 = vadd.f32 %v4961, %v6083
    %v6085 = vmul.f32 %v5705, 2.0
    %v6086 = vadd.f32 %v6084, %v6085
    %v6087 = vadd.f32 %v6086, %v6077
    %v6088 = vstv %s6082
    %v6089 = vmul.f32 %v6088, %v6087
    %v6090 = vadd.f32 %v4590, %v6089
    %6091 = vst.msk [vmem:[#allocation7 + $0x4] sm:$0x1] %vm88, %v6090
    %s6092 = sld [smem:[#allocation2 + $0x5]]
    %s6093 = sld [smem:[#allocation2 + $0x4]]
    %s6094 = ssub.f32 %s6092, %s6093
    %v6096 = vsel %vm93, %v6090, 0
    %6098 = vmatprep.subr.mxu0 0.0
    %6099 = vmatpush1.msra.mxu0 %v57
    %6100 = vmatprep.subr.mxu0 0.0
    %6101 = vmatpush1.msra.mxu0 0.0
    %6102 = vmatprep.subr.mxu0 0.0
    %6103 = vmatpush1.msra.mxu0 0.0
    %6104 = vmatprep.subr.mxu0 0.0
    %6105 = vmatpush1.msra.mxu0 0.0
    %6106 = vmatprep.subr.mxu0 0.0
    %6107 = vmatpush1.msra.mxu0 0.0
    %6108 = vmatprep.subr.mxu0 0.0
    %6109 = vmatpush1.msra.mxu0 0.0
    %6110 = vmatprep.subr.mxu0 0.0
    %6111 = vmatpush1.msra.mxu0 0.0
    %6112 = vmatprep.subr.mxu0 0.0
    %6113 = vmatpush1.msra.mxu0 0.0
    %6114 = vmatprep.subr.mxu0 0.0
    %6115 = vmatpush1.msra.mxu0 0.0
    %6116 = vmatprep.subr.mxu0 0.0
    %6117 = vmatpush1.msra.mxu0 0.0
    %6118 = vmatprep.subr.mxu0 0.0
    %6119 = vmatpush1.msra.mxu0 0.0
    %6120 = vmatprep.subr.mxu0 0.0
    %6121 = vmatpush1.msra.mxu0 0.0
    %6122 = vmatprep.subr.mxu0 0.0
    %6123 = vmatpush1.msra.mxu0 0.0
    %6124 = vmatprep.subr.mxu0 0.0
    %6125 = vmatpush1.msra.mxu0 0.0
    %6126 = vmatprep.subr.mxu0 0.0
    %6127 = vmatpush1.msra.mxu0 0.0
    %6128 = vmatprep.subr.mxu0 0.0
    %6129 = vmatpush1.msra.mxu0 0.0
    %6130 = vmatprep.subr.mxu0 0.0
    %6131 = vmatpush1.msra.mxu0 0.0
    %6132 = vmatprep.subr.mxu0 0.0
    %6133 = vmatpush1.msra.mxu0 0.0
    %6134 = vmatprep.subr.mxu0 0.0
    %6135 = vmatpush1.msra.mxu0 0.0
    %6136 = vmatprep.subr.mxu0 0.0
    %6137 = vmatpush1.msra.mxu0 0.0
    %6138 = vmatprep.subr.mxu0 0.0
    %6139 = vmatpush1.msra.mxu0 0.0
    %6140 = vmatprep.subr.mxu0 0.0
    %6141 = vmatpush1.msra.mxu0 0.0
    %6142 = vmatprep.subr.mxu0 0.0
    %6143 = vmatpush1.msra.mxu0 0.0
    %6144 = vmatprep.subr.mxu0 0.0
    %6145 = vmatpush1.msra.mxu0 0.0
    %6146 = vmatprep.subr.mxu0 0.0
    %6147 = vmatpush1.msra.mxu0 0.0
    %6148 = vmatprep.subr.mxu0 0.0
    %6149 = vmatpush1.msra.mxu0 0.0
    %6150 = vmatprep.subr.mxu0 0.0
    %6151 = vmatpush1.msra.mxu0 0.0
    %6152 = vmatprep.subr.mxu0 0.0
    %6153 = vmatpush1.msra.mxu0 0.0
    %6154 = vmatprep.subr.mxu0 0.0
    %6155 = vmatpush1.msra.mxu0 0.0
    %6156 = vmatprep.subr.mxu0 0.0
    %6157 = vmatpush1.msra.mxu0 0.0
    %6158 = vmatprep.subr.mxu0 0.0
    %6159 = vmatpush1.msra.mxu0 0.0
    %6160 = vmatprep.subr.mxu0 0.0
    %6161 = vmatpush1.msra.mxu0 0.0
    %6162 = vmatprep.mubr.f32.mxu0 0.0
    %6163 = vmatmul.mubr.f32.gmra.mrb[0].mxu0 %v6096
    %v6164 = vpop.f32.mrb[0].mxu0
    %v6165 = vadd.f32 %v58, %v6164
    %v6166 = vpop.f32.mrb[0].mxu0
    %6167 = vdwg.mxu0
    %v6168 = vtanh.pop %v6165
    %v6170 = vsel %vm168, %v6168, 0
    %6172 = vmatprep.subr.mxu0 0.0
    %6173 = vmatpush1.msra.mxu0 %v59
    %6174 = vmatprep.subr.mxu0 0.0
    %6175 = vmatpush1.msra.mxu0 %v60
    %6176 = vmatprep.subr.mxu0 0.0
    %6177 = vmatpush1.msra.mxu0 %v61
    %6178 = vmatprep.subr.mxu0 0.0
    %6179 = vmatpush1.msra.mxu0 %v62
    %6180 = vmatprep.subr.mxu0 0.0
    %6181 = vmatpush1.msra.mxu0 %v63
    %6182 = vmatprep.subr.mxu0 0.0
    %6183 = vmatpush1.msra.mxu0 0.0
    %6184 = vmatprep.subr.mxu0 0.0
    %6185 = vmatpush1.msra.mxu0 0.0
    %6186 = vmatprep.subr.mxu0 0.0
    %6187 = vmatpush1.msra.mxu0 0.0
    %6188 = vmatprep.subr.mxu0 0.0
    %6189 = vmatpush1.msra.mxu0 0.0
    %6190 = vmatprep.subr.mxu0 0.0
    %6191 = vmatpush1.msra.mxu0 0.0
    %6192 = vmatprep.subr.mxu0 0.0
    %6193 = vmatpush1.msra.mxu0 0.0
    %6194 = vmatprep.subr.mxu0 0.0
    %6195 = vmatpush1.msra.mxu0 0.0
    %6196 = vmatprep.subr.mxu0 0.0
    %6197 = vmatpush1.msra.mxu0 0.0
    %6198 = vmatprep.subr.mxu0 0.0
    %6199 = vmatpush1.msra.mxu0 0.0
    %6200 = vmatprep.subr.mxu0 0.0
    %6201 = vmatpush1.msra.mxu0 0.0
    %6202 = vmatprep.subr.mxu0 0.0
    %6203 = vmatpush1.msra.mxu0 0.0
    %6204 = vmatprep.subr.mxu0 0.0
    %6205 = vmatpush1.msra.mxu0 0.0
    %6206 = vmatprep.subr.mxu0 0.0
    %6207 = vmatpush1.msra.mxu0 0.0
    %6208 = vmatprep.subr.mxu0 0.0
    %6209 = vmatpush1.msra.mxu0 0.0
    %6210 = vmatprep.subr.mxu0 0.0
    %6211 = vmatpush1.msra.mxu0 0.0
    %6212 = vmatprep.subr.mxu0 0.0
    %6213 = vmatpush1.msra.mxu0 0.0
    %6214 = vmatprep.subr.mxu0 0.0
    %6215 = vmatpush1.msra.mxu0 0.0
    %6216 = vmatprep.subr.mxu0 0.0
    %6217 = vmatpush1.msra.mxu0 0.0
    %6218 = vmatprep.subr.mxu0 0.0
    %6219 = vmatpush1.msra.mxu0 0.0
    %6220 = vmatprep.subr.mxu0 0.0
    %6221 = vmatpush1.msra.mxu0 0.0
    %6222 = vmatprep.subr.mxu0 0.0
    %6223 = vmatpush1.msra.mxu0 0.0
    %6224 = vmatprep.subr.mxu0 0.0
    %6225 = vmatpush1.msra.mxu0 0.0
    %6226 = vmatprep.subr.mxu0 0.0
    %6227 = vmatpush1.msra.mxu0 0.0
    %6228 = vmatprep.subr.mxu0 0.0
    %6229 = vmatpush1.msra.mxu0 0.0
    %6230 = vmatprep.subr.mxu0 0.0
    %6231 = vmatpush1.msra.mxu0 0.0
    %6232 = vmatprep.subr.mxu0 0.0
    %6233 = vmatpush1.msra.mxu0 0.0
    %6234 = vmatprep.subr.mxu0 0.0
    %6235 = vmatpush1.msra.mxu0 0.0
    %6236 = vmatprep.mubr.f32.mxu0 0.0
    %6237 = vmatmul.mubr.f32.gmra.mrb[0].mxu0 %v6170
    %v6238 = vpop.f32.mrb[0].mxu0
    %v6239 = vadd.f32 %v76, %v6238
    %v6240 = vpop.f32.mrb[0].mxu0
    %6241 = vdwg.mxu0
    %v6242 = vtanh.pop %v6239
    %v6244 = vsel %vm168, %v6242, 0
    %6246 = vmatprep.subr.mxu0 0.0
    %6247 = vmatpush1.msra.mxu0 %v65
    %6248 = vmatprep.subr.mxu0 0.0
    %6249 = vmatpush1.msra.mxu0 %v66
    %6250 = vmatprep.subr.mxu0 0.0
    %6251 = vmatpush1.msra.mxu0 %v67
    %6252 = vmatprep.subr.mxu0 0.0
    %6253 = vmatpush1.msra.mxu0 %v68
    %6254 = vmatprep.subr.mxu0 0.0
    %6255 = vmatpush1.msra.mxu0 %v69
    %6256 = vmatprep.subr.mxu0 0.0
    %6257 = vmatpush1.msra.mxu0 0.0
    %6258 = vmatprep.subr.mxu0 0.0
    %6259 = vmatpush1.msra.mxu0 0.0
    %6260 = vmatprep.subr.mxu0 0.0
    %6261 = vmatpush1.msra.mxu0 0.0
    %6262 = vmatprep.subr.mxu0 0.0
    %6263 = vmatpush1.msra.mxu0 0.0
    %6264 = vmatprep.subr.mxu0 0.0
    %6265 = vmatpush1.msra.mxu0 0.0
    %6266 = vmatprep.subr.mxu0 0.0
    %6267 = vmatpush1.msra.mxu0 0.0
    %6268 = vmatprep.subr.mxu0 0.0
    %6269 = vmatpush1.msra.mxu0 0.0
    %6270 = vmatprep.subr.mxu0 0.0
    %6271 = vmatpush1.msra.mxu0 0.0
    %6272 = vmatprep.subr.mxu0 0.0
    %6273 = vmatpush1.msra.mxu0 0.0
    %6274 = vmatprep.subr.mxu0 0.0
    %6275 = vmatpush1.msra.mxu0 0.0
    %6276 = vmatprep.subr.mxu0 0.0
    %6277 = vmatpush1.msra.mxu0 0.0
    %6278 = vmatprep.subr.mxu0 0.0
    %6279 = vmatpush1.msra.mxu0 0.0
    %6280 = vmatprep.subr.mxu0 0.0
    %6281 = vmatpush1.msra.mxu0 0.0
    %6282 = vmatprep.subr.mxu0 0.0
    %6283 = vmatpush1.msra.mxu0 0.0
    %6284 = vmatprep.subr.mxu0 0.0
    %6285 = vmatpush1.msra.mxu0 0.0
    %6286 = vmatprep.subr.mxu0 0.0
    %6287 = vmatpush1.msra.mxu0 0.0
    %6288 = vmatprep.subr.mxu0 0.0
    %6289 = vmatpush1.msra.mxu0 0.0
    %6290 = vmatprep.subr.mxu0 0.0
    %6291 = vmatpush1.msra.mxu0 0.0
    %6292 = vmatprep.subr.mxu0 0.0
    %6293 = vmatpush1.msra.mxu0 0.0
    %6294 = vmatprep.subr.mxu0 0.0
    %6295 = vmatpush1.msra.mxu0 0.0
    %6296 = vmatprep.subr.mxu0 0.0
    %6297 = vmatpush1.msra.mxu0 0.0
    %6298 = vmatprep.subr.mxu0 0.0
    %6299 = vmatpush1.msra.mxu0 0.0
    %6300 = vmatprep.subr.mxu0 0.0
    %6301 = vmatpush1.msra.mxu0 0.0
    %6302 = vmatprep.subr.mxu0 0.0
    %6303 = vmatpush1.msra.mxu0 0.0
    %6304 = vmatprep.subr.mxu0 0.0
    %6305 = vmatpush1.msra.mxu0 0.0
    %6306 = vmatprep.subr.mxu0 0.0
    %6307 = vmatpush1.msra.mxu0 0.0
    %6308 = vmatprep.subr.mxu0 0.0
    %6309 = vmatpush1.msra.mxu0 0.0
    %6310 = vmatprep.mubr.f32.mxu0 0.0
    %6311 = vmatmul.mubr.f32.gmra.mrb[0].mxu0 %v6244
    %v6312 = vpop.f32.mrb[0].mxu0
    %v6313 = vadd.f32 %v78, %v6312
    %v6314 = vpop.f32.mrb[0].mxu0
    %6315 = vdwg.mxu0
    %v6316 = vtanh.pop %v6313
    %v6318 = vsel %vm168, %v6316, 0
    %6320 = vmatprep.subr.mxu0 0.0
    %6321 = vmatpush1.msra.mxu0 %v71
    %6322 = vmatprep.subr.mxu0 0.0
    %6323 = vmatpush1.msra.mxu0 %v72
    %6324 = vmatprep.subr.mxu0 0.0
    %6325 = vmatpush1.msra.mxu0 %v73
    %6326 = vmatprep.subr.mxu0 0.0
    %6327 = vmatpush1.msra.mxu0 %v74
    %6328 = vmatprep.subr.mxu0 0.0
    %6329 = vmatpush1.msra.mxu0 %v75
    %6330 = vmatprep.subr.mxu0 0.0
    %6331 = vmatpush1.msra.mxu0 0.0
    %6332 = vmatprep.subr.mxu0 0.0
    %6333 = vmatpush1.msra.mxu0 0.0
    %6334 = vmatprep.subr.mxu0 0.0
    %6335 = vmatpush1.msra.mxu0 0.0
    %6336 = vmatprep.subr.mxu0 0.0
    %6337 = vmatpush1.msra.mxu0 0.0
    %6338 = vmatprep.subr.mxu0 0.0
    %6339 = vmatpush1.msra.mxu0 0.0
    %6340 = vmatprep.subr.mxu0 0.0
    %6341 = vmatpush1.msra.mxu0 0.0
    %6342 = vmatprep.subr.mxu0 0.0
    %6343 = vmatpush1.msra.mxu0 0.0
    %6344 = vmatprep.subr.mxu0 0.0
    %6345 = vmatpush1.msra.mxu0 0.0
    %6346 = vmatprep.subr.mxu0 0.0
    %6347 = vmatpush1.msra.mxu0 0.0
    %6348 = vmatprep.subr.mxu0 0.0
    %6349 = vmatpush1.msra.mxu0 0.0
    %6350 = vmatprep.subr.mxu0 0.0
    %6351 = vmatpush1.msra.mxu0 0.0
    %6352 = vmatprep.subr.mxu0 0.0
    %6353 = vmatpush1.msra.mxu0 0.0
    %6354 = vmatprep.subr.mxu0 0.0
    %6355 = vmatpush1.msra.mxu0 0.0
    %6356 = vmatprep.subr.mxu0 0.0
    %6357 = vmatpush1.msra.mxu0 0.0
    %6358 = vmatprep.subr.mxu0 0.0
    %6359 = vmatpush1.msra.mxu0 0.0
    %6360 = vmatprep.subr.mxu0 0.0
    %6361 = vmatpush1.msra.mxu0 0.0
    %6362 = vmatprep.subr.mxu0 0.0
    %6363 = vmatpush1.msra.mxu0 0.0
    %6364 = vmatprep.subr.mxu0 0.0
    %6365 = vmatpush1.msra.mxu0 0.0
    %6366 = vmatprep.subr.mxu0 0.0
    %6367 = vmatpush1.msra.mxu0 0.0
    %6368 = vmatprep.subr.mxu0 0.0
    %6369 = vmatpush1.msra.mxu0 0.0
    %6370 = vmatprep.subr.mxu0 0.0
    %6371 = vmatpush1.msra.mxu0 0.0
    %6372 = vmatprep.subr.mxu0 0.0
    %6373 = vmatpush1.msra.mxu0 0.0
    %6374 = vmatprep.subr.mxu0 0.0
    %6375 = vmatpush1.msra.mxu0 0.0
    %6376 = vmatprep.subr.mxu0 0.0
    %6377 = vmatpush1.msra.mxu0 0.0
    %6378 = vmatprep.subr.mxu0 0.0
    %6379 = vmatpush1.msra.mxu0 0.0
    %6380 = vmatprep.subr.mxu0 0.0
    %6381 = vmatpush1.msra.mxu0 0.0
    %6382 = vmatprep.subr.mxu0 0.0
    %6383 = vmatpush1.msra.mxu0 0.0
    %6384 = vmatprep.mubr.f32.mxu0 0.0
    %6385 = vmatmul.mubr.f32.gmra.mrb[0].mxu0 %v6318
    %v6386 = vpop.f32.mrb[0].mxu0
    %v6387 = vadd.f32 %v80, %v6386
    %v6388 = vpop.f32.mrb[0].mxu0
    %6389 = vdwg.mxu0
    %v6390 = vtanh.pop %v6387
    %v6392 = vsel %vm168, %v6390, 0
    %6394 = vmatprep.subr.mxu0 0.0
    %6395 = vmatpush1.msra.mxu0 %v81
    %6396 = vmatprep.subr.mxu0 0.0
    %6397 = vmatpush1.msra.mxu0 %v82
    %6398 = vmatprep.subr.mxu0 0.0
    %6399 = vmatpush1.msra.mxu0 %v83
    %6400 = vmatprep.subr.mxu0 0.0
    %6401 = vmatpush1.msra.mxu0 %v84
    %6402 = vmatprep.subr.mxu0 0.0
    %6403 = vmatpush1.msra.mxu0 %v85
    %6404 = vmatprep.subr.mxu0 0.0
    %6405 = vmatpush1.msra.mxu0 0.0
    %6406 = vmatprep.subr.mxu0 0.0
    %6407 = vmatpush1.msra.mxu0 0.0
    %6408 = vmatprep.subr.mxu0 0.0
    %6409 = vmatpush1.msra.mxu0 0.0
    %6410 = vmatprep.subr.mxu0 0.0
    %6411 = vmatpush1.msra.mxu0 0.0
    %6412 = vmatprep.subr.mxu0 0.0
    %6413 = vmatpush1.msra.mxu0 0.0
    %6414 = vmatprep.subr.mxu0 0.0
    %6415 = vmatpush1.msra.mxu0 0.0
    %6416 = vmatprep.subr.mxu0 0.0
    %6417 = vmatpush1.msra.mxu0 0.0
    %6418 = vmatprep.subr.mxu0 0.0
    %6419 = vmatpush1.msra.mxu0 0.0
    %6420 = vmatprep.subr.mxu0 0.0
    %6421 = vmatpush1.msra.mxu0 0.0
    %6422 = vmatprep.subr.mxu0 0.0
    %6423 = vmatpush1.msra.mxu0 0.0
    %6424 = vmatprep.subr.mxu0 0.0
    %6425 = vmatpush1.msra.mxu0 0.0
    %6426 = vmatprep.subr.mxu0 0.0
    %6427 = vmatpush1.msra.mxu0 0.0
    %6428 = vmatprep.subr.mxu0 0.0
    %6429 = vmatpush1.msra.mxu0 0.0
    %6430 = vmatprep.subr.mxu0 0.0
    %6431 = vmatpush1.msra.mxu0 0.0
    %6432 = vmatprep.subr.mxu0 0.0
    %6433 = vmatpush1.msra.mxu0 0.0
    %6434 = vmatprep.subr.mxu0 0.0
    %6435 = vmatpush1.msra.mxu0 0.0
    %6436 = vmatprep.subr.mxu0 0.0
    %6437 = vmatpush1.msra.mxu0 0.0
    %6438 = vmatprep.subr.mxu0 0.0
    %6439 = vmatpush1.msra.mxu0 0.0
    %6440 = vmatprep.subr.mxu0 0.0
    %6441 = vmatpush1.msra.mxu0 0.0
    %6442 = vmatprep.subr.mxu0 0.0
    %6443 = vmatpush1.msra.mxu0 0.0
    %6444 = vmatprep.subr.mxu0 0.0
    %6445 = vmatpush1.msra.mxu0 0.0
    %6446 = vmatprep.subr.mxu0 0.0
    %6447 = vmatpush1.msra.mxu0 0.0
    %6448 = vmatprep.subr.mxu0 0.0
    %6449 = vmatpush1.msra.mxu0 0.0
    %6450 = vmatprep.subr.mxu0 0.0
    %6451 = vmatpush1.msra.mxu0 0.0
    %6452 = vmatprep.subr.mxu0 0.0
    %6453 = vmatpush1.msra.mxu0 0.0
    %6454 = vmatprep.subr.mxu0 0.0
    %6455 = vmatpush1.msra.mxu0 0.0
    %6456 = vmatprep.subr.mxu0 0.0
    %6457 = vmatpush1.msra.mxu0 0.0
    %6458 = vmatprep.mubr.f32.mxu0 0.0
    %6459 = vmatmul.mubr.f32.gmra.mrb[0].mxu0 %v6392
    %v6460 = vpop.f32.mrb[0].mxu0
    %v6461 = vadd.f32 %v86, %v6460
    %v6462 = vpop.f32.mrb[0].mxu0
    %6463 = vdwg.mxu0
    %s6464 = smul.f32 %s6094, 0.5
    %v6465 = vstv %s6464
    %v6466 = vmul.f32 %v6465, %v6461
    %v6467 = vadd.f32 %v6090, %v6466
    %v6469 = vsel %vm93, %v6467, 0
    %6471 = vmatprep.subr.mxu0 0.0
    %6472 = vmatpush1.msra.mxu0 %v57
    %6473 = vmatprep.subr.mxu0 0.0
    %6474 = vmatpush1.msra.mxu0 0.0
    %6475 = vmatprep.subr.mxu0 0.0
    %6476 = vmatpush1.msra.mxu0 0.0
    %6477 = vmatprep.subr.mxu0 0.0
    %6478 = vmatpush1.msra.mxu0 0.0
    %6479 = vmatprep.subr.mxu0 0.0
    %6480 = vmatpush1.msra.mxu0 0.0
    %6481 = vmatprep.subr.mxu0 0.0
    %6482 = vmatpush1.msra.mxu0 0.0
    %6483 = vmatprep.subr.mxu0 0.0
    %6484 = vmatpush1.msra.mxu0 0.0
    %6485 = vmatprep.subr.mxu0 0.0
    %6486 = vmatpush1.msra.mxu0 0.0
    %6487 = vmatprep.subr.mxu0 0.0
    %6488 = vmatpush1.msra.mxu0 0.0
    %6489 = vmatprep.subr.mxu0 0.0
    %6490 = vmatpush1.msra.mxu0 0.0
    %6491 = vmatprep.subr.mxu0 0.0
    %6492 = vmatpush1.msra.mxu0 0.0
    %6493 = vmatprep.subr.mxu0 0.0
    %6494 = vmatpush1.msra.mxu0 0.0
    %6495 = vmatprep.subr.mxu0 0.0
    %6496 = vmatpush1.msra.mxu0 0.0
    %6497 = vmatprep.subr.mxu0 0.0
    %6498 = vmatpush1.msra.mxu0 0.0
    %6499 = vmatprep.subr.mxu0 0.0
    %6500 = vmatpush1.msra.mxu0 0.0
    %6501 = vmatprep.subr.mxu0 0.0
    %6502 = vmatpush1.msra.mxu0 0.0
    %6503 = vmatprep.subr.mxu0 0.0
    %6504 = vmatpush1.msra.mxu0 0.0
    %6505 = vmatprep.subr.mxu0 0.0
    %6506 = vmatpush1.msra.mxu0 0.0
    %6507 = vmatprep.subr.mxu0 0.0
    %6508 = vmatpush1.msra.mxu0 0.0
    %6509 = vmatprep.subr.mxu0 0.0
    %6510 = vmatpush1.msra.mxu0 0.0
    %6511 = vmatprep.subr.mxu0 0.0
    %6512 = vmatpush1.msra.mxu0 0.0
    %6513 = vmatprep.subr.mxu0 0.0
    %6514 = vmatpush1.msra.mxu0 0.0
    %6515 = vmatprep.subr.mxu0 0.0
    %6516 = vmatpush1.msra.mxu0 0.0
    %6517 = vmatprep.subr.mxu0 0.0
    %6518 = vmatpush1.msra.mxu0 0.0
    %6519 = vmatprep.subr.mxu0 0.0
    %6520 = vmatpush1.msra.mxu0 0.0
    %6521 = vmatprep.subr.mxu0 0.0
    %6522 = vmatpush1.msra.mxu0 0.0
    %6523 = vmatprep.subr.mxu0 0.0
    %6524 = vmatpush1.msra.mxu0 0.0
    %6525 = vmatprep.subr.mxu0 0.0
    %6526 = vmatpush1.msra.mxu0 0.0
    %6527 = vmatprep.subr.mxu0 0.0
    %6528 = vmatpush1.msra.mxu0 0.0
    %6529 = vmatprep.subr.mxu0 0.0
    %6530 = vmatpush1.msra.mxu0 0.0
    %6531 = vmatprep.subr.mxu0 0.0
    %6532 = vmatpush1.msra.mxu0 0.0
    %6533 = vmatprep.subr.mxu0 0.0
    %6534 = vmatpush1.msra.mxu0 0.0
    %6535 = vmatprep.mubr.f32.mxu0 0.0
    %6536 = vmatmul.mubr.f32.gmra.mrb[0].mxu0 %v6469
    %v6537 = vpop.f32.mrb[0].mxu0
    %v6538 = vadd.f32 %v58, %v6537
    %v6539 = vpop.f32.mrb[0].mxu0
    %6540 = vdwg.mxu0
    %v6541 = vtanh.pop %v6538
    %v6543 = vsel %vm168, %v6541, 0
    %6545 = vmatprep.subr.mxu0 0.0
    %6546 = vmatpush1.msra.mxu0 %v59
    %6547 = vmatprep.subr.mxu0 0.0
    %6548 = vmatpush1.msra.mxu0 %v60
    %6549 = vmatprep.subr.mxu0 0.0
    %6550 = vmatpush1.msra.mxu0 %v61
    %6551 = vmatprep.subr.mxu0 0.0
    %6552 = vmatpush1.msra.mxu0 %v62
    %6553 = vmatprep.subr.mxu0 0.0
    %6554 = vmatpush1.msra.mxu0 %v63
    %6555 = vmatprep.subr.mxu0 0.0
    %6556 = vmatpush1.msra.mxu0 0.0
    %6557 = vmatprep.subr.mxu0 0.0
    %6558 = vmatpush1.msra.mxu0 0.0
    %6559 = vmatprep.subr.mxu0 0.0
    %6560 = vmatpush1.msra.mxu0 0.0
    %6561 = vmatprep.subr.mxu0 0.0
    %6562 = vmatpush1.msra.mxu0 0.0
    %6563 = vmatprep.subr.mxu0 0.0
    %6564 = vmatpush1.msra.mxu0 0.0
    %6565 = vmatprep.subr.mxu0 0.0
    %6566 = vmatpush1.msra.mxu0 0.0
    %6567 = vmatprep.subr.mxu0 0.0
    %6568 = vmatpush1.msra.mxu0 0.0
    %6569 = vmatprep.subr.mxu0 0.0
    %6570 = vmatpush1.msra.mxu0 0.0
    %6571 = vmatprep.subr.mxu0 0.0
    %6572 = vmatpush1.msra.mxu0 0.0
    %6573 = vmatprep.subr.mxu0 0.0
    %6574 = vmatpush1.msra.mxu0 0.0
    %6575 = vmatprep.subr.mxu0 0.0
    %6576 = vmatpush1.msra.mxu0 0.0
    %6577 = vmatprep.subr.mxu0 0.0
    %6578 = vmatpush1.msra.mxu0 0.0
    %6579 = vmatprep.subr.mxu0 0.0
    %6580 = vmatpush1.msra.mxu0 0.0
    %6581 = vmatprep.subr.mxu0 0.0
    %6582 = vmatpush1.msra.mxu0 0.0
    %6583 = vmatprep.subr.mxu0 0.0
    %6584 = vmatpush1.msra.mxu0 0.0
    %6585 = vmatprep.subr.mxu0 0.0
    %6586 = vmatpush1.msra.mxu0 0.0
    %6587 = vmatprep.subr.mxu0 0.0
    %6588 = vmatpush1.msra.mxu0 0.0
    %6589 = vmatprep.subr.mxu0 0.0
    %6590 = vmatpush1.msra.mxu0 0.0
    %6591 = vmatprep.subr.mxu0 0.0
    %6592 = vmatpush1.msra.mxu0 0.0
    %6593 = vmatprep.subr.mxu0 0.0
    %6594 = vmatpush1.msra.mxu0 0.0
    %6595 = vmatprep.subr.mxu0 0.0
    %6596 = vmatpush1.msra.mxu0 0.0
    %6597 = vmatprep.subr.mxu0 0.0
    %6598 = vmatpush1.msra.mxu0 0.0
    %6599 = vmatprep.subr.mxu0 0.0
    %6600 = vmatpush1.msra.mxu0 0.0
    %6601 = vmatprep.subr.mxu0 0.0
    %6602 = vmatpush1.msra.mxu0 0.0
    %6603 = vmatprep.subr.mxu0 0.0
    %6604 = vmatpush1.msra.mxu0 0.0
    %6605 = vmatprep.subr.mxu0 0.0
    %6606 = vmatpush1.msra.mxu0 0.0
    %6607 = vmatprep.subr.mxu0 0.0
    %6608 = vmatpush1.msra.mxu0 0.0
    %6609 = vmatprep.mubr.f32.mxu0 0.0
    %6610 = vmatmul.mubr.f32.gmra.mrb[0].mxu0 %v6543
    %v6611 = vpop.f32.mrb[0].mxu0
    %v6612 = vadd.f32 %v76, %v6611
    %v6613 = vpop.f32.mrb[0].mxu0
    %6614 = vdwg.mxu0
    %v6615 = vtanh.pop %v6612
    %v6617 = vsel %vm168, %v6615, 0
    %6619 = vmatprep.subr.mxu0 0.0
    %6620 = vmatpush1.msra.mxu0 %v65
    %6621 = vmatprep.subr.mxu0 0.0
    %6622 = vmatpush1.msra.mxu0 %v66
    %6623 = vmatprep.subr.mxu0 0.0
    %6624 = vmatpush1.msra.mxu0 %v67
    %6625 = vmatprep.subr.mxu0 0.0
    %6626 = vmatpush1.msra.mxu0 %v68
    %6627 = vmatprep.subr.mxu0 0.0
    %6628 = vmatpush1.msra.mxu0 %v69
    %6629 = vmatprep.subr.mxu0 0.0
    %6630 = vmatpush1.msra.mxu0 0.0
    %6631 = vmatprep.subr.mxu0 0.0
    %6632 = vmatpush1.msra.mxu0 0.0
    %6633 = vmatprep.subr.mxu0 0.0
    %6634 = vmatpush1.msra.mxu0 0.0
    %6635 = vmatprep.subr.mxu0 0.0
    %6636 = vmatpush1.msra.mxu0 0.0
    %6637 = vmatprep.subr.mxu0 0.0
    %6638 = vmatpush1.msra.mxu0 0.0
    %6639 = vmatprep.subr.mxu0 0.0
    %6640 = vmatpush1.msra.mxu0 0.0
    %6641 = vmatprep.subr.mxu0 0.0
    %6642 = vmatpush1.msra.mxu0 0.0
    %6643 = vmatprep.subr.mxu0 0.0
    %6644 = vmatpush1.msra.mxu0 0.0
    %6645 = vmatprep.subr.mxu0 0.0
    %6646 = vmatpush1.msra.mxu0 0.0
    %6647 = vmatprep.subr.mxu0 0.0
    %6648 = vmatpush1.msra.mxu0 0.0
    %6649 = vmatprep.subr.mxu0 0.0
    %6650 = vmatpush1.msra.mxu0 0.0
    %6651 = vmatprep.subr.mxu0 0.0
    %6652 = vmatpush1.msra.mxu0 0.0
    %6653 = vmatprep.subr.mxu0 0.0
    %6654 = vmatpush1.msra.mxu0 0.0
    %6655 = vmatprep.subr.mxu0 0.0
    %6656 = vmatpush1.msra.mxu0 0.0
    %6657 = vmatprep.subr.mxu0 0.0
    %6658 = vmatpush1.msra.mxu0 0.0
    %6659 = vmatprep.subr.mxu0 0.0
    %6660 = vmatpush1.msra.mxu0 0.0
    %6661 = vmatprep.subr.mxu0 0.0
    %6662 = vmatpush1.msra.mxu0 0.0
    %6663 = vmatprep.subr.mxu0 0.0
    %6664 = vmatpush1.msra.mxu0 0.0
    %6665 = vmatprep.subr.mxu0 0.0
    %6666 = vmatpush1.msra.mxu0 0.0
    %6667 = vmatprep.subr.mxu0 0.0
    %6668 = vmatpush1.msra.mxu0 0.0
    %6669 = vmatprep.subr.mxu0 0.0
    %6670 = vmatpush1.msra.mxu0 0.0
    %6671 = vmatprep.subr.mxu0 0.0
    %6672 = vmatpush1.msra.mxu0 0.0
    %6673 = vmatprep.subr.mxu0 0.0
    %6674 = vmatpush1.msra.mxu0 0.0
    %6675 = vmatprep.subr.mxu0 0.0
    %6676 = vmatpush1.msra.mxu0 0.0
    %6677 = vmatprep.subr.mxu0 0.0
    %6678 = vmatpush1.msra.mxu0 0.0
    %6679 = vmatprep.subr.mxu0 0.0
    %6680 = vmatpush1.msra.mxu0 0.0
    %6681 = vmatprep.subr.mxu0 0.0
    %6682 = vmatpush1.msra.mxu0 0.0
    %6683 = vmatprep.mubr.f32.mxu0 0.0
    %6684 = vmatmul.mubr.f32.gmra.mrb[0].mxu0 %v6617
    %v6685 = vpop.f32.mrb[0].mxu0
    %v6686 = vadd.f32 %v78, %v6685
    %v6687 = vpop.f32.mrb[0].mxu0
    %6688 = vdwg.mxu0
    %v6689 = vtanh.pop %v6686
    %v6691 = vsel %vm168, %v6689, 0
    %6693 = vmatprep.subr.mxu0 0.0
    %6694 = vmatpush1.msra.mxu0 %v71
    %6695 = vmatprep.subr.mxu0 0.0
    %6696 = vmatpush1.msra.mxu0 %v72
    %6697 = vmatprep.subr.mxu0 0.0
    %6698 = vmatpush1.msra.mxu0 %v73
    %6699 = vmatprep.subr.mxu0 0.0
    %6700 = vmatpush1.msra.mxu0 %v74
    %6701 = vmatprep.subr.mxu0 0.0
    %6702 = vmatpush1.msra.mxu0 %v75
    %6703 = vmatprep.subr.mxu0 0.0
    %6704 = vmatpush1.msra.mxu0 0.0
    %6705 = vmatprep.subr.mxu0 0.0
    %6706 = vmatpush1.msra.mxu0 0.0
    %6707 = vmatprep.subr.mxu0 0.0
    %6708 = vmatpush1.msra.mxu0 0.0
    %6709 = vmatprep.subr.mxu0 0.0
    %6710 = vmatpush1.msra.mxu0 0.0
    %6711 = vmatprep.subr.mxu0 0.0
    %6712 = vmatpush1.msra.mxu0 0.0
    %6713 = vmatprep.subr.mxu0 0.0
    %6714 = vmatpush1.msra.mxu0 0.0
    %6715 = vmatprep.subr.mxu0 0.0
    %6716 = vmatpush1.msra.mxu0 0.0
    %6717 = vmatprep.subr.mxu0 0.0
    %6718 = vmatpush1.msra.mxu0 0.0
    %6719 = vmatprep.subr.mxu0 0.0
    %6720 = vmatpush1.msra.mxu0 0.0
    %6721 = vmatprep.subr.mxu0 0.0
    %6722 = vmatpush1.msra.mxu0 0.0
    %6723 = vmatprep.subr.mxu0 0.0
    %6724 = vmatpush1.msra.mxu0 0.0
    %6725 = vmatprep.subr.mxu0 0.0
    %6726 = vmatpush1.msra.mxu0 0.0
    %6727 = vmatprep.subr.mxu0 0.0
    %6728 = vmatpush1.msra.mxu0 0.0
    %6729 = vmatprep.subr.mxu0 0.0
    %6730 = vmatpush1.msra.mxu0 0.0
    %6731 = vmatprep.subr.mxu0 0.0
    %6732 = vmatpush1.msra.mxu0 0.0
    %6733 = vmatprep.subr.mxu0 0.0
    %6734 = vmatpush1.msra.mxu0 0.0
    %6735 = vmatprep.subr.mxu0 0.0
    %6736 = vmatpush1.msra.mxu0 0.0
    %6737 = vmatprep.subr.mxu0 0.0
    %6738 = vmatpush1.msra.mxu0 0.0
    %6739 = vmatprep.subr.mxu0 0.0
    %6740 = vmatpush1.msra.mxu0 0.0
    %6741 = vmatprep.subr.mxu0 0.0
    %6742 = vmatpush1.msra.mxu0 0.0
    %6743 = vmatprep.subr.mxu0 0.0
    %6744 = vmatpush1.msra.mxu0 0.0
    %6745 = vmatprep.subr.mxu0 0.0
    %6746 = vmatpush1.msra.mxu0 0.0
    %6747 = vmatprep.subr.mxu0 0.0
    %6748 = vmatpush1.msra.mxu0 0.0
    %6749 = vmatprep.subr.mxu0 0.0
    %6750 = vmatpush1.msra.mxu0 0.0
    %6751 = vmatprep.subr.mxu0 0.0
    %6752 = vmatpush1.msra.mxu0 0.0
    %6753 = vmatprep.subr.mxu0 0.0
    %6754 = vmatpush1.msra.mxu0 0.0
    %6755 = vmatprep.subr.mxu0 0.0
    %6756 = vmatpush1.msra.mxu0 0.0
    %6757 = vmatprep.mubr.f32.mxu0 0.0
    %6758 = vmatmul.mubr.f32.gmra.mrb[0].mxu0 %v6691
    %v6759 = vpop.f32.mrb[0].mxu0
    %v6760 = vadd.f32 %v80, %v6759
    %v6761 = vpop.f32.mrb[0].mxu0
    %6762 = vdwg.mxu0
    %v6763 = vtanh.pop %v6760
    %v6765 = vsel %vm168, %v6763, 0
    %6767 = vmatprep.subr.mxu0 0.0
    %6768 = vmatpush1.msra.mxu0 %v81
    %6769 = vmatprep.subr.mxu0 0.0
    %6770 = vmatpush1.msra.mxu0 %v82
    %6771 = vmatprep.subr.mxu0 0.0
    %6772 = vmatpush1.msra.mxu0 %v83
    %6773 = vmatprep.subr.mxu0 0.0
    %6774 = vmatpush1.msra.mxu0 %v84
    %6775 = vmatprep.subr.mxu0 0.0
    %6776 = vmatpush1.msra.mxu0 %v85
    %6777 = vmatprep.subr.mxu0 0.0
    %6778 = vmatpush1.msra.mxu0 0.0
    %6779 = vmatprep.subr.mxu0 0.0
    %6780 = vmatpush1.msra.mxu0 0.0
    %6781 = vmatprep.subr.mxu0 0.0
    %6782 = vmatpush1.msra.mxu0 0.0
    %6783 = vmatprep.subr.mxu0 0.0
    %6784 = vmatpush1.msra.mxu0 0.0
    %6785 = vmatprep.subr.mxu0 0.0
    %6786 = vmatpush1.msra.mxu0 0.0
    %6787 = vmatprep.subr.mxu0 0.0
    %6788 = vmatpush1.msra.mxu0 0.0
    %6789 = vmatprep.subr.mxu0 0.0
    %6790 = vmatpush1.msra.mxu0 0.0
    %6791 = vmatprep.subr.mxu0 0.0
    %6792 = vmatpush1.msra.mxu0 0.0
    %6793 = vmatprep.subr.mxu0 0.0
    %6794 = vmatpush1.msra.mxu0 0.0
    %6795 = vmatprep.subr.mxu0 0.0
    %6796 = vmatpush1.msra.mxu0 0.0
    %6797 = vmatprep.subr.mxu0 0.0
    %6798 = vmatpush1.msra.mxu0 0.0
    %6799 = vmatprep.subr.mxu0 0.0
    %6800 = vmatpush1.msra.mxu0 0.0
    %6801 = vmatprep.subr.mxu0 0.0
    %6802 = vmatpush1.msra.mxu0 0.0
    %6803 = vmatprep.subr.mxu0 0.0
    %6804 = vmatpush1.msra.mxu0 0.0
    %6805 = vmatprep.subr.mxu0 0.0
    %6806 = vmatpush1.msra.mxu0 0.0
    %6807 = vmatprep.subr.mxu0 0.0
    %6808 = vmatpush1.msra.mxu0 0.0
    %6809 = vmatprep.subr.mxu0 0.0
    %6810 = vmatpush1.msra.mxu0 0.0
    %6811 = vmatprep.subr.mxu0 0.0
    %6812 = vmatpush1.msra.mxu0 0.0
    %6813 = vmatprep.subr.mxu0 0.0
    %6814 = vmatpush1.msra.mxu0 0.0
    %6815 = vmatprep.subr.mxu0 0.0
    %6816 = vmatpush1.msra.mxu0 0.0
    %6817 = vmatprep.subr.mxu0 0.0
    %6818 = vmatpush1.msra.mxu0 0.0
    %6819 = vmatprep.subr.mxu0 0.0
    %6820 = vmatpush1.msra.mxu0 0.0
    %6821 = vmatprep.subr.mxu0 0.0
    %6822 = vmatpush1.msra.mxu0 0.0
    %6823 = vmatprep.subr.mxu0 0.0
    %6824 = vmatpush1.msra.mxu0 0.0
    %6825 = vmatprep.subr.mxu0 0.0
    %6826 = vmatpush1.msra.mxu0 0.0
    %6827 = vmatprep.subr.mxu0 0.0
    %6828 = vmatpush1.msra.mxu0 0.0
    %6829 = vmatprep.subr.mxu0 0.0
    %6830 = vmatpush1.msra.mxu0 0.0
    %6831 = vmatprep.mubr.f32.mxu0 0.0
    %6832 = vmatmul.mubr.f32.gmra.mrb[0].mxu0 %v6765
    %v6833 = vpop.f32.mrb[0].mxu0
    %v6834 = vadd.f32 %v86, %v6833
    %v6835 = vpop.f32.mrb[0].mxu0
    %6836 = vdwg.mxu0
    %v6837 = vmul.f32 %v6465, %v6834
    %v6838 = vadd.f32 %v6090, %v6837
    %v6840 = vsel %vm93, %v6838, 0
    %6842 = vmatprep.subr.mxu0 0.0
    %6843 = vmatpush1.msra.mxu0 %v57
    %6844 = vmatprep.subr.mxu0 0.0
    %6845 = vmatpush1.msra.mxu0 0.0
    %6846 = vmatprep.subr.mxu0 0.0
    %6847 = vmatpush1.msra.mxu0 0.0
    %6848 = vmatprep.subr.mxu0 0.0
    %6849 = vmatpush1.msra.mxu0 0.0
    %6850 = vmatprep.subr.mxu0 0.0
    %6851 = vmatpush1.msra.mxu0 0.0
    %6852 = vmatprep.subr.mxu0 0.0
    %6853 = vmatpush1.msra.mxu0 0.0
    %6854 = vmatprep.subr.mxu0 0.0
    %6855 = vmatpush1.msra.mxu0 0.0
    %6856 = vmatprep.subr.mxu0 0.0
    %6857 = vmatpush1.msra.mxu0 0.0
    %6858 = vmatprep.subr.mxu0 0.0
    %6859 = vmatpush1.msra.mxu0 0.0
    %6860 = vmatprep.subr.mxu0 0.0
    %6861 = vmatpush1.msra.mxu0 0.0
    %6862 = vmatprep.subr.mxu0 0.0
    %6863 = vmatpush1.msra.mxu0 0.0
    %6864 = vmatprep.subr.mxu0 0.0
    %6865 = vmatpush1.msra.mxu0 0.0
    %6866 = vmatprep.subr.mxu0 0.0
    %6867 = vmatpush1.msra.mxu0 0.0
    %6868 = vmatprep.subr.mxu0 0.0
    %6869 = vmatpush1.msra.mxu0 0.0
    %6870 = vmatprep.subr.mxu0 0.0
    %6871 = vmatpush1.msra.mxu0 0.0
    %6872 = vmatprep.subr.mxu0 0.0
    %6873 = vmatpush1.msra.mxu0 0.0
    %6874 = vmatprep.subr.mxu0 0.0
    %6875 = vmatpush1.msra.mxu0 0.0
    %6876 = vmatprep.subr.mxu0 0.0
    %6877 = vmatpush1.msra.mxu0 0.0
    %6878 = vmatprep.subr.mxu0 0.0
    %6879 = vmatpush1.msra.mxu0 0.0
    %6880 = vmatprep.subr.mxu0 0.0
    %6881 = vmatpush1.msra.mxu0 0.0
    %6882 = vmatprep.subr.mxu0 0.0
    %6883 = vmatpush1.msra.mxu0 0.0
    %6884 = vmatprep.subr.mxu0 0.0
    %6885 = vmatpush1.msra.mxu0 0.0
    %6886 = vmatprep.subr.mxu0 0.0
    %6887 = vmatpush1.msra.mxu0 0.0
    %6888 = vmatprep.subr.mxu0 0.0
    %6889 = vmatpush1.msra.mxu0 0.0
    %6890 = vmatprep.subr.mxu0 0.0
    %6891 = vmatpush1.msra.mxu0 0.0
    %6892 = vmatprep.subr.mxu0 0.0
    %6893 = vmatpush1.msra.mxu0 0.0
    %6894 = vmatprep.subr.mxu0 0.0
    %6895 = vmatpush1.msra.mxu0 0.0
    %6896 = vmatprep.subr.mxu0 0.0
    %6897 = vmatpush1.msra.mxu0 0.0
    %6898 = vmatprep.subr.mxu0 0.0
    %6899 = vmatpush1.msra.mxu0 0.0
    %6900 = vmatprep.subr.mxu0 0.0
    %6901 = vmatpush1.msra.mxu0 0.0
    %6902 = vmatprep.subr.mxu0 0.0
    %6903 = vmatpush1.msra.mxu0 0.0
    %6904 = vmatprep.subr.mxu0 0.0
    %6905 = vmatpush1.msra.mxu0 0.0
    %6906 = vmatprep.mubr.f32.mxu0 0.0
    %6907 = vmatmul.mubr.f32.gmra.mrb[0].mxu0 %v6840
    %v6908 = vpop.f32.mrb[0].mxu0
    %v6909 = vadd.f32 %v58, %v6908
    %v6910 = vpop.f32.mrb[0].mxu0
    %6911 = vdwg.mxu0
    %v6912 = vtanh.pop %v6909
    %v6914 = vsel %vm168, %v6912, 0
    %6916 = vmatprep.subr.mxu0 0.0
    %6917 = vmatpush1.msra.mxu0 %v59
    %6918 = vmatprep.subr.mxu0 0.0
    %6919 = vmatpush1.msra.mxu0 %v60
    %6920 = vmatprep.subr.mxu0 0.0
    %6921 = vmatpush1.msra.mxu0 %v61
    %6922 = vmatprep.subr.mxu0 0.0
    %6923 = vmatpush1.msra.mxu0 %v62
    %6924 = vmatprep.subr.mxu0 0.0
    %6925 = vmatpush1.msra.mxu0 %v63
    %6926 = vmatprep.subr.mxu0 0.0
    %6927 = vmatpush1.msra.mxu0 0.0
    %6928 = vmatprep.subr.mxu0 0.0
    %6929 = vmatpush1.msra.mxu0 0.0
    %6930 = vmatprep.subr.mxu0 0.0
    %6931 = vmatpush1.msra.mxu0 0.0
    %6932 = vmatprep.subr.mxu0 0.0
    %6933 = vmatpush1.msra.mxu0 0.0
    %6934 = vmatprep.subr.mxu0 0.0
    %6935 = vmatpush1.msra.mxu0 0.0
    %6936 = vmatprep.subr.mxu0 0.0
    %6937 = vmatpush1.msra.mxu0 0.0
    %6938 = vmatprep.subr.mxu0 0.0
    %6939 = vmatpush1.msra.mxu0 0.0
    %6940 = vmatprep.subr.mxu0 0.0
    %6941 = vmatpush1.msra.mxu0 0.0
    %6942 = vmatprep.subr.mxu0 0.0
    %6943 = vmatpush1.msra.mxu0 0.0
    %6944 = vmatprep.subr.mxu0 0.0
    %6945 = vmatpush1.msra.mxu0 0.0
    %6946 = vmatprep.subr.mxu0 0.0
    %6947 = vmatpush1.msra.mxu0 0.0
    %6948 = vmatprep.subr.mxu0 0.0
    %6949 = vmatpush1.msra.mxu0 0.0
    %6950 = vmatprep.subr.mxu0 0.0
    %6951 = vmatpush1.msra.mxu0 0.0
    %6952 = vmatprep.subr.mxu0 0.0
    %6953 = vmatpush1.msra.mxu0 0.0
    %6954 = vmatprep.subr.mxu0 0.0
    %6955 = vmatpush1.msra.mxu0 0.0
    %6956 = vmatprep.subr.mxu0 0.0
    %6957 = vmatpush1.msra.mxu0 0.0
    %6958 = vmatprep.subr.mxu0 0.0
    %6959 = vmatpush1.msra.mxu0 0.0
    %6960 = vmatprep.subr.mxu0 0.0
    %6961 = vmatpush1.msra.mxu0 0.0
    %6962 = vmatprep.subr.mxu0 0.0
    %6963 = vmatpush1.msra.mxu0 0.0
    %6964 = vmatprep.subr.mxu0 0.0
    %6965 = vmatpush1.msra.mxu0 0.0
    %6966 = vmatprep.subr.mxu0 0.0
    %6967 = vmatpush1.msra.mxu0 0.0
    %6968 = vmatprep.subr.mxu0 0.0
    %6969 = vmatpush1.msra.mxu0 0.0
    %6970 = vmatprep.subr.mxu0 0.0
    %6971 = vmatpush1.msra.mxu0 0.0
    %6972 = vmatprep.subr.mxu0 0.0
    %6973 = vmatpush1.msra.mxu0 0.0
    %6974 = vmatprep.subr.mxu0 0.0
    %6975 = vmatpush1.msra.mxu0 0.0
    %6976 = vmatprep.subr.mxu0 0.0
    %6977 = vmatpush1.msra.mxu0 0.0
    %6978 = vmatprep.subr.mxu0 0.0
    %6979 = vmatpush1.msra.mxu0 0.0
    %6980 = vmatprep.mubr.f32.mxu0 0.0
    %6981 = vmatmul.mubr.f32.gmra.mrb[0].mxu0 %v6914
    %v6982 = vpop.f32.mrb[0].mxu0
    %v6983 = vadd.f32 %v76, %v6982
    %v6984 = vpop.f32.mrb[0].mxu0
    %6985 = vdwg.mxu0
    %v6986 = vtanh.pop %v6983
    %v6988 = vsel %vm168, %v6986, 0
    %6990 = vmatprep.subr.mxu0 0.0
    %6991 = vmatpush1.msra.mxu0 %v65
    %6992 = vmatprep.subr.mxu0 0.0
    %6993 = vmatpush1.msra.mxu0 %v66
    %6994 = vmatprep.subr.mxu0 0.0
    %6995 = vmatpush1.msra.mxu0 %v67
    %6996 = vmatprep.subr.mxu0 0.0
    %6997 = vmatpush1.msra.mxu0 %v68
    %6998 = vmatprep.subr.mxu0 0.0
    %6999 = vmatpush1.msra.mxu0 %v69
    %7000 = vmatprep.subr.mxu0 0.0
    %7001 = vmatpush1.msra.mxu0 0.0
    %7002 = vmatprep.subr.mxu0 0.0
    %7003 = vmatpush1.msra.mxu0 0.0
    %7004 = vmatprep.subr.mxu0 0.0
    %7005 = vmatpush1.msra.mxu0 0.0
    %7006 = vmatprep.subr.mxu0 0.0
    %7007 = vmatpush1.msra.mxu0 0.0
    %7008 = vmatprep.subr.mxu0 0.0
    %7009 = vmatpush1.msra.mxu0 0.0
    %7010 = vmatprep.subr.mxu0 0.0
    %7011 = vmatpush1.msra.mxu0 0.0
    %7012 = vmatprep.subr.mxu0 0.0
    %7013 = vmatpush1.msra.mxu0 0.0
    %7014 = vmatprep.subr.mxu0 0.0
    %7015 = vmatpush1.msra.mxu0 0.0
    %7016 = vmatprep.subr.mxu0 0.0
    %7017 = vmatpush1.msra.mxu0 0.0
    %7018 = vmatprep.subr.mxu0 0.0
    %7019 = vmatpush1.msra.mxu0 0.0
    %7020 = vmatprep.subr.mxu0 0.0
    %7021 = vmatpush1.msra.mxu0 0.0
    %7022 = vmatprep.subr.mxu0 0.0
    %7023 = vmatpush1.msra.mxu0 0.0
    %7024 = vmatprep.subr.mxu0 0.0
    %7025 = vmatpush1.msra.mxu0 0.0
    %7026 = vmatprep.subr.mxu0 0.0
    %7027 = vmatpush1.msra.mxu0 0.0
    %7028 = vmatprep.subr.mxu0 0.0
    %7029 = vmatpush1.msra.mxu0 0.0
    %7030 = vmatprep.subr.mxu0 0.0
    %7031 = vmatpush1.msra.mxu0 0.0
    %7032 = vmatprep.subr.mxu0 0.0
    %7033 = vmatpush1.msra.mxu0 0.0
    %7034 = vmatprep.subr.mxu0 0.0
    %7035 = vmatpush1.msra.mxu0 0.0
    %7036 = vmatprep.subr.mxu0 0.0
    %7037 = vmatpush1.msra.mxu0 0.0
    %7038 = vmatprep.subr.mxu0 0.0
    %7039 = vmatpush1.msra.mxu0 0.0
    %7040 = vmatprep.subr.mxu0 0.0
    %7041 = vmatpush1.msra.mxu0 0.0
    %7042 = vmatprep.subr.mxu0 0.0
    %7043 = vmatpush1.msra.mxu0 0.0
    %7044 = vmatprep.subr.mxu0 0.0
    %7045 = vmatpush1.msra.mxu0 0.0
    %7046 = vmatprep.subr.mxu0 0.0
    %7047 = vmatpush1.msra.mxu0 0.0
    %7048 = vmatprep.subr.mxu0 0.0
    %7049 = vmatpush1.msra.mxu0 0.0
    %7050 = vmatprep.subr.mxu0 0.0
    %7051 = vmatpush1.msra.mxu0 0.0
    %7052 = vmatprep.subr.mxu0 0.0
    %7053 = vmatpush1.msra.mxu0 0.0
    %7054 = vmatprep.mubr.f32.mxu0 0.0
    %7055 = vmatmul.mubr.f32.gmra.mrb[0].mxu0 %v6988
    %v7056 = vpop.f32.mrb[0].mxu0
    %v7057 = vadd.f32 %v78, %v7056
    %v7058 = vpop.f32.mrb[0].mxu0
    %7059 = vdwg.mxu0
    %v7060 = vtanh.pop %v7057
    %v7062 = vsel %vm168, %v7060, 0
    %7064 = vmatprep.subr.mxu0 0.0
    %7065 = vmatpush1.msra.mxu0 %v71
    %7066 = vmatprep.subr.mxu0 0.0
    %7067 = vmatpush1.msra.mxu0 %v72
    %7068 = vmatprep.subr.mxu0 0.0
    %7069 = vmatpush1.msra.mxu0 %v73
    %7070 = vmatprep.subr.mxu0 0.0
    %7071 = vmatpush1.msra.mxu0 %v74
    %7072 = vmatprep.subr.mxu0 0.0
    %7073 = vmatpush1.msra.mxu0 %v75
    %7074 = vmatprep.subr.mxu0 0.0
    %7075 = vmatpush1.msra.mxu0 0.0
    %7076 = vmatprep.subr.mxu0 0.0
    %7077 = vmatpush1.msra.mxu0 0.0
    %7078 = vmatprep.subr.mxu0 0.0
    %7079 = vmatpush1.msra.mxu0 0.0
    %7080 = vmatprep.subr.mxu0 0.0
    %7081 = vmatpush1.msra.mxu0 0.0
    %7082 = vmatprep.subr.mxu0 0.0
    %7083 = vmatpush1.msra.mxu0 0.0
    %7084 = vmatprep.subr.mxu0 0.0
    %7085 = vmatpush1.msra.mxu0 0.0
    %7086 = vmatprep.subr.mxu0 0.0
    %7087 = vmatpush1.msra.mxu0 0.0
    %7088 = vmatprep.subr.mxu0 0.0
    %7089 = vmatpush1.msra.mxu0 0.0
    %7090 = vmatprep.subr.mxu0 0.0
    %7091 = vmatpush1.msra.mxu0 0.0
    %7092 = vmatprep.subr.mxu0 0.0
    %7093 = vmatpush1.msra.mxu0 0.0
    %7094 = vmatprep.subr.mxu0 0.0
    %7095 = vmatpush1.msra.mxu0 0.0
    %7096 = vmatprep.subr.mxu0 0.0
    %7097 = vmatpush1.msra.mxu0 0.0
    %7098 = vmatprep.subr.mxu0 0.0
    %7099 = vmatpush1.msra.mxu0 0.0
    %7100 = vmatprep.subr.mxu0 0.0
    %7101 = vmatpush1.msra.mxu0 0.0
    %7102 = vmatprep.subr.mxu0 0.0
    %7103 = vmatpush1.msra.mxu0 0.0
    %7104 = vmatprep.subr.mxu0 0.0
    %7105 = vmatpush1.msra.mxu0 0.0
    %7106 = vmatprep.subr.mxu0 0.0
    %7107 = vmatpush1.msra.mxu0 0.0
    %7108 = vmatprep.subr.mxu0 0.0
    %7109 = vmatpush1.msra.mxu0 0.0
    %7110 = vmatprep.subr.mxu0 0.0
    %7111 = vmatpush1.msra.mxu0 0.0
    %7112 = vmatprep.subr.mxu0 0.0
    %7113 = vmatpush1.msra.mxu0 0.0
    %7114 = vmatprep.subr.mxu0 0.0
    %7115 = vmatpush1.msra.mxu0 0.0
    %7116 = vmatprep.subr.mxu0 0.0
    %7117 = vmatpush1.msra.mxu0 0.0
    %7118 = vmatprep.subr.mxu0 0.0
    %7119 = vmatpush1.msra.mxu0 0.0
    %7120 = vmatprep.subr.mxu0 0.0
    %7121 = vmatpush1.msra.mxu0 0.0
    %7122 = vmatprep.subr.mxu0 0.0
    %7123 = vmatpush1.msra.mxu0 0.0
    %7124 = vmatprep.subr.mxu0 0.0
    %7125 = vmatpush1.msra.mxu0 0.0
    %7126 = vmatprep.subr.mxu0 0.0
    %7127 = vmatpush1.msra.mxu0 0.0
    %7128 = vmatprep.mubr.f32.mxu0 0.0
    %7129 = vmatmul.mubr.f32.gmra.mrb[0].mxu0 %v7062
    %v7130 = vpop.f32.mrb[0].mxu0
    %v7131 = vadd.f32 %v80, %v7130
    %v7132 = vpop.f32.mrb[0].mxu0
    %7133 = vdwg.mxu0
    %v7134 = vtanh.pop %v7131
    %v7136 = vsel %vm168, %v7134, 0
    %7138 = vmatprep.subr.mxu0 0.0
    %7139 = vmatpush1.msra.mxu0 %v81
    %7140 = vmatprep.subr.mxu0 0.0
    %7141 = vmatpush1.msra.mxu0 %v82
    %7142 = vmatprep.subr.mxu0 0.0
    %7143 = vmatpush1.msra.mxu0 %v83
    %7144 = vmatprep.subr.mxu0 0.0
    %7145 = vmatpush1.msra.mxu0 %v84
    %7146 = vmatprep.subr.mxu0 0.0
    %7147 = vmatpush1.msra.mxu0 %v85
    %7148 = vmatprep.subr.mxu0 0.0
    %7149 = vmatpush1.msra.mxu0 0.0
    %7150 = vmatprep.subr.mxu0 0.0
    %7151 = vmatpush1.msra.mxu0 0.0
    %7152 = vmatprep.subr.mxu0 0.0
    %7153 = vmatpush1.msra.mxu0 0.0
    %7154 = vmatprep.subr.mxu0 0.0
    %7155 = vmatpush1.msra.mxu0 0.0
    %7156 = vmatprep.subr.mxu0 0.0
    %7157 = vmatpush1.msra.mxu0 0.0
    %7158 = vmatprep.subr.mxu0 0.0
    %7159 = vmatpush1.msra.mxu0 0.0
    %7160 = vmatprep.subr.mxu0 0.0
    %7161 = vmatpush1.msra.mxu0 0.0
    %7162 = vmatprep.subr.mxu0 0.0
    %7163 = vmatpush1.msra.mxu0 0.0
    %7164 = vmatprep.subr.mxu0 0.0
    %7165 = vmatpush1.msra.mxu0 0.0
    %7166 = vmatprep.subr.mxu0 0.0
    %7167 = vmatpush1.msra.mxu0 0.0
    %7168 = vmatprep.subr.mxu0 0.0
    %7169 = vmatpush1.msra.mxu0 0.0
    %7170 = vmatprep.subr.mxu0 0.0
    %7171 = vmatpush1.msra.mxu0 0.0
    %7172 = vmatprep.subr.mxu0 0.0
    %7173 = vmatpush1.msra.mxu0 0.0
    %7174 = vmatprep.subr.mxu0 0.0
    %7175 = vmatpush1.msra.mxu0 0.0
    %7176 = vmatprep.subr.mxu0 0.0
    %7177 = vmatpush1.msra.mxu0 0.0
    %7178 = vmatprep.subr.mxu0 0.0
    %7179 = vmatpush1.msra.mxu0 0.0
    %7180 = vmatprep.subr.mxu0 0.0
    %7181 = vmatpush1.msra.mxu0 0.0
    %7182 = vmatprep.subr.mxu0 0.0
    %7183 = vmatpush1.msra.mxu0 0.0
    %7184 = vmatprep.subr.mxu0 0.0
    %7185 = vmatpush1.msra.mxu0 0.0
    %7186 = vmatprep.subr.mxu0 0.0
    %7187 = vmatpush1.msra.mxu0 0.0
    %7188 = vmatprep.subr.mxu0 0.0
    %7189 = vmatpush1.msra.mxu0 0.0
    %7190 = vmatprep.subr.mxu0 0.0
    %7191 = vmatpush1.msra.mxu0 0.0
    %7192 = vmatprep.subr.mxu0 0.0
    %7193 = vmatpush1.msra.mxu0 0.0
    %7194 = vmatprep.subr.mxu0 0.0
    %7195 = vmatpush1.msra.mxu0 0.0
    %7196 = vmatprep.subr.mxu0 0.0
    %7197 = vmatpush1.msra.mxu0 0.0
    %7198 = vmatprep.subr.mxu0 0.0
    %7199 = vmatpush1.msra.mxu0 0.0
    %7200 = vmatprep.subr.mxu0 0.0
    %7201 = vmatpush1.msra.mxu0 0.0
    %7202 = vmatprep.mubr.f32.mxu0 0.0
    %7203 = vmatmul.mubr.f32.gmra.mrb[0].mxu0 %v7136
    %v7204 = vpop.f32.mrb[0].mxu0
    %v7205 = vadd.f32 %v86, %v7204
    %v7206 = vpop.f32.mrb[0].mxu0
    %7207 = vdwg.mxu0
    %v7208 = vstv %s6094
    %v7209 = vmul.f32 %v7208, %v7205
    %v7210 = vadd.f32 %v6090, %v7209
    %v7212 = vsel %vm93, %v7210, 0
    %7214 = vmatprep.subr.mxu0 0.0
    %7215 = vmatpush1.msra.mxu0 %v57
    %7216 = vmatprep.subr.mxu0 0.0
    %7217 = vmatpush1.msra.mxu0 0.0
    %7218 = vmatprep.subr.mxu0 0.0
    %7219 = vmatpush1.msra.mxu0 0.0
    %7220 = vmatprep.subr.mxu0 0.0
    %7221 = vmatpush1.msra.mxu0 0.0
    %7222 = vmatprep.subr.mxu0 0.0
    %7223 = vmatpush1.msra.mxu0 0.0
    %7224 = vmatprep.subr.mxu0 0.0
    %7225 = vmatpush1.msra.mxu0 0.0
    %7226 = vmatprep.subr.mxu0 0.0
    %7227 = vmatpush1.msra.mxu0 0.0
    %7228 = vmatprep.subr.mxu0 0.0
    %7229 = vmatpush1.msra.mxu0 0.0
    %7230 = vmatprep.subr.mxu0 0.0
    %7231 = vmatpush1.msra.mxu0 0.0
    %7232 = vmatprep.subr.mxu0 0.0
    %7233 = vmatpush1.msra.mxu0 0.0
    %7234 = vmatprep.subr.mxu0 0.0
    %7235 = vmatpush1.msra.mxu0 0.0
    %7236 = vmatprep.subr.mxu0 0.0
    %7237 = vmatpush1.msra.mxu0 0.0
    %7238 = vmatprep.subr.mxu0 0.0
    %7239 = vmatpush1.msra.mxu0 0.0
    %7240 = vmatprep.subr.mxu0 0.0
    %7241 = vmatpush1.msra.mxu0 0.0
    %7242 = vmatprep.subr.mxu0 0.0
    %7243 = vmatpush1.msra.mxu0 0.0
    %7244 = vmatprep.subr.mxu0 0.0
    %7245 = vmatpush1.msra.mxu0 0.0
    %7246 = vmatprep.subr.mxu0 0.0
    %7247 = vmatpush1.msra.mxu0 0.0
    %7248 = vmatprep.subr.mxu0 0.0
    %7249 = vmatpush1.msra.mxu0 0.0
    %7250 = vmatprep.subr.mxu0 0.0
    %7251 = vmatpush1.msra.mxu0 0.0
    %7252 = vmatprep.subr.mxu0 0.0
    %7253 = vmatpush1.msra.mxu0 0.0
    %7254 = vmatprep.subr.mxu0 0.0
    %7255 = vmatpush1.msra.mxu0 0.0
    %7256 = vmatprep.subr.mxu0 0.0
    %7257 = vmatpush1.msra.mxu0 0.0
    %7258 = vmatprep.subr.mxu0 0.0
    %7259 = vmatpush1.msra.mxu0 0.0
    %7260 = vmatprep.subr.mxu0 0.0
    %7261 = vmatpush1.msra.mxu0 0.0
    %7262 = vmatprep.subr.mxu0 0.0
    %7263 = vmatpush1.msra.mxu0 0.0
    %7264 = vmatprep.subr.mxu0 0.0
    %7265 = vmatpush1.msra.mxu0 0.0
    %7266 = vmatprep.subr.mxu0 0.0
    %7267 = vmatpush1.msra.mxu0 0.0
    %7268 = vmatprep.subr.mxu0 0.0
    %7269 = vmatpush1.msra.mxu0 0.0
    %7270 = vmatprep.subr.mxu0 0.0
    %7271 = vmatpush1.msra.mxu0 0.0
    %7272 = vmatprep.subr.mxu0 0.0
    %7273 = vmatpush1.msra.mxu0 0.0
    %7274 = vmatprep.subr.mxu0 0.0
    %7275 = vmatpush1.msra.mxu0 0.0
    %7276 = vmatprep.subr.mxu0 0.0
    %7277 = vmatpush1.msra.mxu0 0.0
    %7278 = vmatprep.mubr.f32.mxu0 0.0
    %7279 = vmatmul.mubr.f32.gmra.mrb[0].mxu0 %v7212
    %v7280 = vpop.f32.mrb[0].mxu0
    %v7281 = vadd.f32 %v58, %v7280
    %v7282 = vpop.f32.mrb[0].mxu0
    %7283 = vdwg.mxu0
    %v7284 = vtanh.pop %v7281
    %v7286 = vsel %vm168, %v7284, 0
    %7288 = vmatprep.subr.mxu0 0.0
    %7289 = vmatpush1.msra.mxu0 %v59
    %7290 = vmatprep.subr.mxu0 0.0
    %7291 = vmatpush1.msra.mxu0 %v60
    %7292 = vmatprep.subr.mxu0 0.0
    %7293 = vmatpush1.msra.mxu0 %v61
    %7294 = vmatprep.subr.mxu0 0.0
    %7295 = vmatpush1.msra.mxu0 %v62
    %7296 = vmatprep.subr.mxu0 0.0
    %7297 = vmatpush1.msra.mxu0 %v63
    %7298 = vmatprep.subr.mxu0 0.0
    %7299 = vmatpush1.msra.mxu0 0.0
    %7300 = vmatprep.subr.mxu0 0.0
    %7301 = vmatpush1.msra.mxu0 0.0
    %7302 = vmatprep.subr.mxu0 0.0
    %7303 = vmatpush1.msra.mxu0 0.0
    %7304 = vmatprep.subr.mxu0 0.0
    %7305 = vmatpush1.msra.mxu0 0.0
    %7306 = vmatprep.subr.mxu0 0.0
    %7307 = vmatpush1.msra.mxu0 0.0
    %7308 = vmatprep.subr.mxu0 0.0
    %7309 = vmatpush1.msra.mxu0 0.0
    %7310 = vmatprep.subr.mxu0 0.0
    %7311 = vmatpush1.msra.mxu0 0.0
    %7312 = vmatprep.subr.mxu0 0.0
    %7313 = vmatpush1.msra.mxu0 0.0
    %7314 = vmatprep.subr.mxu0 0.0
    %7315 = vmatpush1.msra.mxu0 0.0
    %7316 = vmatprep.subr.mxu0 0.0
    %7317 = vmatpush1.msra.mxu0 0.0
    %7318 = vmatprep.subr.mxu0 0.0
    %7319 = vmatpush1.msra.mxu0 0.0
    %7320 = vmatprep.subr.mxu0 0.0
    %7321 = vmatpush1.msra.mxu0 0.0
    %7322 = vmatprep.subr.mxu0 0.0
    %7323 = vmatpush1.msra.mxu0 0.0
    %7324 = vmatprep.subr.mxu0 0.0
    %7325 = vmatpush1.msra.mxu0 0.0
    %7326 = vmatprep.subr.mxu0 0.0
    %7327 = vmatpush1.msra.mxu0 0.0
    %7328 = vmatprep.subr.mxu0 0.0
    %7329 = vmatpush1.msra.mxu0 0.0
    %7330 = vmatprep.subr.mxu0 0.0
    %7331 = vmatpush1.msra.mxu0 0.0
    %7332 = vmatprep.subr.mxu0 0.0
    %7333 = vmatpush1.msra.mxu0 0.0
    %7334 = vmatprep.subr.mxu0 0.0
    %7335 = vmatpush1.msra.mxu0 0.0
    %7336 = vmatprep.subr.mxu0 0.0
    %7337 = vmatpush1.msra.mxu0 0.0
    %7338 = vmatprep.subr.mxu0 0.0
    %7339 = vmatpush1.msra.mxu0 0.0
    %7340 = vmatprep.subr.mxu0 0.0
    %7341 = vmatpush1.msra.mxu0 0.0
    %7342 = vmatprep.subr.mxu0 0.0
    %7343 = vmatpush1.msra.mxu0 0.0
    %7344 = vmatprep.subr.mxu0 0.0
    %7345 = vmatpush1.msra.mxu0 0.0
    %7346 = vmatprep.subr.mxu0 0.0
    %7347 = vmatpush1.msra.mxu0 0.0
    %7348 = vmatprep.subr.mxu0 0.0
    %7349 = vmatpush1.msra.mxu0 0.0
    %7350 = vmatprep.subr.mxu0 0.0
    %7351 = vmatpush1.msra.mxu0 0.0
    %7352 = vmatprep.mubr.f32.mxu0 0.0
    %7353 = vmatmul.mubr.f32.gmra.mrb[0].mxu0 %v7286
    %v7354 = vpop.f32.mrb[0].mxu0
    %v7355 = vadd.f32 %v76, %v7354
    %v7356 = vpop.f32.mrb[0].mxu0
    %7357 = vdwg.mxu0
    %v7358 = vtanh.pop %v7355
    %v7360 = vsel %vm168, %v7358, 0
    %7362 = vmatprep.subr.mxu0 0.0
    %7363 = vmatpush1.msra.mxu0 %v65
    %7364 = vmatprep.subr.mxu0 0.0
    %7365 = vmatpush1.msra.mxu0 %v66
    %7366 = vmatprep.subr.mxu0 0.0
    %7367 = vmatpush1.msra.mxu0 %v67
    %7368 = vmatprep.subr.mxu0 0.0
    %7369 = vmatpush1.msra.mxu0 %v68
    %7370 = vmatprep.subr.mxu0 0.0
    %7371 = vmatpush1.msra.mxu0 %v69
    %7372 = vmatprep.subr.mxu0 0.0
    %7373 = vmatpush1.msra.mxu0 0.0
    %7374 = vmatprep.subr.mxu0 0.0
    %7375 = vmatpush1.msra.mxu0 0.0
    %7376 = vmatprep.subr.mxu0 0.0
    %7377 = vmatpush1.msra.mxu0 0.0
    %7378 = vmatprep.subr.mxu0 0.0
    %7379 = vmatpush1.msra.mxu0 0.0
    %7380 = vmatprep.subr.mxu0 0.0
    %7381 = vmatpush1.msra.mxu0 0.0
    %7382 = vmatprep.subr.mxu0 0.0
    %7383 = vmatpush1.msra.mxu0 0.0
    %7384 = vmatprep.subr.mxu0 0.0
    %7385 = vmatpush1.msra.mxu0 0.0
    %7386 = vmatprep.subr.mxu0 0.0
    %7387 = vmatpush1.msra.mxu0 0.0
    %7388 = vmatprep.subr.mxu0 0.0
    %7389 = vmatpush1.msra.mxu0 0.0
    %7390 = vmatprep.subr.mxu0 0.0
    %7391 = vmatpush1.msra.mxu0 0.0
    %7392 = vmatprep.subr.mxu0 0.0
    %7393 = vmatpush1.msra.mxu0 0.0
    %7394 = vmatprep.subr.mxu0 0.0
    %7395 = vmatpush1.msra.mxu0 0.0
    %7396 = vmatprep.subr.mxu0 0.0
    %7397 = vmatpush1.msra.mxu0 0.0
    %7398 = vmatprep.subr.mxu0 0.0
    %7399 = vmatpush1.msra.mxu0 0.0
    %7400 = vmatprep.subr.mxu0 0.0
    %7401 = vmatpush1.msra.mxu0 0.0
    %7402 = vmatprep.subr.mxu0 0.0
    %7403 = vmatpush1.msra.mxu0 0.0
    %7404 = vmatprep.subr.mxu0 0.0
    %7405 = vmatpush1.msra.mxu0 0.0
    %7406 = vmatprep.subr.mxu0 0.0
    %7407 = vmatpush1.msra.mxu0 0.0
    %7408 = vmatprep.subr.mxu0 0.0
    %7409 = vmatpush1.msra.mxu0 0.0
    %7410 = vmatprep.subr.mxu0 0.0
    %7411 = vmatpush1.msra.mxu0 0.0
    %7412 = vmatprep.subr.mxu0 0.0
    %7413 = vmatpush1.msra.mxu0 0.0
    %7414 = vmatprep.subr.mxu0 0.0
    %7415 = vmatpush1.msra.mxu0 0.0
    %7416 = vmatprep.subr.mxu0 0.0
    %7417 = vmatpush1.msra.mxu0 0.0
    %7418 = vmatprep.subr.mxu0 0.0
    %7419 = vmatpush1.msra.mxu0 0.0
    %7420 = vmatprep.subr.mxu0 0.0
    %7421 = vmatpush1.msra.mxu0 0.0
    %7422 = vmatprep.subr.mxu0 0.0
    %7423 = vmatpush1.msra.mxu0 0.0
    %7424 = vmatprep.subr.mxu0 0.0
    %7425 = vmatpush1.msra.mxu0 0.0
    %7426 = vmatprep.mubr.f32.mxu0 0.0
    %7427 = vmatmul.mubr.f32.gmra.mrb[0].mxu0 %v7360
    %v7428 = vpop.f32.mrb[0].mxu0
    %v7429 = vadd.f32 %v78, %v7428
    %v7430 = vpop.f32.mrb[0].mxu0
    %7431 = vdwg.mxu0
    %v7432 = vtanh.pop %v7429
    %v7434 = vsel %vm168, %v7432, 0
    %7436 = vmatprep.subr.mxu0 0.0
    %7437 = vmatpush1.msra.mxu0 %v71
    %7438 = vmatprep.subr.mxu0 0.0
    %7439 = vmatpush1.msra.mxu0 %v72
    %7440 = vmatprep.subr.mxu0 0.0
    %7441 = vmatpush1.msra.mxu0 %v73
    %7442 = vmatprep.subr.mxu0 0.0
    %7443 = vmatpush1.msra.mxu0 %v74
    %7444 = vmatprep.subr.mxu0 0.0
    %7445 = vmatpush1.msra.mxu0 %v75
    %7446 = vmatprep.subr.mxu0 0.0
    %7447 = vmatpush1.msra.mxu0 0.0
    %7448 = vmatprep.subr.mxu0 0.0
    %7449 = vmatpush1.msra.mxu0 0.0
    %7450 = vmatprep.subr.mxu0 0.0
    %7451 = vmatpush1.msra.mxu0 0.0
    %7452 = vmatprep.subr.mxu0 0.0
    %7453 = vmatpush1.msra.mxu0 0.0
    %7454 = vmatprep.subr.mxu0 0.0
    %7455 = vmatpush1.msra.mxu0 0.0
    %7456 = vmatprep.subr.mxu0 0.0
    %7457 = vmatpush1.msra.mxu0 0.0
    %7458 = vmatprep.subr.mxu0 0.0
    %7459 = vmatpush1.msra.mxu0 0.0
    %7460 = vmatprep.subr.mxu0 0.0
    %7461 = vmatpush1.msra.mxu0 0.0
    %7462 = vmatprep.subr.mxu0 0.0
    %7463 = vmatpush1.msra.mxu0 0.0
    %7464 = vmatprep.subr.mxu0 0.0
    %7465 = vmatpush1.msra.mxu0 0.0
    %7466 = vmatprep.subr.mxu0 0.0
    %7467 = vmatpush1.msra.mxu0 0.0
    %7468 = vmatprep.subr.mxu0 0.0
    %7469 = vmatpush1.msra.mxu0 0.0
    %7470 = vmatprep.subr.mxu0 0.0
    %7471 = vmatpush1.msra.mxu0 0.0
    %7472 = vmatprep.subr.mxu0 0.0
    %7473 = vmatpush1.msra.mxu0 0.0
    %7474 = vmatprep.subr.mxu0 0.0
    %7475 = vmatpush1.msra.mxu0 0.0
    %7476 = vmatprep.subr.mxu0 0.0
    %7477 = vmatpush1.msra.mxu0 0.0
    %7478 = vmatprep.subr.mxu0 0.0
    %7479 = vmatpush1.msra.mxu0 0.0
    %7480 = vmatprep.subr.mxu0 0.0
    %7481 = vmatpush1.msra.mxu0 0.0
    %7482 = vmatprep.subr.mxu0 0.0
    %7483 = vmatpush1.msra.mxu0 0.0
    %7484 = vmatprep.subr.mxu0 0.0
    %7485 = vmatpush1.msra.mxu0 0.0
    %7486 = vmatprep.subr.mxu0 0.0
    %7487 = vmatpush1.msra.mxu0 0.0
    %7488 = vmatprep.subr.mxu0 0.0
    %7489 = vmatpush1.msra.mxu0 0.0
    %7490 = vmatprep.subr.mxu0 0.0
    %7491 = vmatpush1.msra.mxu0 0.0
    %7492 = vmatprep.subr.mxu0 0.0
    %7493 = vmatpush1.msra.mxu0 0.0
    %7494 = vmatprep.subr.mxu0 0.0
    %7495 = vmatpush1.msra.mxu0 0.0
    %7496 = vmatprep.subr.mxu0 0.0
    %7497 = vmatpush1.msra.mxu0 0.0
    %7498 = vmatprep.subr.mxu0 0.0
    %7499 = vmatpush1.msra.mxu0 0.0
    %7500 = vmatprep.mubr.f32.mxu0 0.0
    %7501 = vmatmul.mubr.f32.gmra.mrb[0].mxu0 %v7434
    %v7502 = vpop.f32.mrb[0].mxu0
    %v7503 = vadd.f32 %v80, %v7502
    %v7504 = vpop.f32.mrb[0].mxu0
    %7505 = vdwg.mxu0
    %v7506 = vtanh.pop %v7503
    %v7508 = vsel %vm168, %v7506, 0
    %7510 = vmatprep.subr.mxu0 0.0
    %7511 = vmatpush1.msra.mxu0 %v81
    %7512 = vmatprep.subr.mxu0 0.0
    %7513 = vmatpush1.msra.mxu0 %v82
    %7514 = vmatprep.subr.mxu0 0.0
    %7515 = vmatpush1.msra.mxu0 %v83
    %7516 = vmatprep.subr.mxu0 0.0
    %7517 = vmatpush1.msra.mxu0 %v84
    %7518 = vmatprep.subr.mxu0 0.0
    %7519 = vmatpush1.msra.mxu0 %v85
    %7520 = vmatprep.subr.mxu0 0.0
    %7521 = vmatpush1.msra.mxu0 0.0
    %7522 = vmatprep.subr.mxu0 0.0
    %7523 = vmatpush1.msra.mxu0 0.0
    %7524 = vmatprep.subr.mxu0 0.0
    %7525 = vmatpush1.msra.mxu0 0.0
    %7526 = vmatprep.subr.mxu0 0.0
    %7527 = vmatpush1.msra.mxu0 0.0
    %7528 = vmatprep.subr.mxu0 0.0
    %7529 = vmatpush1.msra.mxu0 0.0
    %7530 = vmatprep.subr.mxu0 0.0
    %7531 = vmatpush1.msra.mxu0 0.0
    %7532 = vmatprep.subr.mxu0 0.0
    %7533 = vmatpush1.msra.mxu0 0.0
    %7534 = vmatprep.subr.mxu0 0.0
    %7535 = vmatpush1.msra.mxu0 0.0
    %7536 = vmatprep.subr.mxu0 0.0
    %7537 = vmatpush1.msra.mxu0 0.0
    %7538 = vmatprep.subr.mxu0 0.0
    %7539 = vmatpush1.msra.mxu0 0.0
    %7540 = vmatprep.subr.mxu0 0.0
    %7541 = vmatpush1.msra.mxu0 0.0
    %7542 = vmatprep.subr.mxu0 0.0
    %7543 = vmatpush1.msra.mxu0 0.0
    %7544 = vmatprep.subr.mxu0 0.0
    %7545 = vmatpush1.msra.mxu0 0.0
    %7546 = vmatprep.subr.mxu0 0.0
    %7547 = vmatpush1.msra.mxu0 0.0
    %7548 = vmatprep.subr.mxu0 0.0
    %7549 = vmatpush1.msra.mxu0 0.0
    %7550 = vmatprep.subr.mxu0 0.0
    %7551 = vmatpush1.msra.mxu0 0.0
    %7552 = vmatprep.subr.mxu0 0.0
    %7553 = vmatpush1.msra.mxu0 0.0
    %7554 = vmatprep.subr.mxu0 0.0
    %7555 = vmatpush1.msra.mxu0 0.0
    %7556 = vmatprep.subr.mxu0 0.0
    %7557 = vmatpush1.msra.mxu0 0.0
    %7558 = vmatprep.subr.mxu0 0.0
    %7559 = vmatpush1.msra.mxu0 0.0
    %7560 = vmatprep.subr.mxu0 0.0
    %7561 = vmatpush1.msra.mxu0 0.0
    %7562 = vmatprep.subr.mxu0 0.0
    %7563 = vmatpush1.msra.mxu0 0.0
    %7564 = vmatprep.subr.mxu0 0.0
    %7565 = vmatpush1.msra.mxu0 0.0
    %7566 = vmatprep.subr.mxu0 0.0
    %7567 = vmatpush1.msra.mxu0 0.0
    %7568 = vmatprep.subr.mxu0 0.0
    %7569 = vmatpush1.msra.mxu0 0.0
    %7570 = vmatprep.subr.mxu0 0.0
    %7571 = vmatpush1.msra.mxu0 0.0
    %7572 = vmatprep.subr.mxu0 0.0
    %7573 = vmatpush1.msra.mxu0 0.0
    %7574 = vmatprep.mubr.f32.mxu0 0.0
    %7575 = vmatmul.mubr.f32.gmra.mrb[0].mxu0 %v7508
    %v7576 = vpop.f32.mrb[0].mxu0
    %v7577 = vadd.f32 %v86, %v7576
    %v7578 = vpop.f32.mrb[0].mxu0
    %7579 = vdwg.mxu0
    %v7580 = vrcp.pop 6.0
    %s7581 = vtos %v7580
    %s7582 = smul.f32 %s6094, %s7581
    %v7583 = vmul.f32 %v6834, 2.0
    %v7584 = vadd.f32 %v6461, %v7583
    %v7585 = vmul.f32 %v7205, 2.0
    %v7586 = vadd.f32 %v7584, %v7585
    %v7587 = vadd.f32 %v7586, %v7577
    %v7588 = vstv %s7582
    %v7589 = vmul.f32 %v7588, %v7587
    %v7590 = vadd.f32 %v6090, %v7589
    %7591 = vst.msk [vmem:[#allocation7 + $0x5] sm:$0x1] %vm88, %v7590
    %s7592 = sld [smem:[#allocation2 + $0x6]]
    %s7593 = sld [smem:[#allocation2 + $0x5]]
    %s7594 = ssub.f32 %s7592, %s7593
    %v7596 = vsel %vm93, %v7590, 0
    %7598 = vmatprep.subr.mxu0 0.0
    %7599 = vmatpush1.msra.mxu0 %v57
    %7600 = vmatprep.subr.mxu0 0.0
    %7601 = vmatpush1.msra.mxu0 0.0
    %7602 = vmatprep.subr.mxu0 0.0
    %7603 = vmatpush1.msra.mxu0 0.0
    %7604 = vmatprep.subr.mxu0 0.0
    %7605 = vmatpush1.msra.mxu0 0.0
    %7606 = vmatprep.subr.mxu0 0.0
    %7607 = vmatpush1.msra.mxu0 0.0
    %7608 = vmatprep.subr.mxu0 0.0
    %7609 = vmatpush1.msra.mxu0 0.0
    %7610 = vmatprep.subr.mxu0 0.0
    %7611 = vmatpush1.msra.mxu0 0.0
    %7612 = vmatprep.subr.mxu0 0.0
    %7613 = vmatpush1.msra.mxu0 0.0
    %7614 = vmatprep.subr.mxu0 0.0
    %7615 = vmatpush1.msra.mxu0 0.0
    %7616 = vmatprep.subr.mxu0 0.0
    %7617 = vmatpush1.msra.mxu0 0.0
    %7618 = vmatprep.subr.mxu0 0.0
    %7619 = vmatpush1.msra.mxu0 0.0
    %7620 = vmatprep.subr.mxu0 0.0
    %7621 = vmatpush1.msra.mxu0 0.0
    %7622 = vmatprep.subr.mxu0 0.0
    %7623 = vmatpush1.msra.mxu0 0.0
    %7624 = vmatprep.subr.mxu0 0.0
    %7625 = vmatpush1.msra.mxu0 0.0
    %7626 = vmatprep.subr.mxu0 0.0
    %7627 = vmatpush1.msra.mxu0 0.0
    %7628 = vmatprep.subr.mxu0 0.0
    %7629 = vmatpush1.msra.mxu0 0.0
    %7630 = vmatprep.subr.mxu0 0.0
    %7631 = vmatpush1.msra.mxu0 0.0
    %7632 = vmatprep.subr.mxu0 0.0
    %7633 = vmatpush1.msra.mxu0 0.0
    %7634 = vmatprep.subr.mxu0 0.0
    %7635 = vmatpush1.msra.mxu0 0.0
    %7636 = vmatprep.subr.mxu0 0.0
    %7637 = vmatpush1.msra.mxu0 0.0
    %7638 = vmatprep.subr.mxu0 0.0
    %7639 = vmatpush1.msra.mxu0 0.0
    %7640 = vmatprep.subr.mxu0 0.0
    %7641 = vmatpush1.msra.mxu0 0.0
    %7642 = vmatprep.subr.mxu0 0.0
    %7643 = vmatpush1.msra.mxu0 0.0
    %7644 = vmatprep.subr.mxu0 0.0
    %7645 = vmatpush1.msra.mxu0 0.0
    %7646 = vmatprep.subr.mxu0 0.0
    %7647 = vmatpush1.msra.mxu0 0.0
    %7648 = vmatprep.subr.mxu0 0.0
    %7649 = vmatpush1.msra.mxu0 0.0
    %7650 = vmatprep.subr.mxu0 0.0
    %7651 = vmatpush1.msra.mxu0 0.0
    %7652 = vmatprep.subr.mxu0 0.0
    %7653 = vmatpush1.msra.mxu0 0.0
    %7654 = vmatprep.subr.mxu0 0.0
    %7655 = vmatpush1.msra.mxu0 0.0
    %7656 = vmatprep.subr.mxu0 0.0
    %7657 = vmatpush1.msra.mxu0 0.0
    %7658 = vmatprep.subr.mxu0 0.0
    %7659 = vmatpush1.msra.mxu0 0.0
    %7660 = vmatprep.subr.mxu0 0.0
    %7661 = vmatpush1.msra.mxu0 0.0
    %7662 = vmatprep.mubr.f32.mxu0 0.0
    %7663 = vmatmul.mubr.f32.gmra.mrb[0].mxu0 %v7596
    %v7664 = vpop.f32.mrb[0].mxu0
    %v7665 = vadd.f32 %v58, %v7664
    %v7666 = vpop.f32.mrb[0].mxu0
    %7667 = vdwg.mxu0
    %v7668 = vtanh.pop %v7665
    %v7670 = vsel %vm168, %v7668, 0
    %7672 = vmatprep.subr.mxu0 0.0
    %7673 = vmatpush1.msra.mxu0 %v59
    %7674 = vmatprep.subr.mxu0 0.0
    %7675 = vmatpush1.msra.mxu0 %v60
    %7676 = vmatprep.subr.mxu0 0.0
    %7677 = vmatpush1.msra.mxu0 %v61
    %7678 = vmatprep.subr.mxu0 0.0
    %7679 = vmatpush1.msra.mxu0 %v62
    %7680 = vmatprep.subr.mxu0 0.0
    %7681 = vmatpush1.msra.mxu0 %v63
    %7682 = vmatprep.subr.mxu0 0.0
    %7683 = vmatpush1.msra.mxu0 0.0
    %7684 = vmatprep.subr.mxu0 0.0
    %7685 = vmatpush1.msra.mxu0 0.0
    %7686 = vmatprep.subr.mxu0 0.0
    %7687 = vmatpush1.msra.mxu0 0.0
    %7688 = vmatprep.subr.mxu0 0.0
    %7689 = vmatpush1.msra.mxu0 0.0
    %7690 = vmatprep.subr.mxu0 0.0
    %7691 = vmatpush1.msra.mxu0 0.0
    %7692 = vmatprep.subr.mxu0 0.0
    %7693 = vmatpush1.msra.mxu0 0.0
    %7694 = vmatprep.subr.mxu0 0.0
    %7695 = vmatpush1.msra.mxu0 0.0
    %7696 = vmatprep.subr.mxu0 0.0
    %7697 = vmatpush1.msra.mxu0 0.0
    %7698 = vmatprep.subr.mxu0 0.0
    %7699 = vmatpush1.msra.mxu0 0.0
    %7700 = vmatprep.subr.mxu0 0.0
    %7701 = vmatpush1.msra.mxu0 0.0
    %7702 = vmatprep.subr.mxu0 0.0
    %7703 = vmatpush1.msra.mxu0 0.0
    %7704 = vmatprep.subr.mxu0 0.0
    %7705 = vmatpush1.msra.mxu0 0.0
    %7706 = vmatprep.subr.mxu0 0.0
    %7707 = vmatpush1.msra.mxu0 0.0
    %7708 = vmatprep.subr.mxu0 0.0
    %7709 = vmatpush1.msra.mxu0 0.0
    %7710 = vmatprep.subr.mxu0 0.0
    %7711 = vmatpush1.msra.mxu0 0.0
    %7712 = vmatprep.subr.mxu0 0.0
    %7713 = vmatpush1.msra.mxu0 0.0
    %7714 = vmatprep.subr.mxu0 0.0
    %7715 = vmatpush1.msra.mxu0 0.0
    %7716 = vmatprep.subr.mxu0 0.0
    %7717 = vmatpush1.msra.mxu0 0.0
    %7718 = vmatprep.subr.mxu0 0.0
    %7719 = vmatpush1.msra.mxu0 0.0
    %7720 = vmatprep.subr.mxu0 0.0
    %7721 = vmatpush1.msra.mxu0 0.0
    %7722 = vmatprep.subr.mxu0 0.0
    %7723 = vmatpush1.msra.mxu0 0.0
    %7724 = vmatprep.subr.mxu0 0.0
    %7725 = vmatpush1.msra.mxu0 0.0
    %7726 = vmatprep.subr.mxu0 0.0
    %7727 = vmatpush1.msra.mxu0 0.0
    %7728 = vmatprep.subr.mxu0 0.0
    %7729 = vmatpush1.msra.mxu0 0.0
    %7730 = vmatprep.subr.mxu0 0.0
    %7731 = vmatpush1.msra.mxu0 0.0
    %7732 = vmatprep.subr.mxu0 0.0
    %7733 = vmatpush1.msra.mxu0 0.0
    %7734 = vmatprep.subr.mxu0 0.0
    %7735 = vmatpush1.msra.mxu0 0.0
    %7736 = vmatprep.mubr.f32.mxu0 0.0
    %7737 = vmatmul.mubr.f32.gmra.mrb[0].mxu0 %v7670
    %v7738 = vpop.f32.mrb[0].mxu0
    %v7739 = vadd.f32 %v76, %v7738
    %v7740 = vpop.f32.mrb[0].mxu0
    %7741 = vdwg.mxu0
    %v7742 = vtanh.pop %v7739
    %v7744 = vsel %vm168, %v7742, 0
    %7746 = vmatprep.subr.mxu0 0.0
    %7747 = vmatpush1.msra.mxu0 %v65
    %7748 = vmatprep.subr.mxu0 0.0
    %7749 = vmatpush1.msra.mxu0 %v66
    %7750 = vmatprep.subr.mxu0 0.0
    %7751 = vmatpush1.msra.mxu0 %v67
    %7752 = vmatprep.subr.mxu0 0.0
    %7753 = vmatpush1.msra.mxu0 %v68
    %7754 = vmatprep.subr.mxu0 0.0
    %7755 = vmatpush1.msra.mxu0 %v69
    %7756 = vmatprep.subr.mxu0 0.0
    %7757 = vmatpush1.msra.mxu0 0.0
    %7758 = vmatprep.subr.mxu0 0.0
    %7759 = vmatpush1.msra.mxu0 0.0
    %7760 = vmatprep.subr.mxu0 0.0
    %7761 = vmatpush1.msra.mxu0 0.0
    %7762 = vmatprep.subr.mxu0 0.0
    %7763 = vmatpush1.msra.mxu0 0.0
    %7764 = vmatprep.subr.mxu0 0.0
    %7765 = vmatpush1.msra.mxu0 0.0
    %7766 = vmatprep.subr.mxu0 0.0
    %7767 = vmatpush1.msra.mxu0 0.0
    %7768 = vmatprep.subr.mxu0 0.0
    %7769 = vmatpush1.msra.mxu0 0.0
    %7770 = vmatprep.subr.mxu0 0.0
    %7771 = vmatpush1.msra.mxu0 0.0
    %7772 = vmatprep.subr.mxu0 0.0
    %7773 = vmatpush1.msra.mxu0 0.0
    %7774 = vmatprep.subr.mxu0 0.0
    %7775 = vmatpush1.msra.mxu0 0.0
    %7776 = vmatprep.subr.mxu0 0.0
    %7777 = vmatpush1.msra.mxu0 0.0
    %7778 = vmatprep.subr.mxu0 0.0
    %7779 = vmatpush1.msra.mxu0 0.0
    %7780 = vmatprep.subr.mxu0 0.0
    %7781 = vmatpush1.msra.mxu0 0.0
    %7782 = vmatprep.subr.mxu0 0.0
    %7783 = vmatpush1.msra.mxu0 0.0
    %7784 = vmatprep.subr.mxu0 0.0
    %7785 = vmatpush1.msra.mxu0 0.0
    %7786 = vmatprep.subr.mxu0 0.0
    %7787 = vmatpush1.msra.mxu0 0.0
    %7788 = vmatprep.subr.mxu0 0.0
    %7789 = vmatpush1.msra.mxu0 0.0
    %7790 = vmatprep.subr.mxu0 0.0
    %7791 = vmatpush1.msra.mxu0 0.0
    %7792 = vmatprep.subr.mxu0 0.0
    %7793 = vmatpush1.msra.mxu0 0.0
    %7794 = vmatprep.subr.mxu0 0.0
    %7795 = vmatpush1.msra.mxu0 0.0
    %7796 = vmatprep.subr.mxu0 0.0
    %7797 = vmatpush1.msra.mxu0 0.0
    %7798 = vmatprep.subr.mxu0 0.0
    %7799 = vmatpush1.msra.mxu0 0.0
    %7800 = vmatprep.subr.mxu0 0.0
    %7801 = vmatpush1.msra.mxu0 0.0
    %7802 = vmatprep.subr.mxu0 0.0
    %7803 = vmatpush1.msra.mxu0 0.0
    %7804 = vmatprep.subr.mxu0 0.0
    %7805 = vmatpush1.msra.mxu0 0.0
    %7806 = vmatprep.subr.mxu0 0.0
    %7807 = vmatpush1.msra.mxu0 0.0
    %7808 = vmatprep.subr.mxu0 0.0
    %7809 = vmatpush1.msra.mxu0 0.0
    %7810 = vmatprep.mubr.f32.mxu0 0.0
    %7811 = vmatmul.mubr.f32.gmra.mrb[0].mxu0 %v7744
    %v7812 = vpop.f32.mrb[0].mxu0
    %v7813 = vadd.f32 %v78, %v7812
    %v7814 = vpop.f32.mrb[0].mxu0
    %7815 = vdwg.mxu0
    %v7816 = vtanh.pop %v7813
    %v7818 = vsel %vm168, %v7816, 0
    %7820 = vmatprep.subr.mxu0 0.0
    %7821 = vmatpush1.msra.mxu0 %v71
    %7822 = vmatprep.subr.mxu0 0.0
    %7823 = vmatpush1.msra.mxu0 %v72
    %7824 = vmatprep.subr.mxu0 0.0
    %7825 = vmatpush1.msra.mxu0 %v73
    %7826 = vmatprep.subr.mxu0 0.0
    %7827 = vmatpush1.msra.mxu0 %v74
    %7828 = vmatprep.subr.mxu0 0.0
    %7829 = vmatpush1.msra.mxu0 %v75
    %7830 = vmatprep.subr.mxu0 0.0
    %7831 = vmatpush1.msra.mxu0 0.0
    %7832 = vmatprep.subr.mxu0 0.0
    %7833 = vmatpush1.msra.mxu0 0.0
    %7834 = vmatprep.subr.mxu0 0.0
    %7835 = vmatpush1.msra.mxu0 0.0
    %7836 = vmatprep.subr.mxu0 0.0
    %7837 = vmatpush1.msra.mxu0 0.0
    %7838 = vmatprep.subr.mxu0 0.0
    %7839 = vmatpush1.msra.mxu0 0.0
    %7840 = vmatprep.subr.mxu0 0.0
    %7841 = vmatpush1.msra.mxu0 0.0
    %7842 = vmatprep.subr.mxu0 0.0
    %7843 = vmatpush1.msra.mxu0 0.0
    %7844 = vmatprep.subr.mxu0 0.0
    %7845 = vmatpush1.msra.mxu0 0.0
    %7846 = vmatprep.subr.mxu0 0.0
    %7847 = vmatpush1.msra.mxu0 0.0
    %7848 = vmatprep.subr.mxu0 0.0
    %7849 = vmatpush1.msra.mxu0 0.0
    %7850 = vmatprep.subr.mxu0 0.0
    %7851 = vmatpush1.msra.mxu0 0.0
    %7852 = vmatprep.subr.mxu0 0.0
    %7853 = vmatpush1.msra.mxu0 0.0
    %7854 = vmatprep.subr.mxu0 0.0
    %7855 = vmatpush1.msra.mxu0 0.0
    %7856 = vmatprep.subr.mxu0 0.0
    %7857 = vmatpush1.msra.mxu0 0.0
    %7858 = vmatprep.subr.mxu0 0.0
    %7859 = vmatpush1.msra.mxu0 0.0
    %7860 = vmatprep.subr.mxu0 0.0
    %7861 = vmatpush1.msra.mxu0 0.0
    %7862 = vmatprep.subr.mxu0 0.0
    %7863 = vmatpush1.msra.mxu0 0.0
    %7864 = vmatprep.subr.mxu0 0.0
    %7865 = vmatpush1.msra.mxu0 0.0
    %7866 = vmatprep.subr.mxu0 0.0
    %7867 = vmatpush1.msra.mxu0 0.0
    %7868 = vmatprep.subr.mxu0 0.0
    %7869 = vmatpush1.msra.mxu0 0.0
    %7870 = vmatprep.subr.mxu0 0.0
    %7871 = vmatpush1.msra.mxu0 0.0
    %7872 = vmatprep.subr.mxu0 0.0
    %7873 = vmatpush1.msra.mxu0 0.0
    %7874 = vmatprep.subr.mxu0 0.0
    %7875 = vmatpush1.msra.mxu0 0.0
    %7876 = vmatprep.subr.mxu0 0.0
    %7877 = vmatpush1.msra.mxu0 0.0
    %7878 = vmatprep.subr.mxu0 0.0
    %7879 = vmatpush1.msra.mxu0 0.0
    %7880 = vmatprep.subr.mxu0 0.0
    %7881 = vmatpush1.msra.mxu0 0.0
    %7882 = vmatprep.subr.mxu0 0.0
    %7883 = vmatpush1.msra.mxu0 0.0
    %7884 = vmatprep.mubr.f32.mxu0 0.0
    %7885 = vmatmul.mubr.f32.gmra.mrb[0].mxu0 %v7818
    %v7886 = vpop.f32.mrb[0].mxu0
    %v7887 = vadd.f32 %v80, %v7886
    %v7888 = vpop.f32.mrb[0].mxu0
    %7889 = vdwg.mxu0
    %v7890 = vtanh.pop %v7887
    %v7892 = vsel %vm168, %v7890, 0
    %7894 = vmatprep.subr.mxu0 0.0
    %7895 = vmatpush1.msra.mxu0 %v81
    %7896 = vmatprep.subr.mxu0 0.0
    %7897 = vmatpush1.msra.mxu0 %v82
    %7898 = vmatprep.subr.mxu0 0.0
    %7899 = vmatpush1.msra.mxu0 %v83
    %7900 = vmatprep.subr.mxu0 0.0
    %7901 = vmatpush1.msra.mxu0 %v84
    %7902 = vmatprep.subr.mxu0 0.0
    %7903 = vmatpush1.msra.mxu0 %v85
    %7904 = vmatprep.subr.mxu0 0.0
    %7905 = vmatpush1.msra.mxu0 0.0
    %7906 = vmatprep.subr.mxu0 0.0
    %7907 = vmatpush1.msra.mxu0 0.0
    %7908 = vmatprep.subr.mxu0 0.0
    %7909 = vmatpush1.msra.mxu0 0.0
    %7910 = vmatprep.subr.mxu0 0.0
    %7911 = vmatpush1.msra.mxu0 0.0
    %7912 = vmatprep.subr.mxu0 0.0
    %7913 = vmatpush1.msra.mxu0 0.0
    %7914 = vmatprep.subr.mxu0 0.0
    %7915 = vmatpush1.msra.mxu0 0.0
    %7916 = vmatprep.subr.mxu0 0.0
    %7917 = vmatpush1.msra.mxu0 0.0
    %7918 = vmatprep.subr.mxu0 0.0
    %7919 = vmatpush1.msra.mxu0 0.0
    %7920 = vmatprep.subr.mxu0 0.0
    %7921 = vmatpush1.msra.mxu0 0.0
    %7922 = vmatprep.subr.mxu0 0.0
    %7923 = vmatpush1.msra.mxu0 0.0
    %7924 = vmatprep.subr.mxu0 0.0
    %7925 = vmatpush1.msra.mxu0 0.0
    %7926 = vmatprep.subr.mxu0 0.0
    %7927 = vmatpush1.msra.mxu0 0.0
    %7928 = vmatprep.subr.mxu0 0.0
    %7929 = vmatpush1.msra.mxu0 0.0
    %7930 = vmatprep.subr.mxu0 0.0
    %7931 = vmatpush1.msra.mxu0 0.0
    %7932 = vmatprep.subr.mxu0 0.0
    %7933 = vmatpush1.msra.mxu0 0.0
    %7934 = vmatprep.subr.mxu0 0.0
    %7935 = vmatpush1.msra.mxu0 0.0
    %7936 = vmatprep.subr.mxu0 0.0
    %7937 = vmatpush1.msra.mxu0 0.0
    %7938 = vmatprep.subr.mxu0 0.0
    %7939 = vmatpush1.msra.mxu0 0.0
    %7940 = vmatprep.subr.mxu0 0.0
    %7941 = vmatpush1.msra.mxu0 0.0
    %7942 = vmatprep.subr.mxu0 0.0
    %7943 = vmatpush1.msra.mxu0 0.0
    %7944 = vmatprep.subr.mxu0 0.0
    %7945 = vmatpush1.msra.mxu0 0.0
    %7946 = vmatprep.subr.mxu0 0.0
    %7947 = vmatpush1.msra.mxu0 0.0
    %7948 = vmatprep.subr.mxu0 0.0
    %7949 = vmatpush1.msra.mxu0 0.0
    %7950 = vmatprep.subr.mxu0 0.0
    %7951 = vmatpush1.msra.mxu0 0.0
    %7952 = vmatprep.subr.mxu0 0.0
    %7953 = vmatpush1.msra.mxu0 0.0
    %7954 = vmatprep.subr.mxu0 0.0
    %7955 = vmatpush1.msra.mxu0 0.0
    %7956 = vmatprep.subr.mxu0 0.0
    %7957 = vmatpush1.msra.mxu0 0.0
    %7958 = vmatprep.mubr.f32.mxu0 0.0
    %7959 = vmatmul.mubr.f32.gmra.mrb[0].mxu0 %v7892
    %v7960 = vpop.f32.mrb[0].mxu0
    %v7961 = vadd.f32 %v86, %v7960
    %v7962 = vpop.f32.mrb[0].mxu0
    %7963 = vdwg.mxu0
    %s7964 = smul.f32 %s7594, 0.5
    %v7965 = vstv %s7964
    %v7966 = vmul.f32 %v7965, %v7961
    %v7967 = vadd.f32 %v7590, %v7966
    %v7969 = vsel %vm93, %v7967, 0
    %7971 = vmatprep.subr.mxu0 0.0
    %7972 = vmatpush1.msra.mxu0 %v57
    %7973 = vmatprep.subr.mxu0 0.0
    %7974 = vmatpush1.msra.mxu0 0.0
    %7975 = vmatprep.subr.mxu0 0.0
    %7976 = vmatpush1.msra.mxu0 0.0
    %7977 = vmatprep.subr.mxu0 0.0
    %7978 = vmatpush1.msra.mxu0 0.0
    %7979 = vmatprep.subr.mxu0 0.0
    %7980 = vmatpush1.msra.mxu0 0.0
    %7981 = vmatprep.subr.mxu0 0.0
    %7982 = vmatpush1.msra.mxu0 0.0
    %7983 = vmatprep.subr.mxu0 0.0
    %7984 = vmatpush1.msra.mxu0 0.0
    %7985 = vmatprep.subr.mxu0 0.0
    %7986 = vmatpush1.msra.mxu0 0.0
    %7987 = vmatprep.subr.mxu0 0.0
    %7988 = vmatpush1.msra.mxu0 0.0
    %7989 = vmatprep.subr.mxu0 0.0
    %7990 = vmatpush1.msra.mxu0 0.0
    %7991 = vmatprep.subr.mxu0 0.0
    %7992 = vmatpush1.msra.mxu0 0.0
    %7993 = vmatprep.subr.mxu0 0.0
    %7994 = vmatpush1.msra.mxu0 0.0
    %7995 = vmatprep.subr.mxu0 0.0
    %7996 = vmatpush1.msra.mxu0 0.0
    %7997 = vmatprep.subr.mxu0 0.0
    %7998 = vmatpush1.msra.mxu0 0.0
    %7999 = vmatprep.subr.mxu0 0.0
    %8000 = vmatpush1.msra.mxu0 0.0
    %8001 = vmatprep.subr.mxu0 0.0
    %8002 = vmatpush1.msra.mxu0 0.0
    %8003 = vmatprep.subr.mxu0 0.0
    %8004 = vmatpush1.msra.mxu0 0.0
    %8005 = vmatprep.subr.mxu0 0.0
    %8006 = vmatpush1.msra.mxu0 0.0
    %8007 = vmatprep.subr.mxu0 0.0
    %8008 = vmatpush1.msra.mxu0 0.0
    %8009 = vmatprep.subr.mxu0 0.0
    %8010 = vmatpush1.msra.mxu0 0.0
    %8011 = vmatprep.subr.mxu0 0.0
    %8012 = vmatpush1.msra.mxu0 0.0
    %8013 = vmatprep.subr.mxu0 0.0
    %8014 = vmatpush1.msra.mxu0 0.0
    %8015 = vmatprep.subr.mxu0 0.0
    %8016 = vmatpush1.msra.mxu0 0.0
    %8017 = vmatprep.subr.mxu0 0.0
    %8018 = vmatpush1.msra.mxu0 0.0
    %8019 = vmatprep.subr.mxu0 0.0
    %8020 = vmatpush1.msra.mxu0 0.0
    %8021 = vmatprep.subr.mxu0 0.0
    %8022 = vmatpush1.msra.mxu0 0.0
    %8023 = vmatprep.subr.mxu0 0.0
    %8024 = vmatpush1.msra.mxu0 0.0
    %8025 = vmatprep.subr.mxu0 0.0
    %8026 = vmatpush1.msra.mxu0 0.0
    %8027 = vmatprep.subr.mxu0 0.0
    %8028 = vmatpush1.msra.mxu0 0.0
    %8029 = vmatprep.subr.mxu0 0.0
    %8030 = vmatpush1.msra.mxu0 0.0
    %8031 = vmatprep.subr.mxu0 0.0
    %8032 = vmatpush1.msra.mxu0 0.0
    %8033 = vmatprep.subr.mxu0 0.0
    %8034 = vmatpush1.msra.mxu0 0.0
    %8035 = vmatprep.mubr.f32.mxu0 0.0
    %8036 = vmatmul.mubr.f32.gmra.mrb[0].mxu0 %v7969
    %v8037 = vpop.f32.mrb[0].mxu0
    %v8038 = vadd.f32 %v58, %v8037
    %v8039 = vpop.f32.mrb[0].mxu0
    %8040 = vdwg.mxu0
    %v8041 = vtanh.pop %v8038
    %v8043 = vsel %vm168, %v8041, 0
    %8045 = vmatprep.subr.mxu0 0.0
    %8046 = vmatpush1.msra.mxu0 %v59
    %8047 = vmatprep.subr.mxu0 0.0
    %8048 = vmatpush1.msra.mxu0 %v60
    %8049 = vmatprep.subr.mxu0 0.0
    %8050 = vmatpush1.msra.mxu0 %v61
    %8051 = vmatprep.subr.mxu0 0.0
    %8052 = vmatpush1.msra.mxu0 %v62
    %8053 = vmatprep.subr.mxu0 0.0
    %8054 = vmatpush1.msra.mxu0 %v63
    %8055 = vmatprep.subr.mxu0 0.0
    %8056 = vmatpush1.msra.mxu0 0.0
    %8057 = vmatprep.subr.mxu0 0.0
    %8058 = vmatpush1.msra.mxu0 0.0
    %8059 = vmatprep.subr.mxu0 0.0
    %8060 = vmatpush1.msra.mxu0 0.0
    %8061 = vmatprep.subr.mxu0 0.0
    %8062 = vmatpush1.msra.mxu0 0.0
    %8063 = vmatprep.subr.mxu0 0.0
    %8064 = vmatpush1.msra.mxu0 0.0
    %8065 = vmatprep.subr.mxu0 0.0
    %8066 = vmatpush1.msra.mxu0 0.0
    %8067 = vmatprep.subr.mxu0 0.0
    %8068 = vmatpush1.msra.mxu0 0.0
    %8069 = vmatprep.subr.mxu0 0.0
    %8070 = vmatpush1.msra.mxu0 0.0
    %8071 = vmatprep.subr.mxu0 0.0
    %8072 = vmatpush1.msra.mxu0 0.0
    %8073 = vmatprep.subr.mxu0 0.0
    %8074 = vmatpush1.msra.mxu0 0.0
    %8075 = vmatprep.subr.mxu0 0.0
    %8076 = vmatpush1.msra.mxu0 0.0
    %8077 = vmatprep.subr.mxu0 0.0
    %8078 = vmatpush1.msra.mxu0 0.0
    %8079 = vmatprep.subr.mxu0 0.0
    %8080 = vmatpush1.msra.mxu0 0.0
    %8081 = vmatprep.subr.mxu0 0.0
    %8082 = vmatpush1.msra.mxu0 0.0
    %8083 = vmatprep.subr.mxu0 0.0
    %8084 = vmatpush1.msra.mxu0 0.0
    %8085 = vmatprep.subr.mxu0 0.0
    %8086 = vmatpush1.msra.mxu0 0.0
    %8087 = vmatprep.subr.mxu0 0.0
    %8088 = vmatpush1.msra.mxu0 0.0
    %8089 = vmatprep.subr.mxu0 0.0
    %8090 = vmatpush1.msra.mxu0 0.0
    %8091 = vmatprep.subr.mxu0 0.0
    %8092 = vmatpush1.msra.mxu0 0.0
    %8093 = vmatprep.subr.mxu0 0.0
    %8094 = vmatpush1.msra.mxu0 0.0
    %8095 = vmatprep.subr.mxu0 0.0
    %8096 = vmatpush1.msra.mxu0 0.0
    %8097 = vmatprep.subr.mxu0 0.0
    %8098 = vmatpush1.msra.mxu0 0.0
    %8099 = vmatprep.subr.mxu0 0.0
    %8100 = vmatpush1.msra.mxu0 0.0
    %8101 = vmatprep.subr.mxu0 0.0
    %8102 = vmatpush1.msra.mxu0 0.0
    %8103 = vmatprep.subr.mxu0 0.0
    %8104 = vmatpush1.msra.mxu0 0.0
    %8105 = vmatprep.subr.mxu0 0.0
    %8106 = vmatpush1.msra.mxu0 0.0
    %8107 = vmatprep.subr.mxu0 0.0
    %8108 = vmatpush1.msra.mxu0 0.0
    %8109 = vmatprep.mubr.f32.mxu0 0.0
    %8110 = vmatmul.mubr.f32.gmra.mrb[0].mxu0 %v8043
    %v8111 = vpop.f32.mrb[0].mxu0
    %v8112 = vadd.f32 %v76, %v8111
    %v8113 = vpop.f32.mrb[0].mxu0
    %8114 = vdwg.mxu0
    %v8115 = vtanh.pop %v8112
    %v8117 = vsel %vm168, %v8115, 0
    %8119 = vmatprep.subr.mxu0 0.0
    %8120 = vmatpush1.msra.mxu0 %v65
    %8121 = vmatprep.subr.mxu0 0.0
    %8122 = vmatpush1.msra.mxu0 %v66
    %8123 = vmatprep.subr.mxu0 0.0
    %8124 = vmatpush1.msra.mxu0 %v67
    %8125 = vmatprep.subr.mxu0 0.0
    %8126 = vmatpush1.msra.mxu0 %v68
    %8127 = vmatprep.subr.mxu0 0.0
    %8128 = vmatpush1.msra.mxu0 %v69
    %8129 = vmatprep.subr.mxu0 0.0
    %8130 = vmatpush1.msra.mxu0 0.0
    %8131 = vmatprep.subr.mxu0 0.0
    %8132 = vmatpush1.msra.mxu0 0.0
    %8133 = vmatprep.subr.mxu0 0.0
    %8134 = vmatpush1.msra.mxu0 0.0
    %8135 = vmatprep.subr.mxu0 0.0
    %8136 = vmatpush1.msra.mxu0 0.0
    %8137 = vmatprep.subr.mxu0 0.0
    %8138 = vmatpush1.msra.mxu0 0.0
    %8139 = vmatprep.subr.mxu0 0.0
    %8140 = vmatpush1.msra.mxu0 0.0
    %8141 = vmatprep.subr.mxu0 0.0
    %8142 = vmatpush1.msra.mxu0 0.0
    %8143 = vmatprep.subr.mxu0 0.0
    %8144 = vmatpush1.msra.mxu0 0.0
    %8145 = vmatprep.subr.mxu0 0.0
    %8146 = vmatpush1.msra.mxu0 0.0
    %8147 = vmatprep.subr.mxu0 0.0
    %8148 = vmatpush1.msra.mxu0 0.0
    %8149 = vmatprep.subr.mxu0 0.0
    %8150 = vmatpush1.msra.mxu0 0.0
    %8151 = vmatprep.subr.mxu0 0.0
    %8152 = vmatpush1.msra.mxu0 0.0
    %8153 = vmatprep.subr.mxu0 0.0
    %8154 = vmatpush1.msra.mxu0 0.0
    %8155 = vmatprep.subr.mxu0 0.0
    %8156 = vmatpush1.msra.mxu0 0.0
    %8157 = vmatprep.subr.mxu0 0.0
    %8158 = vmatpush1.msra.mxu0 0.0
    %8159 = vmatprep.subr.mxu0 0.0
    %8160 = vmatpush1.msra.mxu0 0.0
    %8161 = vmatprep.subr.mxu0 0.0
    %8162 = vmatpush1.msra.mxu0 0.0
    %8163 = vmatprep.subr.mxu0 0.0
    %8164 = vmatpush1.msra.mxu0 0.0
    %8165 = vmatprep.subr.mxu0 0.0
    %8166 = vmatpush1.msra.mxu0 0.0
    %8167 = vmatprep.subr.mxu0 0.0
    %8168 = vmatpush1.msra.mxu0 0.0
    %8169 = vmatprep.subr.mxu0 0.0
    %8170 = vmatpush1.msra.mxu0 0.0
    %8171 = vmatprep.subr.mxu0 0.0
    %8172 = vmatpush1.msra.mxu0 0.0
    %8173 = vmatprep.subr.mxu0 0.0
    %8174 = vmatpush1.msra.mxu0 0.0
    %8175 = vmatprep.subr.mxu0 0.0
    %8176 = vmatpush1.msra.mxu0 0.0
    %8177 = vmatprep.subr.mxu0 0.0
    %8178 = vmatpush1.msra.mxu0 0.0
    %8179 = vmatprep.subr.mxu0 0.0
    %8180 = vmatpush1.msra.mxu0 0.0
    %8181 = vmatprep.subr.mxu0 0.0
    %8182 = vmatpush1.msra.mxu0 0.0
    %8183 = vmatprep.mubr.f32.mxu0 0.0
    %8184 = vmatmul.mubr.f32.gmra.mrb[0].mxu0 %v8117
    %v8185 = vpop.f32.mrb[0].mxu0
    %v8186 = vadd.f32 %v78, %v8185
    %v8187 = vpop.f32.mrb[0].mxu0
    %8188 = vdwg.mxu0
    %v8189 = vtanh.pop %v8186
    %v8191 = vsel %vm168, %v8189, 0
    %8193 = vmatprep.subr.mxu0 0.0
    %8194 = vmatpush1.msra.mxu0 %v71
    %8195 = vmatprep.subr.mxu0 0.0
    %8196 = vmatpush1.msra.mxu0 %v72
    %8197 = vmatprep.subr.mxu0 0.0
    %8198 = vmatpush1.msra.mxu0 %v73
    %8199 = vmatprep.subr.mxu0 0.0
    %8200 = vmatpush1.msra.mxu0 %v74
    %8201 = vmatprep.subr.mxu0 0.0
    %8202 = vmatpush1.msra.mxu0 %v75
    %8203 = vmatprep.subr.mxu0 0.0
    %8204 = vmatpush1.msra.mxu0 0.0
    %8205 = vmatprep.subr.mxu0 0.0
    %8206 = vmatpush1.msra.mxu0 0.0
    %8207 = vmatprep.subr.mxu0 0.0
    %8208 = vmatpush1.msra.mxu0 0.0
    %8209 = vmatprep.subr.mxu0 0.0
    %8210 = vmatpush1.msra.mxu0 0.0
    %8211 = vmatprep.subr.mxu0 0.0
    %8212 = vmatpush1.msra.mxu0 0.0
    %8213 = vmatprep.subr.mxu0 0.0
    %8214 = vmatpush1.msra.mxu0 0.0
    %8215 = vmatprep.subr.mxu0 0.0
    %8216 = vmatpush1.msra.mxu0 0.0
    %8217 = vmatprep.subr.mxu0 0.0
    %8218 = vmatpush1.msra.mxu0 0.0
    %8219 = vmatprep.subr.mxu0 0.0
    %8220 = vmatpush1.msra.mxu0 0.0
    %8221 = vmatprep.subr.mxu0 0.0
    %8222 = vmatpush1.msra.mxu0 0.0
    %8223 = vmatprep.subr.mxu0 0.0
    %8224 = vmatpush1.msra.mxu0 0.0
    %8225 = vmatprep.subr.mxu0 0.0
    %8226 = vmatpush1.msra.mxu0 0.0
    %8227 = vmatprep.subr.mxu0 0.0
    %8228 = vmatpush1.msra.mxu0 0.0
    %8229 = vmatprep.subr.mxu0 0.0
    %8230 = vmatpush1.msra.mxu0 0.0
    %8231 = vmatprep.subr.mxu0 0.0
    %8232 = vmatpush1.msra.mxu0 0.0
    %8233 = vmatprep.subr.mxu0 0.0
    %8234 = vmatpush1.msra.mxu0 0.0
    %8235 = vmatprep.subr.mxu0 0.0
    %8236 = vmatpush1.msra.mxu0 0.0
    %8237 = vmatprep.subr.mxu0 0.0
    %8238 = vmatpush1.msra.mxu0 0.0
    %8239 = vmatprep.subr.mxu0 0.0
    %8240 = vmatpush1.msra.mxu0 0.0
    %8241 = vmatprep.subr.mxu0 0.0
    %8242 = vmatpush1.msra.mxu0 0.0
    %8243 = vmatprep.subr.mxu0 0.0
    %8244 = vmatpush1.msra.mxu0 0.0
    %8245 = vmatprep.subr.mxu0 0.0
    %8246 = vmatpush1.msra.mxu0 0.0
    %8247 = vmatprep.subr.mxu0 0.0
    %8248 = vmatpush1.msra.mxu0 0.0
    %8249 = vmatprep.subr.mxu0 0.0
    %8250 = vmatpush1.msra.mxu0 0.0
    %8251 = vmatprep.subr.mxu0 0.0
    %8252 = vmatpush1.msra.mxu0 0.0
    %8253 = vmatprep.subr.mxu0 0.0
    %8254 = vmatpush1.msra.mxu0 0.0
    %8255 = vmatprep.subr.mxu0 0.0
    %8256 = vmatpush1.msra.mxu0 0.0
    %8257 = vmatprep.mubr.f32.mxu0 0.0
    %8258 = vmatmul.mubr.f32.gmra.mrb[0].mxu0 %v8191
    %v8259 = vpop.f32.mrb[0].mxu0
    %v8260 = vadd.f32 %v80, %v8259
    %v8261 = vpop.f32.mrb[0].mxu0
    %8262 = vdwg.mxu0
    %v8263 = vtanh.pop %v8260
    %v8265 = vsel %vm168, %v8263, 0
    %8267 = vmatprep.subr.mxu0 0.0
    %8268 = vmatpush1.msra.mxu0 %v81
    %8269 = vmatprep.subr.mxu0 0.0
    %8270 = vmatpush1.msra.mxu0 %v82
    %8271 = vmatprep.subr.mxu0 0.0
    %8272 = vmatpush1.msra.mxu0 %v83
    %8273 = vmatprep.subr.mxu0 0.0
    %8274 = vmatpush1.msra.mxu0 %v84
    %8275 = vmatprep.subr.mxu0 0.0
    %8276 = vmatpush1.msra.mxu0 %v85
    %8277 = vmatprep.subr.mxu0 0.0
    %8278 = vmatpush1.msra.mxu0 0.0
    %8279 = vmatprep.subr.mxu0 0.0
    %8280 = vmatpush1.msra.mxu0 0.0
    %8281 = vmatprep.subr.mxu0 0.0
    %8282 = vmatpush1.msra.mxu0 0.0
    %8283 = vmatprep.subr.mxu0 0.0
    %8284 = vmatpush1.msra.mxu0 0.0
    %8285 = vmatprep.subr.mxu0 0.0
    %8286 = vmatpush1.msra.mxu0 0.0
    %8287 = vmatprep.subr.mxu0 0.0
    %8288 = vmatpush1.msra.mxu0 0.0
    %8289 = vmatprep.subr.mxu0 0.0
    %8290 = vmatpush1.msra.mxu0 0.0
    %8291 = vmatprep.subr.mxu0 0.0
    %8292 = vmatpush1.msra.mxu0 0.0
    %8293 = vmatprep.subr.mxu0 0.0
    %8294 = vmatpush1.msra.mxu0 0.0
    %8295 = vmatprep.subr.mxu0 0.0
    %8296 = vmatpush1.msra.mxu0 0.0
    %8297 = vmatprep.subr.mxu0 0.0
    %8298 = vmatpush1.msra.mxu0 0.0
    %8299 = vmatprep.subr.mxu0 0.0
    %8300 = vmatpush1.msra.mxu0 0.0
    %8301 = vmatprep.subr.mxu0 0.0
    %8302 = vmatpush1.msra.mxu0 0.0
    %8303 = vmatprep.subr.mxu0 0.0
    %8304 = vmatpush1.msra.mxu0 0.0
    %8305 = vmatprep.subr.mxu0 0.0
    %8306 = vmatpush1.msra.mxu0 0.0
    %8307 = vmatprep.subr.mxu0 0.0
    %8308 = vmatpush1.msra.mxu0 0.0
    %8309 = vmatprep.subr.mxu0 0.0
    %8310 = vmatpush1.msra.mxu0 0.0
    %8311 = vmatprep.subr.mxu0 0.0
    %8312 = vmatpush1.msra.mxu0 0.0
    %8313 = vmatprep.subr.mxu0 0.0
    %8314 = vmatpush1.msra.mxu0 0.0
    %8315 = vmatprep.subr.mxu0 0.0
    %8316 = vmatpush1.msra.mxu0 0.0
    %8317 = vmatprep.subr.mxu0 0.0
    %8318 = vmatpush1.msra.mxu0 0.0
    %8319 = vmatprep.subr.mxu0 0.0
    %8320 = vmatpush1.msra.mxu0 0.0
    %8321 = vmatprep.subr.mxu0 0.0
    %8322 = vmatpush1.msra.mxu0 0.0
    %8323 = vmatprep.subr.mxu0 0.0
    %8324 = vmatpush1.msra.mxu0 0.0
    %8325 = vmatprep.subr.mxu0 0.0
    %8326 = vmatpush1.msra.mxu0 0.0
    %8327 = vmatprep.subr.mxu0 0.0
    %8328 = vmatpush1.msra.mxu0 0.0
    %8329 = vmatprep.subr.mxu0 0.0
    %8330 = vmatpush1.msra.mxu0 0.0
    %8331 = vmatprep.mubr.f32.mxu0 0.0
    %8332 = vmatmul.mubr.f32.gmra.mrb[0].mxu0 %v8265
    %v8333 = vpop.f32.mrb[0].mxu0
    %v8334 = vadd.f32 %v86, %v8333
    %v8335 = vpop.f32.mrb[0].mxu0
    %8336 = vdwg.mxu0
    %v8337 = vmul.f32 %v7965, %v8334
    %v8338 = vadd.f32 %v7590, %v8337
    %v8340 = vsel %vm93, %v8338, 0
    %8342 = vmatprep.subr.mxu0 0.0
    %8343 = vmatpush1.msra.mxu0 %v57
    %8344 = vmatprep.subr.mxu0 0.0
    %8345 = vmatpush1.msra.mxu0 0.0
    %8346 = vmatprep.subr.mxu0 0.0
    %8347 = vmatpush1.msra.mxu0 0.0
    %8348 = vmatprep.subr.mxu0 0.0
    %8349 = vmatpush1.msra.mxu0 0.0
    %8350 = vmatprep.subr.mxu0 0.0
    %8351 = vmatpush1.msra.mxu0 0.0
    %8352 = vmatprep.subr.mxu0 0.0
    %8353 = vmatpush1.msra.mxu0 0.0
    %8354 = vmatprep.subr.mxu0 0.0
    %8355 = vmatpush1.msra.mxu0 0.0
    %8356 = vmatprep.subr.mxu0 0.0
    %8357 = vmatpush1.msra.mxu0 0.0
    %8358 = vmatprep.subr.mxu0 0.0
    %8359 = vmatpush1.msra.mxu0 0.0
    %8360 = vmatprep.subr.mxu0 0.0
    %8361 = vmatpush1.msra.mxu0 0.0
    %8362 = vmatprep.subr.mxu0 0.0
    %8363 = vmatpush1.msra.mxu0 0.0
    %8364 = vmatprep.subr.mxu0 0.0
    %8365 = vmatpush1.msra.mxu0 0.0
    %8366 = vmatprep.subr.mxu0 0.0
    %8367 = vmatpush1.msra.mxu0 0.0
    %8368 = vmatprep.subr.mxu0 0.0
    %8369 = vmatpush1.msra.mxu0 0.0
    %8370 = vmatprep.subr.mxu0 0.0
    %8371 = vmatpush1.msra.mxu0 0.0
    %8372 = vmatprep.subr.mxu0 0.0
    %8373 = vmatpush1.msra.mxu0 0.0
    %8374 = vmatprep.subr.mxu0 0.0
    %8375 = vmatpush1.msra.mxu0 0.0
    %8376 = vmatprep.subr.mxu0 0.0
    %8377 = vmatpush1.msra.mxu0 0.0
    %8378 = vmatprep.subr.mxu0 0.0
    %8379 = vmatpush1.msra.mxu0 0.0
    %8380 = vmatprep.subr.mxu0 0.0
    %8381 = vmatpush1.msra.mxu0 0.0
    %8382 = vmatprep.subr.mxu0 0.0
    %8383 = vmatpush1.msra.mxu0 0.0
    %8384 = vmatprep.subr.mxu0 0.0
    %8385 = vmatpush1.msra.mxu0 0.0
    %8386 = vmatprep.subr.mxu0 0.0
    %8387 = vmatpush1.msra.mxu0 0.0
    %8388 = vmatprep.subr.mxu0 0.0
    %8389 = vmatpush1.msra.mxu0 0.0
    %8390 = vmatprep.subr.mxu0 0.0
    %8391 = vmatpush1.msra.mxu0 0.0
    %8392 = vmatprep.subr.mxu0 0.0
    %8393 = vmatpush1.msra.mxu0 0.0
    %8394 = vmatprep.subr.mxu0 0.0
    %8395 = vmatpush1.msra.mxu0 0.0
    %8396 = vmatprep.subr.mxu0 0.0
    %8397 = vmatpush1.msra.mxu0 0.0
    %8398 = vmatprep.subr.mxu0 0.0
    %8399 = vmatpush1.msra.mxu0 0.0
    %8400 = vmatprep.subr.mxu0 0.0
    %8401 = vmatpush1.msra.mxu0 0.0
    %8402 = vmatprep.subr.mxu0 0.0
    %8403 = vmatpush1.msra.mxu0 0.0
    %8404 = vmatprep.subr.mxu0 0.0
    %8405 = vmatpush1.msra.mxu0 0.0
    %8406 = vmatprep.mubr.f32.mxu0 0.0
    %8407 = vmatmul.mubr.f32.gmra.mrb[0].mxu0 %v8340
    %v8408 = vpop.f32.mrb[0].mxu0
    %v8409 = vadd.f32 %v58, %v8408
    %v8410 = vpop.f32.mrb[0].mxu0
    %8411 = vdwg.mxu0
    %v8412 = vtanh.pop %v8409
    %v8414 = vsel %vm168, %v8412, 0
    %8416 = vmatprep.subr.mxu0 0.0
    %8417 = vmatpush1.msra.mxu0 %v59
    %8418 = vmatprep.subr.mxu0 0.0
    %8419 = vmatpush1.msra.mxu0 %v60
    %8420 = vmatprep.subr.mxu0 0.0
    %8421 = vmatpush1.msra.mxu0 %v61
    %8422 = vmatprep.subr.mxu0 0.0
    %8423 = vmatpush1.msra.mxu0 %v62
    %8424 = vmatprep.subr.mxu0 0.0
    %8425 = vmatpush1.msra.mxu0 %v63
    %8426 = vmatprep.subr.mxu0 0.0
    %8427 = vmatpush1.msra.mxu0 0.0
    %8428 = vmatprep.subr.mxu0 0.0
    %8429 = vmatpush1.msra.mxu0 0.0
    %8430 = vmatprep.subr.mxu0 0.0
    %8431 = vmatpush1.msra.mxu0 0.0
    %8432 = vmatprep.subr.mxu0 0.0
    %8433 = vmatpush1.msra.mxu0 0.0
    %8434 = vmatprep.subr.mxu0 0.0
    %8435 = vmatpush1.msra.mxu0 0.0
    %8436 = vmatprep.subr.mxu0 0.0
    %8437 = vmatpush1.msra.mxu0 0.0
    %8438 = vmatprep.subr.mxu0 0.0
    %8439 = vmatpush1.msra.mxu0 0.0
    %8440 = vmatprep.subr.mxu0 0.0
    %8441 = vmatpush1.msra.mxu0 0.0
    %8442 = vmatprep.subr.mxu0 0.0
    %8443 = vmatpush1.msra.mxu0 0.0
    %8444 = vmatprep.subr.mxu0 0.0
    %8445 = vmatpush1.msra.mxu0 0.0
    %8446 = vmatprep.subr.mxu0 0.0
    %8447 = vmatpush1.msra.mxu0 0.0
    %8448 = vmatprep.subr.mxu0 0.0
    %8449 = vmatpush1.msra.mxu0 0.0
    %8450 = vmatprep.subr.mxu0 0.0
    %8451 = vmatpush1.msra.mxu0 0.0
    %8452 = vmatprep.subr.mxu0 0.0
    %8453 = vmatpush1.msra.mxu0 0.0
    %8454 = vmatprep.subr.mxu0 0.0
    %8455 = vmatpush1.msra.mxu0 0.0
    %8456 = vmatprep.subr.mxu0 0.0
    %8457 = vmatpush1.msra.mxu0 0.0
    %8458 = vmatprep.subr.mxu0 0.0
    %8459 = vmatpush1.msra.mxu0 0.0
    %8460 = vmatprep.subr.mxu0 0.0
    %8461 = vmatpush1.msra.mxu0 0.0
    %8462 = vmatprep.subr.mxu0 0.0
    %8463 = vmatpush1.msra.mxu0 0.0
    %8464 = vmatprep.subr.mxu0 0.0
    %8465 = vmatpush1.msra.mxu0 0.0
    %8466 = vmatprep.subr.mxu0 0.0
    %8467 = vmatpush1.msra.mxu0 0.0
    %8468 = vmatprep.subr.mxu0 0.0
    %8469 = vmatpush1.msra.mxu0 0.0
    %8470 = vmatprep.subr.mxu0 0.0
    %8471 = vmatpush1.msra.mxu0 0.0
    %8472 = vmatprep.subr.mxu0 0.0
    %8473 = vmatpush1.msra.mxu0 0.0
    %8474 = vmatprep.subr.mxu0 0.0
    %8475 = vmatpush1.msra.mxu0 0.0
    %8476 = vmatprep.subr.mxu0 0.0
    %8477 = vmatpush1.msra.mxu0 0.0
    %8478 = vmatprep.subr.mxu0 0.0
    %8479 = vmatpush1.msra.mxu0 0.0
    %8480 = vmatprep.mubr.f32.mxu0 0.0
    %8481 = vmatmul.mubr.f32.gmra.mrb[0].mxu0 %v8414
    %v8482 = vpop.f32.mrb[0].mxu0
    %v8483 = vadd.f32 %v76, %v8482
    %v8484 = vpop.f32.mrb[0].mxu0
    %8485 = vdwg.mxu0
    %v8486 = vtanh.pop %v8483
    %v8488 = vsel %vm168, %v8486, 0
    %8490 = vmatprep.subr.mxu0 0.0
    %8491 = vmatpush1.msra.mxu0 %v65
    %8492 = vmatprep.subr.mxu0 0.0
    %8493 = vmatpush1.msra.mxu0 %v66
    %8494 = vmatprep.subr.mxu0 0.0
    %8495 = vmatpush1.msra.mxu0 %v67
    %8496 = vmatprep.subr.mxu0 0.0
    %8497 = vmatpush1.msra.mxu0 %v68
    %8498 = vmatprep.subr.mxu0 0.0
    %8499 = vmatpush1.msra.mxu0 %v69
    %8500 = vmatprep.subr.mxu0 0.0
    %8501 = vmatpush1.msra.mxu0 0.0
    %8502 = vmatprep.subr.mxu0 0.0
    %8503 = vmatpush1.msra.mxu0 0.0
    %8504 = vmatprep.subr.mxu0 0.0
    %8505 = vmatpush1.msra.mxu0 0.0
    %8506 = vmatprep.subr.mxu0 0.0
    %8507 = vmatpush1.msra.mxu0 0.0
    %8508 = vmatprep.subr.mxu0 0.0
    %8509 = vmatpush1.msra.mxu0 0.0
    %8510 = vmatprep.subr.mxu0 0.0
    %8511 = vmatpush1.msra.mxu0 0.0
    %8512 = vmatprep.subr.mxu0 0.0
    %8513 = vmatpush1.msra.mxu0 0.0
    %8514 = vmatprep.subr.mxu0 0.0
    %8515 = vmatpush1.msra.mxu0 0.0
    %8516 = vmatprep.subr.mxu0 0.0
    %8517 = vmatpush1.msra.mxu0 0.0
    %8518 = vmatprep.subr.mxu0 0.0
    %8519 = vmatpush1.msra.mxu0 0.0
    %8520 = vmatprep.subr.mxu0 0.0
    %8521 = vmatpush1.msra.mxu0 0.0
    %8522 = vmatprep.subr.mxu0 0.0
    %8523 = vmatpush1.msra.mxu0 0.0
    %8524 = vmatprep.subr.mxu0 0.0
    %8525 = vmatpush1.msra.mxu0 0.0
    %8526 = vmatprep.subr.mxu0 0.0
    %8527 = vmatpush1.msra.mxu0 0.0
    %8528 = vmatprep.subr.mxu0 0.0
    %8529 = vmatpush1.msra.mxu0 0.0
    %8530 = vmatprep.subr.mxu0 0.0
    %8531 = vmatpush1.msra.mxu0 0.0
    %8532 = vmatprep.subr.mxu0 0.0
    %8533 = vmatpush1.msra.mxu0 0.0
    %8534 = vmatprep.subr.mxu0 0.0
    %8535 = vmatpush1.msra.mxu0 0.0
    %8536 = vmatprep.subr.mxu0 0.0
    %8537 = vmatpush1.msra.mxu0 0.0
    %8538 = vmatprep.subr.mxu0 0.0
    %8539 = vmatpush1.msra.mxu0 0.0
    %8540 = vmatprep.subr.mxu0 0.0
    %8541 = vmatpush1.msra.mxu0 0.0
    %8542 = vmatprep.subr.mxu0 0.0
    %8543 = vmatpush1.msra.mxu0 0.0
    %8544 = vmatprep.subr.mxu0 0.0
    %8545 = vmatpush1.msra.mxu0 0.0
    %8546 = vmatprep.subr.mxu0 0.0
    %8547 = vmatpush1.msra.mxu0 0.0
    %8548 = vmatprep.subr.mxu0 0.0
    %8549 = vmatpush1.msra.mxu0 0.0
    %8550 = vmatprep.subr.mxu0 0.0
    %8551 = vmatpush1.msra.mxu0 0.0
    %8552 = vmatprep.subr.mxu0 0.0
    %8553 = vmatpush1.msra.mxu0 0.0
    %8554 = vmatprep.mubr.f32.mxu0 0.0
    %8555 = vmatmul.mubr.f32.gmra.mrb[0].mxu0 %v8488
    %v8556 = vpop.f32.mrb[0].mxu0
    %v8557 = vadd.f32 %v78, %v8556
    %v8558 = vpop.f32.mrb[0].mxu0
    %8559 = vdwg.mxu0
    %v8560 = vtanh.pop %v8557
    %v8562 = vsel %vm168, %v8560, 0
    %8564 = vmatprep.subr.mxu0 0.0
    %8565 = vmatpush1.msra.mxu0 %v71
    %8566 = vmatprep.subr.mxu0 0.0
    %8567 = vmatpush1.msra.mxu0 %v72
    %8568 = vmatprep.subr.mxu0 0.0
    %8569 = vmatpush1.msra.mxu0 %v73
    %8570 = vmatprep.subr.mxu0 0.0
    %8571 = vmatpush1.msra.mxu0 %v74
    %8572 = vmatprep.subr.mxu0 0.0
    %8573 = vmatpush1.msra.mxu0 %v75
    %8574 = vmatprep.subr.mxu0 0.0
    %8575 = vmatpush1.msra.mxu0 0.0
    %8576 = vmatprep.subr.mxu0 0.0
    %8577 = vmatpush1.msra.mxu0 0.0
    %8578 = vmatprep.subr.mxu0 0.0
    %8579 = vmatpush1.msra.mxu0 0.0
    %8580 = vmatprep.subr.mxu0 0.0
    %8581 = vmatpush1.msra.mxu0 0.0
    %8582 = vmatprep.subr.mxu0 0.0
    %8583 = vmatpush1.msra.mxu0 0.0
    %8584 = vmatprep.subr.mxu0 0.0
    %8585 = vmatpush1.msra.mxu0 0.0
    %8586 = vmatprep.subr.mxu0 0.0
    %8587 = vmatpush1.msra.mxu0 0.0
    %8588 = vmatprep.subr.mxu0 0.0
    %8589 = vmatpush1.msra.mxu0 0.0
    %8590 = vmatprep.subr.mxu0 0.0
    %8591 = vmatpush1.msra.mxu0 0.0
    %8592 = vmatprep.subr.mxu0 0.0
    %8593 = vmatpush1.msra.mxu0 0.0
    %8594 = vmatprep.subr.mxu0 0.0
    %8595 = vmatpush1.msra.mxu0 0.0
    %8596 = vmatprep.subr.mxu0 0.0
    %8597 = vmatpush1.msra.mxu0 0.0
    %8598 = vmatprep.subr.mxu0 0.0
    %8599 = vmatpush1.msra.mxu0 0.0
    %8600 = vmatprep.subr.mxu0 0.0
    %8601 = vmatpush1.msra.mxu0 0.0
    %8602 = vmatprep.subr.mxu0 0.0
    %8603 = vmatpush1.msra.mxu0 0.0
    %8604 = vmatprep.subr.mxu0 0.0
    %8605 = vmatpush1.msra.mxu0 0.0
    %8606 = vmatprep.subr.mxu0 0.0
    %8607 = vmatpush1.msra.mxu0 0.0
    %8608 = vmatprep.subr.mxu0 0.0
    %8609 = vmatpush1.msra.mxu0 0.0
    %8610 = vmatprep.subr.mxu0 0.0
    %8611 = vmatpush1.msra.mxu0 0.0
    %8612 = vmatprep.subr.mxu0 0.0
    %8613 = vmatpush1.msra.mxu0 0.0
    %8614 = vmatprep.subr.mxu0 0.0
    %8615 = vmatpush1.msra.mxu0 0.0
    %8616 = vmatprep.subr.mxu0 0.0
    %8617 = vmatpush1.msra.mxu0 0.0
    %8618 = vmatprep.subr.mxu0 0.0
    %8619 = vmatpush1.msra.mxu0 0.0
    %8620 = vmatprep.subr.mxu0 0.0
    %8621 = vmatpush1.msra.mxu0 0.0
    %8622 = vmatprep.subr.mxu0 0.0
    %8623 = vmatpush1.msra.mxu0 0.0
    %8624 = vmatprep.subr.mxu0 0.0
    %8625 = vmatpush1.msra.mxu0 0.0
    %8626 = vmatprep.subr.mxu0 0.0
    %8627 = vmatpush1.msra.mxu0 0.0
    %8628 = vmatprep.mubr.f32.mxu0 0.0
    %8629 = vmatmul.mubr.f32.gmra.mrb[0].mxu0 %v8562
    %v8630 = vpop.f32.mrb[0].mxu0
    %v8631 = vadd.f32 %v80, %v8630
    %v8632 = vpop.f32.mrb[0].mxu0
    %8633 = vdwg.mxu0
    %v8634 = vtanh.pop %v8631
    %v8636 = vsel %vm168, %v8634, 0
    %8638 = vmatprep.subr.mxu0 0.0
    %8639 = vmatpush1.msra.mxu0 %v81
    %8640 = vmatprep.subr.mxu0 0.0
    %8641 = vmatpush1.msra.mxu0 %v82
    %8642 = vmatprep.subr.mxu0 0.0
    %8643 = vmatpush1.msra.mxu0 %v83
    %8644 = vmatprep.subr.mxu0 0.0
    %8645 = vmatpush1.msra.mxu0 %v84
    %8646 = vmatprep.subr.mxu0 0.0
    %8647 = vmatpush1.msra.mxu0 %v85
    %8648 = vmatprep.subr.mxu0 0.0
    %8649 = vmatpush1.msra.mxu0 0.0
    %8650 = vmatprep.subr.mxu0 0.0
    %8651 = vmatpush1.msra.mxu0 0.0
    %8652 = vmatprep.subr.mxu0 0.0
    %8653 = vmatpush1.msra.mxu0 0.0
    %8654 = vmatprep.subr.mxu0 0.0
    %8655 = vmatpush1.msra.mxu0 0.0
    %8656 = vmatprep.subr.mxu0 0.0
    %8657 = vmatpush1.msra.mxu0 0.0
    %8658 = vmatprep.subr.mxu0 0.0
    %8659 = vmatpush1.msra.mxu0 0.0
    %8660 = vmatprep.subr.mxu0 0.0
    %8661 = vmatpush1.msra.mxu0 0.0
    %8662 = vmatprep.subr.mxu0 0.0
    %8663 = vmatpush1.msra.mxu0 0.0
    %8664 = vmatprep.subr.mxu0 0.0
    %8665 = vmatpush1.msra.mxu0 0.0
    %8666 = vmatprep.subr.mxu0 0.0
    %8667 = vmatpush1.msra.mxu0 0.0
    %8668 = vmatprep.subr.mxu0 0.0
    %8669 = vmatpush1.msra.mxu0 0.0
    %8670 = vmatprep.subr.mxu0 0.0
    %8671 = vmatpush1.msra.mxu0 0.0
    %8672 = vmatprep.subr.mxu0 0.0
    %8673 = vmatpush1.msra.mxu0 0.0
    %8674 = vmatprep.subr.mxu0 0.0
    %8675 = vmatpush1.msra.mxu0 0.0
    %8676 = vmatprep.subr.mxu0 0.0
    %8677 = vmatpush1.msra.mxu0 0.0
    %8678 = vmatprep.subr.mxu0 0.0
    %8679 = vmatpush1.msra.mxu0 0.0
    %8680 = vmatprep.subr.mxu0 0.0
    %8681 = vmatpush1.msra.mxu0 0.0
    %8682 = vmatprep.subr.mxu0 0.0
    %8683 = vmatpush1.msra.mxu0 0.0
    %8684 = vmatprep.subr.mxu0 0.0
    %8685 = vmatpush1.msra.mxu0 0.0
    %8686 = vmatprep.subr.mxu0 0.0
    %8687 = vmatpush1.msra.mxu0 0.0
    %8688 = vmatprep.subr.mxu0 0.0
    %8689 = vmatpush1.msra.mxu0 0.0
    %8690 = vmatprep.subr.mxu0 0.0
    %8691 = vmatpush1.msra.mxu0 0.0
    %8692 = vmatprep.subr.mxu0 0.0
    %8693 = vmatpush1.msra.mxu0 0.0
    %8694 = vmatprep.subr.mxu0 0.0
    %8695 = vmatpush1.msra.mxu0 0.0
    %8696 = vmatprep.subr.mxu0 0.0
    %8697 = vmatpush1.msra.mxu0 0.0
    %8698 = vmatprep.subr.mxu0 0.0
    %8699 = vmatpush1.msra.mxu0 0.0
    %8700 = vmatprep.subr.mxu0 0.0
    %8701 = vmatpush1.msra.mxu0 0.0
    %8702 = vmatprep.mubr.f32.mxu0 0.0
    %8703 = vmatmul.mubr.f32.gmra.mrb[0].mxu0 %v8636
    %v8704 = vpop.f32.mrb[0].mxu0
    %v8705 = vadd.f32 %v86, %v8704
    %v8706 = vpop.f32.mrb[0].mxu0
    %8707 = vdwg.mxu0
    %v8708 = vstv %s7594
    %v8709 = vmul.f32 %v8708, %v8705
    %v8710 = vadd.f32 %v7590, %v8709
    %v8712 = vsel %vm93, %v8710, 0
    %8714 = vmatprep.subr.mxu0 0.0
    %8715 = vmatpush1.msra.mxu0 %v57
    %8716 = vmatprep.subr.mxu0 0.0
    %8717 = vmatpush1.msra.mxu0 0.0
    %8718 = vmatprep.subr.mxu0 0.0
    %8719 = vmatpush1.msra.mxu0 0.0
    %8720 = vmatprep.subr.mxu0 0.0
    %8721 = vmatpush1.msra.mxu0 0.0
    %8722 = vmatprep.subr.mxu0 0.0
    %8723 = vmatpush1.msra.mxu0 0.0
    %8724 = vmatprep.subr.mxu0 0.0
    %8725 = vmatpush1.msra.mxu0 0.0
    %8726 = vmatprep.subr.mxu0 0.0
    %8727 = vmatpush1.msra.mxu0 0.0
    %8728 = vmatprep.subr.mxu0 0.0
    %8729 = vmatpush1.msra.mxu0 0.0
    %8730 = vmatprep.subr.mxu0 0.0
    %8731 = vmatpush1.msra.mxu0 0.0
    %8732 = vmatprep.subr.mxu0 0.0
    %8733 = vmatpush1.msra.mxu0 0.0
    %8734 = vmatprep.subr.mxu0 0.0
    %8735 = vmatpush1.msra.mxu0 0.0
    %8736 = vmatprep.subr.mxu0 0.0
    %8737 = vmatpush1.msra.mxu0 0.0
    %8738 = vmatprep.subr.mxu0 0.0
    %8739 = vmatpush1.msra.mxu0 0.0
    %8740 = vmatprep.subr.mxu0 0.0
    %8741 = vmatpush1.msra.mxu0 0.0
    %8742 = vmatprep.subr.mxu0 0.0
    %8743 = vmatpush1.msra.mxu0 0.0
    %8744 = vmatprep.subr.mxu0 0.0
    %8745 = vmatpush1.msra.mxu0 0.0
    %8746 = vmatprep.subr.mxu0 0.0
    %8747 = vmatpush1.msra.mxu0 0.0
    %8748 = vmatprep.subr.mxu0 0.0
    %8749 = vmatpush1.msra.mxu0 0.0
    %8750 = vmatprep.subr.mxu0 0.0
    %8751 = vmatpush1.msra.mxu0 0.0
    %8752 = vmatprep.subr.mxu0 0.0
    %8753 = vmatpush1.msra.mxu0 0.0
    %8754 = vmatprep.subr.mxu0 0.0
    %8755 = vmatpush1.msra.mxu0 0.0
    %8756 = vmatprep.subr.mxu0 0.0
    %8757 = vmatpush1.msra.mxu0 0.0
    %8758 = vmatprep.subr.mxu0 0.0
    %8759 = vmatpush1.msra.mxu0 0.0
    %8760 = vmatprep.subr.mxu0 0.0
    %8761 = vmatpush1.msra.mxu0 0.0
    %8762 = vmatprep.subr.mxu0 0.0
    %8763 = vmatpush1.msra.mxu0 0.0
    %8764 = vmatprep.subr.mxu0 0.0
    %8765 = vmatpush1.msra.mxu0 0.0
    %8766 = vmatprep.subr.mxu0 0.0
    %8767 = vmatpush1.msra.mxu0 0.0
    %8768 = vmatprep.subr.mxu0 0.0
    %8769 = vmatpush1.msra.mxu0 0.0
    %8770 = vmatprep.subr.mxu0 0.0
    %8771 = vmatpush1.msra.mxu0 0.0
    %8772 = vmatprep.subr.mxu0 0.0
    %8773 = vmatpush1.msra.mxu0 0.0
    %8774 = vmatprep.subr.mxu0 0.0
    %8775 = vmatpush1.msra.mxu0 0.0
    %8776 = vmatprep.subr.mxu0 0.0
    %8777 = vmatpush1.msra.mxu0 0.0
    %8778 = vmatprep.mubr.f32.mxu0 0.0
    %8779 = vmatmul.mubr.f32.gmra.mrb[0].mxu0 %v8712
    %v8780 = vpop.f32.mrb[0].mxu0
    %v8781 = vadd.f32 %v58, %v8780
    %v8782 = vpop.f32.mrb[0].mxu0
    %8783 = vdwg.mxu0
    %v8784 = vtanh.pop %v8781
    %v8786 = vsel %vm168, %v8784, 0
    %8788 = vmatprep.subr.mxu0 0.0
    %8789 = vmatpush1.msra.mxu0 %v59
    %8790 = vmatprep.subr.mxu0 0.0
    %8791 = vmatpush1.msra.mxu0 %v60
    %8792 = vmatprep.subr.mxu0 0.0
    %8793 = vmatpush1.msra.mxu0 %v61
    %8794 = vmatprep.subr.mxu0 0.0
    %8795 = vmatpush1.msra.mxu0 %v62
    %8796 = vmatprep.subr.mxu0 0.0
    %8797 = vmatpush1.msra.mxu0 %v63
    %8798 = vmatprep.subr.mxu0 0.0
    %8799 = vmatpush1.msra.mxu0 0.0
    %8800 = vmatprep.subr.mxu0 0.0
    %8801 = vmatpush1.msra.mxu0 0.0
    %8802 = vmatprep.subr.mxu0 0.0
    %8803 = vmatpush1.msra.mxu0 0.0
    %8804 = vmatprep.subr.mxu0 0.0
    %8805 = vmatpush1.msra.mxu0 0.0
    %8806 = vmatprep.subr.mxu0 0.0
    %8807 = vmatpush1.msra.mxu0 0.0
    %8808 = vmatprep.subr.mxu0 0.0
    %8809 = vmatpush1.msra.mxu0 0.0
    %8810 = vmatprep.subr.mxu0 0.0
    %8811 = vmatpush1.msra.mxu0 0.0
    %8812 = vmatprep.subr.mxu0 0.0
    %8813 = vmatpush1.msra.mxu0 0.0
    %8814 = vmatprep.subr.mxu0 0.0
    %8815 = vmatpush1.msra.mxu0 0.0
    %8816 = vmatprep.subr.mxu0 0.0
    %8817 = vmatpush1.msra.mxu0 0.0
    %8818 = vmatprep.subr.mxu0 0.0
    %8819 = vmatpush1.msra.mxu0 0.0
    %8820 = vmatprep.subr.mxu0 0.0
    %8821 = vmatpush1.msra.mxu0 0.0
    %8822 = vmatprep.subr.mxu0 0.0
    %8823 = vmatpush1.msra.mxu0 0.0
    %8824 = vmatprep.subr.mxu0 0.0
    %8825 = vmatpush1.msra.mxu0 0.0
    %8826 = vmatprep.subr.mxu0 0.0
    %8827 = vmatpush1.msra.mxu0 0.0
    %8828 = vmatprep.subr.mxu0 0.0
    %8829 = vmatpush1.msra.mxu0 0.0
    %8830 = vmatprep.subr.mxu0 0.0
    %8831 = vmatpush1.msra.mxu0 0.0
    %8832 = vmatprep.subr.mxu0 0.0
    %8833 = vmatpush1.msra.mxu0 0.0
    %8834 = vmatprep.subr.mxu0 0.0
    %8835 = vmatpush1.msra.mxu0 0.0
    %8836 = vmatprep.subr.mxu0 0.0
    %8837 = vmatpush1.msra.mxu0 0.0
    %8838 = vmatprep.subr.mxu0 0.0
    %8839 = vmatpush1.msra.mxu0 0.0
    %8840 = vmatprep.subr.mxu0 0.0
    %8841 = vmatpush1.msra.mxu0 0.0
    %8842 = vmatprep.subr.mxu0 0.0
    %8843 = vmatpush1.msra.mxu0 0.0
    %8844 = vmatprep.subr.mxu0 0.0
    %8845 = vmatpush1.msra.mxu0 0.0
    %8846 = vmatprep.subr.mxu0 0.0
    %8847 = vmatpush1.msra.mxu0 0.0
    %8848 = vmatprep.subr.mxu0 0.0
    %8849 = vmatpush1.msra.mxu0 0.0
    %8850 = vmatprep.subr.mxu0 0.0
    %8851 = vmatpush1.msra.mxu0 0.0
    %8852 = vmatprep.mubr.f32.mxu0 0.0
    %8853 = vmatmul.mubr.f32.gmra.mrb[0].mxu0 %v8786
    %v8854 = vpop.f32.mrb[0].mxu0
    %v8855 = vadd.f32 %v76, %v8854
    %v8856 = vpop.f32.mrb[0].mxu0
    %8857 = vdwg.mxu0
    %v8858 = vtanh.pop %v8855
    %v8860 = vsel %vm168, %v8858, 0
    %8862 = vmatprep.subr.mxu0 0.0
    %8863 = vmatpush1.msra.mxu0 %v65
    %8864 = vmatprep.subr.mxu0 0.0
    %8865 = vmatpush1.msra.mxu0 %v66
    %8866 = vmatprep.subr.mxu0 0.0
    %8867 = vmatpush1.msra.mxu0 %v67
    %8868 = vmatprep.subr.mxu0 0.0
    %8869 = vmatpush1.msra.mxu0 %v68
    %8870 = vmatprep.subr.mxu0 0.0
    %8871 = vmatpush1.msra.mxu0 %v69
    %8872 = vmatprep.subr.mxu0 0.0
    %8873 = vmatpush1.msra.mxu0 0.0
    %8874 = vmatprep.subr.mxu0 0.0
    %8875 = vmatpush1.msra.mxu0 0.0
    %8876 = vmatprep.subr.mxu0 0.0
    %8877 = vmatpush1.msra.mxu0 0.0
    %8878 = vmatprep.subr.mxu0 0.0
    %8879 = vmatpush1.msra.mxu0 0.0
    %8880 = vmatprep.subr.mxu0 0.0
    %8881 = vmatpush1.msra.mxu0 0.0
    %8882 = vmatprep.subr.mxu0 0.0
    %8883 = vmatpush1.msra.mxu0 0.0
    %8884 = vmatprep.subr.mxu0 0.0
    %8885 = vmatpush1.msra.mxu0 0.0
    %8886 = vmatprep.subr.mxu0 0.0
    %8887 = vmatpush1.msra.mxu0 0.0
    %8888 = vmatprep.subr.mxu0 0.0
    %8889 = vmatpush1.msra.mxu0 0.0
    %8890 = vmatprep.subr.mxu0 0.0
    %8891 = vmatpush1.msra.mxu0 0.0
    %8892 = vmatprep.subr.mxu0 0.0
    %8893 = vmatpush1.msra.mxu0 0.0
    %8894 = vmatprep.subr.mxu0 0.0
    %8895 = vmatpush1.msra.mxu0 0.0
    %8896 = vmatprep.subr.mxu0 0.0
    %8897 = vmatpush1.msra.mxu0 0.0
    %8898 = vmatprep.subr.mxu0 0.0
    %8899 = vmatpush1.msra.mxu0 0.0
    %8900 = vmatprep.subr.mxu0 0.0
    %8901 = vmatpush1.msra.mxu0 0.0
    %8902 = vmatprep.subr.mxu0 0.0
    %8903 = vmatpush1.msra.mxu0 0.0
    %8904 = vmatprep.subr.mxu0 0.0
    %8905 = vmatpush1.msra.mxu0 0.0
    %8906 = vmatprep.subr.mxu0 0.0
    %8907 = vmatpush1.msra.mxu0 0.0
    %8908 = vmatprep.subr.mxu0 0.0
    %8909 = vmatpush1.msra.mxu0 0.0
    %8910 = vmatprep.subr.mxu0 0.0
    %8911 = vmatpush1.msra.mxu0 0.0
    %8912 = vmatprep.subr.mxu0 0.0
    %8913 = vmatpush1.msra.mxu0 0.0
    %8914 = vmatprep.subr.mxu0 0.0
    %8915 = vmatpush1.msra.mxu0 0.0
    %8916 = vmatprep.subr.mxu0 0.0
    %8917 = vmatpush1.msra.mxu0 0.0
    %8918 = vmatprep.subr.mxu0 0.0
    %8919 = vmatpush1.msra.mxu0 0.0
    %8920 = vmatprep.subr.mxu0 0.0
    %8921 = vmatpush1.msra.mxu0 0.0
    %8922 = vmatprep.subr.mxu0 0.0
    %8923 = vmatpush1.msra.mxu0 0.0
    %8924 = vmatprep.subr.mxu0 0.0
    %8925 = vmatpush1.msra.mxu0 0.0
    %8926 = vmatprep.mubr.f32.mxu0 0.0
    %8927 = vmatmul.mubr.f32.gmra.mrb[0].mxu0 %v8860
    %v8928 = vpop.f32.mrb[0].mxu0
    %v8929 = vadd.f32 %v78, %v8928
    %v8930 = vpop.f32.mrb[0].mxu0
    %8931 = vdwg.mxu0
    %v8932 = vtanh.pop %v8929
    %v8934 = vsel %vm168, %v8932, 0
    %8936 = vmatprep.subr.mxu0 0.0
    %8937 = vmatpush1.msra.mxu0 %v71
    %8938 = vmatprep.subr.mxu0 0.0
    %8939 = vmatpush1.msra.mxu0 %v72
    %8940 = vmatprep.subr.mxu0 0.0
    %8941 = vmatpush1.msra.mxu0 %v73
    %8942 = vmatprep.subr.mxu0 0.0
    %8943 = vmatpush1.msra.mxu0 %v74
    %8944 = vmatprep.subr.mxu0 0.0
    %8945 = vmatpush1.msra.mxu0 %v75
    %8946 = vmatprep.subr.mxu0 0.0
    %8947 = vmatpush1.msra.mxu0 0.0
    %8948 = vmatprep.subr.mxu0 0.0
    %8949 = vmatpush1.msra.mxu0 0.0
    %8950 = vmatprep.subr.mxu0 0.0
    %8951 = vmatpush1.msra.mxu0 0.0
    %8952 = vmatprep.subr.mxu0 0.0
    %8953 = vmatpush1.msra.mxu0 0.0
    %8954 = vmatprep.subr.mxu0 0.0
    %8955 = vmatpush1.msra.mxu0 0.0
    %8956 = vmatprep.subr.mxu0 0.0
    %8957 = vmatpush1.msra.mxu0 0.0
    %8958 = vmatprep.subr.mxu0 0.0
    %8959 = vmatpush1.msra.mxu0 0.0
    %8960 = vmatprep.subr.mxu0 0.0
    %8961 = vmatpush1.msra.mxu0 0.0
    %8962 = vmatprep.subr.mxu0 0.0
    %8963 = vmatpush1.msra.mxu0 0.0
    %8964 = vmatprep.subr.mxu0 0.0
    %8965 = vmatpush1.msra.mxu0 0.0
    %8966 = vmatprep.subr.mxu0 0.0
    %8967 = vmatpush1.msra.mxu0 0.0
    %8968 = vmatprep.subr.mxu0 0.0
    %8969 = vmatpush1.msra.mxu0 0.0
    %8970 = vmatprep.subr.mxu0 0.0
    %8971 = vmatpush1.msra.mxu0 0.0
    %8972 = vmatprep.subr.mxu0 0.0
    %8973 = vmatpush1.msra.mxu0 0.0
    %8974 = vmatprep.subr.mxu0 0.0
    %8975 = vmatpush1.msra.mxu0 0.0
    %8976 = vmatprep.subr.mxu0 0.0
    %8977 = vmatpush1.msra.mxu0 0.0
    %8978 = vmatprep.subr.mxu0 0.0
    %8979 = vmatpush1.msra.mxu0 0.0
    %8980 = vmatprep.subr.mxu0 0.0
    %8981 = vmatpush1.msra.mxu0 0.0
    %8982 = vmatprep.subr.mxu0 0.0
    %8983 = vmatpush1.msra.mxu0 0.0
    %8984 = vmatprep.subr.mxu0 0.0
    %8985 = vmatpush1.msra.mxu0 0.0
    %8986 = vmatprep.subr.mxu0 0.0
    %8987 = vmatpush1.msra.mxu0 0.0
    %8988 = vmatprep.subr.mxu0 0.0
    %8989 = vmatpush1.msra.mxu0 0.0
    %8990 = vmatprep.subr.mxu0 0.0
    %8991 = vmatpush1.msra.mxu0 0.0
    %8992 = vmatprep.subr.mxu0 0.0
    %8993 = vmatpush1.msra.mxu0 0.0
    %8994 = vmatprep.subr.mxu0 0.0
    %8995 = vmatpush1.msra.mxu0 0.0
    %8996 = vmatprep.subr.mxu0 0.0
    %8997 = vmatpush1.msra.mxu0 0.0
    %8998 = vmatprep.subr.mxu0 0.0
    %8999 = vmatpush1.msra.mxu0 0.0
    %9000 = vmatprep.mubr.f32.mxu0 0.0
    %9001 = vmatmul.mubr.f32.gmra.mrb[0].mxu0 %v8934
    %v9002 = vpop.f32.mrb[0].mxu0
    %v9003 = vadd.f32 %v80, %v9002
    %v9004 = vpop.f32.mrb[0].mxu0
    %9005 = vdwg.mxu0
    %v9006 = vtanh.pop %v9003
    %v9008 = vsel %vm168, %v9006, 0
    %9010 = vmatprep.subr.mxu0 0.0
    %9011 = vmatpush1.msra.mxu0 %v81
    %9012 = vmatprep.subr.mxu0 0.0
    %9013 = vmatpush1.msra.mxu0 %v82
    %9014 = vmatprep.subr.mxu0 0.0
    %9015 = vmatpush1.msra.mxu0 %v83
    %9016 = vmatprep.subr.mxu0 0.0
    %9017 = vmatpush1.msra.mxu0 %v84
    %9018 = vmatprep.subr.mxu0 0.0
    %9019 = vmatpush1.msra.mxu0 %v85
    %9020 = vmatprep.subr.mxu0 0.0
    %9021 = vmatpush1.msra.mxu0 0.0
    %9022 = vmatprep.subr.mxu0 0.0
    %9023 = vmatpush1.msra.mxu0 0.0
    %9024 = vmatprep.subr.mxu0 0.0
    %9025 = vmatpush1.msra.mxu0 0.0
    %9026 = vmatprep.subr.mxu0 0.0
    %9027 = vmatpush1.msra.mxu0 0.0
    %9028 = vmatprep.subr.mxu0 0.0
    %9029 = vmatpush1.msra.mxu0 0.0
    %9030 = vmatprep.subr.mxu0 0.0
    %9031 = vmatpush1.msra.mxu0 0.0
    %9032 = vmatprep.subr.mxu0 0.0
    %9033 = vmatpush1.msra.mxu0 0.0
    %9034 = vmatprep.subr.mxu0 0.0
    %9035 = vmatpush1.msra.mxu0 0.0
    %9036 = vmatprep.subr.mxu0 0.0
    %9037 = vmatpush1.msra.mxu0 0.0
    %9038 = vmatprep.subr.mxu0 0.0
    %9039 = vmatpush1.msra.mxu0 0.0
    %9040 = vmatprep.subr.mxu0 0.0
    %9041 = vmatpush1.msra.mxu0 0.0
    %9042 = vmatprep.subr.mxu0 0.0
    %9043 = vmatpush1.msra.mxu0 0.0
    %9044 = vmatprep.subr.mxu0 0.0
    %9045 = vmatpush1.msra.mxu0 0.0
    %9046 = vmatprep.subr.mxu0 0.0
    %9047 = vmatpush1.msra.mxu0 0.0
    %9048 = vmatprep.subr.mxu0 0.0
    %9049 = vmatpush1.msra.mxu0 0.0
    %9050 = vmatprep.subr.mxu0 0.0
    %9051 = vmatpush1.msra.mxu0 0.0
    %9052 = vmatprep.subr.mxu0 0.0
    %9053 = vmatpush1.msra.mxu0 0.0
    %9054 = vmatprep.subr.mxu0 0.0
    %9055 = vmatpush1.msra.mxu0 0.0
    %9056 = vmatprep.subr.mxu0 0.0
    %9057 = vmatpush1.msra.mxu0 0.0
    %9058 = vmatprep.subr.mxu0 0.0
    %9059 = vmatpush1.msra.mxu0 0.0
    %9060 = vmatprep.subr.mxu0 0.0
    %9061 = vmatpush1.msra.mxu0 0.0
    %9062 = vmatprep.subr.mxu0 0.0
    %9063 = vmatpush1.msra.mxu0 0.0
    %9064 = vmatprep.subr.mxu0 0.0
    %9065 = vmatpush1.msra.mxu0 0.0
    %9066 = vmatprep.subr.mxu0 0.0
    %9067 = vmatpush1.msra.mxu0 0.0
    %9068 = vmatprep.subr.mxu0 0.0
    %9069 = vmatpush1.msra.mxu0 0.0
    %9070 = vmatprep.subr.mxu0 0.0
    %9071 = vmatpush1.msra.mxu0 0.0
    %9072 = vmatprep.subr.mxu0 0.0
    %9073 = vmatpush1.msra.mxu0 0.0
    %9074 = vmatprep.mubr.f32.mxu0 0.0
    %9075 = vmatmul.mubr.f32.gmra.mrb[0].mxu0 %v9008
    %v9076 = vpop.f32.mrb[0].mxu0
    %v9077 = vadd.f32 %v86, %v9076
    %v9078 = vpop.f32.mrb[0].mxu0
    %9079 = vdwg.mxu0
    %v9080 = vrcp.pop 6.0
    %s9081 = vtos %v9080
    %s9082 = smul.f32 %s7594, %s9081
    %v9083 = vmul.f32 %v8334, 2.0
    %v9084 = vadd.f32 %v7961, %v9083
    %v9085 = vmul.f32 %v8705, 2.0
    %v9086 = vadd.f32 %v9084, %v9085
    %v9087 = vadd.f32 %v9086, %v9077
    %v9088 = vstv %s9082
    %v9089 = vmul.f32 %v9088, %v9087
    %v9090 = vadd.f32 %v7590, %v9089
    %9091 = vst.msk [vmem:[#allocation7 + $0x6] sm:$0x1] %vm88, %v9090
    %s9092 = sld [smem:[#allocation2 + $0x7]]
    %s9093 = sld [smem:[#allocation2 + $0x6]]
    %s9094 = ssub.f32 %s9092, %s9093
    %v9096 = vsel %vm93, %v9090, 0
    %9098 = vmatprep.subr.mxu0 0.0
    %9099 = vmatpush1.msra.mxu0 %v57
    %9100 = vmatprep.subr.mxu0 0.0
    %9101 = vmatpush1.msra.mxu0 0.0
    %9102 = vmatprep.subr.mxu0 0.0
    %9103 = vmatpush1.msra.mxu0 0.0
    %9104 = vmatprep.subr.mxu0 0.0
    %9105 = vmatpush1.msra.mxu0 0.0
    %9106 = vmatprep.subr.mxu0 0.0
    %9107 = vmatpush1.msra.mxu0 0.0
    %9108 = vmatprep.subr.mxu0 0.0
    %9109 = vmatpush1.msra.mxu0 0.0
    %9110 = vmatprep.subr.mxu0 0.0
    %9111 = vmatpush1.msra.mxu0 0.0
    %9112 = vmatprep.subr.mxu0 0.0
    %9113 = vmatpush1.msra.mxu0 0.0
    %9114 = vmatprep.subr.mxu0 0.0
    %9115 = vmatpush1.msra.mxu0 0.0
    %9116 = vmatprep.subr.mxu0 0.0
    %9117 = vmatpush1.msra.mxu0 0.0
    %9118 = vmatprep.subr.mxu0 0.0
    %9119 = vmatpush1.msra.mxu0 0.0
    %9120 = vmatprep.subr.mxu0 0.0
    %9121 = vmatpush1.msra.mxu0 0.0
    %9122 = vmatprep.subr.mxu0 0.0
    %9123 = vmatpush1.msra.mxu0 0.0
    %9124 = vmatprep.subr.mxu0 0.0
    %9125 = vmatpush1.msra.mxu0 0.0
    %9126 = vmatprep.subr.mxu0 0.0
    %9127 = vmatpush1.msra.mxu0 0.0
    %9128 = vmatprep.subr.mxu0 0.0
    %9129 = vmatpush1.msra.mxu0 0.0
    %9130 = vmatprep.subr.mxu0 0.0
    %9131 = vmatpush1.msra.mxu0 0.0
    %9132 = vmatprep.subr.mxu0 0.0
    %9133 = vmatpush1.msra.mxu0 0.0
    %9134 = vmatprep.subr.mxu0 0.0
    %9135 = vmatpush1.msra.mxu0 0.0
    %9136 = vmatprep.subr.mxu0 0.0
    %9137 = vmatpush1.msra.mxu0 0.0
    %9138 = vmatprep.subr.mxu0 0.0
    %9139 = vmatpush1.msra.mxu0 0.0
    %9140 = vmatprep.subr.mxu0 0.0
    %9141 = vmatpush1.msra.mxu0 0.0
    %9142 = vmatprep.subr.mxu0 0.0
    %9143 = vmatpush1.msra.mxu0 0.0
    %9144 = vmatprep.subr.mxu0 0.0
    %9145 = vmatpush1.msra.mxu0 0.0
    %9146 = vmatprep.subr.mxu0 0.0
    %9147 = vmatpush1.msra.mxu0 0.0
    %9148 = vmatprep.subr.mxu0 0.0
    %9149 = vmatpush1.msra.mxu0 0.0
    %9150 = vmatprep.subr.mxu0 0.0
    %9151 = vmatpush1.msra.mxu0 0.0
    %9152 = vmatprep.subr.mxu0 0.0
    %9153 = vmatpush1.msra.mxu0 0.0
    %9154 = vmatprep.subr.mxu0 0.0
    %9155 = vmatpush1.msra.mxu0 0.0
    %9156 = vmatprep.subr.mxu0 0.0
    %9157 = vmatpush1.msra.mxu0 0.0
    %9158 = vmatprep.subr.mxu0 0.0
    %9159 = vmatpush1.msra.mxu0 0.0
    %9160 = vmatprep.subr.mxu0 0.0
    %9161 = vmatpush1.msra.mxu0 0.0
    %9162 = vmatprep.mubr.f32.mxu0 0.0
    %9163 = vmatmul.mubr.f32.gmra.mrb[0].mxu0 %v9096
    %v9164 = vpop.f32.mrb[0].mxu0
    %v9165 = vadd.f32 %v58, %v9164
    %v9166 = vpop.f32.mrb[0].mxu0
    %9167 = vdwg.mxu0
    %v9168 = vtanh.pop %v9165
    %v9170 = vsel %vm168, %v9168, 0
    %9172 = vmatprep.subr.mxu0 0.0
    %9173 = vmatpush1.msra.mxu0 %v59
    %9174 = vmatprep.subr.mxu0 0.0
    %9175 = vmatpush1.msra.mxu0 %v60
    %9176 = vmatprep.subr.mxu0 0.0
    %9177 = vmatpush1.msra.mxu0 %v61
    %9178 = vmatprep.subr.mxu0 0.0
    %9179 = vmatpush1.msra.mxu0 %v62
    %9180 = vmatprep.subr.mxu0 0.0
    %9181 = vmatpush1.msra.mxu0 %v63
    %9182 = vmatprep.subr.mxu0 0.0
    %9183 = vmatpush1.msra.mxu0 0.0
    %9184 = vmatprep.subr.mxu0 0.0
    %9185 = vmatpush1.msra.mxu0 0.0
    %9186 = vmatprep.subr.mxu0 0.0
    %9187 = vmatpush1.msra.mxu0 0.0
    %9188 = vmatprep.subr.mxu0 0.0
    %9189 = vmatpush1.msra.mxu0 0.0
    %9190 = vmatprep.subr.mxu0 0.0
    %9191 = vmatpush1.msra.mxu0 0.0
    %9192 = vmatprep.subr.mxu0 0.0
    %9193 = vmatpush1.msra.mxu0 0.0
    %9194 = vmatprep.subr.mxu0 0.0
    %9195 = vmatpush1.msra.mxu0 0.0
    %9196 = vmatprep.subr.mxu0 0.0
    %9197 = vmatpush1.msra.mxu0 0.0
    %9198 = vmatprep.subr.mxu0 0.0
    %9199 = vmatpush1.msra.mxu0 0.0
    %9200 = vmatprep.subr.mxu0 0.0
    %9201 = vmatpush1.msra.mxu0 0.0
    %9202 = vmatprep.subr.mxu0 0.0
    %9203 = vmatpush1.msra.mxu0 0.0
    %9204 = vmatprep.subr.mxu0 0.0
    %9205 = vmatpush1.msra.mxu0 0.0
    %9206 = vmatprep.subr.mxu0 0.0
    %9207 = vmatpush1.msra.mxu0 0.0
    %9208 = vmatprep.subr.mxu0 0.0
    %9209 = vmatpush1.msra.mxu0 0.0
    %9210 = vmatprep.subr.mxu0 0.0
    %9211 = vmatpush1.msra.mxu0 0.0
    %9212 = vmatprep.subr.mxu0 0.0
    %9213 = vmatpush1.msra.mxu0 0.0
    %9214 = vmatprep.subr.mxu0 0.0
    %9215 = vmatpush1.msra.mxu0 0.0
    %9216 = vmatprep.subr.mxu0 0.0
    %9217 = vmatpush1.msra.mxu0 0.0
    %9218 = vmatprep.subr.mxu0 0.0
    %9219 = vmatpush1.msra.mxu0 0.0
    %9220 = vmatprep.subr.mxu0 0.0
    %9221 = vmatpush1.msra.mxu0 0.0
    %9222 = vmatprep.subr.mxu0 0.0
    %9223 = vmatpush1.msra.mxu0 0.0
    %9224 = vmatprep.subr.mxu0 0.0
    %9225 = vmatpush1.msra.mxu0 0.0
    %9226 = vmatprep.subr.mxu0 0.0
    %9227 = vmatpush1.msra.mxu0 0.0
    %9228 = vmatprep.subr.mxu0 0.0
    %9229 = vmatpush1.msra.mxu0 0.0
    %9230 = vmatprep.subr.mxu0 0.0
    %9231 = vmatpush1.msra.mxu0 0.0
    %9232 = vmatprep.subr.mxu0 0.0
    %9233 = vmatpush1.msra.mxu0 0.0
    %9234 = vmatprep.subr.mxu0 0.0
    %9235 = vmatpush1.msra.mxu0 0.0
    %9236 = vmatprep.mubr.f32.mxu0 0.0
    %9237 = vmatmul.mubr.f32.gmra.mrb[0].mxu0 %v9170
    %v9238 = vpop.f32.mrb[0].mxu0
    %v9239 = vadd.f32 %v76, %v9238
    %v9240 = vpop.f32.mrb[0].mxu0
    %9241 = vdwg.mxu0
    %v9242 = vtanh.pop %v9239
    %v9244 = vsel %vm168, %v9242, 0
    %9246 = vmatprep.subr.mxu0 0.0
    %9247 = vmatpush1.msra.mxu0 %v65
    %9248 = vmatprep.subr.mxu0 0.0
    %9249 = vmatpush1.msra.mxu0 %v66
    %9250 = vmatprep.subr.mxu0 0.0
    %9251 = vmatpush1.msra.mxu0 %v67
    %9252 = vmatprep.subr.mxu0 0.0
    %9253 = vmatpush1.msra.mxu0 %v68
    %9254 = vmatprep.subr.mxu0 0.0
    %9255 = vmatpush1.msra.mxu0 %v69
    %9256 = vmatprep.subr.mxu0 0.0
    %9257 = vmatpush1.msra.mxu0 0.0
    %9258 = vmatprep.subr.mxu0 0.0
    %9259 = vmatpush1.msra.mxu0 0.0
    %9260 = vmatprep.subr.mxu0 0.0
    %9261 = vmatpush1.msra.mxu0 0.0
    %9262 = vmatprep.subr.mxu0 0.0
    %9263 = vmatpush1.msra.mxu0 0.0
    %9264 = vmatprep.subr.mxu0 0.0
    %9265 = vmatpush1.msra.mxu0 0.0
    %9266 = vmatprep.subr.mxu0 0.0
    %9267 = vmatpush1.msra.mxu0 0.0
    %9268 = vmatprep.subr.mxu0 0.0
    %9269 = vmatpush1.msra.mxu0 0.0
    %9270 = vmatprep.subr.mxu0 0.0
    %9271 = vmatpush1.msra.mxu0 0.0
    %9272 = vmatprep.subr.mxu0 0.0
    %9273 = vmatpush1.msra.mxu0 0.0
    %9274 = vmatprep.subr.mxu0 0.0
    %9275 = vmatpush1.msra.mxu0 0.0
    %9276 = vmatprep.subr.mxu0 0.0
    %9277 = vmatpush1.msra.mxu0 0.0
    %9278 = vmatprep.subr.mxu0 0.0
    %9279 = vmatpush1.msra.mxu0 0.0
    %9280 = vmatprep.subr.mxu0 0.0
    %9281 = vmatpush1.msra.mxu0 0.0
    %9282 = vmatprep.subr.mxu0 0.0
    %9283 = vmatpush1.msra.mxu0 0.0
    %9284 = vmatprep.subr.mxu0 0.0
    %9285 = vmatpush1.msra.mxu0 0.0
    %9286 = vmatprep.subr.mxu0 0.0
    %9287 = vmatpush1.msra.mxu0 0.0
    %9288 = vmatprep.subr.mxu0 0.0
    %9289 = vmatpush1.msra.mxu0 0.0
    %9290 = vmatprep.subr.mxu0 0.0
    %9291 = vmatpush1.msra.mxu0 0.0
    %9292 = vmatprep.subr.mxu0 0.0
    %9293 = vmatpush1.msra.mxu0 0.0
    %9294 = vmatprep.subr.mxu0 0.0
    %9295 = vmatpush1.msra.mxu0 0.0
    %9296 = vmatprep.subr.mxu0 0.0
    %9297 = vmatpush1.msra.mxu0 0.0
    %9298 = vmatprep.subr.mxu0 0.0
    %9299 = vmatpush1.msra.mxu0 0.0
    %9300 = vmatprep.subr.mxu0 0.0
    %9301 = vmatpush1.msra.mxu0 0.0
    %9302 = vmatprep.subr.mxu0 0.0
    %9303 = vmatpush1.msra.mxu0 0.0
    %9304 = vmatprep.subr.mxu0 0.0
    %9305 = vmatpush1.msra.mxu0 0.0
    %9306 = vmatprep.subr.mxu0 0.0
    %9307 = vmatpush1.msra.mxu0 0.0
    %9308 = vmatprep.subr.mxu0 0.0
    %9309 = vmatpush1.msra.mxu0 0.0
    %9310 = vmatprep.mubr.f32.mxu0 0.0
    %9311 = vmatmul.mubr.f32.gmra.mrb[0].mxu0 %v9244
    %v9312 = vpop.f32.mrb[0].mxu0
    %v9313 = vadd.f32 %v78, %v9312
    %v9314 = vpop.f32.mrb[0].mxu0
    %9315 = vdwg.mxu0
    %v9316 = vtanh.pop %v9313
    %v9318 = vsel %vm168, %v9316, 0
    %9320 = vmatprep.subr.mxu0 0.0
    %9321 = vmatpush1.msra.mxu0 %v71
    %9322 = vmatprep.subr.mxu0 0.0
    %9323 = vmatpush1.msra.mxu0 %v72
    %9324 = vmatprep.subr.mxu0 0.0
    %9325 = vmatpush1.msra.mxu0 %v73
    %9326 = vmatprep.subr.mxu0 0.0
    %9327 = vmatpush1.msra.mxu0 %v74
    %9328 = vmatprep.subr.mxu0 0.0
    %9329 = vmatpush1.msra.mxu0 %v75
    %9330 = vmatprep.subr.mxu0 0.0
    %9331 = vmatpush1.msra.mxu0 0.0
    %9332 = vmatprep.subr.mxu0 0.0
    %9333 = vmatpush1.msra.mxu0 0.0
    %9334 = vmatprep.subr.mxu0 0.0
    %9335 = vmatpush1.msra.mxu0 0.0
    %9336 = vmatprep.subr.mxu0 0.0
    %9337 = vmatpush1.msra.mxu0 0.0
    %9338 = vmatprep.subr.mxu0 0.0
    %9339 = vmatpush1.msra.mxu0 0.0
    %9340 = vmatprep.subr.mxu0 0.0
    %9341 = vmatpush1.msra.mxu0 0.0
    %9342 = vmatprep.subr.mxu0 0.0
    %9343 = vmatpush1.msra.mxu0 0.0
    %9344 = vmatprep.subr.mxu0 0.0
    %9345 = vmatpush1.msra.mxu0 0.0
    %9346 = vmatprep.subr.mxu0 0.0
    %9347 = vmatpush1.msra.mxu0 0.0
    %9348 = vmatprep.subr.mxu0 0.0
    %9349 = vmatpush1.msra.mxu0 0.0
    %9350 = vmatprep.subr.mxu0 0.0
    %9351 = vmatpush1.msra.mxu0 0.0
    %9352 = vmatprep.subr.mxu0 0.0
    %9353 = vmatpush1.msra.mxu0 0.0
    %9354 = vmatprep.subr.mxu0 0.0
    %9355 = vmatpush1.msra.mxu0 0.0
    %9356 = vmatprep.subr.mxu0 0.0
    %9357 = vmatpush1.msra.mxu0 0.0
    %9358 = vmatprep.subr.mxu0 0.0
    %9359 = vmatpush1.msra.mxu0 0.0
    %9360 = vmatprep.subr.mxu0 0.0
    %9361 = vmatpush1.msra.mxu0 0.0
    %9362 = vmatprep.subr.mxu0 0.0
    %9363 = vmatpush1.msra.mxu0 0.0
    %9364 = vmatprep.subr.mxu0 0.0
    %9365 = vmatpush1.msra.mxu0 0.0
    %9366 = vmatprep.subr.mxu0 0.0
    %9367 = vmatpush1.msra.mxu0 0.0
    %9368 = vmatprep.subr.mxu0 0.0
    %9369 = vmatpush1.msra.mxu0 0.0
    %9370 = vmatprep.subr.mxu0 0.0
    %9371 = vmatpush1.msra.mxu0 0.0
    %9372 = vmatprep.subr.mxu0 0.0
    %9373 = vmatpush1.msra.mxu0 0.0
    %9374 = vmatprep.subr.mxu0 0.0
    %9375 = vmatpush1.msra.mxu0 0.0
    %9376 = vmatprep.subr.mxu0 0.0
    %9377 = vmatpush1.msra.mxu0 0.0
    %9378 = vmatprep.subr.mxu0 0.0
    %9379 = vmatpush1.msra.mxu0 0.0
    %9380 = vmatprep.subr.mxu0 0.0
    %9381 = vmatpush1.msra.mxu0 0.0
    %9382 = vmatprep.subr.mxu0 0.0
    %9383 = vmatpush1.msra.mxu0 0.0
    %9384 = vmatprep.mubr.f32.mxu0 0.0
    %9385 = vmatmul.mubr.f32.gmra.mrb[0].mxu0 %v9318
    %v9386 = vpop.f32.mrb[0].mxu0
    %v9387 = vadd.f32 %v80, %v9386
    %v9388 = vpop.f32.mrb[0].mxu0
    %9389 = vdwg.mxu0
    %v9390 = vtanh.pop %v9387
    %v9392 = vsel %vm168, %v9390, 0
    %9394 = vmatprep.subr.mxu0 0.0
    %9395 = vmatpush1.msra.mxu0 %v81
    %9396 = vmatprep.subr.mxu0 0.0
    %9397 = vmatpush1.msra.mxu0 %v82
    %9398 = vmatprep.subr.mxu0 0.0
    %9399 = vmatpush1.msra.mxu0 %v83
    %9400 = vmatprep.subr.mxu0 0.0
    %9401 = vmatpush1.msra.mxu0 %v84
    %9402 = vmatprep.subr.mxu0 0.0
    %9403 = vmatpush1.msra.mxu0 %v85
    %9404 = vmatprep.subr.mxu0 0.0
    %9405 = vmatpush1.msra.mxu0 0.0
    %9406 = vmatprep.subr.mxu0 0.0
    %9407 = vmatpush1.msra.mxu0 0.0
    %9408 = vmatprep.subr.mxu0 0.0
    %9409 = vmatpush1.msra.mxu0 0.0
    %9410 = vmatprep.subr.mxu0 0.0
    %9411 = vmatpush1.msra.mxu0 0.0
    %9412 = vmatprep.subr.mxu0 0.0
    %9413 = vmatpush1.msra.mxu0 0.0
    %9414 = vmatprep.subr.mxu0 0.0
    %9415 = vmatpush1.msra.mxu0 0.0
    %9416 = vmatprep.subr.mxu0 0.0
    %9417 = vmatpush1.msra.mxu0 0.0
    %9418 = vmatprep.subr.mxu0 0.0
    %9419 = vmatpush1.msra.mxu0 0.0
    %9420 = vmatprep.subr.mxu0 0.0
    %9421 = vmatpush1.msra.mxu0 0.0
    %9422 = vmatprep.subr.mxu0 0.0
    %9423 = vmatpush1.msra.mxu0 0.0
    %9424 = vmatprep.subr.mxu0 0.0
    %9425 = vmatpush1.msra.mxu0 0.0
    %9426 = vmatprep.subr.mxu0 0.0
    %9427 = vmatpush1.msra.mxu0 0.0
    %9428 = vmatprep.subr.mxu0 0.0
    %9429 = vmatpush1.msra.mxu0 0.0
    %9430 = vmatprep.subr.mxu0 0.0
    %9431 = vmatpush1.msra.mxu0 0.0
    %9432 = vmatprep.subr.mxu0 0.0
    %9433 = vmatpush1.msra.mxu0 0.0
    %9434 = vmatprep.subr.mxu0 0.0
    %9435 = vmatpush1.msra.mxu0 0.0
    %9436 = vmatprep.subr.mxu0 0.0
    %9437 = vmatpush1.msra.mxu0 0.0
    %9438 = vmatprep.subr.mxu0 0.0
    %9439 = vmatpush1.msra.mxu0 0.0
    %9440 = vmatprep.subr.mxu0 0.0
    %9441 = vmatpush1.msra.mxu0 0.0
    %9442 = vmatprep.subr.mxu0 0.0
    %9443 = vmatpush1.msra.mxu0 0.0
    %9444 = vmatprep.subr.mxu0 0.0
    %9445 = vmatpush1.msra.mxu0 0.0
    %9446 = vmatprep.subr.mxu0 0.0
    %9447 = vmatpush1.msra.mxu0 0.0
    %9448 = vmatprep.subr.mxu0 0.0
    %9449 = vmatpush1.msra.mxu0 0.0
    %9450 = vmatprep.subr.mxu0 0.0
    %9451 = vmatpush1.msra.mxu0 0.0
    %9452 = vmatprep.subr.mxu0 0.0
    %9453 = vmatpush1.msra.mxu0 0.0
    %9454 = vmatprep.subr.mxu0 0.0
    %9455 = vmatpush1.msra.mxu0 0.0
    %9456 = vmatprep.subr.mxu0 0.0
    %9457 = vmatpush1.msra.mxu0 0.0
    %9458 = vmatprep.mubr.f32.mxu0 0.0
    %9459 = vmatmul.mubr.f32.gmra.mrb[0].mxu0 %v9392
    %v9460 = vpop.f32.mrb[0].mxu0
    %v9461 = vadd.f32 %v86, %v9460
    %v9462 = vpop.f32.mrb[0].mxu0
    %9463 = vdwg.mxu0
    %s9464 = smul.f32 %s9094, 0.5
    %v9465 = vstv %s9464
    %v9466 = vmul.f32 %v9465, %v9461
    %v9467 = vadd.f32 %v9090, %v9466
    %v9469 = vsel %vm93, %v9467, 0
    %9471 = vmatprep.subr.mxu0 0.0
    %9472 = vmatpush1.msra.mxu0 %v57
    %9473 = vmatprep.subr.mxu0 0.0
    %9474 = vmatpush1.msra.mxu0 0.0
    %9475 = vmatprep.subr.mxu0 0.0
    %9476 = vmatpush1.msra.mxu0 0.0
    %9477 = vmatprep.subr.mxu0 0.0
    %9478 = vmatpush1.msra.mxu0 0.0
    %9479 = vmatprep.subr.mxu0 0.0
    %9480 = vmatpush1.msra.mxu0 0.0
    %9481 = vmatprep.subr.mxu0 0.0
    %9482 = vmatpush1.msra.mxu0 0.0
    %9483 = vmatprep.subr.mxu0 0.0
    %9484 = vmatpush1.msra.mxu0 0.0
    %9485 = vmatprep.subr.mxu0 0.0
    %9486 = vmatpush1.msra.mxu0 0.0
    %9487 = vmatprep.subr.mxu0 0.0
    %9488 = vmatpush1.msra.mxu0 0.0
    %9489 = vmatprep.subr.mxu0 0.0
    %9490 = vmatpush1.msra.mxu0 0.0
    %9491 = vmatprep.subr.mxu0 0.0
    %9492 = vmatpush1.msra.mxu0 0.0
    %9493 = vmatprep.subr.mxu0 0.0
    %9494 = vmatpush1.msra.mxu0 0.0
    %9495 = vmatprep.subr.mxu0 0.0
    %9496 = vmatpush1.msra.mxu0 0.0
    %9497 = vmatprep.subr.mxu0 0.0
    %9498 = vmatpush1.msra.mxu0 0.0
    %9499 = vmatprep.subr.mxu0 0.0
    %9500 = vmatpush1.msra.mxu0 0.0
    %9501 = vmatprep.subr.mxu0 0.0
    %9502 = vmatpush1.msra.mxu0 0.0
    %9503 = vmatprep.subr.mxu0 0.0
    %9504 = vmatpush1.msra.mxu0 0.0
    %9505 = vmatprep.subr.mxu0 0.0
    %9506 = vmatpush1.msra.mxu0 0.0
    %9507 = vmatprep.subr.mxu0 0.0
    %9508 = vmatpush1.msra.mxu0 0.0
    %9509 = vmatprep.subr.mxu0 0.0
    %9510 = vmatpush1.msra.mxu0 0.0
    %9511 = vmatprep.subr.mxu0 0.0
    %9512 = vmatpush1.msra.mxu0 0.0
    %9513 = vmatprep.subr.mxu0 0.0
    %9514 = vmatpush1.msra.mxu0 0.0
    %9515 = vmatprep.subr.mxu0 0.0
    %9516 = vmatpush1.msra.mxu0 0.0
    %9517 = vmatprep.subr.mxu0 0.0
    %9518 = vmatpush1.msra.mxu0 0.0
    %9519 = vmatprep.subr.mxu0 0.0
    %9520 = vmatpush1.msra.mxu0 0.0
    %9521 = vmatprep.subr.mxu0 0.0
    %9522 = vmatpush1.msra.mxu0 0.0
    %9523 = vmatprep.subr.mxu0 0.0
    %9524 = vmatpush1.msra.mxu0 0.0
    %9525 = vmatprep.subr.mxu0 0.0
    %9526 = vmatpush1.msra.mxu0 0.0
    %9527 = vmatprep.subr.mxu0 0.0
    %9528 = vmatpush1.msra.mxu0 0.0
    %9529 = vmatprep.subr.mxu0 0.0
    %9530 = vmatpush1.msra.mxu0 0.0
    %9531 = vmatprep.subr.mxu0 0.0
    %9532 = vmatpush1.msra.mxu0 0.0
    %9533 = vmatprep.subr.mxu0 0.0
    %9534 = vmatpush1.msra.mxu0 0.0
    %9535 = vmatprep.mubr.f32.mxu0 0.0
    %9536 = vmatmul.mubr.f32.gmra.mrb[0].mxu0 %v9469
    %v9537 = vpop.f32.mrb[0].mxu0
    %v9538 = vadd.f32 %v58, %v9537
    %v9539 = vpop.f32.mrb[0].mxu0
    %9540 = vdwg.mxu0
    %v9541 = vtanh.pop %v9538
    %v9543 = vsel %vm168, %v9541, 0
    %9545 = vmatprep.subr.mxu0 0.0
    %9546 = vmatpush1.msra.mxu0 %v59
    %9547 = vmatprep.subr.mxu0 0.0
    %9548 = vmatpush1.msra.mxu0 %v60
    %9549 = vmatprep.subr.mxu0 0.0
    %9550 = vmatpush1.msra.mxu0 %v61
    %9551 = vmatprep.subr.mxu0 0.0
    %9552 = vmatpush1.msra.mxu0 %v62
    %9553 = vmatprep.subr.mxu0 0.0
    %9554 = vmatpush1.msra.mxu0 %v63
    %9555 = vmatprep.subr.mxu0 0.0
    %9556 = vmatpush1.msra.mxu0 0.0
    %9557 = vmatprep.subr.mxu0 0.0
    %9558 = vmatpush1.msra.mxu0 0.0
    %9559 = vmatprep.subr.mxu0 0.0
    %9560 = vmatpush1.msra.mxu0 0.0
    %9561 = vmatprep.subr.mxu0 0.0
    %9562 = vmatpush1.msra.mxu0 0.0
    %9563 = vmatprep.subr.mxu0 0.0
    %9564 = vmatpush1.msra.mxu0 0.0
    %9565 = vmatprep.subr.mxu0 0.0
    %9566 = vmatpush1.msra.mxu0 0.0
    %9567 = vmatprep.subr.mxu0 0.0
    %9568 = vmatpush1.msra.mxu0 0.0
    %9569 = vmatprep.subr.mxu0 0.0
    %9570 = vmatpush1.msra.mxu0 0.0
    %9571 = vmatprep.subr.mxu0 0.0
    %9572 = vmatpush1.msra.mxu0 0.0
    %9573 = vmatprep.subr.mxu0 0.0
    %9574 = vmatpush1.msra.mxu0 0.0
    %9575 = vmatprep.subr.mxu0 0.0
    %9576 = vmatpush1.msra.mxu0 0.0
    %9577 = vmatprep.subr.mxu0 0.0
    %9578 = vmatpush1.msra.mxu0 0.0
    %9579 = vmatprep.subr.mxu0 0.0
    %9580 = vmatpush1.msra.mxu0 0.0
    %9581 = vmatprep.subr.mxu0 0.0
    %9582 = vmatpush1.msra.mxu0 0.0
    %9583 = vmatprep.subr.mxu0 0.0
    %9584 = vmatpush1.msra.mxu0 0.0
    %9585 = vmatprep.subr.mxu0 0.0
    %9586 = vmatpush1.msra.mxu0 0.0
    %9587 = vmatprep.subr.mxu0 0.0
    %9588 = vmatpush1.msra.mxu0 0.0
    %9589 = vmatprep.subr.mxu0 0.0
    %9590 = vmatpush1.msra.mxu0 0.0
    %9591 = vmatprep.subr.mxu0 0.0
    %9592 = vmatpush1.msra.mxu0 0.0
    %9593 = vmatprep.subr.mxu0 0.0
    %9594 = vmatpush1.msra.mxu0 0.0
    %9595 = vmatprep.subr.mxu0 0.0
    %9596 = vmatpush1.msra.mxu0 0.0
    %9597 = vmatprep.subr.mxu0 0.0
    %9598 = vmatpush1.msra.mxu0 0.0
    %9599 = vmatprep.subr.mxu0 0.0
    %9600 = vmatpush1.msra.mxu0 0.0
    %9601 = vmatprep.subr.mxu0 0.0
    %9602 = vmatpush1.msra.mxu0 0.0
    %9603 = vmatprep.subr.mxu0 0.0
    %9604 = vmatpush1.msra.mxu0 0.0
    %9605 = vmatprep.subr.mxu0 0.0
    %9606 = vmatpush1.msra.mxu0 0.0
    %9607 = vmatprep.subr.mxu0 0.0
    %9608 = vmatpush1.msra.mxu0 0.0
    %9609 = vmatprep.mubr.f32.mxu0 0.0
    %9610 = vmatmul.mubr.f32.gmra.mrb[0].mxu0 %v9543
    %v9611 = vpop.f32.mrb[0].mxu0
    %v9612 = vadd.f32 %v76, %v9611
    %v9613 = vpop.f32.mrb[0].mxu0
    %9614 = vdwg.mxu0
    %v9615 = vtanh.pop %v9612
    %v9617 = vsel %vm168, %v9615, 0
    %9619 = vmatprep.subr.mxu0 0.0
    %9620 = vmatpush1.msra.mxu0 %v65
    %9621 = vmatprep.subr.mxu0 0.0
    %9622 = vmatpush1.msra.mxu0 %v66
    %9623 = vmatprep.subr.mxu0 0.0
    %9624 = vmatpush1.msra.mxu0 %v67
    %9625 = vmatprep.subr.mxu0 0.0
    %9626 = vmatpush1.msra.mxu0 %v68
    %9627 = vmatprep.subr.mxu0 0.0
    %9628 = vmatpush1.msra.mxu0 %v69
    %9629 = vmatprep.subr.mxu0 0.0
    %9630 = vmatpush1.msra.mxu0 0.0
    %9631 = vmatprep.subr.mxu0 0.0
    %9632 = vmatpush1.msra.mxu0 0.0
    %9633 = vmatprep.subr.mxu0 0.0
    %9634 = vmatpush1.msra.mxu0 0.0
    %9635 = vmatprep.subr.mxu0 0.0
    %9636 = vmatpush1.msra.mxu0 0.0
    %9637 = vmatprep.subr.mxu0 0.0
    %9638 = vmatpush1.msra.mxu0 0.0
    %9639 = vmatprep.subr.mxu0 0.0
    %9640 = vmatpush1.msra.mxu0 0.0
    %9641 = vmatprep.subr.mxu0 0.0
    %9642 = vmatpush1.msra.mxu0 0.0
    %9643 = vmatprep.subr.mxu0 0.0
    %9644 = vmatpush1.msra.mxu0 0.0
    %9645 = vmatprep.subr.mxu0 0.0
    %9646 = vmatpush1.msra.mxu0 0.0
    %9647 = vmatprep.subr.mxu0 0.0
    %9648 = vmatpush1.msra.mxu0 0.0
    %9649 = vmatprep.subr.mxu0 0.0
    %9650 = vmatpush1.msra.mxu0 0.0
    %9651 = vmatprep.subr.mxu0 0.0
    %9652 = vmatpush1.msra.mxu0 0.0
    %9653 = vmatprep.subr.mxu0 0.0
    %9654 = vmatpush1.msra.mxu0 0.0
    %9655 = vmatprep.subr.mxu0 0.0
    %9656 = vmatpush1.msra.mxu0 0.0
    %9657 = vmatprep.subr.mxu0 0.0
    %9658 = vmatpush1.msra.mxu0 0.0
    %9659 = vmatprep.subr.mxu0 0.0
    %9660 = vmatpush1.msra.mxu0 0.0
    %9661 = vmatprep.subr.mxu0 0.0
    %9662 = vmatpush1.msra.mxu0 0.0
    %9663 = vmatprep.subr.mxu0 0.0
    %9664 = vmatpush1.msra.mxu0 0.0
    %9665 = vmatprep.subr.mxu0 0.0
    %9666 = vmatpush1.msra.mxu0 0.0
    %9667 = vmatprep.subr.mxu0 0.0
    %9668 = vmatpush1.msra.mxu0 0.0
    %9669 = vmatprep.subr.mxu0 0.0
    %9670 = vmatpush1.msra.mxu0 0.0
    %9671 = vmatprep.subr.mxu0 0.0
    %9672 = vmatpush1.msra.mxu0 0.0
    %9673 = vmatprep.subr.mxu0 0.0
    %9674 = vmatpush1.msra.mxu0 0.0
    %9675 = vmatprep.subr.mxu0 0.0
    %9676 = vmatpush1.msra.mxu0 0.0
    %9677 = vmatprep.subr.mxu0 0.0
    %9678 = vmatpush1.msra.mxu0 0.0
    %9679 = vmatprep.subr.mxu0 0.0
    %9680 = vmatpush1.msra.mxu0 0.0
    %9681 = vmatprep.subr.mxu0 0.0
    %9682 = vmatpush1.msra.mxu0 0.0
    %9683 = vmatprep.mubr.f32.mxu0 0.0
    %9684 = vmatmul.mubr.f32.gmra.mrb[0].mxu0 %v9617
    %v9685 = vpop.f32.mrb[0].mxu0
    %v9686 = vadd.f32 %v78, %v9685
    %v9687 = vpop.f32.mrb[0].mxu0
    %9688 = vdwg.mxu0
    %v9689 = vtanh.pop %v9686
    %v9691 = vsel %vm168, %v9689, 0
    %9693 = vmatprep.subr.mxu0 0.0
    %9694 = vmatpush1.msra.mxu0 %v71
    %9695 = vmatprep.subr.mxu0 0.0
    %9696 = vmatpush1.msra.mxu0 %v72
    %9697 = vmatprep.subr.mxu0 0.0
    %9698 = vmatpush1.msra.mxu0 %v73
    %9699 = vmatprep.subr.mxu0 0.0
    %9700 = vmatpush1.msra.mxu0 %v74
    %9701 = vmatprep.subr.mxu0 0.0
    %9702 = vmatpush1.msra.mxu0 %v75
    %9703 = vmatprep.subr.mxu0 0.0
    %9704 = vmatpush1.msra.mxu0 0.0
    %9705 = vmatprep.subr.mxu0 0.0
    %9706 = vmatpush1.msra.mxu0 0.0
    %9707 = vmatprep.subr.mxu0 0.0
    %9708 = vmatpush1.msra.mxu0 0.0
    %9709 = vmatprep.subr.mxu0 0.0
    %9710 = vmatpush1.msra.mxu0 0.0
    %9711 = vmatprep.subr.mxu0 0.0
    %9712 = vmatpush1.msra.mxu0 0.0
    %9713 = vmatprep.subr.mxu0 0.0
    %9714 = vmatpush1.msra.mxu0 0.0
    %9715 = vmatprep.subr.mxu0 0.0
    %9716 = vmatpush1.msra.mxu0 0.0
    %9717 = vmatprep.subr.mxu0 0.0
    %9718 = vmatpush1.msra.mxu0 0.0
    %9719 = vmatprep.subr.mxu0 0.0
    %9720 = vmatpush1.msra.mxu0 0.0
    %9721 = vmatprep.subr.mxu0 0.0
    %9722 = vmatpush1.msra.mxu0 0.0
    %9723 = vmatprep.subr.mxu0 0.0
    %9724 = vmatpush1.msra.mxu0 0.0
    %9725 = vmatprep.subr.mxu0 0.0
    %9726 = vmatpush1.msra.mxu0 0.0
    %9727 = vmatprep.subr.mxu0 0.0
    %9728 = vmatpush1.msra.mxu0 0.0
    %9729 = vmatprep.subr.mxu0 0.0
    %9730 = vmatpush1.msra.mxu0 0.0
    %9731 = vmatprep.subr.mxu0 0.0
    %9732 = vmatpush1.msra.mxu0 0.0
    %9733 = vmatprep.subr.mxu0 0.0
    %9734 = vmatpush1.msra.mxu0 0.0
    %9735 = vmatprep.subr.mxu0 0.0
    %9736 = vmatpush1.msra.mxu0 0.0
    %9737 = vmatprep.subr.mxu0 0.0
    %9738 = vmatpush1.msra.mxu0 0.0
    %9739 = vmatprep.subr.mxu0 0.0
    %9740 = vmatpush1.msra.mxu0 0.0
    %9741 = vmatprep.subr.mxu0 0.0
    %9742 = vmatpush1.msra.mxu0 0.0
    %9743 = vmatprep.subr.mxu0 0.0
    %9744 = vmatpush1.msra.mxu0 0.0
    %9745 = vmatprep.subr.mxu0 0.0
    %9746 = vmatpush1.msra.mxu0 0.0
    %9747 = vmatprep.subr.mxu0 0.0
    %9748 = vmatpush1.msra.mxu0 0.0
    %9749 = vmatprep.subr.mxu0 0.0
    %9750 = vmatpush1.msra.mxu0 0.0
    %9751 = vmatprep.subr.mxu0 0.0
    %9752 = vmatpush1.msra.mxu0 0.0
    %9753 = vmatprep.subr.mxu0 0.0
    %9754 = vmatpush1.msra.mxu0 0.0
    %9755 = vmatprep.subr.mxu0 0.0
    %9756 = vmatpush1.msra.mxu0 0.0
    %9757 = vmatprep.mubr.f32.mxu0 0.0
    %9758 = vmatmul.mubr.f32.gmra.mrb[0].mxu0 %v9691
    %v9759 = vpop.f32.mrb[0].mxu0
    %v9760 = vadd.f32 %v80, %v9759
    %v9761 = vpop.f32.mrb[0].mxu0
    %9762 = vdwg.mxu0
    %v9763 = vtanh.pop %v9760
    %v9765 = vsel %vm168, %v9763, 0
    %9767 = vmatprep.subr.mxu0 0.0
    %9768 = vmatpush1.msra.mxu0 %v81
    %9769 = vmatprep.subr.mxu0 0.0
    %9770 = vmatpush1.msra.mxu0 %v82
    %9771 = vmatprep.subr.mxu0 0.0
    %9772 = vmatpush1.msra.mxu0 %v83
    %9773 = vmatprep.subr.mxu0 0.0
    %9774 = vmatpush1.msra.mxu0 %v84
    %9775 = vmatprep.subr.mxu0 0.0
    %9776 = vmatpush1.msra.mxu0 %v85
    %9777 = vmatprep.subr.mxu0 0.0
    %9778 = vmatpush1.msra.mxu0 0.0
    %9779 = vmatprep.subr.mxu0 0.0
    %9780 = vmatpush1.msra.mxu0 0.0
    %9781 = vmatprep.subr.mxu0 0.0
    %9782 = vmatpush1.msra.mxu0 0.0
    %9783 = vmatprep.subr.mxu0 0.0
    %9784 = vmatpush1.msra.mxu0 0.0
    %9785 = vmatprep.subr.mxu0 0.0
    %9786 = vmatpush1.msra.mxu0 0.0
    %9787 = vmatprep.subr.mxu0 0.0
    %9788 = vmatpush1.msra.mxu0 0.0
    %9789 = vmatprep.subr.mxu0 0.0
    %9790 = vmatpush1.msra.mxu0 0.0
    %9791 = vmatprep.subr.mxu0 0.0
    %9792 = vmatpush1.msra.mxu0 0.0
    %9793 = vmatprep.subr.mxu0 0.0
    %9794 = vmatpush1.msra.mxu0 0.0
    %9795 = vmatprep.subr.mxu0 0.0
    %9796 = vmatpush1.msra.mxu0 0.0
    %9797 = vmatprep.subr.mxu0 0.0
    %9798 = vmatpush1.msra.mxu0 0.0
    %9799 = vmatprep.subr.mxu0 0.0
    %9800 = vmatpush1.msra.mxu0 0.0
    %9801 = vmatprep.subr.mxu0 0.0
    %9802 = vmatpush1.msra.mxu0 0.0
    %9803 = vmatprep.subr.mxu0 0.0
    %9804 = vmatpush1.msra.mxu0 0.0
    %9805 = vmatprep.subr.mxu0 0.0
    %9806 = vmatpush1.msra.mxu0 0.0
    %9807 = vmatprep.subr.mxu0 0.0
    %9808 = vmatpush1.msra.mxu0 0.0
    %9809 = vmatprep.subr.mxu0 0.0
    %9810 = vmatpush1.msra.mxu0 0.0
    %9811 = vmatprep.subr.mxu0 0.0
    %9812 = vmatpush1.msra.mxu0 0.0
    %9813 = vmatprep.subr.mxu0 0.0
    %9814 = vmatpush1.msra.mxu0 0.0
    %9815 = vmatprep.subr.mxu0 0.0
    %9816 = vmatpush1.msra.mxu0 0.0
    %9817 = vmatprep.subr.mxu0 0.0
    %9818 = vmatpush1.msra.mxu0 0.0
    %9819 = vmatprep.subr.mxu0 0.0
    %9820 = vmatpush1.msra.mxu0 0.0
    %9821 = vmatprep.subr.mxu0 0.0
    %9822 = vmatpush1.msra.mxu0 0.0
    %9823 = vmatprep.subr.mxu0 0.0
    %9824 = vmatpush1.msra.mxu0 0.0
    %9825 = vmatprep.subr.mxu0 0.0
    %9826 = vmatpush1.msra.mxu0 0.0
    %9827 = vmatprep.subr.mxu0 0.0
    %9828 = vmatpush1.msra.mxu0 0.0
    %9829 = vmatprep.subr.mxu0 0.0
    %9830 = vmatpush1.msra.mxu0 0.0
    %9831 = vmatprep.mubr.f32.mxu0 0.0
    %9832 = vmatmul.mubr.f32.gmra.mrb[0].mxu0 %v9765
    %v9833 = vpop.f32.mrb[0].mxu0
    %v9834 = vadd.f32 %v86, %v9833
    %v9835 = vpop.f32.mrb[0].mxu0
    %9836 = vdwg.mxu0
    %v9837 = vmul.f32 %v9465, %v9834
    %v9838 = vadd.f32 %v9090, %v9837
    %v9840 = vsel %vm93, %v9838, 0
    %9842 = vmatprep.subr.mxu0 0.0
    %9843 = vmatpush1.msra.mxu0 %v57
    %9844 = vmatprep.subr.mxu0 0.0
    %9845 = vmatpush1.msra.mxu0 0.0
    %9846 = vmatprep.subr.mxu0 0.0
    %9847 = vmatpush1.msra.mxu0 0.0
    %9848 = vmatprep.subr.mxu0 0.0
    %9849 = vmatpush1.msra.mxu0 0.0
    %9850 = vmatprep.subr.mxu0 0.0
    %9851 = vmatpush1.msra.mxu0 0.0
    %9852 = vmatprep.subr.mxu0 0.0
    %9853 = vmatpush1.msra.mxu0 0.0
    %9854 = vmatprep.subr.mxu0 0.0
    %9855 = vmatpush1.msra.mxu0 0.0
    %9856 = vmatprep.subr.mxu0 0.0
    %9857 = vmatpush1.msra.mxu0 0.0
    %9858 = vmatprep.subr.mxu0 0.0
    %9859 = vmatpush1.msra.mxu0 0.0
    %9860 = vmatprep.subr.mxu0 0.0
    %9861 = vmatpush1.msra.mxu0 0.0
    %9862 = vmatprep.subr.mxu0 0.0
    %9863 = vmatpush1.msra.mxu0 0.0
    %9864 = vmatprep.subr.mxu0 0.0
    %9865 = vmatpush1.msra.mxu0 0.0
    %9866 = vmatprep.subr.mxu0 0.0
    %9867 = vmatpush1.msra.mxu0 0.0
    %9868 = vmatprep.subr.mxu0 0.0
    %9869 = vmatpush1.msra.mxu0 0.0
    %9870 = vmatprep.subr.mxu0 0.0
    %9871 = vmatpush1.msra.mxu0 0.0
    %9872 = vmatprep.subr.mxu0 0.0
    %9873 = vmatpush1.msra.mxu0 0.0
    %9874 = vmatprep.subr.mxu0 0.0
    %9875 = vmatpush1.msra.mxu0 0.0
    %9876 = vmatprep.subr.mxu0 0.0
    %9877 = vmatpush1.msra.mxu0 0.0
    %9878 = vmatprep.subr.mxu0 0.0
    %9879 = vmatpush1.msra.mxu0 0.0
    %9880 = vmatprep.subr.mxu0 0.0
    %9881 = vmatpush1.msra.mxu0 0.0
    %9882 = vmatprep.subr.mxu0 0.0
    %9883 = vmatpush1.msra.mxu0 0.0
    %9884 = vmatprep.subr.mxu0 0.0
    %9885 = vmatpush1.msra.mxu0 0.0
    %9886 = vmatprep.subr.mxu0 0.0
    %9887 = vmatpush1.msra.mxu0 0.0
    %9888 = vmatprep.subr.mxu0 0.0
    %9889 = vmatpush1.msra.mxu0 0.0
    %9890 = vmatprep.subr.mxu0 0.0
    %9891 = vmatpush1.msra.mxu0 0.0
    %9892 = vmatprep.subr.mxu0 0.0
    %9893 = vmatpush1.msra.mxu0 0.0
    %9894 = vmatprep.subr.mxu0 0.0
    %9895 = vmatpush1.msra.mxu0 0.0
    %9896 = vmatprep.subr.mxu0 0.0
    %9897 = vmatpush1.msra.mxu0 0.0
    %9898 = vmatprep.subr.mxu0 0.0
    %9899 = vmatpush1.msra.mxu0 0.0
    %9900 = vmatprep.subr.mxu0 0.0
    %9901 = vmatpush1.msra.mxu0 0.0
    %9902 = vmatprep.subr.mxu0 0.0
    %9903 = vmatpush1.msra.mxu0 0.0
    %9904 = vmatprep.subr.mxu0 0.0
    %9905 = vmatpush1.msra.mxu0 0.0
    %9906 = vmatprep.mubr.f32.mxu0 0.0
    %9907 = vmatmul.mubr.f32.gmra.mrb[0].mxu0 %v9840
    %v9908 = vpop.f32.mrb[0].mxu0
    %v9909 = vadd.f32 %v58, %v9908
    %v9910 = vpop.f32.mrb[0].mxu0
    %9911 = vdwg.mxu0
    %v9912 = vtanh.pop %v9909
    %v9914 = vsel %vm168, %v9912, 0
    %9916 = vmatprep.subr.mxu0 0.0
    %9917 = vmatpush1.msra.mxu0 %v59
    %9918 = vmatprep.subr.mxu0 0.0
    %9919 = vmatpush1.msra.mxu0 %v60
    %9920 = vmatprep.subr.mxu0 0.0
    %9921 = vmatpush1.msra.mxu0 %v61
    %9922 = vmatprep.subr.mxu0 0.0
    %9923 = vmatpush1.msra.mxu0 %v62
    %9924 = vmatprep.subr.mxu0 0.0
    %9925 = vmatpush1.msra.mxu0 %v63
    %9926 = vmatprep.subr.mxu0 0.0
    %9927 = vmatpush1.msra.mxu0 0.0
    %9928 = vmatprep.subr.mxu0 0.0
    %9929 = vmatpush1.msra.mxu0 0.0
    %9930 = vmatprep.subr.mxu0 0.0
    %9931 = vmatpush1.msra.mxu0 0.0
    %9932 = vmatprep.subr.mxu0 0.0
    %9933 = vmatpush1.msra.mxu0 0.0
    %9934 = vmatprep.subr.mxu0 0.0
    %9935 = vmatpush1.msra.mxu0 0.0
    %9936 = vmatprep.subr.mxu0 0.0
    %9937 = vmatpush1.msra.mxu0 0.0
    %9938 = vmatprep.subr.mxu0 0.0
    %9939 = vmatpush1.msra.mxu0 0.0
    %9940 = vmatprep.subr.mxu0 0.0
    %9941 = vmatpush1.msra.mxu0 0.0
    %9942 = vmatprep.subr.mxu0 0.0
    %9943 = vmatpush1.msra.mxu0 0.0
    %9944 = vmatprep.subr.mxu0 0.0
    %9945 = vmatpush1.msra.mxu0 0.0
    %9946 = vmatprep.subr.mxu0 0.0
    %9947 = vmatpush1.msra.mxu0 0.0
    %9948 = vmatprep.subr.mxu0 0.0
    %9949 = vmatpush1.msra.mxu0 0.0
    %9950 = vmatprep.subr.mxu0 0.0
    %9951 = vmatpush1.msra.mxu0 0.0
    %9952 = vmatprep.subr.mxu0 0.0
    %9953 = vmatpush1.msra.mxu0 0.0
    %9954 = vmatprep.subr.mxu0 0.0
    %9955 = vmatpush1.msra.mxu0 0.0
    %9956 = vmatprep.subr.mxu0 0.0
    %9957 = vmatpush1.msra.mxu0 0.0
    %9958 = vmatprep.subr.mxu0 0.0
    %9959 = vmatpush1.msra.mxu0 0.0
    %9960 = vmatprep.subr.mxu0 0.0
    %9961 = vmatpush1.msra.mxu0 0.0
    %9962 = vmatprep.subr.mxu0 0.0
    %9963 = vmatpush1.msra.mxu0 0.0
    %9964 = vmatprep.subr.mxu0 0.0
    %9965 = vmatpush1.msra.mxu0 0.0
    %9966 = vmatprep.subr.mxu0 0.0
    %9967 = vmatpush1.msra.mxu0 0.0
    %9968 = vmatprep.subr.mxu0 0.0
    %9969 = vmatpush1.msra.mxu0 0.0
    %9970 = vmatprep.subr.mxu0 0.0
    %9971 = vmatpush1.msra.mxu0 0.0
    %9972 = vmatprep.subr.mxu0 0.0
    %9973 = vmatpush1.msra.mxu0 0.0
    %9974 = vmatprep.subr.mxu0 0.0
    %9975 = vmatpush1.msra.mxu0 0.0
    %9976 = vmatprep.subr.mxu0 0.0
    %9977 = vmatpush1.msra.mxu0 0.0
    %9978 = vmatprep.subr.mxu0 0.0
    %9979 = vmatpush1.msra.mxu0 0.0
    %9980 = vmatprep.mubr.f32.mxu0 0.0
    %9981 = vmatmul.mubr.f32.gmra.mrb[0].mxu0 %v9914
    %v9982 = vpop.f32.mrb[0].mxu0
    %v9983 = vadd.f32 %v76, %v9982
    %v9984 = vpop.f32.mrb[0].mxu0
    %9985 = vdwg.mxu0
    %v9986 = vtanh.pop %v9983
    %v9988 = vsel %vm168, %v9986, 0
    %9990 = vmatprep.subr.mxu0 0.0
    %9991 = vmatpush1.msra.mxu0 %v65
    %9992 = vmatprep.subr.mxu0 0.0
    %9993 = vmatpush1.msra.mxu0 %v66
    %9994 = vmatprep.subr.mxu0 0.0
    %9995 = vmatpush1.msra.mxu0 %v67
    %9996 = vmatprep.subr.mxu0 0.0
    %9997 = vmatpush1.msra.mxu0 %v68
    %9998 = vmatprep.subr.mxu0 0.0
    %9999 = vmatpush1.msra.mxu0 %v69
    %10000 = vmatprep.subr.mxu0 0.0
    %10001 = vmatpush1.msra.mxu0 0.0
    %10002 = vmatprep.subr.mxu0 0.0
    %10003 = vmatpush1.msra.mxu0 0.0
    %10004 = vmatprep.subr.mxu0 0.0
    %10005 = vmatpush1.msra.mxu0 0.0
    %10006 = vmatprep.subr.mxu0 0.0
    %10007 = vmatpush1.msra.mxu0 0.0
    %10008 = vmatprep.subr.mxu0 0.0
    %10009 = vmatpush1.msra.mxu0 0.0
    %10010 = vmatprep.subr.mxu0 0.0
    %10011 = vmatpush1.msra.mxu0 0.0
    %10012 = vmatprep.subr.mxu0 0.0
    %10013 = vmatpush1.msra.mxu0 0.0
    %10014 = vmatprep.subr.mxu0 0.0
    %10015 = vmatpush1.msra.mxu0 0.0
    %10016 = vmatprep.subr.mxu0 0.0
    %10017 = vmatpush1.msra.mxu0 0.0
    %10018 = vmatprep.subr.mxu0 0.0
    %10019 = vmatpush1.msra.mxu0 0.0
    %10020 = vmatprep.subr.mxu0 0.0
    %10021 = vmatpush1.msra.mxu0 0.0
    %10022 = vmatprep.subr.mxu0 0.0
    %10023 = vmatpush1.msra.mxu0 0.0
    %10024 = vmatprep.subr.mxu0 0.0
    %10025 = vmatpush1.msra.mxu0 0.0
    %10026 = vmatprep.subr.mxu0 0.0
    %10027 = vmatpush1.msra.mxu0 0.0
    %10028 = vmatprep.subr.mxu0 0.0
    %10029 = vmatpush1.msra.mxu0 0.0
    %10030 = vmatprep.subr.mxu0 0.0
    %10031 = vmatpush1.msra.mxu0 0.0
    %10032 = vmatprep.subr.mxu0 0.0
    %10033 = vmatpush1.msra.mxu0 0.0
    %10034 = vmatprep.subr.mxu0 0.0
    %10035 = vmatpush1.msra.mxu0 0.0
    %10036 = vmatprep.subr.mxu0 0.0
    %10037 = vmatpush1.msra.mxu0 0.0
    %10038 = vmatprep.subr.mxu0 0.0
    %10039 = vmatpush1.msra.mxu0 0.0
    %10040 = vmatprep.subr.mxu0 0.0
    %10041 = vmatpush1.msra.mxu0 0.0
    %10042 = vmatprep.subr.mxu0 0.0
    %10043 = vmatpush1.msra.mxu0 0.0
    %10044 = vmatprep.subr.mxu0 0.0
    %10045 = vmatpush1.msra.mxu0 0.0
    %10046 = vmatprep.subr.mxu0 0.0
    %10047 = vmatpush1.msra.mxu0 0.0
    %10048 = vmatprep.subr.mxu0 0.0
    %10049 = vmatpush1.msra.mxu0 0.0
    %10050 = vmatprep.subr.mxu0 0.0
    %10051 = vmatpush1.msra.mxu0 0.0
    %10052 = vmatprep.subr.mxu0 0.0
    %10053 = vmatpush1.msra.mxu0 0.0
    %10054 = vmatprep.mubr.f32.mxu0 0.0
    %10055 = vmatmul.mubr.f32.gmra.mrb[0].mxu0 %v9988
    %v10056 = vpop.f32.mrb[0].mxu0
    %v10057 = vadd.f32 %v78, %v10056
    %v10058 = vpop.f32.mrb[0].mxu0
    %10059 = vdwg.mxu0
    %v10060 = vtanh.pop %v10057
    %v10062 = vsel %vm168, %v10060, 0
    %10064 = vmatprep.subr.mxu0 0.0
    %10065 = vmatpush1.msra.mxu0 %v71
    %10066 = vmatprep.subr.mxu0 0.0
    %10067 = vmatpush1.msra.mxu0 %v72
    %10068 = vmatprep.subr.mxu0 0.0
    %10069 = vmatpush1.msra.mxu0 %v73
    %10070 = vmatprep.subr.mxu0 0.0
    %10071 = vmatpush1.msra.mxu0 %v74
    %10072 = vmatprep.subr.mxu0 0.0
    %10073 = vmatpush1.msra.mxu0 %v75
    %10074 = vmatprep.subr.mxu0 0.0
    %10075 = vmatpush1.msra.mxu0 0.0
    %10076 = vmatprep.subr.mxu0 0.0
    %10077 = vmatpush1.msra.mxu0 0.0
    %10078 = vmatprep.subr.mxu0 0.0
    %10079 = vmatpush1.msra.mxu0 0.0
    %10080 = vmatprep.subr.mxu0 0.0
    %10081 = vmatpush1.msra.mxu0 0.0
    %10082 = vmatprep.subr.mxu0 0.0
    %10083 = vmatpush1.msra.mxu0 0.0
    %10084 = vmatprep.subr.mxu0 0.0
    %10085 = vmatpush1.msra.mxu0 0.0
    %10086 = vmatprep.subr.mxu0 0.0
    %10087 = vmatpush1.msra.mxu0 0.0
    %10088 = vmatprep.subr.mxu0 0.0
    %10089 = vmatpush1.msra.mxu0 0.0
    %10090 = vmatprep.subr.mxu0 0.0
    %10091 = vmatpush1.msra.mxu0 0.0
    %10092 = vmatprep.subr.mxu0 0.0
    %10093 = vmatpush1.msra.mxu0 0.0
    %10094 = vmatprep.subr.mxu0 0.0
    %10095 = vmatpush1.msra.mxu0 0.0
    %10096 = vmatprep.subr.mxu0 0.0
    %10097 = vmatpush1.msra.mxu0 0.0
    %10098 = vmatprep.subr.mxu0 0.0
    %10099 = vmatpush1.msra.mxu0 0.0
    %10100 = vmatprep.subr.mxu0 0.0
    %10101 = vmatpush1.msra.mxu0 0.0
    %10102 = vmatprep.subr.mxu0 0.0
    %10103 = vmatpush1.msra.mxu0 0.0
    %10104 = vmatprep.subr.mxu0 0.0
    %10105 = vmatpush1.msra.mxu0 0.0
    %10106 = vmatprep.subr.mxu0 0.0
    %10107 = vmatpush1.msra.mxu0 0.0
    %10108 = vmatprep.subr.mxu0 0.0
    %10109 = vmatpush1.msra.mxu0 0.0
    %10110 = vmatprep.subr.mxu0 0.0
    %10111 = vmatpush1.msra.mxu0 0.0
    %10112 = vmatprep.subr.mxu0 0.0
    %10113 = vmatpush1.msra.mxu0 0.0
    %10114 = vmatprep.subr.mxu0 0.0
    %10115 = vmatpush1.msra.mxu0 0.0
    %10116 = vmatprep.subr.mxu0 0.0
    %10117 = vmatpush1.msra.mxu0 0.0
    %10118 = vmatprep.subr.mxu0 0.0
    %10119 = vmatpush1.msra.mxu0 0.0
    %10120 = vmatprep.subr.mxu0 0.0
    %10121 = vmatpush1.msra.mxu0 0.0
    %10122 = vmatprep.subr.mxu0 0.0
    %10123 = vmatpush1.msra.mxu0 0.0
    %10124 = vmatprep.subr.mxu0 0.0
    %10125 = vmatpush1.msra.mxu0 0.0
    %10126 = vmatprep.subr.mxu0 0.0
    %10127 = vmatpush1.msra.mxu0 0.0
    %10128 = vmatprep.mubr.f32.mxu0 0.0
    %10129 = vmatmul.mubr.f32.gmra.mrb[0].mxu0 %v10062
    %v10130 = vpop.f32.mrb[0].mxu0
    %v10131 = vadd.f32 %v80, %v10130
    %v10132 = vpop.f32.mrb[0].mxu0
    %10133 = vdwg.mxu0
    %v10134 = vtanh.pop %v10131
    %v10136 = vsel %vm168, %v10134, 0
    %10138 = vmatprep.subr.mxu0 0.0
    %10139 = vmatpush1.msra.mxu0 %v81
    %10140 = vmatprep.subr.mxu0 0.0
    %10141 = vmatpush1.msra.mxu0 %v82
    %10142 = vmatprep.subr.mxu0 0.0
    %10143 = vmatpush1.msra.mxu0 %v83
    %10144 = vmatprep.subr.mxu0 0.0
    %10145 = vmatpush1.msra.mxu0 %v84
    %10146 = vmatprep.subr.mxu0 0.0
    %10147 = vmatpush1.msra.mxu0 %v85
    %10148 = vmatprep.subr.mxu0 0.0
    %10149 = vmatpush1.msra.mxu0 0.0
    %10150 = vmatprep.subr.mxu0 0.0
    %10151 = vmatpush1.msra.mxu0 0.0
    %10152 = vmatprep.subr.mxu0 0.0
    %10153 = vmatpush1.msra.mxu0 0.0
    %10154 = vmatprep.subr.mxu0 0.0
    %10155 = vmatpush1.msra.mxu0 0.0
    %10156 = vmatprep.subr.mxu0 0.0
    %10157 = vmatpush1.msra.mxu0 0.0
    %10158 = vmatprep.subr.mxu0 0.0
    %10159 = vmatpush1.msra.mxu0 0.0
    %10160 = vmatprep.subr.mxu0 0.0
    %10161 = vmatpush1.msra.mxu0 0.0
    %10162 = vmatprep.subr.mxu0 0.0
    %10163 = vmatpush1.msra.mxu0 0.0
    %10164 = vmatprep.subr.mxu0 0.0
    %10165 = vmatpush1.msra.mxu0 0.0
    %10166 = vmatprep.subr.mxu0 0.0
    %10167 = vmatpush1.msra.mxu0 0.0
    %10168 = vmatprep.subr.mxu0 0.0
    %10169 = vmatpush1.msra.mxu0 0.0
    %10170 = vmatprep.subr.mxu0 0.0
    %10171 = vmatpush1.msra.mxu0 0.0
    %10172 = vmatprep.subr.mxu0 0.0
    %10173 = vmatpush1.msra.mxu0 0.0
    %10174 = vmatprep.subr.mxu0 0.0
    %10175 = vmatpush1.msra.mxu0 0.0
    %10176 = vmatprep.subr.mxu0 0.0
    %10177 = vmatpush1.msra.mxu0 0.0
    %10178 = vmatprep.subr.mxu0 0.0
    %10179 = vmatpush1.msra.mxu0 0.0
    %10180 = vmatprep.subr.mxu0 0.0
    %10181 = vmatpush1.msra.mxu0 0.0
    %10182 = vmatprep.subr.mxu0 0.0
    %10183 = vmatpush1.msra.mxu0 0.0
    %10184 = vmatprep.subr.mxu0 0.0
    %10185 = vmatpush1.msra.mxu0 0.0
    %10186 = vmatprep.subr.mxu0 0.0
    %10187 = vmatpush1.msra.mxu0 0.0
    %10188 = vmatprep.subr.mxu0 0.0
    %10189 = vmatpush1.msra.mxu0 0.0
    %10190 = vmatprep.subr.mxu0 0.0
    %10191 = vmatpush1.msra.mxu0 0.0
    %10192 = vmatprep.subr.mxu0 0.0
    %10193 = vmatpush1.msra.mxu0 0.0
    %10194 = vmatprep.subr.mxu0 0.0
    %10195 = vmatpush1.msra.mxu0 0.0
    %10196 = vmatprep.subr.mxu0 0.0
    %10197 = vmatpush1.msra.mxu0 0.0
    %10198 = vmatprep.subr.mxu0 0.0
    %10199 = vmatpush1.msra.mxu0 0.0
    %10200 = vmatprep.subr.mxu0 0.0
    %10201 = vmatpush1.msra.mxu0 0.0
    %10202 = vmatprep.mubr.f32.mxu0 0.0
    %10203 = vmatmul.mubr.f32.gmra.mrb[0].mxu0 %v10136
    %v10204 = vpop.f32.mrb[0].mxu0
    %v10205 = vadd.f32 %v86, %v10204
    %v10206 = vpop.f32.mrb[0].mxu0
    %10207 = vdwg.mxu0
    %v10208 = vstv %s9094
    %v10209 = vmul.f32 %v10208, %v10205
    %v10210 = vadd.f32 %v9090, %v10209
    %v10212 = vsel %vm93, %v10210, 0
    %10214 = vmatprep.subr.mxu0 0.0
    %10215 = vmatpush1.msra.mxu0 %v57
    %10216 = vmatprep.subr.mxu0 0.0
    %10217 = vmatpush1.msra.mxu0 0.0
    %10218 = vmatprep.subr.mxu0 0.0
    %10219 = vmatpush1.msra.mxu0 0.0
    %10220 = vmatprep.subr.mxu0 0.0
    %10221 = vmatpush1.msra.mxu0 0.0
    %10222 = vmatprep.subr.mxu0 0.0
    %10223 = vmatpush1.msra.mxu0 0.0
    %10224 = vmatprep.subr.mxu0 0.0
    %10225 = vmatpush1.msra.mxu0 0.0
    %10226 = vmatprep.subr.mxu0 0.0
    %10227 = vmatpush1.msra.mxu0 0.0
    %10228 = vmatprep.subr.mxu0 0.0
    %10229 = vmatpush1.msra.mxu0 0.0
    %10230 = vmatprep.subr.mxu0 0.0
    %10231 = vmatpush1.msra.mxu0 0.0
    %10232 = vmatprep.subr.mxu0 0.0
    %10233 = vmatpush1.msra.mxu0 0.0
    %10234 = vmatprep.subr.mxu0 0.0
    %10235 = vmatpush1.msra.mxu0 0.0
    %10236 = vmatprep.subr.mxu0 0.0
    %10237 = vmatpush1.msra.mxu0 0.0
    %10238 = vmatprep.subr.mxu0 0.0
    %10239 = vmatpush1.msra.mxu0 0.0
    %10240 = vmatprep.subr.mxu0 0.0
    %10241 = vmatpush1.msra.mxu0 0.0
    %10242 = vmatprep.subr.mxu0 0.0
    %10243 = vmatpush1.msra.mxu0 0.0
    %10244 = vmatprep.subr.mxu0 0.0
    %10245 = vmatpush1.msra.mxu0 0.0
    %10246 = vmatprep.subr.mxu0 0.0
    %10247 = vmatpush1.msra.mxu0 0.0
    %10248 = vmatprep.subr.mxu0 0.0
    %10249 = vmatpush1.msra.mxu0 0.0
    %10250 = vmatprep.subr.mxu0 0.0
    %10251 = vmatpush1.msra.mxu0 0.0
    %10252 = vmatprep.subr.mxu0 0.0
    %10253 = vmatpush1.msra.mxu0 0.0
    %10254 = vmatprep.subr.mxu0 0.0
    %10255 = vmatpush1.msra.mxu0 0.0
    %10256 = vmatprep.subr.mxu0 0.0
    %10257 = vmatpush1.msra.mxu0 0.0
    %10258 = vmatprep.subr.mxu0 0.0
    %10259 = vmatpush1.msra.mxu0 0.0
    %10260 = vmatprep.subr.mxu0 0.0
    %10261 = vmatpush1.msra.mxu0 0.0
    %10262 = vmatprep.subr.mxu0 0.0
    %10263 = vmatpush1.msra.mxu0 0.0
    %10264 = vmatprep.subr.mxu0 0.0
    %10265 = vmatpush1.msra.mxu0 0.0
    %10266 = vmatprep.subr.mxu0 0.0
    %10267 = vmatpush1.msra.mxu0 0.0
    %10268 = vmatprep.subr.mxu0 0.0
    %10269 = vmatpush1.msra.mxu0 0.0
    %10270 = vmatprep.subr.mxu0 0.0
    %10271 = vmatpush1.msra.mxu0 0.0
    %10272 = vmatprep.subr.mxu0 0.0
    %10273 = vmatpush1.msra.mxu0 0.0
    %10274 = vmatprep.subr.mxu0 0.0
    %10275 = vmatpush1.msra.mxu0 0.0
    %10276 = vmatprep.subr.mxu0 0.0
    %10277 = vmatpush1.msra.mxu0 0.0
    %10278 = vmatprep.mubr.f32.mxu0 0.0
    %10279 = vmatmul.mubr.f32.gmra.mrb[0].mxu0 %v10212
    %v10280 = vpop.f32.mrb[0].mxu0
    %v10281 = vadd.f32 %v58, %v10280
    %v10282 = vpop.f32.mrb[0].mxu0
    %10283 = vdwg.mxu0
    %v10284 = vtanh.pop %v10281
    %v10286 = vsel %vm168, %v10284, 0
    %10288 = vmatprep.subr.mxu0 0.0
    %10289 = vmatpush1.msra.mxu0 %v59
    %10290 = vmatprep.subr.mxu0 0.0
    %10291 = vmatpush1.msra.mxu0 %v60
    %10292 = vmatprep.subr.mxu0 0.0
    %10293 = vmatpush1.msra.mxu0 %v61
    %10294 = vmatprep.subr.mxu0 0.0
    %10295 = vmatpush1.msra.mxu0 %v62
    %10296 = vmatprep.subr.mxu0 0.0
    %10297 = vmatpush1.msra.mxu0 %v63
    %10298 = vmatprep.subr.mxu0 0.0
    %10299 = vmatpush1.msra.mxu0 0.0
    %10300 = vmatprep.subr.mxu0 0.0
    %10301 = vmatpush1.msra.mxu0 0.0
    %10302 = vmatprep.subr.mxu0 0.0
    %10303 = vmatpush1.msra.mxu0 0.0
    %10304 = vmatprep.subr.mxu0 0.0
    %10305 = vmatpush1.msra.mxu0 0.0
    %10306 = vmatprep.subr.mxu0 0.0
    %10307 = vmatpush1.msra.mxu0 0.0
    %10308 = vmatprep.subr.mxu0 0.0
    %10309 = vmatpush1.msra.mxu0 0.0
    %10310 = vmatprep.subr.mxu0 0.0
    %10311 = vmatpush1.msra.mxu0 0.0
    %10312 = vmatprep.subr.mxu0 0.0
    %10313 = vmatpush1.msra.mxu0 0.0
    %10314 = vmatprep.subr.mxu0 0.0
    %10315 = vmatpush1.msra.mxu0 0.0
    %10316 = vmatprep.subr.mxu0 0.0
    %10317 = vmatpush1.msra.mxu0 0.0
    %10318 = vmatprep.subr.mxu0 0.0
    %10319 = vmatpush1.msra.mxu0 0.0
    %10320 = vmatprep.subr.mxu0 0.0
    %10321 = vmatpush1.msra.mxu0 0.0
    %10322 = vmatprep.subr.mxu0 0.0
    %10323 = vmatpush1.msra.mxu0 0.0
    %10324 = vmatprep.subr.mxu0 0.0
    %10325 = vmatpush1.msra.mxu0 0.0
    %10326 = vmatprep.subr.mxu0 0.0
    %10327 = vmatpush1.msra.mxu0 0.0
    %10328 = vmatprep.subr.mxu0 0.0
    %10329 = vmatpush1.msra.mxu0 0.0
    %10330 = vmatprep.subr.mxu0 0.0
    %10331 = vmatpush1.msra.mxu0 0.0
    %10332 = vmatprep.subr.mxu0 0.0
    %10333 = vmatpush1.msra.mxu0 0.0
    %10334 = vmatprep.subr.mxu0 0.0
    %10335 = vmatpush1.msra.mxu0 0.0
    %10336 = vmatprep.subr.mxu0 0.0
    %10337 = vmatpush1.msra.mxu0 0.0
    %10338 = vmatprep.subr.mxu0 0.0
    %10339 = vmatpush1.msra.mxu0 0.0
    %10340 = vmatprep.subr.mxu0 0.0
    %10341 = vmatpush1.msra.mxu0 0.0
    %10342 = vmatprep.subr.mxu0 0.0
    %10343 = vmatpush1.msra.mxu0 0.0
    %10344 = vmatprep.subr.mxu0 0.0
    %10345 = vmatpush1.msra.mxu0 0.0
    %10346 = vmatprep.subr.mxu0 0.0
    %10347 = vmatpush1.msra.mxu0 0.0
    %10348 = vmatprep.subr.mxu0 0.0
    %10349 = vmatpush1.msra.mxu0 0.0
    %10350 = vmatprep.subr.mxu0 0.0
    %10351 = vmatpush1.msra.mxu0 0.0
    %10352 = vmatprep.mubr.f32.mxu0 0.0
    %10353 = vmatmul.mubr.f32.gmra.mrb[0].mxu0 %v10286
    %v10354 = vpop.f32.mrb[0].mxu0
    %v10355 = vadd.f32 %v76, %v10354
    %v10356 = vpop.f32.mrb[0].mxu0
    %10357 = vdwg.mxu0
    %v10358 = vtanh.pop %v10355
    %v10360 = vsel %vm168, %v10358, 0
    %10362 = vmatprep.subr.mxu0 0.0
    %10363 = vmatpush1.msra.mxu0 %v65
    %10364 = vmatprep.subr.mxu0 0.0
    %10365 = vmatpush1.msra.mxu0 %v66
    %10366 = vmatprep.subr.mxu0 0.0
    %10367 = vmatpush1.msra.mxu0 %v67
    %10368 = vmatprep.subr.mxu0 0.0
    %10369 = vmatpush1.msra.mxu0 %v68
    %10370 = vmatprep.subr.mxu0 0.0
    %10371 = vmatpush1.msra.mxu0 %v69
    %10372 = vmatprep.subr.mxu0 0.0
    %10373 = vmatpush1.msra.mxu0 0.0
    %10374 = vmatprep.subr.mxu0 0.0
    %10375 = vmatpush1.msra.mxu0 0.0
    %10376 = vmatprep.subr.mxu0 0.0
    %10377 = vmatpush1.msra.mxu0 0.0
    %10378 = vmatprep.subr.mxu0 0.0
    %10379 = vmatpush1.msra.mxu0 0.0
    %10380 = vmatprep.subr.mxu0 0.0
    %10381 = vmatpush1.msra.mxu0 0.0
    %10382 = vmatprep.subr.mxu0 0.0
    %10383 = vmatpush1.msra.mxu0 0.0
    %10384 = vmatprep.subr.mxu0 0.0
    %10385 = vmatpush1.msra.mxu0 0.0
    %10386 = vmatprep.subr.mxu0 0.0
    %10387 = vmatpush1.msra.mxu0 0.0
    %10388 = vmatprep.subr.mxu0 0.0
    %10389 = vmatpush1.msra.mxu0 0.0
    %10390 = vmatprep.subr.mxu0 0.0
    %10391 = vmatpush1.msra.mxu0 0.0
    %10392 = vmatprep.subr.mxu0 0.0
    %10393 = vmatpush1.msra.mxu0 0.0
    %10394 = vmatprep.subr.mxu0 0.0
    %10395 = vmatpush1.msra.mxu0 0.0
    %10396 = vmatprep.subr.mxu0 0.0
    %10397 = vmatpush1.msra.mxu0 0.0
    %10398 = vmatprep.subr.mxu0 0.0
    %10399 = vmatpush1.msra.mxu0 0.0
    %10400 = vmatprep.subr.mxu0 0.0
    %10401 = vmatpush1.msra.mxu0 0.0
    %10402 = vmatprep.subr.mxu0 0.0
    %10403 = vmatpush1.msra.mxu0 0.0
    %10404 = vmatprep.subr.mxu0 0.0
    %10405 = vmatpush1.msra.mxu0 0.0
    %10406 = vmatprep.subr.mxu0 0.0
    %10407 = vmatpush1.msra.mxu0 0.0
    %10408 = vmatprep.subr.mxu0 0.0
    %10409 = vmatpush1.msra.mxu0 0.0
    %10410 = vmatprep.subr.mxu0 0.0
    %10411 = vmatpush1.msra.mxu0 0.0
    %10412 = vmatprep.subr.mxu0 0.0
    %10413 = vmatpush1.msra.mxu0 0.0
    %10414 = vmatprep.subr.mxu0 0.0
    %10415 = vmatpush1.msra.mxu0 0.0
    %10416 = vmatprep.subr.mxu0 0.0
    %10417 = vmatpush1.msra.mxu0 0.0
    %10418 = vmatprep.subr.mxu0 0.0
    %10419 = vmatpush1.msra.mxu0 0.0
    %10420 = vmatprep.subr.mxu0 0.0
    %10421 = vmatpush1.msra.mxu0 0.0
    %10422 = vmatprep.subr.mxu0 0.0
    %10423 = vmatpush1.msra.mxu0 0.0
    %10424 = vmatprep.subr.mxu0 0.0
    %10425 = vmatpush1.msra.mxu0 0.0
    %10426 = vmatprep.mubr.f32.mxu0 0.0
    %10427 = vmatmul.mubr.f32.gmra.mrb[0].mxu0 %v10360
    %v10428 = vpop.f32.mrb[0].mxu0
    %v10429 = vadd.f32 %v78, %v10428
    %v10430 = vpop.f32.mrb[0].mxu0
    %10431 = vdwg.mxu0
    %v10432 = vtanh.pop %v10429
    %v10434 = vsel %vm168, %v10432, 0
    %10436 = vmatprep.subr.mxu0 0.0
    %10437 = vmatpush1.msra.mxu0 %v71
    %10438 = vmatprep.subr.mxu0 0.0
    %10439 = vmatpush1.msra.mxu0 %v72
    %10440 = vmatprep.subr.mxu0 0.0
    %10441 = vmatpush1.msra.mxu0 %v73
    %10442 = vmatprep.subr.mxu0 0.0
    %10443 = vmatpush1.msra.mxu0 %v74
    %10444 = vmatprep.subr.mxu0 0.0
    %10445 = vmatpush1.msra.mxu0 %v75
    %10446 = vmatprep.subr.mxu0 0.0
    %10447 = vmatpush1.msra.mxu0 0.0
    %10448 = vmatprep.subr.mxu0 0.0
    %10449 = vmatpush1.msra.mxu0 0.0
    %10450 = vmatprep.subr.mxu0 0.0
    %10451 = vmatpush1.msra.mxu0 0.0
    %10452 = vmatprep.subr.mxu0 0.0
    %10453 = vmatpush1.msra.mxu0 0.0
    %10454 = vmatprep.subr.mxu0 0.0
    %10455 = vmatpush1.msra.mxu0 0.0
    %10456 = vmatprep.subr.mxu0 0.0
    %10457 = vmatpush1.msra.mxu0 0.0
    %10458 = vmatprep.subr.mxu0 0.0
    %10459 = vmatpush1.msra.mxu0 0.0
    %10460 = vmatprep.subr.mxu0 0.0
    %10461 = vmatpush1.msra.mxu0 0.0
    %10462 = vmatprep.subr.mxu0 0.0
    %10463 = vmatpush1.msra.mxu0 0.0
    %10464 = vmatprep.subr.mxu0 0.0
    %10465 = vmatpush1.msra.mxu0 0.0
    %10466 = vmatprep.subr.mxu0 0.0
    %10467 = vmatpush1.msra.mxu0 0.0
    %10468 = vmatprep.subr.mxu0 0.0
    %10469 = vmatpush1.msra.mxu0 0.0
    %10470 = vmatprep.subr.mxu0 0.0
    %10471 = vmatpush1.msra.mxu0 0.0
    %10472 = vmatprep.subr.mxu0 0.0
    %10473 = vmatpush1.msra.mxu0 0.0
    %10474 = vmatprep.subr.mxu0 0.0
    %10475 = vmatpush1.msra.mxu0 0.0
    %10476 = vmatprep.subr.mxu0 0.0
    %10477 = vmatpush1.msra.mxu0 0.0
    %10478 = vmatprep.subr.mxu0 0.0
    %10479 = vmatpush1.msra.mxu0 0.0
    %10480 = vmatprep.subr.mxu0 0.0
    %10481 = vmatpush1.msra.mxu0 0.0
    %10482 = vmatprep.subr.mxu0 0.0
    %10483 = vmatpush1.msra.mxu0 0.0
    %10484 = vmatprep.subr.mxu0 0.0
    %10485 = vmatpush1.msra.mxu0 0.0
    %10486 = vmatprep.subr.mxu0 0.0
    %10487 = vmatpush1.msra.mxu0 0.0
    %10488 = vmatprep.subr.mxu0 0.0
    %10489 = vmatpush1.msra.mxu0 0.0
    %10490 = vmatprep.subr.mxu0 0.0
    %10491 = vmatpush1.msra.mxu0 0.0
    %10492 = vmatprep.subr.mxu0 0.0
    %10493 = vmatpush1.msra.mxu0 0.0
    %10494 = vmatprep.subr.mxu0 0.0
    %10495 = vmatpush1.msra.mxu0 0.0
    %10496 = vmatprep.subr.mxu0 0.0
    %10497 = vmatpush1.msra.mxu0 0.0
    %10498 = vmatprep.subr.mxu0 0.0
    %10499 = vmatpush1.msra.mxu0 0.0
    %10500 = vmatprep.mubr.f32.mxu0 0.0
    %10501 = vmatmul.mubr.f32.gmra.mrb[0].mxu0 %v10434
    %v10502 = vpop.f32.mrb[0].mxu0
    %v10503 = vadd.f32 %v80, %v10502
    %v10504 = vpop.f32.mrb[0].mxu0
    %10505 = vdwg.mxu0
    %v10506 = vtanh.pop %v10503
    %v10508 = vsel %vm168, %v10506, 0
    %10510 = vmatprep.subr.mxu0 0.0
    %10511 = vmatpush1.msra.mxu0 %v81
    %10512 = vmatprep.subr.mxu0 0.0
    %10513 = vmatpush1.msra.mxu0 %v82
    %10514 = vmatprep.subr.mxu0 0.0
    %10515 = vmatpush1.msra.mxu0 %v83
    %10516 = vmatprep.subr.mxu0 0.0
    %10517 = vmatpush1.msra.mxu0 %v84
    %10518 = vmatprep.subr.mxu0 0.0
    %10519 = vmatpush1.msra.mxu0 %v85
    %10520 = vmatprep.subr.mxu0 0.0
    %10521 = vmatpush1.msra.mxu0 0.0
    %10522 = vmatprep.subr.mxu0 0.0
    %10523 = vmatpush1.msra.mxu0 0.0
    %10524 = vmatprep.subr.mxu0 0.0
    %10525 = vmatpush1.msra.mxu0 0.0
    %10526 = vmatprep.subr.mxu0 0.0
    %10527 = vmatpush1.msra.mxu0 0.0
    %10528 = vmatprep.subr.mxu0 0.0
    %10529 = vmatpush1.msra.mxu0 0.0
    %10530 = vmatprep.subr.mxu0 0.0
    %10531 = vmatpush1.msra.mxu0 0.0
    %10532 = vmatprep.subr.mxu0 0.0
    %10533 = vmatpush1.msra.mxu0 0.0
    %10534 = vmatprep.subr.mxu0 0.0
    %10535 = vmatpush1.msra.mxu0 0.0
    %10536 = vmatprep.subr.mxu0 0.0
    %10537 = vmatpush1.msra.mxu0 0.0
    %10538 = vmatprep.subr.mxu0 0.0
    %10539 = vmatpush1.msra.mxu0 0.0
    %10540 = vmatprep.subr.mxu0 0.0
    %10541 = vmatpush1.msra.mxu0 0.0
    %10542 = vmatprep.subr.mxu0 0.0
    %10543 = vmatpush1.msra.mxu0 0.0
    %10544 = vmatprep.subr.mxu0 0.0
    %10545 = vmatpush1.msra.mxu0 0.0
    %10546 = vmatprep.subr.mxu0 0.0
    %10547 = vmatpush1.msra.mxu0 0.0
    %10548 = vmatprep.subr.mxu0 0.0
    %10549 = vmatpush1.msra.mxu0 0.0
    %10550 = vmatprep.subr.mxu0 0.0
    %10551 = vmatpush1.msra.mxu0 0.0
    %10552 = vmatprep.subr.mxu0 0.0
    %10553 = vmatpush1.msra.mxu0 0.0
    %10554 = vmatprep.subr.mxu0 0.0
    %10555 = vmatpush1.msra.mxu0 0.0
    %10556 = vmatprep.subr.mxu0 0.0
    %10557 = vmatpush1.msra.mxu0 0.0
    %10558 = vmatprep.subr.mxu0 0.0
    %10559 = vmatpush1.msra.mxu0 0.0
    %10560 = vmatprep.subr.mxu0 0.0
    %10561 = vmatpush1.msra.mxu0 0.0
    %10562 = vmatprep.subr.mxu0 0.0
    %10563 = vmatpush1.msra.mxu0 0.0
    %10564 = vmatprep.subr.mxu0 0.0
    %10565 = vmatpush1.msra.mxu0 0.0
    %10566 = vmatprep.subr.mxu0 0.0
    %10567 = vmatpush1.msra.mxu0 0.0
    %10568 = vmatprep.subr.mxu0 0.0
    %10569 = vmatpush1.msra.mxu0 0.0
    %10570 = vmatprep.subr.mxu0 0.0
    %10571 = vmatpush1.msra.mxu0 0.0
    %10572 = vmatprep.subr.mxu0 0.0
    %10573 = vmatpush1.msra.mxu0 0.0
    %10574 = vmatprep.mubr.f32.mxu0 0.0
    %10575 = vmatmul.mubr.f32.gmra.mrb[0].mxu0 %v10508
    %v10576 = vpop.f32.mrb[0].mxu0
    %v10577 = vadd.f32 %v86, %v10576
    %v10578 = vpop.f32.mrb[0].mxu0
    %10579 = vdwg.mxu0
    %v10580 = vrcp.pop 6.0
    %s10581 = vtos %v10580
    %s10582 = smul.f32 %s9094, %s10581
    %v10583 = vmul.f32 %v9834, 2.0
    %v10584 = vadd.f32 %v9461, %v10583
    %v10585 = vmul.f32 %v10205, 2.0
    %v10586 = vadd.f32 %v10584, %v10585
    %v10587 = vadd.f32 %v10586, %v10577
    %v10588 = vstv %s10582
    %v10589 = vmul.f32 %v10588, %v10587
    %v10590 = vadd.f32 %v9090, %v10589
    %10591 = vst.msk [vmem:[#allocation7 + $0x7] sm:$0x1] %vm88, %v10590
    // Predicated region
    $region42: #{tpu_custom_call.1} parent=1 // pred_check
      _
    $region43: #{tpu_custom_call.1} parent=1 // pred_check_branch
      %10593 = sbr.rel (0) target = $region45
    $region44: #{tpu_custom_call.1} parent=1 // pred_region
      %s10595 = ssub.s32 128, 128
      %10596 = vsyncadd [#allocation4], %s10595
      %s10598 = sshll.u32 [#allocation7], 4
      %s10599 = int_to_ptr.vmem [resolvable:$true] %s10598
      %10601 = dma.vmem_to_hbm [thread:$0]  %s10599, 128, %s8, [#allocation4]
    $region45: #{tpu_custom_call.1} parent=1 // pred_fallthru
      _
    // Predicated region
    $region46: #{tpu_custom_call.1} parent=1 // pred_check
      _
    $region47: #{tpu_custom_call.1} parent=1 // pred_check_branch
      %10603 = sbr.rel (0) target = $region49
    $region48: #{tpu_custom_call.1} parent=1 // pred_region
      %10604 = dma.done [#allocation4], 128
    $region49: #{tpu_custom_call.1} parent=1 // pred_fallthru
      _
    %10605 = vsyncpa [#allocation3], 1
    %10606 = vsyncpa [#allocation4], 1
    %10607 = vsyncpa [#allocation5], 1

</llo_original>
